<compile_context>
chip_gen: v5e
topology: v5e:2x2
jax: 0.10.0
libtpu: 0.0.40
codegen_flags: <defaults>
</compile_context>

<pallas_src>
import functools

import numpy as np
import jax
import jax.numpy as jnp
from jax import lax
from jax.experimental import pallas as pl
from jax.experimental.pallas import tpu as pltpu

PAD = 9                                  # max halo: kernel 7, dilation 3 -> 9
BRANCHES = ((3, 1), (5, 2), (7, 3))      # (taps K, dilation) per direction
# Union of tap offsets over the three branches (13 distinct offsets).
OFFSETS = (-9, -6, -4, -3, -2, -1, 0, 1, 2, 3, 4, 6, 9)


def _fs_kernel(x_ref, wd_ref, fc1_ref, fc2_ref, w12_ref, bias_ref, o_ref,
               xv_s, xh_s, *, H, W, C, C_out):
    HW = H * W
    C3 = 3 * C

    x = x_ref[0]                                         # (H, W, C) bf16

    # ---- zero-padded per-direction sliding copies in VMEM scratch ----------
    # (pad + the H/W transpose for the horizontal direction live here, not in
    #  HBM; halos rewritten every step so megacore sharding stays safe.)
    zpad_v = jnp.zeros((PAD, W, C), jnp.bfloat16)
    xv_s[PAD:PAD + H] = x
    xv_s[0:PAD] = zpad_v
    xv_s[PAD + H:PAD + H + PAD] = zpad_v

    zpad_h = jnp.zeros((PAD, H, C), jnp.bfloat16)
    xh_s[PAD:PAD + W] = pltpu.einshape(
        "hwc->whc", x.astype(jnp.float32)).astype(jnp.bfloat16)   # (W, H, C)
    xh_s[0:PAD] = zpad_h
    xh_s[PAD + W:PAD + W + PAD] = zpad_h

    def union_slab(xp_s, n_slide, n_fix):
        # All 13 tap views slide the untiled leading axis -> aligned slices.
        taps = [xp_s[PAD + off:PAD + off + n_slide].reshape(n_slide * n_fix, C)
                for off in OFFSETS]
        return jnp.concatenate(taps, axis=-1)            # (HW, 13C) bf16

    slab_v = union_slab(xv_s, H, W)                      # rows in (h, w) order
    slab_h = union_slab(xh_s, W, H)                      # rows in (w, h) order

    # ---- six dilated convs: ONE (HW,13C)@(13C,4C) dot per direction --------
    # wd[0] (horizontal): cols [0:3C] = 3 branch weights, cols [3C:4C] = 0.
    # wd[1] (vertical):   cols [0:3C] = 3 branch weights, cols [3C:4C] = I at
    #                     offset 0 -> the residual x passes through for free.
    yh = jnp.dot(slab_h, wd_ref[0], preferred_element_type=jnp.float32)  # (HW,4C)
    yv = jnp.dot(slab_v, wd_ref[1], preferred_element_type=jnp.float32)  # (HW,4C)

    # ---- FeatureSelection SE gate ------------------------------------------
    # Global average pool via ones-vector MXU dots on the slabs (the row-sum
    # commutes with the conv matmul); the 1/(H*W) scale is folded into fc1.
    ones_hw = jnp.ones((1, HW), jnp.bfloat16)
    psl_h = jnp.dot(ones_hw, slab_h, preferred_element_type=jnp.float32)  # (1,13C)
    psl_v = jnp.dot(ones_hw, slab_v, preferred_element_type=jnp.float32)
    ph = jnp.dot(psl_h.astype(jnp.bfloat16), wd_ref[0],
                 preferred_element_type=jnp.float32)                      # (1,4C)
    pv = jnp.dot(psl_v.astype(jnp.bfloat16), wd_ref[1],
                 preferred_element_type=jnp.float32)                      # (1,4C)
    # Extra column blocks (zeros / residual sums) hit zero rows of fc1_ext.
    pooled = jnp.concatenate([ph, pv], axis=-1)                           # (1,8C)
    hid_act = jnp.maximum(
        jnp.dot(pooled, fc1_ref[...], preferred_element_type=jnp.float32), 0.0)
    logits = jnp.dot(hid_act, fc2_ref[...], preferred_element_type=jnp.float32)
    gates = 1.0 / (1.0 + jnp.exp(-logits))                                # (1,6C) f32

    # ---- gate the branch outputs (f32 VALU; residual columns keep gate 1) --
    ones_c = jnp.ones((1, C), jnp.float32)
    sh = jnp.concatenate([gates[:, :C3], ones_c], axis=-1)                # (1,4C)
    sv = jnp.concatenate([gates[:, C3:], ones_c], axis=-1)                # (1,4C)
    yh_g = (yh * sh).astype(jnp.bfloat16)
    yv_g = (yv * sv).astype(jnp.bfloat16)

    # ---- fused 1x1 convs (+ residual + BN scale, pre-folded into w12) ------
    oh = jnp.dot(yh_g, w12_ref[0], preferred_element_type=jnp.float32)  # (HW,C_out) (w,h)
    ov = jnp.dot(yv_g, w12_ref[1], preferred_element_type=jnp.float32)  # (HW,C_out) (h,w)

    ov_t = pltpu.einshape("hwc->whc", ov.reshape(H, W, C_out))          # (W,H,C_out)
    out_t = jnp.maximum(oh.reshape(W, H, C_out) + ov_t
                        + bias_ref[...].reshape(1, 1, C_out), 0.0)      # BN bias + ReLU

    # ---- lane-dense store: output block is (1, H, W*C_out) ------------------
    for w in range(W):
        o_ref[0, :, w * C_out:(w + 1) * C_out] = out_t[w]


def feature_selection_forward(x_nchw, params):
    """Forward pass. x_nchw: (B, C, H, W) float32 -> (B, C_out, H, W)."""
    B, C, H, W = x_nchw.shape
    assert H % 8 == 0 and W % 8 == 0, "H/W must be sublane-aligned (multiple of 8)"
    C_out = params["w2"].shape[1]
    hid = params["fc1"].shape[1]

    # Single wrapper-side prep op: NCHW -> NHWC + bf16 cast.  Pad, halo and the
    # horizontal-direction transpose are all built in-kernel (no xh in HBM).
    x = jnp.transpose(x_nchw, (0, 2, 3, 1)).astype(jnp.bfloat16)

    # Fold BN (eval, running stats) into conv2; pre-fold conv1 @ conv2.
    eps = 1e-5
    scale = params["bn_gamma"] / jnp.sqrt(params["bn_var"] + eps)
    bias = (params["bn_beta"] - params["bn_mean"] * scale).reshape(1, C_out)
    w2s = params["w2"] * scale[None, :]                       # (C, C_out) f32
    w12 = params["w1"] @ w2s                                  # (6C, C_out) f32

    # Union-offset block weights, one per direction: (13C, 4C), bf16.
    def pack_dir(keys, with_identity):
        wd = jnp.zeros((len(OFFSETS) * C, 4 * C), jnp.float32)
        for bi, ((K, dil), name) in enumerate(zip(BRANCHES, keys)):
            p = (K - 1) // 2 * dil
            for t in range(K):
                j = OFFSETS.index(t * dil - p)
                wd = wd.at[j * C:(j + 1) * C,
                           bi * C:(bi + 1) * C].set(params[name][t])
        if with_identity:                 # residual x passthrough at offset 0
            j0 = OFFSETS.index(0)
            wd = wd.at[j0 * C:(j0 + 1) * C,
                       3 * C:4 * C].set(jnp.eye(C, dtype=jnp.float32))
        return wd

    wd = jnp.stack([pack_dir(("wh2", "wh3", "wh4"), False),
                    pack_dir(("wv2", "wv3", "wv4"), True)]).astype(jnp.bfloat16)

    # Packed 1x1 weights per direction (4C, C_out): vertical gets w2s (residual
    # columns), horizontal gets zeros (its extra columns are zero anyway).
    zc = jnp.zeros((C, C_out), jnp.float32)
    w12p = jnp.stack([jnp.concatenate([w12[:3 * C], zc], axis=0),
                      jnp.concatenate([w12[3 * C:], w2s], axis=0)]
                     ).astype(jnp.bfloat16)                   # (2, 4C, C_out)

    # fc1 with 1/(H*W) folded in, padded with zero rows for the two unused
    # column blocks of the pooled vector; fc2 unchanged.
    fc1s = params["fc1"].astype(jnp.float32) / float(H * W)
    zh = jnp.zeros((C, hid), jnp.float32)
    fc1_ext = jnp.concatenate([fc1s[:3 * C], zh, fc1s[3 * C:], zh], axis=0)
    fc2 = params["fc2"].astype(jnp.float32)

    consts = [wd, fc1_ext, fc2, w12p, bias]

    kernel = functools.partial(_fs_kernel, H=H, W=W, C=C, C_out=C_out)

    def const_spec(arr):
        n = arr.ndim
        # Constant index_map -> block stays VMEM-resident, no re-DMA per step.
        return pl.BlockSpec(arr.shape, lambda b, _n=n: (0,) * _n)

    # Shape-derived VMEM budget (2x headroom), clamped to stay valid on v7x's
    # 64 MiB VMEM as well as v5e/v6e's 128 MiB.
    bf2, f4 = 2, 4
    est = (2 * len(OFFSETS) * H * W * C * bf2            # two union slabs
           + 2 * H * W * 4 * C * (f4 + bf2)              # yh/yv f32 + gated bf16
           + (H + W + 4 * PAD) * max(H, W) * C * bf2     # padded scratch copies
           + 4 * H * W * C_out * f4                      # oh/ov/out + out block
           + 4 * H * W * C * bf2                         # x block double buffer
           + 2 * int(wd.size) * bf2 + 2 * int(w12p.size) * bf2
           + 2 * int(fc1_ext.size) * f4 + 2 * int(fc2.size) * f4
           + 2 * int(bias.size) * f4)
    vmem_limit = int(min(max(2 * est, 32 * 1024 * 1024), 64 * 1024 * 1024))

    out = pl.pallas_call(
        kernel,
        out_shape=jax.ShapeDtypeStruct((B, H, W * C_out), jnp.float32),
        grid=(B,),
        in_specs=[pl.BlockSpec((1, H, W, C), lambda b: (b, 0, 0, 0))]
                 + [const_spec(a) for a in consts],
        out_specs=pl.BlockSpec((1, H, W * C_out), lambda b: (b, 0, 0)),
        scratch_shapes=[pltpu.VMEM((H + 2 * PAD, W, C), jnp.bfloat16),
                        pltpu.VMEM((W + 2 * PAD, H, C), jnp.bfloat16)],
        compiler_params=pltpu.CompilerParams(
            dimension_semantics=("parallel",),
            vmem_limit_bytes=vmem_limit),
    )(x, *consts)

    out = out.reshape(B, H, W, C_out)
    return jnp.transpose(out, (0, 3, 1, 2))               # back to NCHW


def init_params(key, in_channel, out_channel, reduction=16):
    """Deterministic synthetic parameters (shapes from the module __init__)."""
    C = in_channel
    hid = (6 * C) // reduction
    ks = jax.random.split(key, 10)

    def w(k, shape, fan_in):
        return jax.random.normal(k, shape, jnp.float32) / jnp.sqrt(float(fan_in))

    return {
        "wh2": w(ks[0], (3, C, C), 3 * C),   # (1,3) dil 1
        "wh3": w(ks[1], (5, C, C), 5 * C),   # (1,5) dil 2
        "wh4": w(ks[2], (7, C, C), 7 * C),   # (1,7) dil 3
        "wv2": w(ks[3], (3, C, C), 3 * C),   # (3,1) dil 1
        "wv3": w(ks[4], (5, C, C), 5 * C),   # (5,1) dil 2
        "wv4": w(ks[5], (7, C, C), 7 * C),   # (7,1) dil 3
        "fc1": w(ks[6], (6 * C, hid), 6 * C),        # SE fc1 (no bias)
        "fc2": w(ks[7], (hid, 6 * C), hid),          # SE fc2 (no bias)
        "w1": w(ks[8], (6 * C, C), 6 * C),           # conv1 1x1
        "w2": w(ks[9], (C, out_channel), C),         # conv2 1x1
        "bn_gamma": jnp.ones((out_channel,), jnp.float32),
        "bn_beta": jnp.zeros((out_channel,), jnp.float32),
        "bn_mean": jnp.zeros((out_channel,), jnp.float32),
        "bn_var": jnp.ones((out_channel,), jnp.float32),
    }


def ref_forward(x_nchw, params):
    """Pure-JAX f32 reference (NHWC, lax conv) for correctness checking."""
    x = jnp.transpose(x_nchw, (0, 2, 3, 1)).astype(jnp.float32)
    C_out = params["w2"].shape[1]

    def conv_h(w, dil):
        K = w.shape[0]
        p = (K - 1) // 2 * dil
        kern = w[None]                                   # (1, K, Cin, Cout) HWIO
        return lax.conv_general_dilated(
            x, kern, (1, 1), ((0, 0), (p, p)), rhs_dilation=(1, dil),
            dimension_numbers=("NHWC", "HWIO", "NHWC"))

    def conv_v(w, dil):
        K = w.shape[0]
        p = (K - 1) // 2 * dil
        kern = w[:, None]                                # (K, 1, Cin, Cout)
        return lax.conv_general_dilated(
            x, kern, (1, 1), ((p, p), (0, 0)), rhs_dilation=(dil, 1),
            dimension_numbers=("NHWC", "HWIO", "NHWC"))

    ys = [conv_h(params["wh2"], 1), conv_h(params["wh3"], 2), conv_h(params["wh4"], 3),
          conv_v(params["wv2"], 1), conv_v(params["wv3"], 2), conv_v(params["wv4"], 3)]
    x5 = jnp.concatenate(ys, axis=-1)                     # (B, H, W, 6C)

    pooled = x5.mean(axis=(1, 2))                         # (B, 6C)
    h = jnp.maximum(pooled @ params["fc1"], 0.0)
    s = 1.0 / (1.0 + jnp.exp(-(h @ params["fc2"])))       # (B, 6C)
    x5 = x5 * s[:, None, None, :]

    z = jnp.einsum("bhwc,cd->bhwd", x5, params["w1"]) + x
    out = jnp.einsum("bhwc,cd->bhwd", z, params["w2"])

    eps = 1e-5
    scale = params["bn_gamma"] / jnp.sqrt(params["bn_var"] + eps)
    bias = params["bn_beta"] - params["bn_mean"] * scale
    out = out * scale.reshape(1, 1, 1, C_out) + bias.reshape(1, 1, 1, C_out)
    out = jnp.maximum(out, 0.0)
    return jnp.transpose(out, (0, 3, 1, 2))


if __name__ == "__main__":
    key = jax.random.PRNGKey(0)
    k_x, k_p = jax.random.split(key)

    B, C, H, W = 2, 32, 16, 16
    C_out = 16

    x = jax.random.normal(k_x, (B, C, H, W), jnp.float32)
    params = init_params(k_p, C, C_out, reduction=16)

    out = jax.block_until_ready(feature_selection_forward(x, params))
    assert out.shape == (B, C_out, H, W), out.shape

    ref = jax.block_until_ready(ref_forward(x, params))
    # bf16 MXU operands -> slightly looser tolerance than the pure-f32 reference.
    np.testing.assert_allclose(np.asarray(out), np.asarray(ref),
                               rtol=5e-2, atol=5e-2)
    print("KERNEL_OK")
</pallas_src>

<mosaic_0001>
module attributes {stable_mosaic.version = 11 : i64} {
  func.func @_fs_kernel(%arg0: i32, %arg1: memref<1x16x16x32xbf16, #tpu.memory_space<vmem>>, %arg2: memref<2x416x128xbf16, #tpu.memory_space<vmem>>, %arg3: memref<256x12xf32, #tpu.memory_space<vmem>>, %arg4: memref<12x192xf32, #tpu.memory_space<vmem>>, %arg5: memref<2x128x16xbf16, #tpu.memory_space<vmem>>, %arg6: memref<1x16xf32, #tpu.memory_space<vmem>>, %arg7: memref<1x16x256xf32, #tpu.memory_space<vmem>>, %arg8: memref<34x16x32xbf16, #tpu.memory_space<vmem>>, %arg9: memref<34x16x32xbf16, #tpu.memory_space<vmem>>) attributes {dimension_semantics = [#tpu.dimension_semantics<parallel>], iteration_bounds = array<i64: 2>, scalar_prefetch = 0 : i64, scratch_operands = 2 : i64, tpu.core_type = #tpu.core_type<tc>, window_params = [{transform_indices = @transform_0, window_bounds = array<i64: 1, 16, 16, 32>}, {pipeline_mode = #tpu.pipeline_mode<synchronous>, transform_indices = @transform_1, window_bounds = array<i64: 2, 416, 128>}, {pipeline_mode = #tpu.pipeline_mode<synchronous>, transform_indices = @transform_2, window_bounds = array<i64: 256, 12>}, {pipeline_mode = #tpu.pipeline_mode<synchronous>, transform_indices = @transform_3, window_bounds = array<i64: 12, 192>}, {pipeline_mode = #tpu.pipeline_mode<synchronous>, transform_indices = @transform_4, window_bounds = array<i64: 2, 128, 16>}, {pipeline_mode = #tpu.pipeline_mode<synchronous>, transform_indices = @transform_5, window_bounds = array<i64: 1, 16>}, {transform_indices = @transform_6, window_bounds = array<i64: 1, 16, 256>}]} {
    %c0 = arith.constant 0 : index
    %c0_0 = arith.constant 0 : index
    %c0_1 = arith.constant 0 : index
    %c0_2 = arith.constant 0 : index
    %0 = vector.load %arg1[%c0, %c0_0, %c0_1, %c0_2] : memref<1x16x16x32xbf16, #tpu.memory_space<vmem>>, vector<1x16x16x32xbf16>
    %1 = vector.shape_cast %0 : vector<1x16x16x32xbf16> to vector<16x16x32xbf16>
    %cst = arith.constant 0.000000e+00 : bf16
    %2 = vector.broadcast %cst : bf16 to vector<9x16x32xbf16>
    %c9 = arith.constant 9 : index
    %c0_3 = arith.constant 0 : index
    %c0_4 = arith.constant 0 : index
    %3 = vector.load %arg8[%c9, %c0_3, %c0_4] : memref<34x16x32xbf16, #tpu.memory_space<vmem>>, vector<16x16x32xbf16>
    tpu.vector_store %arg8[%c9, %c0_3, %c0_4], %1 {strides = array<i32>} : memref<34x16x32xbf16, #tpu.memory_space<vmem>>, vector<16x16x32xbf16>,
    %c0_5 = arith.constant 0 : index
    %c0_6 = arith.constant 0 : index
    %c0_7 = arith.constant 0 : index
    %4 = vector.load %arg8[%c0_5, %c0_6, %c0_7] : memref<34x16x32xbf16, #tpu.memory_space<vmem>>, vector<9x16x32xbf16>
    tpu.vector_store %arg8[%c0_5, %c0_6, %c0_7], %2 {strides = array<i32>} : memref<34x16x32xbf16, #tpu.memory_space<vmem>>, vector<9x16x32xbf16>,
    %c25 = arith.constant 25 : index
    %c0_8 = arith.constant 0 : index
    %c0_9 = arith.constant 0 : index
    %5 = vector.load %arg8[%c25, %c0_8, %c0_9] : memref<34x16x32xbf16, #tpu.memory_space<vmem>>, vector<9x16x32xbf16>
    tpu.vector_store %arg8[%c25, %c0_8, %c0_9], %2 {strides = array<i32>} : memref<34x16x32xbf16, #tpu.memory_space<vmem>>, vector<9x16x32xbf16>,
    %cst_10 = arith.constant 0.000000e+00 : bf16
    %6 = vector.broadcast %cst_10 : bf16 to vector<9x16x32xbf16>
    %7 = arith.extf %1 : vector<16x16x32xbf16> to vector<16x16x32xf32>
    %8 = tpu.transpose %7, [1, 0, 2] : vector<16x16x32xf32> -> vector<16x16x32xf32>
    %9 = arith.truncf %8 : vector<16x16x32xf32> to vector<16x16x32xbf16>
    %c9_11 = arith.constant 9 : index
    %c0_12 = arith.constant 0 : index
    %c0_13 = arith.constant 0 : index
    %10 = vector.load %arg9[%c9_11, %c0_12, %c0_13] : memref<34x16x32xbf16, #tpu.memory_space<vmem>>, vector<16x16x32xbf16>
    tpu.vector_store %arg9[%c9_11, %c0_12, %c0_13], %9 {strides = array<i32>} : memref<34x16x32xbf16, #tpu.memory_space<vmem>>, vector<16x16x32xbf16>,
    %c0_14 = arith.constant 0 : index
    %c0_15 = arith.constant 0 : index
    %c0_16 = arith.constant 0 : index
    %11 = vector.load %arg9[%c0_14, %c0_15, %c0_16] : memref<34x16x32xbf16, #tpu.memory_space<vmem>>, vector<9x16x32xbf16>
    tpu.vector_store %arg9[%c0_14, %c0_15, %c0_16], %6 {strides = array<i32>} : memref<34x16x32xbf16, #tpu.memory_space<vmem>>, vector<9x16x32xbf16>,
    %c25_17 = arith.constant 25 : index
    %c0_18 = arith.constant 0 : index
    %c0_19 = arith.constant 0 : index
    %12 = vector.load %arg9[%c25_17, %c0_18, %c0_19] : memref<34x16x32xbf16, #tpu.memory_space<vmem>>, vector<9x16x32xbf16>
    tpu.vector_store %arg9[%c25_17, %c0_18, %c0_19], %6 {strides = array<i32>} : memref<34x16x32xbf16, #tpu.memory_space<vmem>>, vector<9x16x32xbf16>,
    %c0_20 = arith.constant 0 : index
    %c0_21 = arith.constant 0 : index
    %c0_22 = arith.constant 0 : index
    %13 = vector.load %arg8[%c0_20, %c0_21, %c0_22] : memref<34x16x32xbf16, #tpu.memory_space<vmem>>, vector<16x16x32xbf16>
    %14 = vector.shape_cast %13 : vector<16x16x32xbf16> to vector<256x32xbf16>
    %c3 = arith.constant 3 : index
    %c0_23 = arith.constant 0 : index
    %c0_24 = arith.constant 0 : index
    %15 = vector.load %arg8[%c3, %c0_23, %c0_24] : memref<34x16x32xbf16, #tpu.memory_space<vmem>>, vector<16x16x32xbf16>
    %16 = vector.shape_cast %15 : vector<16x16x32xbf16> to vector<256x32xbf16>
    %c5 = arith.constant 5 : index
    %c0_25 = arith.constant 0 : index
    %c0_26 = arith.constant 0 : index
    %17 = vector.load %arg8[%c5, %c0_25, %c0_26] : memref<34x16x32xbf16, #tpu.memory_space<vmem>>, vector<16x16x32xbf16>
    %18 = vector.shape_cast %17 : vector<16x16x32xbf16> to vector<256x32xbf16>
    %c6 = arith.constant 6 : index
    %c0_27 = arith.constant 0 : index
    %c0_28 = arith.constant 0 : index
    %19 = vector.load %arg8[%c6, %c0_27, %c0_28] : memref<34x16x32xbf16, #tpu.memory_space<vmem>>, vector<16x16x32xbf16>
    %20 = vector.shape_cast %19 : vector<16x16x32xbf16> to vector<256x32xbf16>
    %c7 = arith.constant 7 : index
    %c0_29 = arith.constant 0 : index
    %c0_30 = arith.constant 0 : index
    %21 = vector.load %arg8[%c7, %c0_29, %c0_30] : memref<34x16x32xbf16, #tpu.memory_space<vmem>>, vector<16x16x32xbf16>
    %22 = vector.shape_cast %21 : vector<16x16x32xbf16> to vector<256x32xbf16>
    %c8 = arith.constant 8 : index
    %c0_31 = arith.constant 0 : index
    %c0_32 = arith.constant 0 : index
    %23 = vector.load %arg8[%c8, %c0_31, %c0_32] : memref<34x16x32xbf16, #tpu.memory_space<vmem>>, vector<16x16x32xbf16>
    %24 = vector.shape_cast %23 : vector<16x16x32xbf16> to vector<256x32xbf16>
    %c9_33 = arith.constant 9 : index
    %c0_34 = arith.constant 0 : index
    %c0_35 = arith.constant 0 : index
    %25 = vector.load %arg8[%c9_33, %c0_34, %c0_35] : memref<34x16x32xbf16, #tpu.memory_space<vmem>>, vector<16x16x32xbf16>
    %26 = vector.shape_cast %25 : vector<16x16x32xbf16> to vector<256x32xbf16>
    %c10 = arith.constant 10 : index
    %c0_36 = arith.constant 0 : index
    %c0_37 = arith.constant 0 : index
    %27 = vector.load %arg8[%c10, %c0_36, %c0_37] : memref<34x16x32xbf16, #tpu.memory_space<vmem>>, vector<16x16x32xbf16>
    %28 = vector.shape_cast %27 : vector<16x16x32xbf16> to vector<256x32xbf16>
    %c11 = arith.constant 11 : index
    %c0_38 = arith.constant 0 : index
    %c0_39 = arith.constant 0 : index
    %29 = vector.load %arg8[%c11, %c0_38, %c0_39] : memref<34x16x32xbf16, #tpu.memory_space<vmem>>, vector<16x16x32xbf16>
    %30 = vector.shape_cast %29 : vector<16x16x32xbf16> to vector<256x32xbf16>
    %c12 = arith.constant 12 : index
    %c0_40 = arith.constant 0 : index
    %c0_41 = arith.constant 0 : index
    %31 = vector.load %arg8[%c12, %c0_40, %c0_41] : memref<34x16x32xbf16, #tpu.memory_space<vmem>>, vector<16x16x32xbf16>
    %32 = vector.shape_cast %31 : vector<16x16x32xbf16> to vector<256x32xbf16>
    %c13 = arith.constant 13 : index
    %c0_42 = arith.constant 0 : index
    %c0_43 = arith.constant 0 : index
    %33 = vector.load %arg8[%c13, %c0_42, %c0_43] : memref<34x16x32xbf16, #tpu.memory_space<vmem>>, vector<16x16x32xbf16>
    %34 = vector.shape_cast %33 : vector<16x16x32xbf16> to vector<256x32xbf16>
    %c15 = arith.constant 15 : index
    %c0_44 = arith.constant 0 : index
    %c0_45 = arith.constant 0 : index
    %35 = vector.load %arg8[%c15, %c0_44, %c0_45] : memref<34x16x32xbf16, #tpu.memory_space<vmem>>, vector<16x16x32xbf16>
    %36 = vector.shape_cast %35 : vector<16x16x32xbf16> to vector<256x32xbf16>
    %c18 = arith.constant 18 : index
    %c0_46 = arith.constant 0 : index
    %c0_47 = arith.constant 0 : index
    %37 = vector.load %arg8[%c18, %c0_46, %c0_47] : memref<34x16x32xbf16, #tpu.memory_space<vmem>>, vector<16x16x32xbf16>
    %38 = vector.shape_cast %37 : vector<16x16x32xbf16> to vector<256x32xbf16>
    %39 = tpu.concatenate %14, %16, %18, %20, %22, %24, %26, %28, %30, %32, %34, %36, %38 in 1 : vector<256x32xbf16>, vector<256x32xbf16>, vector<256x32xbf16>, vector<256x32xbf16>, vector<256x32xbf16>, vector<256x32xbf16>, vector<256x32xbf16>, vector<256x32xbf16>, vector<256x32xbf16>, vector<256x32xbf16>, vector<256x32xbf16>, vector<256x32xbf16>, vector<256x32xbf16> -> vector<256x416xbf16>
    %c0_48 = arith.constant 0 : index
    %c0_49 = arith.constant 0 : index
    %c0_50 = arith.constant 0 : index
    %40 = vector.load %arg9[%c0_48, %c0_49, %c0_50] : memref<34x16x32xbf16, #tpu.memory_space<vmem>>, vector<16x16x32xbf16>
    %41 = vector.shape_cast %40 : vector<16x16x32xbf16> to vector<256x32xbf16>
    %c3_51 = arith.constant 3 : index
    %c0_52 = arith.constant 0 : index
    %c0_53 = arith.constant 0 : index
    %42 = vector.load %arg9[%c3_51, %c0_52, %c0_53] : memref<34x16x32xbf16, #tpu.memory_space<vmem>>, vector<16x16x32xbf16>
    %43 = vector.shape_cast %42 : vector<16x16x32xbf16> to vector<256x32xbf16>
    %c5_54 = arith.constant 5 : index
    %c0_55 = arith.constant 0 : index
    %c0_56 = arith.constant 0 : index
    %44 = vector.load %arg9[%c5_54, %c0_55, %c0_56] : memref<34x16x32xbf16, #tpu.memory_space<vmem>>, vector<16x16x32xbf16>
    %45 = vector.shape_cast %44 : vector<16x16x32xbf16> to vector<256x32xbf16>
    %c6_57 = arith.constant 6 : index
    %c0_58 = arith.constant 0 : index
    %c0_59 = arith.constant 0 : index
    %46 = vector.load %arg9[%c6_57, %c0_58, %c0_59] : memref<34x16x32xbf16, #tpu.memory_space<vmem>>, vector<16x16x32xbf16>
    %47 = vector.shape_cast %46 : vector<16x16x32xbf16> to vector<256x32xbf16>
    %c7_60 = arith.constant 7 : index
    %c0_61 = arith.constant 0 : index
    %c0_62 = arith.constant 0 : index
    %48 = vector.load %arg9[%c7_60, %c0_61, %c0_62] : memref<34x16x32xbf16, #tpu.memory_space<vmem>>, vector<16x16x32xbf16>
    %49 = vector.shape_cast %48 : vector<16x16x32xbf16> to vector<256x32xbf16>
    %c8_63 = arith.constant 8 : index
    %c0_64 = arith.constant 0 : index
    %c0_65 = arith.constant 0 : index
    %50 = vector.load %arg9[%c8_63, %c0_64, %c0_65] : memref<34x16x32xbf16, #tpu.memory_space<vmem>>, vector<16x16x32xbf16>
    %51 = vector.shape_cast %50 : vector<16x16x32xbf16> to vector<256x32xbf16>
    %c9_66 = arith.constant 9 : index
    %c0_67 = arith.constant 0 : index
    %c0_68 = arith.constant 0 : index
    %52 = vector.load %arg9[%c9_66, %c0_67, %c0_68] : memref<34x16x32xbf16, #tpu.memory_space<vmem>>, vector<16x16x32xbf16>
    %53 = vector.shape_cast %52 : vector<16x16x32xbf16> to vector<256x32xbf16>
    %c10_69 = arith.constant 10 : index
    %c0_70 = arith.constant 0 : index
    %c0_71 = arith.constant 0 : index
    %54 = vector.load %arg9[%c10_69, %c0_70, %c0_71] : memref<34x16x32xbf16, #tpu.memory_space<vmem>>, vector<16x16x32xbf16>
    %55 = vector.shape_cast %54 : vector<16x16x32xbf16> to vector<256x32xbf16>
    %c11_72 = arith.constant 11 : index
    %c0_73 = arith.constant 0 : index
    %c0_74 = arith.constant 0 : index
    %56 = vector.load %arg9[%c11_72, %c0_73, %c0_74] : memref<34x16x32xbf16, #tpu.memory_space<vmem>>, vector<16x16x32xbf16>
    %57 = vector.shape_cast %56 : vector<16x16x32xbf16> to vector<256x32xbf16>
    %c12_75 = arith.constant 12 : index
    %c0_76 = arith.constant 0 : index
    %c0_77 = arith.constant 0 : index
    %58 = vector.load %arg9[%c12_75, %c0_76, %c0_77] : memref<34x16x32xbf16, #tpu.memory_space<vmem>>, vector<16x16x32xbf16>
    %59 = vector.shape_cast %58 : vector<16x16x32xbf16> to vector<256x32xbf16>
    %c13_78 = arith.constant 13 : index
    %c0_79 = arith.constant 0 : index
    %c0_80 = arith.constant 0 : index
    %60 = vector.load %arg9[%c13_78, %c0_79, %c0_80] : memref<34x16x32xbf16, #tpu.memory_space<vmem>>, vector<16x16x32xbf16>
    %61 = vector.shape_cast %60 : vector<16x16x32xbf16> to vector<256x32xbf16>
    %c15_81 = arith.constant 15 : index
    %c0_82 = arith.constant 0 : index
    %c0_83 = arith.constant 0 : index
    %62 = vector.load %arg9[%c15_81, %c0_82, %c0_83] : memref<34x16x32xbf16, #tpu.memory_space<vmem>>, vector<16x16x32xbf16>
    %63 = vector.shape_cast %62 : vector<16x16x32xbf16> to vector<256x32xbf16>
    %c18_84 = arith.constant 18 : index
    %c0_85 = arith.constant 0 : index
    %c0_86 = arith.constant 0 : index
    %64 = vector.load %arg9[%c18_84, %c0_85, %c0_86] : memref<34x16x32xbf16, #tpu.memory_space<vmem>>, vector<16x16x32xbf16>
    %65 = vector.shape_cast %64 : vector<16x16x32xbf16> to vector<256x32xbf16>
    %66 = tpu.concatenate %41, %43, %45, %47, %49, %51, %53, %55, %57, %59, %61, %63, %65 in 1 : vector<256x32xbf16>, vector<256x32xbf16>, vector<256x32xbf16>, vector<256x32xbf16>, vector<256x32xbf16>, vector<256x32xbf16>, vector<256x32xbf16>, vector<256x32xbf16>, vector<256x32xbf16>, vector<256x32xbf16>, vector<256x32xbf16>, vector<256x32xbf16>, vector<256x32xbf16> -> vector<256x416xbf16>
    %c0_87 = arith.constant 0 : index
    %c0_88 = arith.constant 0 : index
    %c0_89 = arith.constant 0 : index
    %67 = vector.load %arg2[%c0_87, %c0_88, %c0_89] : memref<2x416x128xbf16, #tpu.memory_space<vmem>>, vector<1x416x128xbf16>
    %68 = vector.shape_cast %67 : vector<1x416x128xbf16> to vector<416x128xbf16>
    %cst_90 = arith.constant dense<0.000000e+00> : vector<256x128xf32>
    %69 = tpu.matmul %66, %68, %cst_90 {dimension_numbers = #tpu.dot_dimension_numbers<[1], [0], [0], [1], [0, 0, 1, 1], [], []>} : vector<256x416xbf16>, vector<416x128xbf16>, vector<256x128xf32> -> vector<256x128xf32>
    %c1 = arith.constant 1 : index
    %c0_91 = arith.constant 0 : index
    %c0_92 = arith.constant 0 : index
    %70 = vector.load %arg2[%c1, %c0_91, %c0_92] : memref<2x416x128xbf16, #tpu.memory_space<vmem>>, vector<1x416x128xbf16>
    %71 = vector.shape_cast %70 : vector<1x416x128xbf16> to vector<416x128xbf16>
    %cst_93 = arith.constant dense<0.000000e+00> : vector<256x128xf32>
    %72 = tpu.matmul %39, %71, %cst_93 {dimension_numbers = #tpu.dot_dimension_numbers<[1], [0], [0], [1], [0, 0, 1, 1], [], []>} : vector<256x416xbf16>, vector<416x128xbf16>, vector<256x128xf32> -> vector<256x128xf32>
    %cst_94 = arith.constant 1.000000e+00 : bf16
    %73 = vector.broadcast %cst_94 : bf16 to vector<1x256xbf16>
    %cst_95 = arith.constant dense<0.000000e+00> : vector<1x416xf32>
    %74 = tpu.matmul %73, %66, %cst_95 {dimension_numbers = #tpu.dot_dimension_numbers<[1], [0], [0], [1], [0, 0, 1, 1], [], []>} : vector<1x256xbf16>, vector<256x416xbf16>, vector<1x416xf32> -> vector<1x416xf32>
    %cst_96 = arith.constant dense<0.000000e+00> : vector<1x416xf32>
    %75 = tpu.matmul %73, %39, %cst_96 {dimension_numbers = #tpu.dot_dimension_numbers<[1], [0], [0], [1], [0, 0, 1, 1], [], []>} : vector<1x256xbf16>, vector<256x416xbf16>, vector<1x416xf32> -> vector<1x416xf32>
    %76 = arith.truncf %74 : vector<1x416xf32> to vector<1x416xbf16>
    %c0_97 = arith.constant 0 : index
    %c0_98 = arith.constant 0 : index
    %c0_99 = arith.constant 0 : index
    %77 = vector.load %arg2[%c0_97, %c0_98, %c0_99] : memref<2x416x128xbf16, #tpu.memory_space<vmem>>, vector<1x416x128xbf16>
    %78 = vector.shape_cast %77 : vector<1x416x128xbf16> to vector<416x128xbf16>
    %cst_100 = arith.constant dense<0.000000e+00> : vector<1x128xf32>
    %79 = tpu.matmul %76, %78, %cst_100 {dimension_numbers = #tpu.dot_dimension_numbers<[1], [0], [0], [1], [0, 0, 1, 1], [], []>} : vector<1x416xbf16>, vector<416x128xbf16>, vector<1x128xf32> -> vector<1x128xf32>
    %80 = arith.truncf %75 : vector<1x416xf32> to vector<1x416xbf16>
    %c1_101 = arith.constant 1 : index
    %c0_102 = arith.constant 0 : index
    %c0_103 = arith.constant 0 : index
    %81 = vector.load %arg2[%c1_101, %c0_102, %c0_103] : memref<2x416x128xbf16, #tpu.memory_space<vmem>>, vector<1x416x128xbf16>
    %82 = vector.shape_cast %81 : vector<1x416x128xbf16> to vector<416x128xbf16>
    %cst_104 = arith.constant dense<0.000000e+00> : vector<1x128xf32>
    %83 = tpu.matmul %80, %82, %cst_104 {dimension_numbers = #tpu.dot_dimension_numbers<[1], [0], [0], [1], [0, 0, 1, 1], [], []>} : vector<1x416xbf16>, vector<416x128xbf16>, vector<1x128xf32> -> vector<1x128xf32>
    %84 = tpu.concatenate %79, %83 in 1 : vector<1x128xf32>, vector<1x128xf32> -> vector<1x256xf32>
    %c0_105 = arith.constant 0 : index
    %c0_106 = arith.constant 0 : index
    %85 = vector.load %arg3[%c0_105, %c0_106] : memref<256x12xf32, #tpu.memory_space<vmem>>, vector<256x12xf32>
    %cst_107 = arith.constant dense<0.000000e+00> : vector<1x12xf32>
    %86 = tpu.matmul %84, %85, %cst_107 {dimension_numbers = #tpu.dot_dimension_numbers<[1], [0], [0], [1], [0, 0, 1, 1], [], []>} : vector<1x256xf32>, vector<256x12xf32>, vector<1x12xf32> -> vector<1x12xf32>
    %cst_108 = arith.constant 0.000000e+00 : f32
    %87 = vector.broadcast %cst_108 : f32 to vector<1x12xf32>
    %88 = arith.maximumf %86, %87 : vector<1x12xf32>
    %c0_109 = arith.constant 0 : index
    %c0_110 = arith.constant 0 : index
    %89 = vector.load %arg4[%c0_109, %c0_110] : memref<12x192xf32, #tpu.memory_space<vmem>>, vector<12x192xf32>
    %cst_111 = arith.constant dense<0.000000e+00> : vector<1x192xf32>
    %90 = tpu.matmul %88, %89, %cst_111 {dimension_numbers = #tpu.dot_dimension_numbers<[1], [0], [0], [1], [0, 0, 1, 1], [], []>} : vector<1x12xf32>, vector<12x192xf32>, vector<1x192xf32> -> vector<1x192xf32>
    %cst_112 = arith.constant 0.000000e+00 : f32
    %91 = vector.broadcast %cst_112 : f32 to vector<1x192xf32>
    %92 = arith.subf %91, %90 : vector<1x192xf32>
    %93 = math.exp %92 : vector<1x192xf32>
    %cst_113 = arith.constant 1.000000e+00 : f32
    %94 = vector.broadcast %cst_113 : f32 to vector<1x192xf32>
    %95 = arith.addf %94, %93 : vector<1x192xf32>
    %cst_114 = arith.constant 1.000000e+00 : f32
    %96 = vector.broadcast %cst_114 : f32 to vector<1x192xf32>
    %97 = arith.divf %96, %95 : vector<1x192xf32>
    %cst_115 = arith.constant 1.000000e+00 : f32
    %98 = vector.broadcast %cst_115 : f32 to vector<1x32xf32>
    %99 = vector.extract_strided_slice %97 {offsets = [0, 0], sizes = [1, 96], strides = [1, 1]} : vector<1x192xf32> to vector<1x96xf32>
    %100 = tpu.concatenate %99, %98 in 1 : vector<1x96xf32>, vector<1x32xf32> -> vector<1x128xf32>
    %101 = vector.extract_strided_slice %97 {offsets = [0, 96], sizes = [1, 96], strides = [1, 1]} : vector<1x192xf32> to vector<1x96xf32>
    %102 = tpu.concatenate %101, %98 in 1 : vector<1x96xf32>, vector<1x32xf32> -> vector<1x128xf32>
    %103 = vector.broadcast %100 : vector<1x128xf32> to vector<256x128xf32>
    %104 = arith.mulf %69, %103 : vector<256x128xf32>
    %105 = arith.truncf %104 : vector<256x128xf32> to vector<256x128xbf16>
    %106 = vector.broadcast %102 : vector<1x128xf32> to vector<256x128xf32>
    %107 = arith.mulf %72, %106 : vector<256x128xf32>
    %108 = arith.truncf %107 : vector<256x128xf32> to vector<256x128xbf16>
    %c0_116 = arith.constant 0 : index
    %c0_117 = arith.constant 0 : index
    %c0_118 = arith.constant 0 : index
    %109 = vector.load %arg5[%c0_116, %c0_117, %c0_118] : memref<2x128x16xbf16, #tpu.memory_space<vmem>>, vector<1x128x16xbf16>
    %110 = vector.shape_cast %109 : vector<1x128x16xbf16> to vector<128x16xbf16>
    %cst_119 = arith.constant dense<0.000000e+00> : vector<256x16xf32>
    %111 = tpu.matmul %105, %110, %cst_119 {dimension_numbers = #tpu.dot_dimension_numbers<[1], [0], [0], [1], [0, 0, 1, 1], [], []>} : vector<256x128xbf16>, vector<128x16xbf16>, vector<256x16xf32> -> vector<256x16xf32>
    %c1_120 = arith.constant 1 : index
    %c0_121 = arith.constant 0 : index
    %c0_122 = arith.constant 0 : index
    %112 = vector.load %arg5[%c1_120, %c0_121, %c0_122] : memref<2x128x16xbf16, #tpu.memory_space<vmem>>, vector<1x128x16xbf16>
    %113 = vector.shape_cast %112 : vector<1x128x16xbf16> to vector<128x16xbf16>
    %cst_123 = arith.constant dense<0.000000e+00> : vector<256x16xf32>
    %114 = tpu.matmul %108, %113, %cst_123 {dimension_numbers = #tpu.dot_dimension_numbers<[1], [0], [0], [1], [0, 0, 1, 1], [], []>} : vector<256x128xbf16>, vector<128x16xbf16>, vector<256x16xf32> -> vector<256x16xf32>
    %115 = vector.shape_cast %114 : vector<256x16xf32> to vector<16x16x16xf32>
    %116 = tpu.transpose %115, [1, 0, 2] : vector<16x16x16xf32> -> vector<16x16x16xf32>
    %117 = vector.shape_cast %111 : vector<256x16xf32> to vector<16x16x16xf32>
    %118 = arith.addf %117, %116 : vector<16x16x16xf32>
    %c0_124 = arith.constant 0 : index
    %c0_125 = arith.constant 0 : index
    %119 = vector.load %arg6[%c0_124, %c0_125] : memref<1x16xf32, #tpu.memory_space<vmem>>, vector<1x16xf32>
    %120 = vector.shape_cast %119 : vector<1x16xf32> to vector<1x1x16xf32>
    %121 = vector.broadcast %120 : vector<1x1x16xf32> to vector<16x16x16xf32>
    %122 = arith.addf %118, %121 : vector<16x16x16xf32>
    %cst_126 = arith.constant 0.000000e+00 : f32
    %123 = vector.broadcast %cst_126 : f32 to vector<16x16x16xf32>
    %124 = arith.maximumf %122, %123 : vector<16x16x16xf32>
    %125 = vector.extract_strided_slice %124 {offsets = [0, 0, 0], sizes = [1, 16, 16], strides = [1, 1, 1]} : vector<16x16x16xf32> to vector<1x16x16xf32>
    %126 = vector.shape_cast %125 : vector<1x16x16xf32> to vector<16x16xf32>
    %c0_127 = arith.constant 0 : index
    %c0_128 = arith.constant 0 : index
    %c0_129 = arith.constant 0 : index
    %127 = vector.load %arg7[%c0_127, %c0_128, %c0_129] : memref<1x16x256xf32, #tpu.memory_space<vmem>>, vector<1x16x16xf32>
    %128 = vector.shape_cast %127 : vector<1x16x16xf32> to vector<16x16xf32>
    %129 = vector.shape_cast %126 : vector<16x16xf32> to vector<1x16x16xf32>
    tpu.vector_store %arg7[%c0_127, %c0_128, %c0_129], %129 {strides = array<i32>} : memref<1x16x256xf32, #tpu.memory_space<vmem>>, vector<1x16x16xf32>,
    %130 = vector.extract_strided_slice %124 {offsets = [1, 0, 0], sizes = [1, 16, 16], strides = [1, 1, 1]} : vector<16x16x16xf32> to vector<1x16x16xf32>
    %131 = vector.shape_cast %130 : vector<1x16x16xf32> to vector<16x16xf32>
    %c0_130 = arith.constant 0 : index
    %c0_131 = arith.constant 0 : index
    %c16 = arith.constant 16 : index
    %132 = vector.load %arg7[%c0_130, %c0_131, %c16] : memref<1x16x256xf32, #tpu.memory_space<vmem>>, vector<1x16x16xf32>
    %133 = vector.shape_cast %132 : vector<1x16x16xf32> to vector<16x16xf32>
    %134 = vector.shape_cast %131 : vector<16x16xf32> to vector<1x16x16xf32>
    tpu.vector_store %arg7[%c0_130, %c0_131, %c16], %134 {strides = array<i32>} : memref<1x16x256xf32, #tpu.memory_space<vmem>>, vector<1x16x16xf32>,
    %135 = vector.extract_strided_slice %124 {offsets = [2, 0, 0], sizes = [1, 16, 16], strides = [1, 1, 1]} : vector<16x16x16xf32> to vector<1x16x16xf32>
    %136 = vector.shape_cast %135 : vector<1x16x16xf32> to vector<16x16xf32>
    %c0_132 = arith.constant 0 : index
    %c0_133 = arith.constant 0 : index
    %c32 = arith.constant 32 : index
    %137 = vector.load %arg7[%c0_132, %c0_133, %c32] : memref<1x16x256xf32, #tpu.memory_space<vmem>>, vector<1x16x16xf32>
    %138 = vector.shape_cast %137 : vector<1x16x16xf32> to vector<16x16xf32>
    %139 = vector.shape_cast %136 : vector<16x16xf32> to vector<1x16x16xf32>
    tpu.vector_store %arg7[%c0_132, %c0_133, %c32], %139 {strides = array<i32>} : memref<1x16x256xf32, #tpu.memory_space<vmem>>, vector<1x16x16xf32>,
    %140 = vector.extract_strided_slice %124 {offsets = [3, 0, 0], sizes = [1, 16, 16], strides = [1, 1, 1]} : vector<16x16x16xf32> to vector<1x16x16xf32>
    %141 = vector.shape_cast %140 : vector<1x16x16xf32> to vector<16x16xf32>
    %c0_134 = arith.constant 0 : index
    %c0_135 = arith.constant 0 : index
    %c48 = arith.constant 48 : index
    %142 = vector.load %arg7[%c0_134, %c0_135, %c48] : memref<1x16x256xf32, #tpu.memory_space<vmem>>, vector<1x16x16xf32>
    %143 = vector.shape_cast %142 : vector<1x16x16xf32> to vector<16x16xf32>
    %144 = vector.shape_cast %141 : vector<16x16xf32> to vector<1x16x16xf32>
    tpu.vector_store %arg7[%c0_134, %c0_135, %c48], %144 {strides = array<i32>} : memref<1x16x256xf32, #tpu.memory_space<vmem>>, vector<1x16x16xf32>,
    %145 = vector.extract_strided_slice %124 {offsets = [4, 0, 0], sizes = [1, 16, 16], strides = [1, 1, 1]} : vector<16x16x16xf32> to vector<1x16x16xf32>
    %146 = vector.shape_cast %145 : vector<1x16x16xf32> to vector<16x16xf32>
    %c0_136 = arith.constant 0 : index
    %c0_137 = arith.constant 0 : index
    %c64 = arith.constant 64 : index
    %147 = vector.load %arg7[%c0_136, %c0_137, %c64] : memref<1x16x256xf32, #tpu.memory_space<vmem>>, vector<1x16x16xf32>
    %148 = vector.shape_cast %147 : vector<1x16x16xf32> to vector<16x16xf32>
    %149 = vector.shape_cast %146 : vector<16x16xf32> to vector<1x16x16xf32>
    tpu.vector_store %arg7[%c0_136, %c0_137, %c64], %149 {strides = array<i32>} : memref<1x16x256xf32, #tpu.memory_space<vmem>>, vector<1x16x16xf32>,
    %150 = vector.extract_strided_slice %124 {offsets = [5, 0, 0], sizes = [1, 16, 16], strides = [1, 1, 1]} : vector<16x16x16xf32> to vector<1x16x16xf32>
    %151 = vector.shape_cast %150 : vector<1x16x16xf32> to vector<16x16xf32>
    %c0_138 = arith.constant 0 : index
    %c0_139 = arith.constant 0 : index
    %c80 = arith.constant 80 : index
    %152 = vector.load %arg7[%c0_138, %c0_139, %c80] : memref<1x16x256xf32, #tpu.memory_space<vmem>>, vector<1x16x16xf32>
    %153 = vector.shape_cast %152 : vector<1x16x16xf32> to vector<16x16xf32>
    %154 = vector.shape_cast %151 : vector<16x16xf32> to vector<1x16x16xf32>
    tpu.vector_store %arg7[%c0_138, %c0_139, %c80], %154 {strides = array<i32>} : memref<1x16x256xf32, #tpu.memory_space<vmem>>, vector<1x16x16xf32>,
    %155 = vector.extract_strided_slice %124 {offsets = [6, 0, 0], sizes = [1, 16, 16], strides = [1, 1, 1]} : vector<16x16x16xf32> to vector<1x16x16xf32>
    %156 = vector.shape_cast %155 : vector<1x16x16xf32> to vector<16x16xf32>
    %c0_140 = arith.constant 0 : index
    %c0_141 = arith.constant 0 : index
    %c96 = arith.constant 96 : index
    %157 = vector.load %arg7[%c0_140, %c0_141, %c96] : memref<1x16x256xf32, #tpu.memory_space<vmem>>, vector<1x16x16xf32>
    %158 = vector.shape_cast %157 : vector<1x16x16xf32> to vector<16x16xf32>
    %159 = vector.shape_cast %156 : vector<16x16xf32> to vector<1x16x16xf32>
    tpu.vector_store %arg7[%c0_140, %c0_141, %c96], %159 {strides = array<i32>} : memref<1x16x256xf32, #tpu.memory_space<vmem>>, vector<1x16x16xf32>,
    %160 = vector.extract_strided_slice %124 {offsets = [7, 0, 0], sizes = [1, 16, 16], strides = [1, 1, 1]} : vector<16x16x16xf32> to vector<1x16x16xf32>
    %161 = vector.shape_cast %160 : vector<1x16x16xf32> to vector<16x16xf32>
    %c0_142 = arith.constant 0 : index
    %c0_143 = arith.constant 0 : index
    %c112 = arith.constant 112 : index
    %162 = vector.load %arg7[%c0_142, %c0_143, %c112] : memref<1x16x256xf32, #tpu.memory_space<vmem>>, vector<1x16x16xf32>
    %163 = vector.shape_cast %162 : vector<1x16x16xf32> to vector<16x16xf32>
    %164 = vector.shape_cast %161 : vector<16x16xf32> to vector<1x16x16xf32>
    tpu.vector_store %arg7[%c0_142, %c0_143, %c112], %164 {strides = array<i32>} : memref<1x16x256xf32, #tpu.memory_space<vmem>>, vector<1x16x16xf32>,
    %165 = vector.extract_strided_slice %124 {offsets = [8, 0, 0], sizes = [1, 16, 16], strides = [1, 1, 1]} : vector<16x16x16xf32> to vector<1x16x16xf32>
    %166 = vector.shape_cast %165 : vector<1x16x16xf32> to vector<16x16xf32>
    %c0_144 = arith.constant 0 : index
    %c0_145 = arith.constant 0 : index
    %c128 = arith.constant 128 : index
    %167 = vector.load %arg7[%c0_144, %c0_145, %c128] : memref<1x16x256xf32, #tpu.memory_space<vmem>>, vector<1x16x16xf32>
    %168 = vector.shape_cast %167 : vector<1x16x16xf32> to vector<16x16xf32>
    %169 = vector.shape_cast %166 : vector<16x16xf32> to vector<1x16x16xf32>
    tpu.vector_store %arg7[%c0_144, %c0_145, %c128], %169 {strides = array<i32>} : memref<1x16x256xf32, #tpu.memory_space<vmem>>, vector<1x16x16xf32>,
    %170 = vector.extract_strided_slice %124 {offsets = [9, 0, 0], sizes = [1, 16, 16], strides = [1, 1, 1]} : vector<16x16x16xf32> to vector<1x16x16xf32>
    %171 = vector.shape_cast %170 : vector<1x16x16xf32> to vector<16x16xf32>
    %c0_146 = arith.constant 0 : index
    %c0_147 = arith.constant 0 : index
    %c144 = arith.constant 144 : index
    %172 = vector.load %arg7[%c0_146, %c0_147, %c144] : memref<1x16x256xf32, #tpu.memory_space<vmem>>, vector<1x16x16xf32>
    %173 = vector.shape_cast %172 : vector<1x16x16xf32> to vector<16x16xf32>
    %174 = vector.shape_cast %171 : vector<16x16xf32> to vector<1x16x16xf32>
    tpu.vector_store %arg7[%c0_146, %c0_147, %c144], %174 {strides = array<i32>} : memref<1x16x256xf32, #tpu.memory_space<vmem>>, vector<1x16x16xf32>,
    %175 = vector.extract_strided_slice %124 {offsets = [10, 0, 0], sizes = [1, 16, 16], strides = [1, 1, 1]} : vector<16x16x16xf32> to vector<1x16x16xf32>
    %176 = vector.shape_cast %175 : vector<1x16x16xf32> to vector<16x16xf32>
    %c0_148 = arith.constant 0 : index
    %c0_149 = arith.constant 0 : index
    %c160 = arith.constant 160 : index
    %177 = vector.load %arg7[%c0_148, %c0_149, %c160] : memref<1x16x256xf32, #tpu.memory_space<vmem>>, vector<1x16x16xf32>
    %178 = vector.shape_cast %177 : vector<1x16x16xf32> to vector<16x16xf32>
    %179 = vector.shape_cast %176 : vector<16x16xf32> to vector<1x16x16xf32>
    tpu.vector_store %arg7[%c0_148, %c0_149, %c160], %179 {strides = array<i32>} : memref<1x16x256xf32, #tpu.memory_space<vmem>>, vector<1x16x16xf32>,
    %180 = vector.extract_strided_slice %124 {offsets = [11, 0, 0], sizes = [1, 16, 16], strides = [1, 1, 1]} : vector<16x16x16xf32> to vector<1x16x16xf32>
    %181 = vector.shape_cast %180 : vector<1x16x16xf32> to vector<16x16xf32>
    %c0_150 = arith.constant 0 : index
    %c0_151 = arith.constant 0 : index
    %c176 = arith.constant 176 : index
    %182 = vector.load %arg7[%c0_150, %c0_151, %c176] : memref<1x16x256xf32, #tpu.memory_space<vmem>>, vector<1x16x16xf32>
    %183 = vector.shape_cast %182 : vector<1x16x16xf32> to vector<16x16xf32>
    %184 = vector.shape_cast %181 : vector<16x16xf32> to vector<1x16x16xf32>
    tpu.vector_store %arg7[%c0_150, %c0_151, %c176], %184 {strides = array<i32>} : memref<1x16x256xf32, #tpu.memory_space<vmem>>, vector<1x16x16xf32>,
    %185 = vector.extract_strided_slice %124 {offsets = [12, 0, 0], sizes = [1, 16, 16], strides = [1, 1, 1]} : vector<16x16x16xf32> to vector<1x16x16xf32>
    %186 = vector.shape_cast %185 : vector<1x16x16xf32> to vector<16x16xf32>
    %c0_152 = arith.constant 0 : index
    %c0_153 = arith.constant 0 : index
    %c192 = arith.constant 192 : index
    %187 = vector.load %arg7[%c0_152, %c0_153, %c192] : memref<1x16x256xf32, #tpu.memory_space<vmem>>, vector<1x16x16xf32>
    %188 = vector.shape_cast %187 : vector<1x16x16xf32> to vector<16x16xf32>
    %189 = vector.shape_cast %186 : vector<16x16xf32> to vector<1x16x16xf32>
    tpu.vector_store %arg7[%c0_152, %c0_153, %c192], %189 {strides = array<i32>} : memref<1x16x256xf32, #tpu.memory_space<vmem>>, vector<1x16x16xf32>,
    %190 = vector.extract_strided_slice %124 {offsets = [13, 0, 0], sizes = [1, 16, 16], strides = [1, 1, 1]} : vector<16x16x16xf32> to vector<1x16x16xf32>
    %191 = vector.shape_cast %190 : vector<1x16x16xf32> to vector<16x16xf32>
    %c0_154 = arith.constant 0 : index
    %c0_155 = arith.constant 0 : index
    %c208 = arith.constant 208 : index
    %192 = vector.load %arg7[%c0_154, %c0_155, %c208] : memref<1x16x256xf32, #tpu.memory_space<vmem>>, vector<1x16x16xf32>
    %193 = vector.shape_cast %192 : vector<1x16x16xf32> to vector<16x16xf32>
    %194 = vector.shape_cast %191 : vector<16x16xf32> to vector<1x16x16xf32>
    tpu.vector_store %arg7[%c0_154, %c0_155, %c208], %194 {strides = array<i32>} : memref<1x16x256xf32, #tpu.memory_space<vmem>>, vector<1x16x16xf32>,
    %195 = vector.extract_strided_slice %124 {offsets = [14, 0, 0], sizes = [1, 16, 16], strides = [1, 1, 1]} : vector<16x16x16xf32> to vector<1x16x16xf32>
    %196 = vector.shape_cast %195 : vector<1x16x16xf32> to vector<16x16xf32>
    %c0_156 = arith.constant 0 : index
    %c0_157 = arith.constant 0 : index
    %c224 = arith.constant 224 : index
    %197 = vector.load %arg7[%c0_156, %c0_157, %c224] : memref<1x16x256xf32, #tpu.memory_space<vmem>>, vector<1x16x16xf32>
    %198 = vector.shape_cast %197 : vector<1x16x16xf32> to vector<16x16xf32>
    %199 = vector.shape_cast %196 : vector<16x16xf32> to vector<1x16x16xf32>
    tpu.vector_store %arg7[%c0_156, %c0_157, %c224], %199 {strides = array<i32>} : memref<1x16x256xf32, #tpu.memory_space<vmem>>, vector<1x16x16xf32>,
    %200 = vector.extract_strided_slice %124 {offsets = [15, 0, 0], sizes = [1, 16, 16], strides = [1, 1, 1]} : vector<16x16x16xf32> to vector<1x16x16xf32>
    %201 = vector.shape_cast %200 : vector<1x16x16xf32> to vector<16x16xf32>
    %c0_158 = arith.constant 0 : index
    %c0_159 = arith.constant 0 : index
    %c240 = arith.constant 240 : index
    %202 = vector.load %arg7[%c0_158, %c0_159, %c240] : memref<1x16x256xf32, #tpu.memory_space<vmem>>, vector<1x16x16xf32>
    %203 = vector.shape_cast %202 : vector<1x16x16xf32> to vector<16x16xf32>
    %204 = vector.shape_cast %201 : vector<16x16xf32> to vector<1x16x16xf32>
    tpu.vector_store %arg7[%c0_158, %c0_159, %c240], %204 {strides = array<i32>} : memref<1x16x256xf32, #tpu.memory_space<vmem>>, vector<1x16x16xf32>,
    return
  }
  func.func @transform_0(%arg0: i32) -> (i32, i32, i32, i32) {
    %c0_i32 = arith.constant 0 : i32
    %c0_i32_0 = arith.constant 0 : i32
    %c0_i32_1 = arith.constant 0 : i32
    %c0_i32_2 = arith.constant 0 : i32
    return %arg0, %c0_i32, %c0_i32_0, %c0_i32_1 : i32, i32, i32, i32
  }
  func.func @transform_1(%arg0: i32) -> (i32, i32, i32) {
    %c0_i32 = arith.constant 0 : i32
    %c0_i32_0 = arith.constant 0 : i32
    %c0_i32_1 = arith.constant 0 : i32
    %c0_i32_2 = arith.constant 0 : i32
    return %c0_i32, %c0_i32_0, %c0_i32_1 : i32, i32, i32
  }
  func.func @transform_2(%arg0: i32) -> (i32, i32) {
    %c0_i32 = arith.constant 0 : i32
    %c0_i32_0 = arith.constant 0 : i32
    %c0_i32_1 = arith.constant 0 : i32
    return %c0_i32, %c0_i32_0 : i32, i32
  }
  func.func @transform_3(%arg0: i32) -> (i32, i32) {
    %c0_i32 = arith.constant 0 : i32
    %c0_i32_0 = arith.constant 0 : i32
    %c0_i32_1 = arith.constant 0 : i32
    return %c0_i32, %c0_i32_0 : i32, i32
  }
  func.func @transform_4(%arg0: i32) -> (i32, i32, i32) {
    %c0_i32 = arith.constant 0 : i32
    %c0_i32_0 = arith.constant 0 : i32
    %c0_i32_1 = arith.constant 0 : i32
    %c0_i32_2 = arith.constant 0 : i32
    return %c0_i32, %c0_i32_0, %c0_i32_1 : i32, i32, i32
  }
  func.func @transform_5(%arg0: i32) -> (i32, i32) {
    %c0_i32 = arith.constant 0 : i32
    %c0_i32_0 = arith.constant 0 : i32
    %c0_i32_1 = arith.constant 0 : i32
    return %c0_i32, %c0_i32_0 : i32, i32
  }
  func.func @transform_6(%arg0: i32) -> (i32, i32, i32) {
    %c0_i32 = arith.constant 0 : i32
    %c0_i32_0 = arith.constant 0 : i32
    %c0_i32_1 = arith.constant 0 : i32
    return %arg0, %c0_i32, %c0_i32_0 : i32, i32, i32
  }
}

</mosaic_0001>

<llo_original>
// kernel: tpu_custom_call.1
$region0: #{tpu_custom_call.1}
  #allocation0 [shape = 'u32[]', space=smem, size = 0x4, offset = 0x4, fixed_abs, tag = 'smem constant byte address 0x4 - core index']
  #allocation1 [shape = 'u32[72,128]{1,0:T(1,128)}', space=vmem, size = 0x9000, scoped, tag = 'internal scratch']
  #allocation2 [shape = 'bf16[34,16,32]{2,1,0:T(8,128)(2,1)}', space=vmem, size = 0x22000, scoped, tag = 'scratch operand']
  #allocation3 [shape = 'bf16[34,16,32]{2,1,0:T(8,128)(2,1)}', space=vmem, size = 0x22000, scoped, tag = 'scratch operand']
  %s0 = inlined_call_operand.vmem [shape: bf16[2,16,16,32], index: 0, kind: input, shape index: {}]
  %s1 = inlined_call_operand.hbm [shape: bf16[2,416,128], index: 1, kind: input, shape index: {}]
  %s2 = inlined_call_operand.vmem [shape: f32[256,12], index: 2, kind: input, shape index: {}]
  %s3 = inlined_call_operand.vmem [shape: f32[12,192], index: 3, kind: input, shape index: {}]
  %s4 = inlined_call_operand.vmem [shape: bf16[2,128,16], index: 4, kind: input, shape index: {}]
  %s5 = inlined_call_operand.vmem [shape: f32[1,16], index: 5, kind: input, shape index: {}]
  %s6 = inlined_call_operand.hbm [shape: f32[2,16,256], index: 6, kind: output, shape index: {}]
  %s7 = sld [smem:[#allocation0]]
  $region61: #{tpu_custom_call.1} parent=0
    _
  %s9 = ssub.s32 1, %s7
  %s10 = scalar_select 0, %s9, %s7
  $region1: #{tpu_custom_call.1} parent=0
    #allocation4 [shape = 'u8[212992]{0}', space=vmem, size = 0x34000, scoped, tag = 'input window, operand 1, single buffered']
    #allocation5 [shape = 's32[2]{0}', space=sflag, size = 0x8, scoped, tag = 'scoped memory for tpu_custom_call.1']
    #allocation6 [shape = 's32[2]{0}', space=sflag, size = 0x8, scoped, tag = 'scoped memory for tpu_custom_call.1']
    #allocation7 [shape = 'u8[32768]{0}', space=vmem, size = 0x8000, scoped, tag = 'output window, operand 0']
    %11 = vsyncpa [#allocation5], 0
    %12 = vsyncpa [#allocation6], 0
    %s13 = scalar_lea.sflag [#allocation6], 1
    %14 = vsyncpa %s13, 0
    loop: start=0, step=1, limit=4
    $region2: #{tpu_custom_call.1} parent=1 // loop_pre_header
      _
    $region3: #{tpu_custom_call.1} parent=1 // loop_header
      %s16 = sphi 0, %s20
      %p17 = scmp.ge.s32.totalorder %s16, 4
      %s26 = sphi 0, %s28
      %s29 = sphi 0, %s26
      %s30 = sphi 0, %s29
      %s46 = sphi 0, %s30
      %s50 = sphi 0, %s50
      %s52 = sphi 0, %s50
      %s53 = sphi 0, %s52
      %s67 = sphi 0, %s53
      %s71 = sphi 0, %s71
      %s73 = sphi 0, %s71
      %s74 = sphi 0, %s73
      %s88 = sphi 0, %s74
      %s92 = sphi 0, %s92
      %s94 = sphi 0, %s92
      %s95 = sphi 0, %s94
      %s109 = sphi 0, %s95
      %s113 = sphi 0, %s113
      %s115 = sphi 0, %s113
      %s116 = sphi 0, %s115
      %s130 = sphi 0, %s116
      %s134 = sphi 0, %s134
      %s136 = sphi 0, %s134
      %s137 = sphi 0, %s136
      %s151 = sphi 0, %s137
      %s157 = sphi 0, %s159
      %s160 = sphi 0, %s157
      %s161 = sphi 0, %s160
      %s177 = sphi 0, %s161
    $region4: #{tpu_custom_call.1} parent=1 // loop_header_branch
      %19 = sbr.rel (%p17) target = $region8
    $region5: #{tpu_custom_call.1} parent=1 // loop_body
      %s21 = ssub.s32 %s16, 1
      %s22 = ssub.s32 %s16, 2
      %s23 = sadd.s32 %s16, 1
      %s24 = ssub.s32 %s16, %s23
      %p25 = scmp.eq.s32.totalorder %s24, 0
      %s27 = sadd.s32 %s26, 1
      %s28 = scalar_select %p25, %s26, %s27
      %p31 = pneg %p25
      %p32 = scmp.eq.s32.totalorder %s16, 1
      %p33 = por %p31, %p32
      %p34 = scmp.ne.s32.totalorder %s26, %s29
      %p35 = scmp.eq.s32.totalorder %s16, 0
      %p36 = por %p34, %p35
      %p37 = scmp.ne.s32.totalorder %s26, %s29
      %p38 = scmp.eq.s32.totalorder %s21, 1
      %p39 = por %p37, %p38
      %p40 = scmp.ne.s32.totalorder %s29, %s30
      %p41 = scmp.eq.s32.totalorder %s21, 0
      %p42 = por %p40, %p41
      %p43 = scmp.ne.s32.totalorder %s29, %s30
      %p44 = scmp.eq.s32.totalorder %s22, 1
      %p45 = por %p43, %p44
      %p47 = scmp.ne.s32.totalorder %s30, %s46
      %p48 = scmp.eq.s32.totalorder %s22, 0
      %p49 = por %p47, %p48
      %s51 = sadd.s32 %s50, 1
      %p54 = scmp.eq.s32.totalorder %s16, 1
      %p55 = scmp.ne.s32.totalorder %s50, %s52
      %p56 = scmp.eq.s32.totalorder %s16, 0
      %p57 = por %p55, %p56
      %p58 = scmp.ne.s32.totalorder %s50, %s52
      %p59 = scmp.eq.s32.totalorder %s21, 1
      %p60 = por %p58, %p59
      %p61 = scmp.ne.s32.totalorder %s52, %s53
      %p62 = scmp.eq.s32.totalorder %s21, 0
      %p63 = por %p61, %p62
      %p64 = scmp.ne.s32.totalorder %s52, %s53
      %p65 = scmp.eq.s32.totalorder %s22, 1
      %p66 = por %p64, %p65
      %p68 = scmp.ne.s32.totalorder %s53, %s67
      %p69 = scmp.eq.s32.totalorder %s22, 0
      %p70 = por %p68, %p69
      %s72 = sadd.s32 %s71, 1
      %p75 = scmp.eq.s32.totalorder %s16, 1
      %p76 = scmp.ne.s32.totalorder %s71, %s73
      %p77 = scmp.eq.s32.totalorder %s16, 0
      %p78 = por %p76, %p77
      %p79 = scmp.ne.s32.totalorder %s71, %s73
      %p80 = scmp.eq.s32.totalorder %s21, 1
      %p81 = por %p79, %p80
      %p82 = scmp.ne.s32.totalorder %s73, %s74
      %p83 = scmp.eq.s32.totalorder %s21, 0
      %p84 = por %p82, %p83
      %p85 = scmp.ne.s32.totalorder %s73, %s74
      %p86 = scmp.eq.s32.totalorder %s22, 1
      %p87 = por %p85, %p86
      %p89 = scmp.ne.s32.totalorder %s74, %s88
      %p90 = scmp.eq.s32.totalorder %s22, 0
      %p91 = por %p89, %p90
      %s93 = sadd.s32 %s92, 1
      %p96 = scmp.eq.s32.totalorder %s16, 1
      %p97 = scmp.ne.s32.totalorder %s92, %s94
      %p98 = scmp.eq.s32.totalorder %s16, 0
      %p99 = por %p97, %p98
      %p100 = scmp.ne.s32.totalorder %s92, %s94
      %p101 = scmp.eq.s32.totalorder %s21, 1
      %p102 = por %p100, %p101
      %p103 = scmp.ne.s32.totalorder %s94, %s95
      %p104 = scmp.eq.s32.totalorder %s21, 0
      %p105 = por %p103, %p104
      %p106 = scmp.ne.s32.totalorder %s94, %s95
      %p107 = scmp.eq.s32.totalorder %s22, 1
      %p108 = por %p106, %p107
      %p110 = scmp.ne.s32.totalorder %s95, %s109
      %p111 = scmp.eq.s32.totalorder %s22, 0
      %p112 = por %p110, %p111
      %s114 = sadd.s32 %s113, 1
      %p117 = scmp.eq.s32.totalorder %s16, 1
      %p118 = scmp.ne.s32.totalorder %s113, %s115
      %p119 = scmp.eq.s32.totalorder %s16, 0
      %p120 = por %p118, %p119
      %p121 = scmp.ne.s32.totalorder %s113, %s115
      %p122 = scmp.eq.s32.totalorder %s21, 1
      %p123 = por %p121, %p122
      %p124 = scmp.ne.s32.totalorder %s115, %s116
      %p125 = scmp.eq.s32.totalorder %s21, 0
      %p126 = por %p124, %p125
      %p127 = scmp.ne.s32.totalorder %s115, %s116
      %p128 = scmp.eq.s32.totalorder %s22, 1
      %p129 = por %p127, %p128
      %p131 = scmp.ne.s32.totalorder %s116, %s130
      %p132 = scmp.eq.s32.totalorder %s22, 0
      %p133 = por %p131, %p132
      %s135 = sadd.s32 %s134, 1
      %p138 = scmp.eq.s32.totalorder %s16, 1
      %p139 = scmp.ne.s32.totalorder %s134, %s136
      %p140 = scmp.eq.s32.totalorder %s16, 0
      %p141 = por %p139, %p140
      %p142 = scmp.ne.s32.totalorder %s134, %s136
      %p143 = scmp.eq.s32.totalorder %s21, 1
      %p144 = por %p142, %p143
      %p145 = scmp.ne.s32.totalorder %s136, %s137
      %p146 = scmp.eq.s32.totalorder %s21, 0
      %p147 = por %p145, %p146
      %p148 = scmp.ne.s32.totalorder %s136, %s137
      %p149 = scmp.eq.s32.totalorder %s22, 1
      %p150 = por %p148, %p149
      %p152 = scmp.ne.s32.totalorder %s137, %s151
      %p153 = scmp.eq.s32.totalorder %s22, 0
      %p154 = por %p152, %p153
      %s155 = ssub.s32 %s16, %s23
      %p156 = scmp.eq.s32.totalorder %s155, 0
      %s158 = sadd.s32 %s157, 1
      %s159 = scalar_select %p156, %s157, %s158
      %p162 = pneg %p156
      %p163 = scmp.eq.s32.totalorder %s16, 1
      %p164 = por %p162, %p163
      %p165 = scmp.ne.s32.totalorder %s157, %s160
      %p166 = scmp.eq.s32.totalorder %s16, 0
      %p167 = por %p165, %p166
      %p168 = scmp.ne.s32.totalorder %s157, %s160
      %p169 = scmp.eq.s32.totalorder %s21, 1
      %p170 = por %p168, %p169
      %p171 = scmp.ne.s32.totalorder %s160, %s161
      %p172 = scmp.eq.s32.totalorder %s21, 0
      %p173 = por %p171, %p172
      %p174 = scmp.ne.s32.totalorder %s160, %s161
      %p175 = scmp.eq.s32.totalorder %s22, 1
      %p176 = por %p174, %p175
      %p178 = scmp.ne.s32.totalorder %s161, %s177
      %p179 = scmp.eq.s32.totalorder %s22, 0
      %p180 = por %p178, %p179
      %p181 = scmp.le.s32.totalorder 1, %s16
      %p182 = scmp.lt.s32.totalorder %s16, 3
      %p183 = pnand %p181, %p182
      %p184 = pneg %p183
      // Predicated region
      $region9: #{tpu_custom_call.1} parent=5 // pred_check
        _
      $region10: #{tpu_custom_call.1} parent=5 // pred_check_branch
        %186 = sbr.rel (%p183) target = $region12
      $region11: #{tpu_custom_call.1} parent=5 // pred_region
        %s187 = ssub.s32 %s16, 1
        // Predicated region
        $region13: #{tpu_custom_call.1} parent=11 // pred_check
          %p188 = pneg %p63
        $region14: #{tpu_custom_call.1} parent=11 // pred_check_branch
          %190 = sbr.rel (%p188) target = $region16
        $region15: #{tpu_custom_call.1} parent=11 // pred_region
          %192 = vsyncadd [#allocation5], 0
          %s193 = sshll.u32 %s1, 4
          %s194 = int_to_ptr.hbm [resolvable:$true] %s193
          %s195 = sshll.u32 [#allocation4], 4
          %s196 = int_to_ptr.vmem [resolvable:$true] %s195
          %201 = dma.hbm_to_vmem [thread:$0]  %s194, 6656, %s196, [#allocation5], 64, 64, 4
        $region16: #{tpu_custom_call.1} parent=11 // pred_fallthru
          _
        // Predicated region
        $region17: #{tpu_custom_call.1} parent=11 // pred_check
          %p202 = pneg %p84
        $region18: #{tpu_custom_call.1} parent=11 // pred_check_branch
          %204 = sbr.rel (%p202) target = $region20
        $region19: #{tpu_custom_call.1} parent=11 // pred_region
          _
        $region20: #{tpu_custom_call.1} parent=11 // pred_fallthru
          _
        // Predicated region
        $region21: #{tpu_custom_call.1} parent=11 // pred_check
          %p205 = pneg %p105
        $region22: #{tpu_custom_call.1} parent=11 // pred_check_branch
          %207 = sbr.rel (%p205) target = $region24
        $region23: #{tpu_custom_call.1} parent=11 // pred_region
          _
        $region24: #{tpu_custom_call.1} parent=11 // pred_fallthru
          _
        // Predicated region
        $region25: #{tpu_custom_call.1} parent=11 // pred_check
          %p208 = pneg %p126
        $region26: #{tpu_custom_call.1} parent=11 // pred_check_branch
          %210 = sbr.rel (%p208) target = $region28
        $region27: #{tpu_custom_call.1} parent=11 // pred_region
          _
        $region28: #{tpu_custom_call.1} parent=11 // pred_fallthru
          _
        // Predicated region
        $region29: #{tpu_custom_call.1} parent=11 // pred_check
          %p211 = pneg %p147
        $region30: #{tpu_custom_call.1} parent=11 // pred_check_branch
          %213 = sbr.rel (%p211) target = $region32
        $region31: #{tpu_custom_call.1} parent=11 // pred_region
          _
        $region32: #{tpu_custom_call.1} parent=11 // pred_fallthru
          _
      $region12: #{tpu_custom_call.1} parent=5 // pred_fallthru
        _
      %p214 = scmp.lt.s32.totalorder %s16, 2
      // Predicated region
      $region33: #{tpu_custom_call.1} parent=5 // pred_check
        %p215 = pneg %p214
      $region34: #{tpu_custom_call.1} parent=5 // pred_check_branch
        %217 = sbr.rel (%p215) target = $region36
      $region35: #{tpu_custom_call.1} parent=5 // pred_region
        // Predicated region
        $region37: #{tpu_custom_call.1} parent=35 // pred_check
          %p218 = pneg %p36
        $region38: #{tpu_custom_call.1} parent=35 // pred_check_branch
          %220 = sbr.rel (%p218) target = $region40
        $region39: #{tpu_custom_call.1} parent=35 // pred_region
          %p221 = scmp.lt.s32.totalorder %s16, 1
          %s222 = scalar_select %p221, %s16, 1
          %s223 = smul.addr %s222, 32
          %s224 = smul.addr %s223, 4
          %s225 = scalar_lea.vmem %s0, %s224
        $region40: #{tpu_custom_call.1} parent=35 // pred_fallthru
          _
      $region36: #{tpu_custom_call.1} parent=5 // pred_fallthru
        _
      %p226 = scmp.le.s32.totalorder 1, %s16
      %p227 = scmp.lt.s32.totalorder %s16, 3
      %p228 = pnand %p226, %p227
      %p229 = pneg %p228
      // Predicated region
      $region41: #{tpu_custom_call.1} parent=5 // pred_check
        _
      $region42: #{tpu_custom_call.1} parent=5 // pred_check_branch
        %231 = sbr.rel (%p228) target = $region44
      $region43: #{tpu_custom_call.1} parent=5 // pred_region
        %s232 = ssub.s32 %s16, 1
        // Predicated region
        $region45: #{tpu_custom_call.1} parent=43 // pred_check
          %p233 = pneg %p63
        $region46: #{tpu_custom_call.1} parent=43 // pred_check_branch
          %235 = sbr.rel (%p233) target = $region48
        $region47: #{tpu_custom_call.1} parent=43 // pred_region
          %237 = dma.done [#allocation5], 6656
        $region48: #{tpu_custom_call.1} parent=43 // pred_fallthru
          _
        %p238 = scmp.lt.s32.totalorder %s21, 1
        %s239 = scalar_select %p238, %s21, 1
        %s240 = smul.addr %s239, 32
        %s241 = smul.addr %s240, 4
        %s242 = scalar_lea.vmem %s0, %s241
        %p243 = pneg %p42
        %p244 = pneg %p39
        %p245 = pneg %p63
        %p246 = pneg %p60
        %p247 = pneg %p84
        %p248 = pneg %p81
        %p249 = pneg %p105
        %p250 = pneg %p102
        %p251 = pneg %p126
        %p252 = pneg %p123
        %p253 = pneg %p147
        %p254 = pneg %p144
        %p255 = pneg %p173
        %p256 = pneg %p170
        %s257 = sand.u32 %s160, 1
        %s258 = scalar_lea.sflag [#allocation6], %s257
        %s259 = sand.u32 %s160, 1
        %s260 = smul.addr %s259, 32
        %s261 = scalar_lea.vmem [#allocation7], %s260
        %p262 = scmp.lt.s32.totalorder %s21, 1
        %s263 = scalar_select %p262, %s21, 1
        %s264 = smul.addr %s263, 32
        %s265 = smul.addr %s264, 4
        %s266 = scalar_lea.vmem %s0, %s265
        %v269 = vld [vmem:[%s266] sm:$0xf]
        %v270 = vld [vmem:[%s266 + $0x4] sm:$0xf]
        %v271 = vld [vmem:[%s266 + $0x8] sm:$0xf]
        %v272 = vld [vmem:[%s266 + $0xc] sm:$0xf]
        %v273 = vld [vmem:[%s266 + $0x10] sm:$0xf]
        %v274 = vld [vmem:[%s266 + $0x14] sm:$0xf]
        %v275 = vld [vmem:[%s266 + $0x18] sm:$0xf]
        %v276 = vld [vmem:[%s266 + $0x1c] sm:$0xf]
        %v277 = vld [vmem:[%s266 + $0x20] sm:$0xf]
        %v278 = vld [vmem:[%s266 + $0x24] sm:$0xf]
        %v279 = vld [vmem:[%s266 + $0x28] sm:$0xf]
        %v280 = vld [vmem:[%s266 + $0x2c] sm:$0xf]
        %v281 = vld [vmem:[%s266 + $0x30] sm:$0xf]
        %v282 = vld [vmem:[%s266 + $0x34] sm:$0xf]
        %v283 = vld [vmem:[%s266 + $0x38] sm:$0xf]
        %v284 = vld [vmem:[%s266 + $0x3c] sm:$0xf]
        %v285 = vld [vmem:[%s266 + $0x40] sm:$0xf]
        %v286 = vld [vmem:[%s266 + $0x44] sm:$0xf]
        %v287 = vld [vmem:[%s266 + $0x48] sm:$0xf]
        %v288 = vld [vmem:[%s266 + $0x4c] sm:$0xf]
        %v289 = vld [vmem:[%s266 + $0x50] sm:$0xf]
        %v290 = vld [vmem:[%s266 + $0x54] sm:$0xf]
        %v291 = vld [vmem:[%s266 + $0x58] sm:$0xf]
        %v292 = vld [vmem:[%s266 + $0x5c] sm:$0xf]
        %v293 = vld [vmem:[%s266 + $0x60] sm:$0xf]
        %v294 = vld [vmem:[%s266 + $0x64] sm:$0xf]
        %v295 = vld [vmem:[%s266 + $0x68] sm:$0xf]
        %v296 = vld [vmem:[%s266 + $0x6c] sm:$0xf]
        %v297 = vld [vmem:[%s266 + $0x70] sm:$0xf]
        %v298 = vld [vmem:[%s266 + $0x74] sm:$0xf]
        %v299 = vld [vmem:[%s266 + $0x78] sm:$0xf]
        %v300 = vld [vmem:[%s266 + $0x7c] sm:$0xf]
        %s301 = scalar_lea.vmem [#allocation2], 72
        %vm302 = vcmask 257024
        %303 = vst.msk [vmem:[%s301] sm:$0xf] %vm302, %v269
        %304 = vst.msk [vmem:[%s301 + $0x4] sm:$0xf] %vm302, %v270
        %305 = vst.msk [vmem:[%s301 + $0x8] sm:$0xf] %vm302, %v271
        %306 = vst.msk [vmem:[%s301 + $0xc] sm:$0xf] %vm302, %v272
        %307 = vst.msk [vmem:[%s301 + $0x10] sm:$0xf] %vm302, %v273
        %308 = vst.msk [vmem:[%s301 + $0x14] sm:$0xf] %vm302, %v274
        %309 = vst.msk [vmem:[%s301 + $0x18] sm:$0xf] %vm302, %v275
        %310 = vst.msk [vmem:[%s301 + $0x1c] sm:$0xf] %vm302, %v276
        %311 = vst.msk [vmem:[%s301 + $0x20] sm:$0xf] %vm302, %v277
        %312 = vst.msk [vmem:[%s301 + $0x24] sm:$0xf] %vm302, %v278
        %313 = vst.msk [vmem:[%s301 + $0x28] sm:$0xf] %vm302, %v279
        %314 = vst.msk [vmem:[%s301 + $0x2c] sm:$0xf] %vm302, %v280
        %315 = vst.msk [vmem:[%s301 + $0x30] sm:$0xf] %vm302, %v281
        %316 = vst.msk [vmem:[%s301 + $0x34] sm:$0xf] %vm302, %v282
        %317 = vst.msk [vmem:[%s301 + $0x38] sm:$0xf] %vm302, %v283
        %318 = vst.msk [vmem:[%s301 + $0x3c] sm:$0xf] %vm302, %v284
        %319 = vst.msk [vmem:[%s301 + $0x40] sm:$0xf] %vm302, %v285
        %320 = vst.msk [vmem:[%s301 + $0x44] sm:$0xf] %vm302, %v286
        %321 = vst.msk [vmem:[%s301 + $0x48] sm:$0xf] %vm302, %v287
        %322 = vst.msk [vmem:[%s301 + $0x4c] sm:$0xf] %vm302, %v288
        %323 = vst.msk [vmem:[%s301 + $0x50] sm:$0xf] %vm302, %v289
        %324 = vst.msk [vmem:[%s301 + $0x54] sm:$0xf] %vm302, %v290
        %325 = vst.msk [vmem:[%s301 + $0x58] sm:$0xf] %vm302, %v291
        %326 = vst.msk [vmem:[%s301 + $0x5c] sm:$0xf] %vm302, %v292
        %327 = vst.msk [vmem:[%s301 + $0x60] sm:$0xf] %vm302, %v293
        %328 = vst.msk [vmem:[%s301 + $0x64] sm:$0xf] %vm302, %v294
        %329 = vst.msk [vmem:[%s301 + $0x68] sm:$0xf] %vm302, %v295
        %330 = vst.msk [vmem:[%s301 + $0x6c] sm:$0xf] %vm302, %v296
        %331 = vst.msk [vmem:[%s301 + $0x70] sm:$0xf] %vm302, %v297
        %332 = vst.msk [vmem:[%s301 + $0x74] sm:$0xf] %vm302, %v298
        %333 = vst.msk [vmem:[%s301 + $0x78] sm:$0xf] %vm302, %v299
        %334 = vst.msk [vmem:[%s301 + $0x7c] sm:$0xf] %vm302, %v300
        %335 = vst.msk [vmem:[#allocation2] sm:$0xf] %vm302, 0
        %336 = vst.msk [vmem:[#allocation2 + $0x4] sm:$0xf] %vm302, 0
        %337 = vst.msk [vmem:[#allocation2 + $0x8] sm:$0xf] %vm302, 0
        %338 = vst.msk [vmem:[#allocation2 + $0xc] sm:$0xf] %vm302, 0
        %339 = vst.msk [vmem:[#allocation2 + $0x10] sm:$0xf] %vm302, 0
        %340 = vst.msk [vmem:[#allocation2 + $0x14] sm:$0xf] %vm302, 0
        %341 = vst.msk [vmem:[#allocation2 + $0x18] sm:$0xf] %vm302, 0
        %342 = vst.msk [vmem:[#allocation2 + $0x1c] sm:$0xf] %vm302, 0
        %343 = vst.msk [vmem:[#allocation2 + $0x20] sm:$0xf] %vm302, 0
        %344 = vst.msk [vmem:[#allocation2 + $0x24] sm:$0xf] %vm302, 0
        %345 = vst.msk [vmem:[#allocation2 + $0x28] sm:$0xf] %vm302, 0
        %346 = vst.msk [vmem:[#allocation2 + $0x2c] sm:$0xf] %vm302, 0
        %347 = vst.msk [vmem:[#allocation2 + $0x30] sm:$0xf] %vm302, 0
        %348 = vst.msk [vmem:[#allocation2 + $0x34] sm:$0xf] %vm302, 0
        %349 = vst.msk [vmem:[#allocation2 + $0x38] sm:$0xf] %vm302, 0
        %350 = vst.msk [vmem:[#allocation2 + $0x3c] sm:$0xf] %vm302, 0
        %351 = vst.msk [vmem:[#allocation2 + $0x40] sm:$0xf] %vm302, 0
        %352 = vst.msk [vmem:[#allocation2 + $0x44] sm:$0xf] %vm302, 0
        %s353 = scalar_lea.vmem [#allocation2], 200
        %354 = vst.msk [vmem:[%s353] sm:$0xf] %vm302, 0
        %355 = vst.msk [vmem:[%s353 + $0x4] sm:$0xf] %vm302, 0
        %356 = vst.msk [vmem:[%s353 + $0x8] sm:$0xf] %vm302, 0
        %357 = vst.msk [vmem:[%s353 + $0xc] sm:$0xf] %vm302, 0
        %358 = vst.msk [vmem:[%s353 + $0x10] sm:$0xf] %vm302, 0
        %359 = vst.msk [vmem:[%s353 + $0x14] sm:$0xf] %vm302, 0
        %360 = vst.msk [vmem:[%s353 + $0x18] sm:$0xf] %vm302, 0
        %361 = vst.msk [vmem:[%s353 + $0x1c] sm:$0xf] %vm302, 0
        %362 = vst.msk [vmem:[%s353 + $0x20] sm:$0xf] %vm302, 0
        %363 = vst.msk [vmem:[%s353 + $0x24] sm:$0xf] %vm302, 0
        %364 = vst.msk [vmem:[%s353 + $0x28] sm:$0xf] %vm302, 0
        %365 = vst.msk [vmem:[%s353 + $0x2c] sm:$0xf] %vm302, 0
        %366 = vst.msk [vmem:[%s353 + $0x30] sm:$0xf] %vm302, 0
        %367 = vst.msk [vmem:[%s353 + $0x34] sm:$0xf] %vm302, 0
        %368 = vst.msk [vmem:[%s353 + $0x38] sm:$0xf] %vm302, 0
        %369 = vst.msk [vmem:[%s353 + $0x3c] sm:$0xf] %vm302, 0
        %370 = vst.msk [vmem:[%s353 + $0x40] sm:$0xf] %vm302, 0
        %371 = vst.msk [vmem:[%s353 + $0x44] sm:$0xf] %vm302, 0
        %v372 = vunpack.c.l.bf16 %v269
        %v373 = vunpack.c.l.bf16 %v270
        %v374 = vunpack.c.l.bf16 %v271
        %v375 = vunpack.c.l.bf16 %v272
        %v376 = vunpack.c.l.bf16 %v273
        %v377 = vunpack.c.l.bf16 %v274
        %v378 = vunpack.c.l.bf16 %v275
        %v379 = vunpack.c.l.bf16 %v276
        %v380 = vunpack.c.l.bf16 %v277
        %v381 = vunpack.c.l.bf16 %v278
        %v382 = vunpack.c.l.bf16 %v279
        %v383 = vunpack.c.l.bf16 %v280
        %v384 = vunpack.c.l.bf16 %v281
        %v385 = vunpack.c.l.bf16 %v282
        %v386 = vunpack.c.l.bf16 %v283
        %v387 = vunpack.c.l.bf16 %v284
        %v388 = vunpack.c.l.bf16 %v285
        %v389 = vunpack.c.l.bf16 %v286
        %v390 = vunpack.c.l.bf16 %v287
        %v391 = vunpack.c.l.bf16 %v288
        %v392 = vunpack.c.l.bf16 %v289
        %v393 = vunpack.c.l.bf16 %v290
        %v394 = vunpack.c.l.bf16 %v291
        %v395 = vunpack.c.l.bf16 %v292
        %v396 = vunpack.c.l.bf16 %v293
        %v397 = vunpack.c.l.bf16 %v294
        %v398 = vunpack.c.l.bf16 %v295
        %v399 = vunpack.c.l.bf16 %v296
        %v400 = vunpack.c.l.bf16 %v297
        %v401 = vunpack.c.l.bf16 %v298
        %v402 = vunpack.c.l.bf16 %v299
        %v403 = vunpack.c.l.bf16 %v300
        %v404 = vrot.slane %v376, 4
        %vm405 = vcmask 1047556
        %v406 = vsel %vm405, %v404, %v372
        %v407 = vrot.slane %v372, 4
        %v408 = vsel %vm405, %v376, %v407
        %v410 = vunpack.c.l.s4 1983009808
        %v411 = vunpack.c.0.s8 %v410
        %v412 = vperm.slane %v406, %v411
        %v414 = vunpack.c.l.s4 1983009808
        %v415 = vunpack.c.0.s8 %v414
        %v416 = vperm.slane %v408, %v415
        %v417 = vrot.slane %v378, 4
        %v418 = vsel %vm405, %v417, %v374
        %v419 = vrot.slane %v374, 4
        %v420 = vsel %vm405, %v378, %v419
        %v422 = vunpack.c.l.s4 1983009808
        %v423 = vunpack.c.0.s8 %v422
        %v424 = vperm.slane %v418, %v423
        %v426 = vunpack.c.l.s4 1983009808
        %v427 = vunpack.c.0.s8 %v426
        %v428 = vperm.slane %v420, %v427
        %v429 = vrot.slane %v384, 4
        %v430 = vsel %vm405, %v429, %v380
        %v431 = vrot.slane %v380, 4
        %v432 = vsel %vm405, %v384, %v431
        %v434 = vunpack.c.l.s4 1983009808
        %v435 = vunpack.c.0.s8 %v434
        %v436 = vperm.slane %v430, %v435
        %v438 = vunpack.c.l.s4 1983009808
        %v439 = vunpack.c.0.s8 %v438
        %v440 = vperm.slane %v432, %v439
        %v441 = vrot.slane %v386, 4
        %v442 = vsel %vm405, %v441, %v382
        %v443 = vrot.slane %v382, 4
        %v444 = vsel %vm405, %v386, %v443
        %v446 = vunpack.c.l.s4 1983009808
        %v447 = vunpack.c.0.s8 %v446
        %v448 = vperm.slane %v442, %v447
        %v450 = vunpack.c.l.s4 1983009808
        %v451 = vunpack.c.0.s8 %v450
        %v452 = vperm.slane %v444, %v451
        %v453 = vrot.slane %v424, 4
        %v454 = vsel %vm405, %v453, %v412
        %v455 = vrot.slane %v412, 4
        %v456 = vsel %vm405, %v424, %v455
        %v458 = vunpack.c.l.s4 1934713408
        %v459 = vunpack.c.0.s8 %v458
        %v460 = vperm.slane %v454, %v459
        %v462 = vunpack.c.l.s4 1934713408
        %v463 = vunpack.c.0.s8 %v462
        %v464 = vperm.slane %v456, %v463
        %v465 = vrot.slane %v428, 4
        %v466 = vsel %vm405, %v465, %v416
        %v467 = vrot.slane %v416, 4
        %v468 = vsel %vm405, %v428, %v467
        %v470 = vunpack.c.l.s4 1934713408
        %v471 = vunpack.c.0.s8 %v470
        %v472 = vperm.slane %v466, %v471
        %v474 = vunpack.c.l.s4 1934713408
        %v475 = vunpack.c.0.s8 %v474
        %v476 = vperm.slane %v468, %v475
        %v477 = vrot.slane %v448, 4
        %v478 = vsel %vm405, %v477, %v436
        %v479 = vrot.slane %v436, 4
        %v480 = vsel %vm405, %v448, %v479
        %v482 = vunpack.c.l.s4 1934713408
        %v483 = vunpack.c.0.s8 %v482
        %v484 = vperm.slane %v478, %v483
        %v486 = vunpack.c.l.s4 1934713408
        %v487 = vunpack.c.0.s8 %v486
        %v488 = vperm.slane %v480, %v487
        %v489 = vrot.slane %v452, 4
        %v490 = vsel %vm405, %v489, %v440
        %v491 = vrot.slane %v440, 4
        %v492 = vsel %vm405, %v452, %v491
        %v494 = vunpack.c.l.s4 1934713408
        %v495 = vunpack.c.0.s8 %v494
        %v496 = vperm.slane %v490, %v495
        %v498 = vunpack.c.l.s4 1934713408
        %v499 = vunpack.c.0.s8 %v498
        %v500 = vperm.slane %v492, %v499
        %v501 = vrot.slane %v484, 4
        %v502 = vsel %vm405, %v501, %v460
        %v503 = vrot.slane %v460, 4
        %v504 = vsel %vm405, %v484, %v503
        %v505 = vrot.slane %v488, 4
        %v506 = vsel %vm405, %v505, %v464
        %v507 = vrot.slane %v464, 4
        %v508 = vsel %vm405, %v488, %v507
        %v509 = vrot.slane %v496, 4
        %v510 = vsel %vm405, %v509, %v472
        %v511 = vrot.slane %v472, 4
        %v512 = vsel %vm405, %v496, %v511
        %v513 = vrot.slane %v500, 4
        %v514 = vsel %vm405, %v513, %v476
        %v515 = vrot.slane %v476, 4
        %v516 = vsel %vm405, %v500, %v515
        %v517 = vrot.slane %v392, 4
        %v518 = vsel %vm405, %v517, %v388
        %v519 = vrot.slane %v388, 4
        %v520 = vsel %vm405, %v392, %v519
        %v522 = vunpack.c.l.s4 1983009808
        %v523 = vunpack.c.0.s8 %v522
        %v524 = vperm.slane %v518, %v523
        %v526 = vunpack.c.l.s4 1983009808
        %v527 = vunpack.c.0.s8 %v526
        %v528 = vperm.slane %v520, %v527
        %v529 = vrot.slane %v394, 4
        %v530 = vsel %vm405, %v529, %v390
        %v531 = vrot.slane %v390, 4
        %v532 = vsel %vm405, %v394, %v531
        %v534 = vunpack.c.l.s4 1983009808
        %v535 = vunpack.c.0.s8 %v534
        %v536 = vperm.slane %v530, %v535
        %v538 = vunpack.c.l.s4 1983009808
        %v539 = vunpack.c.0.s8 %v538
        %v540 = vperm.slane %v532, %v539
        %v541 = vrot.slane %v400, 4
        %v542 = vsel %vm405, %v541, %v396
        %v543 = vrot.slane %v396, 4
        %v544 = vsel %vm405, %v400, %v543
        %v546 = vunpack.c.l.s4 1983009808
        %v547 = vunpack.c.0.s8 %v546
        %v548 = vperm.slane %v542, %v547
        %v550 = vunpack.c.l.s4 1983009808
        %v551 = vunpack.c.0.s8 %v550
        %v552 = vperm.slane %v544, %v551
        %v553 = vrot.slane %v402, 4
        %v554 = vsel %vm405, %v553, %v398
        %v555 = vrot.slane %v398, 4
        %v556 = vsel %vm405, %v402, %v555
        %v558 = vunpack.c.l.s4 1983009808
        %v559 = vunpack.c.0.s8 %v558
        %v560 = vperm.slane %v554, %v559
        %v562 = vunpack.c.l.s4 1983009808
        %v563 = vunpack.c.0.s8 %v562
        %v564 = vperm.slane %v556, %v563
        %v565 = vrot.slane %v536, 4
        %v566 = vsel %vm405, %v565, %v524
        %v567 = vrot.slane %v524, 4
        %v568 = vsel %vm405, %v536, %v567
        %v570 = vunpack.c.l.s4 1934713408
        %v571 = vunpack.c.0.s8 %v570
        %v572 = vperm.slane %v566, %v571
        %v574 = vunpack.c.l.s4 1934713408
        %v575 = vunpack.c.0.s8 %v574
        %v576 = vperm.slane %v568, %v575
        %v577 = vrot.slane %v540, 4
        %v578 = vsel %vm405, %v577, %v528
        %v579 = vrot.slane %v528, 4
        %v580 = vsel %vm405, %v540, %v579
        %v582 = vunpack.c.l.s4 1934713408
        %v583 = vunpack.c.0.s8 %v582
        %v584 = vperm.slane %v578, %v583
        %v586 = vunpack.c.l.s4 1934713408
        %v587 = vunpack.c.0.s8 %v586
        %v588 = vperm.slane %v580, %v587
        %v589 = vrot.slane %v560, 4
        %v590 = vsel %vm405, %v589, %v548
        %v591 = vrot.slane %v548, 4
        %v592 = vsel %vm405, %v560, %v591
        %v594 = vunpack.c.l.s4 1934713408
        %v595 = vunpack.c.0.s8 %v594
        %v596 = vperm.slane %v590, %v595
        %v598 = vunpack.c.l.s4 1934713408
        %v599 = vunpack.c.0.s8 %v598
        %v600 = vperm.slane %v592, %v599
        %v601 = vrot.slane %v564, 4
        %v602 = vsel %vm405, %v601, %v552
        %v603 = vrot.slane %v552, 4
        %v604 = vsel %vm405, %v564, %v603
        %v606 = vunpack.c.l.s4 1934713408
        %v607 = vunpack.c.0.s8 %v606
        %v608 = vperm.slane %v602, %v607
        %v610 = vunpack.c.l.s4 1934713408
        %v611 = vunpack.c.0.s8 %v610
        %v612 = vperm.slane %v604, %v611
        %v613 = vrot.slane %v596, 4
        %v614 = vsel %vm405, %v613, %v572
        %v615 = vrot.slane %v572, 4
        %v616 = vsel %vm405, %v596, %v615
        %v617 = vrot.slane %v600, 4
        %v618 = vsel %vm405, %v617, %v576
        %v619 = vrot.slane %v576, 4
        %v620 = vsel %vm405, %v600, %v619
        %v621 = vrot.slane %v608, 4
        %v622 = vsel %vm405, %v621, %v584
        %v623 = vrot.slane %v584, 4
        %v624 = vsel %vm405, %v608, %v623
        %v625 = vrot.slane %v612, 4
        %v626 = vsel %vm405, %v625, %v588
        %v627 = vrot.slane %v588, 4
        %v628 = vsel %vm405, %v612, %v627
        %v629 = vrot.slane %v377, 4
        %v630 = vsel %vm405, %v629, %v373
        %v631 = vrot.slane %v373, 4
        %v632 = vsel %vm405, %v377, %v631
        %v634 = vunpack.c.l.s4 1983009808
        %v635 = vunpack.c.0.s8 %v634
        %v636 = vperm.slane %v630, %v635
        %v638 = vunpack.c.l.s4 1983009808
        %v639 = vunpack.c.0.s8 %v638
        %v640 = vperm.slane %v632, %v639
        %v641 = vrot.slane %v379, 4
        %v642 = vsel %vm405, %v641, %v375
        %v643 = vrot.slane %v375, 4
        %v644 = vsel %vm405, %v379, %v643
        %v646 = vunpack.c.l.s4 1983009808
        %v647 = vunpack.c.0.s8 %v646
        %v648 = vperm.slane %v642, %v647
        %v650 = vunpack.c.l.s4 1983009808
        %v651 = vunpack.c.0.s8 %v650
        %v652 = vperm.slane %v644, %v651
        %v653 = vrot.slane %v385, 4
        %v654 = vsel %vm405, %v653, %v381
        %v655 = vrot.slane %v381, 4
        %v656 = vsel %vm405, %v385, %v655
        %v658 = vunpack.c.l.s4 1983009808
        %v659 = vunpack.c.0.s8 %v658
        %v660 = vperm.slane %v654, %v659
        %v662 = vunpack.c.l.s4 1983009808
        %v663 = vunpack.c.0.s8 %v662
        %v664 = vperm.slane %v656, %v663
        %v665 = vrot.slane %v387, 4
        %v666 = vsel %vm405, %v665, %v383
        %v667 = vrot.slane %v383, 4
        %v668 = vsel %vm405, %v387, %v667
        %v670 = vunpack.c.l.s4 1983009808
        %v671 = vunpack.c.0.s8 %v670
        %v672 = vperm.slane %v666, %v671
        %v674 = vunpack.c.l.s4 1983009808
        %v675 = vunpack.c.0.s8 %v674
        %v676 = vperm.slane %v668, %v675
        %v677 = vrot.slane %v648, 4
        %v678 = vsel %vm405, %v677, %v636
        %v679 = vrot.slane %v636, 4
        %v680 = vsel %vm405, %v648, %v679
        %v682 = vunpack.c.l.s4 1934713408
        %v683 = vunpack.c.0.s8 %v682
        %v684 = vperm.slane %v678, %v683
        %v686 = vunpack.c.l.s4 1934713408
        %v687 = vunpack.c.0.s8 %v686
        %v688 = vperm.slane %v680, %v687
        %v689 = vrot.slane %v652, 4
        %v690 = vsel %vm405, %v689, %v640
        %v691 = vrot.slane %v640, 4
        %v692 = vsel %vm405, %v652, %v691
        %v694 = vunpack.c.l.s4 1934713408
        %v695 = vunpack.c.0.s8 %v694
        %v696 = vperm.slane %v690, %v695
        %v698 = vunpack.c.l.s4 1934713408
        %v699 = vunpack.c.0.s8 %v698
        %v700 = vperm.slane %v692, %v699
        %v701 = vrot.slane %v672, 4
        %v702 = vsel %vm405, %v701, %v660
        %v703 = vrot.slane %v660, 4
        %v704 = vsel %vm405, %v672, %v703
        %v706 = vunpack.c.l.s4 1934713408
        %v707 = vunpack.c.0.s8 %v706
        %v708 = vperm.slane %v702, %v707
        %v710 = vunpack.c.l.s4 1934713408
        %v711 = vunpack.c.0.s8 %v710
        %v712 = vperm.slane %v704, %v711
        %v713 = vrot.slane %v676, 4
        %v714 = vsel %vm405, %v713, %v664
        %v715 = vrot.slane %v664, 4
        %v716 = vsel %vm405, %v676, %v715
        %v718 = vunpack.c.l.s4 1934713408
        %v719 = vunpack.c.0.s8 %v718
        %v720 = vperm.slane %v714, %v719
        %v722 = vunpack.c.l.s4 1934713408
        %v723 = vunpack.c.0.s8 %v722
        %v724 = vperm.slane %v716, %v723
        %v725 = vrot.slane %v708, 4
        %v726 = vsel %vm405, %v725, %v684
        %v727 = vrot.slane %v684, 4
        %v728 = vsel %vm405, %v708, %v727
        %v729 = vrot.slane %v712, 4
        %v730 = vsel %vm405, %v729, %v688
        %v731 = vrot.slane %v688, 4
        %v732 = vsel %vm405, %v712, %v731
        %v733 = vrot.slane %v720, 4
        %v734 = vsel %vm405, %v733, %v696
        %v735 = vrot.slane %v696, 4
        %v736 = vsel %vm405, %v720, %v735
        %v737 = vrot.slane %v724, 4
        %v738 = vsel %vm405, %v737, %v700
        %v739 = vrot.slane %v700, 4
        %v740 = vsel %vm405, %v724, %v739
        %v741 = vrot.slane %v393, 4
        %v742 = vsel %vm405, %v741, %v389
        %v743 = vrot.slane %v389, 4
        %v744 = vsel %vm405, %v393, %v743
        %v746 = vunpack.c.l.s4 1983009808
        %v747 = vunpack.c.0.s8 %v746
        %v748 = vperm.slane %v742, %v747
        %v750 = vunpack.c.l.s4 1983009808
        %v751 = vunpack.c.0.s8 %v750
        %v752 = vperm.slane %v744, %v751
        %v753 = vrot.slane %v395, 4
        %v754 = vsel %vm405, %v753, %v391
        %v755 = vrot.slane %v391, 4
        %v756 = vsel %vm405, %v395, %v755
        %v758 = vunpack.c.l.s4 1983009808
        %v759 = vunpack.c.0.s8 %v758
        %v760 = vperm.slane %v754, %v759
        %v762 = vunpack.c.l.s4 1983009808
        %v763 = vunpack.c.0.s8 %v762
        %v764 = vperm.slane %v756, %v763
        %v765 = vrot.slane %v401, 4
        %v766 = vsel %vm405, %v765, %v397
        %v767 = vrot.slane %v397, 4
        %v768 = vsel %vm405, %v401, %v767
        %v770 = vunpack.c.l.s4 1983009808
        %v771 = vunpack.c.0.s8 %v770
        %v772 = vperm.slane %v766, %v771
        %v774 = vunpack.c.l.s4 1983009808
        %v775 = vunpack.c.0.s8 %v774
        %v776 = vperm.slane %v768, %v775
        %v777 = vrot.slane %v403, 4
        %v778 = vsel %vm405, %v777, %v399
        %v779 = vrot.slane %v399, 4
        %v780 = vsel %vm405, %v403, %v779
        %v782 = vunpack.c.l.s4 1983009808
        %v783 = vunpack.c.0.s8 %v782
        %v784 = vperm.slane %v778, %v783
        %v786 = vunpack.c.l.s4 1983009808
        %v787 = vunpack.c.0.s8 %v786
        %v788 = vperm.slane %v780, %v787
        %v789 = vrot.slane %v760, 4
        %v790 = vsel %vm405, %v789, %v748
        %v791 = vrot.slane %v748, 4
        %v792 = vsel %vm405, %v760, %v791
        %v794 = vunpack.c.l.s4 1934713408
        %v795 = vunpack.c.0.s8 %v794
        %v796 = vperm.slane %v790, %v795
        %v798 = vunpack.c.l.s4 1934713408
        %v799 = vunpack.c.0.s8 %v798
        %v800 = vperm.slane %v792, %v799
        %v801 = vrot.slane %v764, 4
        %v802 = vsel %vm405, %v801, %v752
        %v803 = vrot.slane %v752, 4
        %v804 = vsel %vm405, %v764, %v803
        %v806 = vunpack.c.l.s4 1934713408
        %v807 = vunpack.c.0.s8 %v806
        %v808 = vperm.slane %v802, %v807
        %v810 = vunpack.c.l.s4 1934713408
        %v811 = vunpack.c.0.s8 %v810
        %v812 = vperm.slane %v804, %v811
        %v813 = vrot.slane %v784, 4
        %v814 = vsel %vm405, %v813, %v772
        %v815 = vrot.slane %v772, 4
        %v816 = vsel %vm405, %v784, %v815
        %v818 = vunpack.c.l.s4 1934713408
        %v819 = vunpack.c.0.s8 %v818
        %v820 = vperm.slane %v814, %v819
        %v822 = vunpack.c.l.s4 1934713408
        %v823 = vunpack.c.0.s8 %v822
        %v824 = vperm.slane %v816, %v823
        %v825 = vrot.slane %v788, 4
        %v826 = vsel %vm405, %v825, %v776
        %v827 = vrot.slane %v776, 4
        %v828 = vsel %vm405, %v788, %v827
        %v830 = vunpack.c.l.s4 1934713408
        %v831 = vunpack.c.0.s8 %v830
        %v832 = vperm.slane %v826, %v831
        %v834 = vunpack.c.l.s4 1934713408
        %v835 = vunpack.c.0.s8 %v834
        %v836 = vperm.slane %v828, %v835
        %v837 = vrot.slane %v820, 4
        %v838 = vsel %vm405, %v837, %v796
        %v839 = vrot.slane %v796, 4
        %v840 = vsel %vm405, %v820, %v839
        %v841 = vrot.slane %v824, 4
        %v842 = vsel %vm405, %v841, %v800
        %v843 = vrot.slane %v800, 4
        %v844 = vsel %vm405, %v824, %v843
        %v845 = vrot.slane %v832, 4
        %v846 = vsel %vm405, %v845, %v808
        %v847 = vrot.slane %v808, 4
        %v848 = vsel %vm405, %v832, %v847
        %v849 = vrot.slane %v836, 4
        %v850 = vsel %vm405, %v849, %v812
        %v851 = vrot.slane %v812, 4
        %v852 = vsel %vm405, %v836, %v851
        %v853 = vpack.c.bf16 %v502, %v502
        %v854 = vpack.c.bf16 %v614, %v614
        %v855 = vpack.c.bf16 %v504, %v504
        %v856 = vpack.c.bf16 %v616, %v616
        %v857 = vpack.c.bf16 %v506, %v506
        %v858 = vpack.c.bf16 %v618, %v618
        %v859 = vpack.c.bf16 %v508, %v508
        %v860 = vpack.c.bf16 %v620, %v620
        %v861 = vpack.c.bf16 %v510, %v510
        %v862 = vpack.c.bf16 %v622, %v622
        %v863 = vpack.c.bf16 %v512, %v512
        %v864 = vpack.c.bf16 %v624, %v624
        %v865 = vpack.c.bf16 %v514, %v514
        %v866 = vpack.c.bf16 %v626, %v626
        %v867 = vpack.c.bf16 %v516, %v516
        %v868 = vpack.c.bf16 %v628, %v628
        %v869 = vpack.c.bf16 %v726, %v726
        %v870 = vpack.c.bf16 %v838, %v838
        %v871 = vpack.c.bf16 %v728, %v728
        %v872 = vpack.c.bf16 %v840, %v840
        %v873 = vpack.c.bf16 %v730, %v730
        %v874 = vpack.c.bf16 %v842, %v842
        %v875 = vpack.c.bf16 %v732, %v732
        %v876 = vpack.c.bf16 %v844, %v844
        %v877 = vpack.c.bf16 %v734, %v734
        %v878 = vpack.c.bf16 %v846, %v846
        %v879 = vpack.c.bf16 %v736, %v736
        %v880 = vpack.c.bf16 %v848, %v848
        %v881 = vpack.c.bf16 %v738, %v738
        %v882 = vpack.c.bf16 %v850, %v850
        %v883 = vpack.c.bf16 %v740, %v740
        %v884 = vpack.c.bf16 %v852, %v852
        %s885 = scalar_lea.vmem [#allocation3], 72
        %886 = vst.msk [vmem:[%s885] sm:$0xf] %vm302, %v853
        %887 = vst.msk [vmem:[%s885 + $0x4] sm:$0xf] %vm302, %v854
        %888 = vst.msk [vmem:[%s885 + $0x8] sm:$0xf] %vm302, %v855
        %889 = vst.msk [vmem:[%s885 + $0xc] sm:$0xf] %vm302, %v856
        %890 = vst.msk [vmem:[%s885 + $0x10] sm:$0xf] %vm302, %v857
        %891 = vst.msk [vmem:[%s885 + $0x14] sm:$0xf] %vm302, %v858
        %892 = vst.msk [vmem:[%s885 + $0x18] sm:$0xf] %vm302, %v859
        %893 = vst.msk [vmem:[%s885 + $0x1c] sm:$0xf] %vm302, %v860
        %894 = vst.msk [vmem:[%s885 + $0x20] sm:$0xf] %vm302, %v861
        %895 = vst.msk [vmem:[%s885 + $0x24] sm:$0xf] %vm302, %v862
        %896 = vst.msk [vmem:[%s885 + $0x28] sm:$0xf] %vm302, %v863
        %897 = vst.msk [vmem:[%s885 + $0x2c] sm:$0xf] %vm302, %v864
        %898 = vst.msk [vmem:[%s885 + $0x30] sm:$0xf] %vm302, %v865
        %899 = vst.msk [vmem:[%s885 + $0x34] sm:$0xf] %vm302, %v866
        %900 = vst.msk [vmem:[%s885 + $0x38] sm:$0xf] %vm302, %v867
        %901 = vst.msk [vmem:[%s885 + $0x3c] sm:$0xf] %vm302, %v868
        %902 = vst.msk [vmem:[%s885 + $0x40] sm:$0xf] %vm302, %v869
        %903 = vst.msk [vmem:[%s885 + $0x44] sm:$0xf] %vm302, %v870
        %904 = vst.msk [vmem:[%s885 + $0x48] sm:$0xf] %vm302, %v871
        %905 = vst.msk [vmem:[%s885 + $0x4c] sm:$0xf] %vm302, %v872
        %906 = vst.msk [vmem:[%s885 + $0x50] sm:$0xf] %vm302, %v873
        %907 = vst.msk [vmem:[%s885 + $0x54] sm:$0xf] %vm302, %v874
        %908 = vst.msk [vmem:[%s885 + $0x58] sm:$0xf] %vm302, %v875
        %909 = vst.msk [vmem:[%s885 + $0x5c] sm:$0xf] %vm302, %v876
        %910 = vst.msk [vmem:[%s885 + $0x60] sm:$0xf] %vm302, %v877
        %911 = vst.msk [vmem:[%s885 + $0x64] sm:$0xf] %vm302, %v878
        %912 = vst.msk [vmem:[%s885 + $0x68] sm:$0xf] %vm302, %v879
        %913 = vst.msk [vmem:[%s885 + $0x6c] sm:$0xf] %vm302, %v880
        %914 = vst.msk [vmem:[%s885 + $0x70] sm:$0xf] %vm302, %v881
        %915 = vst.msk [vmem:[%s885 + $0x74] sm:$0xf] %vm302, %v882
        %916 = vst.msk [vmem:[%s885 + $0x78] sm:$0xf] %vm302, %v883
        %917 = vst.msk [vmem:[%s885 + $0x7c] sm:$0xf] %vm302, %v884
        %918 = vst.msk [vmem:[#allocation3] sm:$0xf] %vm302, 0
        %919 = vst.msk [vmem:[#allocation3 + $0x4] sm:$0xf] %vm302, 0
        %920 = vst.msk [vmem:[#allocation3 + $0x8] sm:$0xf] %vm302, 0
        %921 = vst.msk [vmem:[#allocation3 + $0xc] sm:$0xf] %vm302, 0
        %922 = vst.msk [vmem:[#allocation3 + $0x10] sm:$0xf] %vm302, 0
        %923 = vst.msk [vmem:[#allocation3 + $0x14] sm:$0xf] %vm302, 0
        %924 = vst.msk [vmem:[#allocation3 + $0x18] sm:$0xf] %vm302, 0
        %925 = vst.msk [vmem:[#allocation3 + $0x1c] sm:$0xf] %vm302, 0
        %926 = vst.msk [vmem:[#allocation3 + $0x20] sm:$0xf] %vm302, 0
        %927 = vst.msk [vmem:[#allocation3 + $0x24] sm:$0xf] %vm302, 0
        %928 = vst.msk [vmem:[#allocation3 + $0x28] sm:$0xf] %vm302, 0
        %929 = vst.msk [vmem:[#allocation3 + $0x2c] sm:$0xf] %vm302, 0
        %930 = vst.msk [vmem:[#allocation3 + $0x30] sm:$0xf] %vm302, 0
        %931 = vst.msk [vmem:[#allocation3 + $0x34] sm:$0xf] %vm302, 0
        %932 = vst.msk [vmem:[#allocation3 + $0x38] sm:$0xf] %vm302, 0
        %933 = vst.msk [vmem:[#allocation3 + $0x3c] sm:$0xf] %vm302, 0
        %934 = vst.msk [vmem:[#allocation3 + $0x40] sm:$0xf] %vm302, 0
        %935 = vst.msk [vmem:[#allocation3 + $0x44] sm:$0xf] %vm302, 0
        %s936 = scalar_lea.vmem [#allocation3], 200
        %937 = vst.msk [vmem:[%s936] sm:$0xf] %vm302, 0
        %938 = vst.msk [vmem:[%s936 + $0x4] sm:$0xf] %vm302, 0
        %939 = vst.msk [vmem:[%s936 + $0x8] sm:$0xf] %vm302, 0
        %940 = vst.msk [vmem:[%s936 + $0xc] sm:$0xf] %vm302, 0
        %941 = vst.msk [vmem:[%s936 + $0x10] sm:$0xf] %vm302, 0
        %942 = vst.msk [vmem:[%s936 + $0x14] sm:$0xf] %vm302, 0
        %943 = vst.msk [vmem:[%s936 + $0x18] sm:$0xf] %vm302, 0
        %944 = vst.msk [vmem:[%s936 + $0x1c] sm:$0xf] %vm302, 0
        %945 = vst.msk [vmem:[%s936 + $0x20] sm:$0xf] %vm302, 0
        %946 = vst.msk [vmem:[%s936 + $0x24] sm:$0xf] %vm302, 0
        %947 = vst.msk [vmem:[%s936 + $0x28] sm:$0xf] %vm302, 0
        %948 = vst.msk [vmem:[%s936 + $0x2c] sm:$0xf] %vm302, 0
        %949 = vst.msk [vmem:[%s936 + $0x30] sm:$0xf] %vm302, 0
        %950 = vst.msk [vmem:[%s936 + $0x34] sm:$0xf] %vm302, 0
        %951 = vst.msk [vmem:[%s936 + $0x38] sm:$0xf] %vm302, 0
        %952 = vst.msk [vmem:[%s936 + $0x3c] sm:$0xf] %vm302, 0
        %953 = vst.msk [vmem:[%s936 + $0x40] sm:$0xf] %vm302, 0
        %954 = vst.msk [vmem:[%s936 + $0x44] sm:$0xf] %vm302, 0
        %v955 = vld [vmem:[#allocation2] sm:$0xf]
        %v956 = vld [vmem:[#allocation2 + $0x4] sm:$0xf]
        %v957 = vld [vmem:[#allocation2 + $0x8] sm:$0xf]
        %v958 = vld [vmem:[#allocation2 + $0xc] sm:$0xf]
        %v959 = vld [vmem:[#allocation2 + $0x10] sm:$0xf]
        %v960 = vld [vmem:[#allocation2 + $0x14] sm:$0xf]
        %v961 = vld [vmem:[#allocation2 + $0x18] sm:$0xf]
        %v962 = vld [vmem:[#allocation2 + $0x1c] sm:$0xf]
        %v963 = vld [vmem:[#allocation2 + $0x20] sm:$0xf]
        %v964 = vld [vmem:[#allocation2 + $0x24] sm:$0xf]
        %v965 = vld [vmem:[#allocation2 + $0x28] sm:$0xf]
        %v966 = vld [vmem:[#allocation2 + $0x2c] sm:$0xf]
        %v967 = vld [vmem:[#allocation2 + $0x30] sm:$0xf]
        %v968 = vld [vmem:[#allocation2 + $0x34] sm:$0xf]
        %v969 = vld [vmem:[#allocation2 + $0x38] sm:$0xf]
        %v970 = vld [vmem:[#allocation2 + $0x3c] sm:$0xf]
        %v971 = vld [vmem:[#allocation2 + $0x40] sm:$0xf]
        %v972 = vld [vmem:[#allocation2 + $0x44] sm:$0xf]
        %v973 = vld [vmem:[#allocation2 + $0x48] sm:$0xf]
        %v974 = vld [vmem:[#allocation2 + $0x4c] sm:$0xf]
        %v975 = vld [vmem:[#allocation2 + $0x50] sm:$0xf]
        %v976 = vld [vmem:[#allocation2 + $0x54] sm:$0xf]
        %v977 = vld [vmem:[#allocation2 + $0x58] sm:$0xf]
        %v978 = vld [vmem:[#allocation2 + $0x5c] sm:$0xf]
        %v979 = vld [vmem:[#allocation2 + $0x60] sm:$0xf]
        %v980 = vld [vmem:[#allocation2 + $0x64] sm:$0xf]
        %v981 = vld [vmem:[#allocation2 + $0x68] sm:$0xf]
        %v982 = vld [vmem:[#allocation2 + $0x6c] sm:$0xf]
        %v983 = vld [vmem:[#allocation2 + $0x70] sm:$0xf]
        %v984 = vld [vmem:[#allocation2 + $0x74] sm:$0xf]
        %v985 = vld [vmem:[#allocation2 + $0x78] sm:$0xf]
        %v986 = vld [vmem:[#allocation2 + $0x7c] sm:$0xf]
        %s987 = scalar_lea.vmem [#allocation2], 24
        %v988 = vld [vmem:[%s987] sm:$0xf]
        %v989 = vld [vmem:[%s987 + $0x4] sm:$0xf]
        %v990 = vld [vmem:[%s987 + $0x8] sm:$0xf]
        %v991 = vld [vmem:[%s987 + $0xc] sm:$0xf]
        %v992 = vld [vmem:[%s987 + $0x10] sm:$0xf]
        %v993 = vld [vmem:[%s987 + $0x14] sm:$0xf]
        %v994 = vld [vmem:[%s987 + $0x18] sm:$0xf]
        %v995 = vld [vmem:[%s987 + $0x1c] sm:$0xf]
        %v996 = vld [vmem:[%s987 + $0x20] sm:$0xf]
        %v997 = vld [vmem:[%s987 + $0x24] sm:$0xf]
        %v998 = vld [vmem:[%s987 + $0x28] sm:$0xf]
        %v999 = vld [vmem:[%s987 + $0x2c] sm:$0xf]
        %v1000 = vld [vmem:[%s987 + $0x30] sm:$0xf]
        %v1001 = vld [vmem:[%s987 + $0x34] sm:$0xf]
        %v1002 = vld [vmem:[%s987 + $0x38] sm:$0xf]
        %v1003 = vld [vmem:[%s987 + $0x3c] sm:$0xf]
        %v1004 = vld [vmem:[%s987 + $0x40] sm:$0xf]
        %v1005 = vld [vmem:[%s987 + $0x44] sm:$0xf]
        %v1006 = vld [vmem:[%s987 + $0x48] sm:$0xf]
        %v1007 = vld [vmem:[%s987 + $0x4c] sm:$0xf]
        %v1008 = vld [vmem:[%s987 + $0x50] sm:$0xf]
        %v1009 = vld [vmem:[%s987 + $0x54] sm:$0xf]
        %v1010 = vld [vmem:[%s987 + $0x58] sm:$0xf]
        %v1011 = vld [vmem:[%s987 + $0x5c] sm:$0xf]
        %v1012 = vld [vmem:[%s987 + $0x60] sm:$0xf]
        %v1013 = vld [vmem:[%s987 + $0x64] sm:$0xf]
        %v1014 = vld [vmem:[%s987 + $0x68] sm:$0xf]
        %v1015 = vld [vmem:[%s987 + $0x6c] sm:$0xf]
        %v1016 = vld [vmem:[%s987 + $0x70] sm:$0xf]
        %v1017 = vld [vmem:[%s987 + $0x74] sm:$0xf]
        %v1018 = vld [vmem:[%s987 + $0x78] sm:$0xf]
        %v1019 = vld [vmem:[%s987 + $0x7c] sm:$0xf]
        %s1020 = scalar_lea.vmem [#allocation2], 40
        %v1021 = vld [vmem:[%s1020] sm:$0xf]
        %v1022 = vld [vmem:[%s1020 + $0x4] sm:$0xf]
        %v1023 = vld [vmem:[%s1020 + $0x8] sm:$0xf]
        %v1024 = vld [vmem:[%s1020 + $0xc] sm:$0xf]
        %v1025 = vld [vmem:[%s1020 + $0x10] sm:$0xf]
        %v1026 = vld [vmem:[%s1020 + $0x14] sm:$0xf]
        %v1027 = vld [vmem:[%s1020 + $0x18] sm:$0xf]
        %v1028 = vld [vmem:[%s1020 + $0x1c] sm:$0xf]
        %v1029 = vld [vmem:[%s1020 + $0x20] sm:$0xf]
        %v1030 = vld [vmem:[%s1020 + $0x24] sm:$0xf]
        %v1031 = vld [vmem:[%s1020 + $0x28] sm:$0xf]
        %v1032 = vld [vmem:[%s1020 + $0x2c] sm:$0xf]
        %v1033 = vld [vmem:[%s1020 + $0x30] sm:$0xf]
        %v1034 = vld [vmem:[%s1020 + $0x34] sm:$0xf]
        %v1035 = vld [vmem:[%s1020 + $0x38] sm:$0xf]
        %v1036 = vld [vmem:[%s1020 + $0x3c] sm:$0xf]
        %v1037 = vld [vmem:[%s1020 + $0x40] sm:$0xf]
        %v1038 = vld [vmem:[%s1020 + $0x44] sm:$0xf]
        %v1039 = vld [vmem:[%s1020 + $0x48] sm:$0xf]
        %v1040 = vld [vmem:[%s1020 + $0x4c] sm:$0xf]
        %v1041 = vld [vmem:[%s1020 + $0x50] sm:$0xf]
        %v1042 = vld [vmem:[%s1020 + $0x54] sm:$0xf]
        %v1043 = vld [vmem:[%s1020 + $0x58] sm:$0xf]
        %v1044 = vld [vmem:[%s1020 + $0x5c] sm:$0xf]
        %v1045 = vld [vmem:[%s1020 + $0x60] sm:$0xf]
        %v1046 = vld [vmem:[%s1020 + $0x64] sm:$0xf]
        %v1047 = vld [vmem:[%s1020 + $0x68] sm:$0xf]
        %v1048 = vld [vmem:[%s1020 + $0x6c] sm:$0xf]
        %v1049 = vld [vmem:[%s1020 + $0x70] sm:$0xf]
        %v1050 = vld [vmem:[%s1020 + $0x74] sm:$0xf]
        %v1051 = vld [vmem:[%s1020 + $0x78] sm:$0xf]
        %v1052 = vld [vmem:[%s1020 + $0x7c] sm:$0xf]
        %s1053 = scalar_lea.vmem [#allocation2], 48
        %v1054 = vld [vmem:[%s1053] sm:$0xf]
        %v1055 = vld [vmem:[%s1053 + $0x4] sm:$0xf]
        %v1056 = vld [vmem:[%s1053 + $0x8] sm:$0xf]
        %v1057 = vld [vmem:[%s1053 + $0xc] sm:$0xf]
        %v1058 = vld [vmem:[%s1053 + $0x10] sm:$0xf]
        %v1059 = vld [vmem:[%s1053 + $0x14] sm:$0xf]
        %v1060 = vld [vmem:[%s1053 + $0x18] sm:$0xf]
        %v1061 = vld [vmem:[%s1053 + $0x1c] sm:$0xf]
        %v1062 = vld [vmem:[%s1053 + $0x20] sm:$0xf]
        %v1063 = vld [vmem:[%s1053 + $0x24] sm:$0xf]
        %v1064 = vld [vmem:[%s1053 + $0x28] sm:$0xf]
        %v1065 = vld [vmem:[%s1053 + $0x2c] sm:$0xf]
        %v1066 = vld [vmem:[%s1053 + $0x30] sm:$0xf]
        %v1067 = vld [vmem:[%s1053 + $0x34] sm:$0xf]
        %v1068 = vld [vmem:[%s1053 + $0x38] sm:$0xf]
        %v1069 = vld [vmem:[%s1053 + $0x3c] sm:$0xf]
        %v1070 = vld [vmem:[%s1053 + $0x40] sm:$0xf]
        %v1071 = vld [vmem:[%s1053 + $0x44] sm:$0xf]
        %v1072 = vld [vmem:[%s1053 + $0x48] sm:$0xf]
        %v1073 = vld [vmem:[%s1053 + $0x4c] sm:$0xf]
        %v1074 = vld [vmem:[%s1053 + $0x50] sm:$0xf]
        %v1075 = vld [vmem:[%s1053 + $0x54] sm:$0xf]
        %v1076 = vld [vmem:[%s1053 + $0x58] sm:$0xf]
        %v1077 = vld [vmem:[%s1053 + $0x5c] sm:$0xf]
        %v1078 = vld [vmem:[%s1053 + $0x60] sm:$0xf]
        %v1079 = vld [vmem:[%s1053 + $0x64] sm:$0xf]
        %v1080 = vld [vmem:[%s1053 + $0x68] sm:$0xf]
        %v1081 = vld [vmem:[%s1053 + $0x6c] sm:$0xf]
        %v1082 = vld [vmem:[%s1053 + $0x70] sm:$0xf]
        %v1083 = vld [vmem:[%s1053 + $0x74] sm:$0xf]
        %v1084 = vld [vmem:[%s1053 + $0x78] sm:$0xf]
        %v1085 = vld [vmem:[%s1053 + $0x7c] sm:$0xf]
        %s1086 = scalar_lea.vmem [#allocation2], 56
        %v1087 = vld [vmem:[%s1086] sm:$0xf]
        %v1088 = vld [vmem:[%s1086 + $0x4] sm:$0xf]
        %v1089 = vld [vmem:[%s1086 + $0x8] sm:$0xf]
        %v1090 = vld [vmem:[%s1086 + $0xc] sm:$0xf]
        %v1091 = vld [vmem:[%s1086 + $0x10] sm:$0xf]
        %v1092 = vld [vmem:[%s1086 + $0x14] sm:$0xf]
        %v1093 = vld [vmem:[%s1086 + $0x18] sm:$0xf]
        %v1094 = vld [vmem:[%s1086 + $0x1c] sm:$0xf]
        %v1095 = vld [vmem:[%s1086 + $0x20] sm:$0xf]
        %v1096 = vld [vmem:[%s1086 + $0x24] sm:$0xf]
        %v1097 = vld [vmem:[%s1086 + $0x28] sm:$0xf]
        %v1098 = vld [vmem:[%s1086 + $0x2c] sm:$0xf]
        %v1099 = vld [vmem:[%s1086 + $0x30] sm:$0xf]
        %v1100 = vld [vmem:[%s1086 + $0x34] sm:$0xf]
        %v1101 = vld [vmem:[%s1086 + $0x38] sm:$0xf]
        %v1102 = vld [vmem:[%s1086 + $0x3c] sm:$0xf]
        %v1103 = vld [vmem:[%s1086 + $0x40] sm:$0xf]
        %v1104 = vld [vmem:[%s1086 + $0x44] sm:$0xf]
        %v1105 = vld [vmem:[%s1086 + $0x48] sm:$0xf]
        %v1106 = vld [vmem:[%s1086 + $0x4c] sm:$0xf]
        %v1107 = vld [vmem:[%s1086 + $0x50] sm:$0xf]
        %v1108 = vld [vmem:[%s1086 + $0x54] sm:$0xf]
        %v1109 = vld [vmem:[%s1086 + $0x58] sm:$0xf]
        %v1110 = vld [vmem:[%s1086 + $0x5c] sm:$0xf]
        %v1111 = vld [vmem:[%s1086 + $0x60] sm:$0xf]
        %v1112 = vld [vmem:[%s1086 + $0x64] sm:$0xf]
        %v1113 = vld [vmem:[%s1086 + $0x68] sm:$0xf]
        %v1114 = vld [vmem:[%s1086 + $0x6c] sm:$0xf]
        %v1115 = vld [vmem:[%s1086 + $0x70] sm:$0xf]
        %v1116 = vld [vmem:[%s1086 + $0x74] sm:$0xf]
        %v1117 = vld [vmem:[%s1086 + $0x78] sm:$0xf]
        %v1118 = vld [vmem:[%s1086 + $0x7c] sm:$0xf]
        %s1119 = scalar_lea.vmem [#allocation2], 64
        %v1120 = vld [vmem:[%s1119] sm:$0xf]
        %v1121 = vld [vmem:[%s1119 + $0x4] sm:$0xf]
        %v1122 = vld [vmem:[%s1119 + $0x8] sm:$0xf]
        %v1123 = vld [vmem:[%s1119 + $0xc] sm:$0xf]
        %v1124 = vld [vmem:[%s1119 + $0x10] sm:$0xf]
        %v1125 = vld [vmem:[%s1119 + $0x14] sm:$0xf]
        %v1126 = vld [vmem:[%s1119 + $0x18] sm:$0xf]
        %v1127 = vld [vmem:[%s1119 + $0x1c] sm:$0xf]
        %v1128 = vld [vmem:[%s1119 + $0x20] sm:$0xf]
        %v1129 = vld [vmem:[%s1119 + $0x24] sm:$0xf]
        %v1130 = vld [vmem:[%s1119 + $0x28] sm:$0xf]
        %v1131 = vld [vmem:[%s1119 + $0x2c] sm:$0xf]
        %v1132 = vld [vmem:[%s1119 + $0x30] sm:$0xf]
        %v1133 = vld [vmem:[%s1119 + $0x34] sm:$0xf]
        %v1134 = vld [vmem:[%s1119 + $0x38] sm:$0xf]
        %v1135 = vld [vmem:[%s1119 + $0x3c] sm:$0xf]
        %v1136 = vld [vmem:[%s1119 + $0x40] sm:$0xf]
        %v1137 = vld [vmem:[%s1119 + $0x44] sm:$0xf]
        %v1138 = vld [vmem:[%s1119 + $0x48] sm:$0xf]
        %v1139 = vld [vmem:[%s1119 + $0x4c] sm:$0xf]
        %v1140 = vld [vmem:[%s1119 + $0x50] sm:$0xf]
        %v1141 = vld [vmem:[%s1119 + $0x54] sm:$0xf]
        %v1142 = vld [vmem:[%s1119 + $0x58] sm:$0xf]
        %v1143 = vld [vmem:[%s1119 + $0x5c] sm:$0xf]
        %v1144 = vld [vmem:[%s1119 + $0x60] sm:$0xf]
        %v1145 = vld [vmem:[%s1119 + $0x64] sm:$0xf]
        %v1146 = vld [vmem:[%s1119 + $0x68] sm:$0xf]
        %v1147 = vld [vmem:[%s1119 + $0x6c] sm:$0xf]
        %v1148 = vld [vmem:[%s1119 + $0x70] sm:$0xf]
        %v1149 = vld [vmem:[%s1119 + $0x74] sm:$0xf]
        %v1150 = vld [vmem:[%s1119 + $0x78] sm:$0xf]
        %v1151 = vld [vmem:[%s1119 + $0x7c] sm:$0xf]
        %v1152 = vld [vmem:[%s301] sm:$0xf]
        %v1153 = vld [vmem:[%s301 + $0x4] sm:$0xf]
        %v1154 = vld [vmem:[%s301 + $0x8] sm:$0xf]
        %v1155 = vld [vmem:[%s301 + $0xc] sm:$0xf]
        %v1156 = vld [vmem:[%s301 + $0x10] sm:$0xf]
        %v1157 = vld [vmem:[%s301 + $0x14] sm:$0xf]
        %v1158 = vld [vmem:[%s301 + $0x18] sm:$0xf]
        %v1159 = vld [vmem:[%s301 + $0x1c] sm:$0xf]
        %v1160 = vld [vmem:[%s301 + $0x20] sm:$0xf]
        %v1161 = vld [vmem:[%s301 + $0x24] sm:$0xf]
        %v1162 = vld [vmem:[%s301 + $0x28] sm:$0xf]
        %v1163 = vld [vmem:[%s301 + $0x2c] sm:$0xf]
        %v1164 = vld [vmem:[%s301 + $0x30] sm:$0xf]
        %v1165 = vld [vmem:[%s301 + $0x34] sm:$0xf]
        %v1166 = vld [vmem:[%s301 + $0x38] sm:$0xf]
        %v1167 = vld [vmem:[%s301 + $0x3c] sm:$0xf]
        %v1168 = vld [vmem:[%s301 + $0x40] sm:$0xf]
        %v1169 = vld [vmem:[%s301 + $0x44] sm:$0xf]
        %v1170 = vld [vmem:[%s301 + $0x48] sm:$0xf]
        %v1171 = vld [vmem:[%s301 + $0x4c] sm:$0xf]
        %v1172 = vld [vmem:[%s301 + $0x50] sm:$0xf]
        %v1173 = vld [vmem:[%s301 + $0x54] sm:$0xf]
        %v1174 = vld [vmem:[%s301 + $0x58] sm:$0xf]
        %v1175 = vld [vmem:[%s301 + $0x5c] sm:$0xf]
        %v1176 = vld [vmem:[%s301 + $0x60] sm:$0xf]
        %v1177 = vld [vmem:[%s301 + $0x64] sm:$0xf]
        %v1178 = vld [vmem:[%s301 + $0x68] sm:$0xf]
        %v1179 = vld [vmem:[%s301 + $0x6c] sm:$0xf]
        %v1180 = vld [vmem:[%s301 + $0x70] sm:$0xf]
        %v1181 = vld [vmem:[%s301 + $0x74] sm:$0xf]
        %v1182 = vld [vmem:[%s301 + $0x78] sm:$0xf]
        %v1183 = vld [vmem:[%s301 + $0x7c] sm:$0xf]
        %s1184 = scalar_lea.vmem [#allocation2], 80
        %v1185 = vld [vmem:[%s1184] sm:$0xf]
        %v1186 = vld [vmem:[%s1184 + $0x4] sm:$0xf]
        %v1187 = vld [vmem:[%s1184 + $0x8] sm:$0xf]
        %v1188 = vld [vmem:[%s1184 + $0xc] sm:$0xf]
        %v1189 = vld [vmem:[%s1184 + $0x10] sm:$0xf]
        %v1190 = vld [vmem:[%s1184 + $0x14] sm:$0xf]
        %v1191 = vld [vmem:[%s1184 + $0x18] sm:$0xf]
        %v1192 = vld [vmem:[%s1184 + $0x1c] sm:$0xf]
        %v1193 = vld [vmem:[%s1184 + $0x20] sm:$0xf]
        %v1194 = vld [vmem:[%s1184 + $0x24] sm:$0xf]
        %v1195 = vld [vmem:[%s1184 + $0x28] sm:$0xf]
        %v1196 = vld [vmem:[%s1184 + $0x2c] sm:$0xf]
        %v1197 = vld [vmem:[%s1184 + $0x30] sm:$0xf]
        %v1198 = vld [vmem:[%s1184 + $0x34] sm:$0xf]
        %v1199 = vld [vmem:[%s1184 + $0x38] sm:$0xf]
        %v1200 = vld [vmem:[%s1184 + $0x3c] sm:$0xf]
        %v1201 = vld [vmem:[%s1184 + $0x40] sm:$0xf]
        %v1202 = vld [vmem:[%s1184 + $0x44] sm:$0xf]
        %v1203 = vld [vmem:[%s1184 + $0x48] sm:$0xf]
        %v1204 = vld [vmem:[%s1184 + $0x4c] sm:$0xf]
        %v1205 = vld [vmem:[%s1184 + $0x50] sm:$0xf]
        %v1206 = vld [vmem:[%s1184 + $0x54] sm:$0xf]
        %v1207 = vld [vmem:[%s1184 + $0x58] sm:$0xf]
        %v1208 = vld [vmem:[%s1184 + $0x5c] sm:$0xf]
        %v1209 = vld [vmem:[%s1184 + $0x60] sm:$0xf]
        %v1210 = vld [vmem:[%s1184 + $0x64] sm:$0xf]
        %v1211 = vld [vmem:[%s1184 + $0x68] sm:$0xf]
        %v1212 = vld [vmem:[%s1184 + $0x6c] sm:$0xf]
        %v1213 = vld [vmem:[%s1184 + $0x70] sm:$0xf]
        %v1214 = vld [vmem:[%s1184 + $0x74] sm:$0xf]
        %v1215 = vld [vmem:[%s1184 + $0x78] sm:$0xf]
        %v1216 = vld [vmem:[%s1184 + $0x7c] sm:$0xf]
        %s1217 = scalar_lea.vmem [#allocation2], 88
        %v1218 = vld [vmem:[%s1217] sm:$0xf]
        %v1219 = vld [vmem:[%s1217 + $0x4] sm:$0xf]
        %v1220 = vld [vmem:[%s1217 + $0x8] sm:$0xf]
        %v1221 = vld [vmem:[%s1217 + $0xc] sm:$0xf]
        %v1222 = vld [vmem:[%s1217 + $0x10] sm:$0xf]
        %v1223 = vld [vmem:[%s1217 + $0x14] sm:$0xf]
        %v1224 = vld [vmem:[%s1217 + $0x18] sm:$0xf]
        %v1225 = vld [vmem:[%s1217 + $0x1c] sm:$0xf]
        %v1226 = vld [vmem:[%s1217 + $0x20] sm:$0xf]
        %v1227 = vld [vmem:[%s1217 + $0x24] sm:$0xf]
        %v1228 = vld [vmem:[%s1217 + $0x28] sm:$0xf]
        %v1229 = vld [vmem:[%s1217 + $0x2c] sm:$0xf]
        %v1230 = vld [vmem:[%s1217 + $0x30] sm:$0xf]
        %v1231 = vld [vmem:[%s1217 + $0x34] sm:$0xf]
        %v1232 = vld [vmem:[%s1217 + $0x38] sm:$0xf]
        %v1233 = vld [vmem:[%s1217 + $0x3c] sm:$0xf]
        %v1234 = vld [vmem:[%s1217 + $0x40] sm:$0xf]
        %v1235 = vld [vmem:[%s1217 + $0x44] sm:$0xf]
        %v1236 = vld [vmem:[%s1217 + $0x48] sm:$0xf]
        %v1237 = vld [vmem:[%s1217 + $0x4c] sm:$0xf]
        %v1238 = vld [vmem:[%s1217 + $0x50] sm:$0xf]
        %v1239 = vld [vmem:[%s1217 + $0x54] sm:$0xf]
        %v1240 = vld [vmem:[%s1217 + $0x58] sm:$0xf]
        %v1241 = vld [vmem:[%s1217 + $0x5c] sm:$0xf]
        %v1242 = vld [vmem:[%s1217 + $0x60] sm:$0xf]
        %v1243 = vld [vmem:[%s1217 + $0x64] sm:$0xf]
        %v1244 = vld [vmem:[%s1217 + $0x68] sm:$0xf]
        %v1245 = vld [vmem:[%s1217 + $0x6c] sm:$0xf]
        %v1246 = vld [vmem:[%s1217 + $0x70] sm:$0xf]
        %v1247 = vld [vmem:[%s1217 + $0x74] sm:$0xf]
        %v1248 = vld [vmem:[%s1217 + $0x78] sm:$0xf]
        %v1249 = vld [vmem:[%s1217 + $0x7c] sm:$0xf]
        %s1250 = scalar_lea.vmem [#allocation2], 96
        %v1251 = vld [vmem:[%s1250] sm:$0xf]
        %v1252 = vld [vmem:[%s1250 + $0x4] sm:$0xf]
        %v1253 = vld [vmem:[%s1250 + $0x8] sm:$0xf]
        %v1254 = vld [vmem:[%s1250 + $0xc] sm:$0xf]
        %v1255 = vld [vmem:[%s1250 + $0x10] sm:$0xf]
        %v1256 = vld [vmem:[%s1250 + $0x14] sm:$0xf]
        %v1257 = vld [vmem:[%s1250 + $0x18] sm:$0xf]
        %v1258 = vld [vmem:[%s1250 + $0x1c] sm:$0xf]
        %v1259 = vld [vmem:[%s1250 + $0x20] sm:$0xf]
        %v1260 = vld [vmem:[%s1250 + $0x24] sm:$0xf]
        %v1261 = vld [vmem:[%s1250 + $0x28] sm:$0xf]
        %v1262 = vld [vmem:[%s1250 + $0x2c] sm:$0xf]
        %v1263 = vld [vmem:[%s1250 + $0x30] sm:$0xf]
        %v1264 = vld [vmem:[%s1250 + $0x34] sm:$0xf]
        %v1265 = vld [vmem:[%s1250 + $0x38] sm:$0xf]
        %v1266 = vld [vmem:[%s1250 + $0x3c] sm:$0xf]
        %v1267 = vld [vmem:[%s1250 + $0x40] sm:$0xf]
        %v1268 = vld [vmem:[%s1250 + $0x44] sm:$0xf]
        %v1269 = vld [vmem:[%s1250 + $0x48] sm:$0xf]
        %v1270 = vld [vmem:[%s1250 + $0x4c] sm:$0xf]
        %v1271 = vld [vmem:[%s1250 + $0x50] sm:$0xf]
        %v1272 = vld [vmem:[%s1250 + $0x54] sm:$0xf]
        %v1273 = vld [vmem:[%s1250 + $0x58] sm:$0xf]
        %v1274 = vld [vmem:[%s1250 + $0x5c] sm:$0xf]
        %v1275 = vld [vmem:[%s1250 + $0x60] sm:$0xf]
        %v1276 = vld [vmem:[%s1250 + $0x64] sm:$0xf]
        %v1277 = vld [vmem:[%s1250 + $0x68] sm:$0xf]
        %v1278 = vld [vmem:[%s1250 + $0x6c] sm:$0xf]
        %v1279 = vld [vmem:[%s1250 + $0x70] sm:$0xf]
        %v1280 = vld [vmem:[%s1250 + $0x74] sm:$0xf]
        %v1281 = vld [vmem:[%s1250 + $0x78] sm:$0xf]
        %v1282 = vld [vmem:[%s1250 + $0x7c] sm:$0xf]
        %s1283 = scalar_lea.vmem [#allocation2], 104
        %v1284 = vld [vmem:[%s1283] sm:$0xf]
        %v1285 = vld [vmem:[%s1283 + $0x4] sm:$0xf]
        %v1286 = vld [vmem:[%s1283 + $0x8] sm:$0xf]
        %v1287 = vld [vmem:[%s1283 + $0xc] sm:$0xf]
        %v1288 = vld [vmem:[%s1283 + $0x10] sm:$0xf]
        %v1289 = vld [vmem:[%s1283 + $0x14] sm:$0xf]
        %v1290 = vld [vmem:[%s1283 + $0x18] sm:$0xf]
        %v1291 = vld [vmem:[%s1283 + $0x1c] sm:$0xf]
        %v1292 = vld [vmem:[%s1283 + $0x20] sm:$0xf]
        %v1293 = vld [vmem:[%s1283 + $0x24] sm:$0xf]
        %v1294 = vld [vmem:[%s1283 + $0x28] sm:$0xf]
        %v1295 = vld [vmem:[%s1283 + $0x2c] sm:$0xf]
        %v1296 = vld [vmem:[%s1283 + $0x30] sm:$0xf]
        %v1297 = vld [vmem:[%s1283 + $0x34] sm:$0xf]
        %v1298 = vld [vmem:[%s1283 + $0x38] sm:$0xf]
        %v1299 = vld [vmem:[%s1283 + $0x3c] sm:$0xf]
        %v1300 = vld [vmem:[%s1283 + $0x40] sm:$0xf]
        %v1301 = vld [vmem:[%s1283 + $0x44] sm:$0xf]
        %v1302 = vld [vmem:[%s1283 + $0x48] sm:$0xf]
        %v1303 = vld [vmem:[%s1283 + $0x4c] sm:$0xf]
        %v1304 = vld [vmem:[%s1283 + $0x50] sm:$0xf]
        %v1305 = vld [vmem:[%s1283 + $0x54] sm:$0xf]
        %v1306 = vld [vmem:[%s1283 + $0x58] sm:$0xf]
        %v1307 = vld [vmem:[%s1283 + $0x5c] sm:$0xf]
        %v1308 = vld [vmem:[%s1283 + $0x60] sm:$0xf]
        %v1309 = vld [vmem:[%s1283 + $0x64] sm:$0xf]
        %v1310 = vld [vmem:[%s1283 + $0x68] sm:$0xf]
        %v1311 = vld [vmem:[%s1283 + $0x6c] sm:$0xf]
        %v1312 = vld [vmem:[%s1283 + $0x70] sm:$0xf]
        %v1313 = vld [vmem:[%s1283 + $0x74] sm:$0xf]
        %v1314 = vld [vmem:[%s1283 + $0x78] sm:$0xf]
        %v1315 = vld [vmem:[%s1283 + $0x7c] sm:$0xf]
        %s1316 = scalar_lea.vmem [#allocation2], 120
        %v1317 = vld [vmem:[%s1316] sm:$0xf]
        %v1318 = vld [vmem:[%s1316 + $0x4] sm:$0xf]
        %v1319 = vld [vmem:[%s1316 + $0x8] sm:$0xf]
        %v1320 = vld [vmem:[%s1316 + $0xc] sm:$0xf]
        %v1321 = vld [vmem:[%s1316 + $0x10] sm:$0xf]
        %v1322 = vld [vmem:[%s1316 + $0x14] sm:$0xf]
        %v1323 = vld [vmem:[%s1316 + $0x18] sm:$0xf]
        %v1324 = vld [vmem:[%s1316 + $0x1c] sm:$0xf]
        %v1325 = vld [vmem:[%s1316 + $0x20] sm:$0xf]
        %v1326 = vld [vmem:[%s1316 + $0x24] sm:$0xf]
        %v1327 = vld [vmem:[%s1316 + $0x28] sm:$0xf]
        %v1328 = vld [vmem:[%s1316 + $0x2c] sm:$0xf]
        %v1329 = vld [vmem:[%s1316 + $0x30] sm:$0xf]
        %v1330 = vld [vmem:[%s1316 + $0x34] sm:$0xf]
        %v1331 = vld [vmem:[%s1316 + $0x38] sm:$0xf]
        %v1332 = vld [vmem:[%s1316 + $0x3c] sm:$0xf]
        %v1333 = vld [vmem:[%s1316 + $0x40] sm:$0xf]
        %v1334 = vld [vmem:[%s1316 + $0x44] sm:$0xf]
        %v1335 = vld [vmem:[%s1316 + $0x48] sm:$0xf]
        %v1336 = vld [vmem:[%s1316 + $0x4c] sm:$0xf]
        %v1337 = vld [vmem:[%s1316 + $0x50] sm:$0xf]
        %v1338 = vld [vmem:[%s1316 + $0x54] sm:$0xf]
        %v1339 = vld [vmem:[%s1316 + $0x58] sm:$0xf]
        %v1340 = vld [vmem:[%s1316 + $0x5c] sm:$0xf]
        %v1341 = vld [vmem:[%s1316 + $0x60] sm:$0xf]
        %v1342 = vld [vmem:[%s1316 + $0x64] sm:$0xf]
        %v1343 = vld [vmem:[%s1316 + $0x68] sm:$0xf]
        %v1344 = vld [vmem:[%s1316 + $0x6c] sm:$0xf]
        %v1345 = vld [vmem:[%s1316 + $0x70] sm:$0xf]
        %v1346 = vld [vmem:[%s1316 + $0x74] sm:$0xf]
        %v1347 = vld [vmem:[%s1316 + $0x78] sm:$0xf]
        %v1348 = vld [vmem:[%s1316 + $0x7c] sm:$0xf]
        %s1349 = scalar_lea.vmem [#allocation2], 144
        %v1350 = vld [vmem:[%s1349] sm:$0xf]
        %v1351 = vld [vmem:[%s1349 + $0x4] sm:$0xf]
        %v1352 = vld [vmem:[%s1349 + $0x8] sm:$0xf]
        %v1353 = vld [vmem:[%s1349 + $0xc] sm:$0xf]
        %v1354 = vld [vmem:[%s1349 + $0x10] sm:$0xf]
        %v1355 = vld [vmem:[%s1349 + $0x14] sm:$0xf]
        %v1356 = vld [vmem:[%s1349 + $0x18] sm:$0xf]
        %v1357 = vld [vmem:[%s1349 + $0x1c] sm:$0xf]
        %v1358 = vld [vmem:[%s1349 + $0x20] sm:$0xf]
        %v1359 = vld [vmem:[%s1349 + $0x24] sm:$0xf]
        %v1360 = vld [vmem:[%s1349 + $0x28] sm:$0xf]
        %v1361 = vld [vmem:[%s1349 + $0x2c] sm:$0xf]
        %v1362 = vld [vmem:[%s1349 + $0x30] sm:$0xf]
        %v1363 = vld [vmem:[%s1349 + $0x34] sm:$0xf]
        %v1364 = vld [vmem:[%s1349 + $0x38] sm:$0xf]
        %v1365 = vld [vmem:[%s1349 + $0x3c] sm:$0xf]
        %v1366 = vld [vmem:[%s1349 + $0x40] sm:$0xf]
        %v1367 = vld [vmem:[%s1349 + $0x44] sm:$0xf]
        %v1368 = vld [vmem:[%s1349 + $0x48] sm:$0xf]
        %v1369 = vld [vmem:[%s1349 + $0x4c] sm:$0xf]
        %v1370 = vld [vmem:[%s1349 + $0x50] sm:$0xf]
        %v1371 = vld [vmem:[%s1349 + $0x54] sm:$0xf]
        %v1372 = vld [vmem:[%s1349 + $0x58] sm:$0xf]
        %v1373 = vld [vmem:[%s1349 + $0x5c] sm:$0xf]
        %v1374 = vld [vmem:[%s1349 + $0x60] sm:$0xf]
        %v1375 = vld [vmem:[%s1349 + $0x64] sm:$0xf]
        %v1376 = vld [vmem:[%s1349 + $0x68] sm:$0xf]
        %v1377 = vld [vmem:[%s1349 + $0x6c] sm:$0xf]
        %v1378 = vld [vmem:[%s1349 + $0x70] sm:$0xf]
        %v1379 = vld [vmem:[%s1349 + $0x74] sm:$0xf]
        %v1380 = vld [vmem:[%s1349 + $0x78] sm:$0xf]
        %v1381 = vld [vmem:[%s1349 + $0x7c] sm:$0xf]
        %v1414 = vunpack.c.l.b16 %v955
        %v1415 = vunpack.c.l.b16 %v956
        %v1416 = vunpack.c.l.b16 %v957
        %v1417 = vunpack.c.l.b16 %v958
        %v1418 = vunpack.c.l.b16 %v959
        %v1419 = vunpack.c.l.b16 %v960
        %v1420 = vunpack.c.l.b16 %v961
        %v1421 = vunpack.c.l.b16 %v962
        %v1422 = vunpack.c.l.b16 %v963
        %v1423 = vunpack.c.l.b16 %v964
        %v1424 = vunpack.c.l.b16 %v965
        %v1425 = vunpack.c.l.b16 %v966
        %v1426 = vunpack.c.l.b16 %v967
        %v1427 = vunpack.c.l.b16 %v968
        %v1428 = vunpack.c.l.b16 %v969
        %v1429 = vunpack.c.l.b16 %v970
        %v1430 = vunpack.c.l.b16 %v971
        %v1431 = vunpack.c.l.b16 %v972
        %v1432 = vunpack.c.l.b16 %v973
        %v1433 = vunpack.c.l.b16 %v974
        %v1434 = vunpack.c.l.b16 %v975
        %v1435 = vunpack.c.l.b16 %v976
        %v1436 = vunpack.c.l.b16 %v977
        %v1437 = vunpack.c.l.b16 %v978
        %v1438 = vunpack.c.l.b16 %v979
        %v1439 = vunpack.c.l.b16 %v980
        %v1440 = vunpack.c.l.b16 %v981
        %v1441 = vunpack.c.l.b16 %v982
        %v1442 = vunpack.c.l.b16 %v983
        %v1443 = vunpack.c.l.b16 %v984
        %v1444 = vunpack.c.l.b16 %v985
        %v1445 = vunpack.c.l.b16 %v986
        %v1446 = vpack.c.b16 %v1415, %v1414
        %v1447 = vpack.c.b16 %v1417, %v1416
        %v1448 = vpack.c.b16 %v1419, %v1418
        %v1449 = vpack.c.b16 %v1421, %v1420
        %v1450 = vpack.c.b16 %v1423, %v1422
        %v1451 = vpack.c.b16 %v1425, %v1424
        %v1452 = vpack.c.b16 %v1427, %v1426
        %v1453 = vpack.c.b16 %v1429, %v1428
        %v1454 = vpack.c.b16 %v1431, %v1430
        %v1455 = vpack.c.b16 %v1433, %v1432
        %v1456 = vpack.c.b16 %v1435, %v1434
        %v1457 = vpack.c.b16 %v1437, %v1436
        %v1458 = vpack.c.b16 %v1439, %v1438
        %v1459 = vpack.c.b16 %v1441, %v1440
        %v1460 = vpack.c.b16 %v1443, %v1442
        %v1461 = vpack.c.b16 %v1445, %v1444
        %v1494 = vunpack.c.l.b16 %v988
        %v1495 = vunpack.c.l.b16 %v989
        %v1496 = vunpack.c.l.b16 %v990
        %v1497 = vunpack.c.l.b16 %v991
        %v1498 = vunpack.c.l.b16 %v992
        %v1499 = vunpack.c.l.b16 %v993
        %v1500 = vunpack.c.l.b16 %v994
        %v1501 = vunpack.c.l.b16 %v995
        %v1502 = vunpack.c.l.b16 %v996
        %v1503 = vunpack.c.l.b16 %v997
        %v1504 = vunpack.c.l.b16 %v998
        %v1505 = vunpack.c.l.b16 %v999
        %v1506 = vunpack.c.l.b16 %v1000
        %v1507 = vunpack.c.l.b16 %v1001
        %v1508 = vunpack.c.l.b16 %v1002
        %v1509 = vunpack.c.l.b16 %v1003
        %v1510 = vunpack.c.l.b16 %v1004
        %v1511 = vunpack.c.l.b16 %v1005
        %v1512 = vunpack.c.l.b16 %v1006
        %v1513 = vunpack.c.l.b16 %v1007
        %v1514 = vunpack.c.l.b16 %v1008
        %v1515 = vunpack.c.l.b16 %v1009
        %v1516 = vunpack.c.l.b16 %v1010
        %v1517 = vunpack.c.l.b16 %v1011
        %v1518 = vunpack.c.l.b16 %v1012
        %v1519 = vunpack.c.l.b16 %v1013
        %v1520 = vunpack.c.l.b16 %v1014
        %v1521 = vunpack.c.l.b16 %v1015
        %v1522 = vunpack.c.l.b16 %v1016
        %v1523 = vunpack.c.l.b16 %v1017
        %v1524 = vunpack.c.l.b16 %v1018
        %v1525 = vunpack.c.l.b16 %v1019
        %v1526 = vpack.c.b16 %v1495, %v1494
        %v1527 = vpack.c.b16 %v1497, %v1496
        %v1528 = vpack.c.b16 %v1499, %v1498
        %v1529 = vpack.c.b16 %v1501, %v1500
        %v1530 = vpack.c.b16 %v1503, %v1502
        %v1531 = vpack.c.b16 %v1505, %v1504
        %v1532 = vpack.c.b16 %v1507, %v1506
        %v1533 = vpack.c.b16 %v1509, %v1508
        %v1534 = vpack.c.b16 %v1511, %v1510
        %v1535 = vpack.c.b16 %v1513, %v1512
        %v1536 = vpack.c.b16 %v1515, %v1514
        %v1537 = vpack.c.b16 %v1517, %v1516
        %v1538 = vpack.c.b16 %v1519, %v1518
        %v1539 = vpack.c.b16 %v1521, %v1520
        %v1540 = vpack.c.b16 %v1523, %v1522
        %v1541 = vpack.c.b16 %v1525, %v1524
        %1542 = vrot.lane.b32.xlu0 %v1526, 32
        %v1543 = vpop.permute.xlu0 %1542
        %1544 = vrot.lane.b32.xlu0 %v1527, 32
        %v1545 = vpop.permute.xlu0 %1544
        %1546 = vrot.lane.b32.xlu0 %v1528, 32
        %v1547 = vpop.permute.xlu0 %1546
        %1548 = vrot.lane.b32.xlu0 %v1529, 32
        %v1549 = vpop.permute.xlu0 %1548
        %1550 = vrot.lane.b32.xlu0 %v1530, 32
        %v1551 = vpop.permute.xlu0 %1550
        %1552 = vrot.lane.b32.xlu0 %v1531, 32
        %v1553 = vpop.permute.xlu0 %1552
        %1554 = vrot.lane.b32.xlu0 %v1532, 32
        %v1555 = vpop.permute.xlu0 %1554
        %1556 = vrot.lane.b32.xlu0 %v1533, 32
        %v1557 = vpop.permute.xlu0 %1556
        %1558 = vrot.lane.b32.xlu0 %v1534, 32
        %v1559 = vpop.permute.xlu0 %1558
        %1560 = vrot.lane.b32.xlu0 %v1535, 32
        %v1561 = vpop.permute.xlu0 %1560
        %1562 = vrot.lane.b32.xlu0 %v1536, 32
        %v1563 = vpop.permute.xlu0 %1562
        %1564 = vrot.lane.b32.xlu0 %v1537, 32
        %v1565 = vpop.permute.xlu0 %1564
        %1566 = vrot.lane.b32.xlu0 %v1538, 32
        %v1567 = vpop.permute.xlu0 %1566
        %1568 = vrot.lane.b32.xlu0 %v1539, 32
        %v1569 = vpop.permute.xlu0 %1568
        %1570 = vrot.lane.b32.xlu0 %v1540, 32
        %v1571 = vpop.permute.xlu0 %1570
        %1572 = vrot.lane.b32.xlu0 %v1541, 32
        %v1573 = vpop.permute.xlu0 %1572
        %v1606 = vunpack.c.l.b16 %v1021
        %v1607 = vunpack.c.l.b16 %v1022
        %v1608 = vunpack.c.l.b16 %v1023
        %v1609 = vunpack.c.l.b16 %v1024
        %v1610 = vunpack.c.l.b16 %v1025
        %v1611 = vunpack.c.l.b16 %v1026
        %v1612 = vunpack.c.l.b16 %v1027
        %v1613 = vunpack.c.l.b16 %v1028
        %v1614 = vunpack.c.l.b16 %v1029
        %v1615 = vunpack.c.l.b16 %v1030
        %v1616 = vunpack.c.l.b16 %v1031
        %v1617 = vunpack.c.l.b16 %v1032
        %v1618 = vunpack.c.l.b16 %v1033
        %v1619 = vunpack.c.l.b16 %v1034
        %v1620 = vunpack.c.l.b16 %v1035
        %v1621 = vunpack.c.l.b16 %v1036
        %v1622 = vunpack.c.l.b16 %v1037
        %v1623 = vunpack.c.l.b16 %v1038
        %v1624 = vunpack.c.l.b16 %v1039
        %v1625 = vunpack.c.l.b16 %v1040
        %v1626 = vunpack.c.l.b16 %v1041
        %v1627 = vunpack.c.l.b16 %v1042
        %v1628 = vunpack.c.l.b16 %v1043
        %v1629 = vunpack.c.l.b16 %v1044
        %v1630 = vunpack.c.l.b16 %v1045
        %v1631 = vunpack.c.l.b16 %v1046
        %v1632 = vunpack.c.l.b16 %v1047
        %v1633 = vunpack.c.l.b16 %v1048
        %v1634 = vunpack.c.l.b16 %v1049
        %v1635 = vunpack.c.l.b16 %v1050
        %v1636 = vunpack.c.l.b16 %v1051
        %v1637 = vunpack.c.l.b16 %v1052
        %v1638 = vpack.c.b16 %v1607, %v1606
        %v1639 = vpack.c.b16 %v1609, %v1608
        %v1640 = vpack.c.b16 %v1611, %v1610
        %v1641 = vpack.c.b16 %v1613, %v1612
        %v1642 = vpack.c.b16 %v1615, %v1614
        %v1643 = vpack.c.b16 %v1617, %v1616
        %v1644 = vpack.c.b16 %v1619, %v1618
        %v1645 = vpack.c.b16 %v1621, %v1620
        %v1646 = vpack.c.b16 %v1623, %v1622
        %v1647 = vpack.c.b16 %v1625, %v1624
        %v1648 = vpack.c.b16 %v1627, %v1626
        %v1649 = vpack.c.b16 %v1629, %v1628
        %v1650 = vpack.c.b16 %v1631, %v1630
        %v1651 = vpack.c.b16 %v1633, %v1632
        %v1652 = vpack.c.b16 %v1635, %v1634
        %v1653 = vpack.c.b16 %v1637, %v1636
        %1654 = vrot.lane.b32.xlu0 %v1638, 64
        %v1655 = vpop.permute.xlu0 %1654
        %1656 = vrot.lane.b32.xlu0 %v1639, 64
        %v1657 = vpop.permute.xlu0 %1656
        %1658 = vrot.lane.b32.xlu0 %v1640, 64
        %v1659 = vpop.permute.xlu0 %1658
        %1660 = vrot.lane.b32.xlu0 %v1641, 64
        %v1661 = vpop.permute.xlu0 %1660
        %1662 = vrot.lane.b32.xlu0 %v1642, 64
        %v1663 = vpop.permute.xlu0 %1662
        %1664 = vrot.lane.b32.xlu0 %v1643, 64
        %v1665 = vpop.permute.xlu0 %1664
        %1666 = vrot.lane.b32.xlu0 %v1644, 64
        %v1667 = vpop.permute.xlu0 %1666
        %1668 = vrot.lane.b32.xlu0 %v1645, 64
        %v1669 = vpop.permute.xlu0 %1668
        %1670 = vrot.lane.b32.xlu0 %v1646, 64
        %v1671 = vpop.permute.xlu0 %1670
        %1672 = vrot.lane.b32.xlu0 %v1647, 64
        %v1673 = vpop.permute.xlu0 %1672
        %1674 = vrot.lane.b32.xlu0 %v1648, 64
        %v1675 = vpop.permute.xlu0 %1674
        %1676 = vrot.lane.b32.xlu0 %v1649, 64
        %v1677 = vpop.permute.xlu0 %1676
        %1678 = vrot.lane.b32.xlu0 %v1650, 64
        %v1679 = vpop.permute.xlu0 %1678
        %1680 = vrot.lane.b32.xlu0 %v1651, 64
        %v1681 = vpop.permute.xlu0 %1680
        %1682 = vrot.lane.b32.xlu0 %v1652, 64
        %v1683 = vpop.permute.xlu0 %1682
        %1684 = vrot.lane.b32.xlu0 %v1653, 64
        %v1685 = vpop.permute.xlu0 %1684
        %v1718 = vunpack.c.l.b16 %v1054
        %v1719 = vunpack.c.l.b16 %v1055
        %v1720 = vunpack.c.l.b16 %v1056
        %v1721 = vunpack.c.l.b16 %v1057
        %v1722 = vunpack.c.l.b16 %v1058
        %v1723 = vunpack.c.l.b16 %v1059
        %v1724 = vunpack.c.l.b16 %v1060
        %v1725 = vunpack.c.l.b16 %v1061
        %v1726 = vunpack.c.l.b16 %v1062
        %v1727 = vunpack.c.l.b16 %v1063
        %v1728 = vunpack.c.l.b16 %v1064
        %v1729 = vunpack.c.l.b16 %v1065
        %v1730 = vunpack.c.l.b16 %v1066
        %v1731 = vunpack.c.l.b16 %v1067
        %v1732 = vunpack.c.l.b16 %v1068
        %v1733 = vunpack.c.l.b16 %v1069
        %v1734 = vunpack.c.l.b16 %v1070
        %v1735 = vunpack.c.l.b16 %v1071
        %v1736 = vunpack.c.l.b16 %v1072
        %v1737 = vunpack.c.l.b16 %v1073
        %v1738 = vunpack.c.l.b16 %v1074
        %v1739 = vunpack.c.l.b16 %v1075
        %v1740 = vunpack.c.l.b16 %v1076
        %v1741 = vunpack.c.l.b16 %v1077
        %v1742 = vunpack.c.l.b16 %v1078
        %v1743 = vunpack.c.l.b16 %v1079
        %v1744 = vunpack.c.l.b16 %v1080
        %v1745 = vunpack.c.l.b16 %v1081
        %v1746 = vunpack.c.l.b16 %v1082
        %v1747 = vunpack.c.l.b16 %v1083
        %v1748 = vunpack.c.l.b16 %v1084
        %v1749 = vunpack.c.l.b16 %v1085
        %v1750 = vpack.c.b16 %v1719, %v1718
        %v1751 = vpack.c.b16 %v1721, %v1720
        %v1752 = vpack.c.b16 %v1723, %v1722
        %v1753 = vpack.c.b16 %v1725, %v1724
        %v1754 = vpack.c.b16 %v1727, %v1726
        %v1755 = vpack.c.b16 %v1729, %v1728
        %v1756 = vpack.c.b16 %v1731, %v1730
        %v1757 = vpack.c.b16 %v1733, %v1732
        %v1758 = vpack.c.b16 %v1735, %v1734
        %v1759 = vpack.c.b16 %v1737, %v1736
        %v1760 = vpack.c.b16 %v1739, %v1738
        %v1761 = vpack.c.b16 %v1741, %v1740
        %v1762 = vpack.c.b16 %v1743, %v1742
        %v1763 = vpack.c.b16 %v1745, %v1744
        %v1764 = vpack.c.b16 %v1747, %v1746
        %v1765 = vpack.c.b16 %v1749, %v1748
        %1766 = vrot.lane.b32.xlu0 %v1750, 96
        %v1767 = vpop.permute.xlu0 %1766
        %1768 = vrot.lane.b32.xlu0 %v1751, 96
        %v1769 = vpop.permute.xlu0 %1768
        %1770 = vrot.lane.b32.xlu0 %v1752, 96
        %v1771 = vpop.permute.xlu0 %1770
        %1772 = vrot.lane.b32.xlu0 %v1753, 96
        %v1773 = vpop.permute.xlu0 %1772
        %1774 = vrot.lane.b32.xlu0 %v1754, 96
        %v1775 = vpop.permute.xlu0 %1774
        %1776 = vrot.lane.b32.xlu0 %v1755, 96
        %v1777 = vpop.permute.xlu0 %1776
        %1778 = vrot.lane.b32.xlu0 %v1756, 96
        %v1779 = vpop.permute.xlu0 %1778
        %1780 = vrot.lane.b32.xlu0 %v1757, 96
        %v1781 = vpop.permute.xlu0 %1780
        %1782 = vrot.lane.b32.xlu0 %v1758, 96
        %v1783 = vpop.permute.xlu0 %1782
        %1784 = vrot.lane.b32.xlu0 %v1759, 96
        %v1785 = vpop.permute.xlu0 %1784
        %1786 = vrot.lane.b32.xlu0 %v1760, 96
        %v1787 = vpop.permute.xlu0 %1786
        %1788 = vrot.lane.b32.xlu0 %v1761, 96
        %v1789 = vpop.permute.xlu0 %1788
        %1790 = vrot.lane.b32.xlu0 %v1762, 96
        %v1791 = vpop.permute.xlu0 %1790
        %1792 = vrot.lane.b32.xlu0 %v1763, 96
        %v1793 = vpop.permute.xlu0 %1792
        %1794 = vrot.lane.b32.xlu0 %v1764, 96
        %v1795 = vpop.permute.xlu0 %1794
        %1796 = vrot.lane.b32.xlu0 %v1765, 96
        %v1797 = vpop.permute.xlu0 %1796
        %v1830 = vunpack.c.l.b16 %v1087
        %v1831 = vunpack.c.l.b16 %v1088
        %v1832 = vunpack.c.l.b16 %v1089
        %v1833 = vunpack.c.l.b16 %v1090
        %v1834 = vunpack.c.l.b16 %v1091
        %v1835 = vunpack.c.l.b16 %v1092
        %v1836 = vunpack.c.l.b16 %v1093
        %v1837 = vunpack.c.l.b16 %v1094
        %v1838 = vunpack.c.l.b16 %v1095
        %v1839 = vunpack.c.l.b16 %v1096
        %v1840 = vunpack.c.l.b16 %v1097
        %v1841 = vunpack.c.l.b16 %v1098
        %v1842 = vunpack.c.l.b16 %v1099
        %v1843 = vunpack.c.l.b16 %v1100
        %v1844 = vunpack.c.l.b16 %v1101
        %v1845 = vunpack.c.l.b16 %v1102
        %v1846 = vunpack.c.l.b16 %v1103
        %v1847 = vunpack.c.l.b16 %v1104
        %v1848 = vunpack.c.l.b16 %v1105
        %v1849 = vunpack.c.l.b16 %v1106
        %v1850 = vunpack.c.l.b16 %v1107
        %v1851 = vunpack.c.l.b16 %v1108
        %v1852 = vunpack.c.l.b16 %v1109
        %v1853 = vunpack.c.l.b16 %v1110
        %v1854 = vunpack.c.l.b16 %v1111
        %v1855 = vunpack.c.l.b16 %v1112
        %v1856 = vunpack.c.l.b16 %v1113
        %v1857 = vunpack.c.l.b16 %v1114
        %v1858 = vunpack.c.l.b16 %v1115
        %v1859 = vunpack.c.l.b16 %v1116
        %v1860 = vunpack.c.l.b16 %v1117
        %v1861 = vunpack.c.l.b16 %v1118
        %v1862 = vpack.c.b16 %v1831, %v1830
        %v1863 = vpack.c.b16 %v1833, %v1832
        %v1864 = vpack.c.b16 %v1835, %v1834
        %v1865 = vpack.c.b16 %v1837, %v1836
        %v1866 = vpack.c.b16 %v1839, %v1838
        %v1867 = vpack.c.b16 %v1841, %v1840
        %v1868 = vpack.c.b16 %v1843, %v1842
        %v1869 = vpack.c.b16 %v1845, %v1844
        %v1870 = vpack.c.b16 %v1847, %v1846
        %v1871 = vpack.c.b16 %v1849, %v1848
        %v1872 = vpack.c.b16 %v1851, %v1850
        %v1873 = vpack.c.b16 %v1853, %v1852
        %v1874 = vpack.c.b16 %v1855, %v1854
        %v1875 = vpack.c.b16 %v1857, %v1856
        %v1876 = vpack.c.b16 %v1859, %v1858
        %v1877 = vpack.c.b16 %v1861, %v1860
        %v1910 = vunpack.c.l.b16 %v1120
        %v1911 = vunpack.c.l.b16 %v1121
        %v1912 = vunpack.c.l.b16 %v1122
        %v1913 = vunpack.c.l.b16 %v1123
        %v1914 = vunpack.c.l.b16 %v1124
        %v1915 = vunpack.c.l.b16 %v1125
        %v1916 = vunpack.c.l.b16 %v1126
        %v1917 = vunpack.c.l.b16 %v1127
        %v1918 = vunpack.c.l.b16 %v1128
        %v1919 = vunpack.c.l.b16 %v1129
        %v1920 = vunpack.c.l.b16 %v1130
        %v1921 = vunpack.c.l.b16 %v1131
        %v1922 = vunpack.c.l.b16 %v1132
        %v1923 = vunpack.c.l.b16 %v1133
        %v1924 = vunpack.c.l.b16 %v1134
        %v1925 = vunpack.c.l.b16 %v1135
        %v1926 = vunpack.c.l.b16 %v1136
        %v1927 = vunpack.c.l.b16 %v1137
        %v1928 = vunpack.c.l.b16 %v1138
        %v1929 = vunpack.c.l.b16 %v1139
        %v1930 = vunpack.c.l.b16 %v1140
        %v1931 = vunpack.c.l.b16 %v1141
        %v1932 = vunpack.c.l.b16 %v1142
        %v1933 = vunpack.c.l.b16 %v1143
        %v1934 = vunpack.c.l.b16 %v1144
        %v1935 = vunpack.c.l.b16 %v1145
        %v1936 = vunpack.c.l.b16 %v1146
        %v1937 = vunpack.c.l.b16 %v1147
        %v1938 = vunpack.c.l.b16 %v1148
        %v1939 = vunpack.c.l.b16 %v1149
        %v1940 = vunpack.c.l.b16 %v1150
        %v1941 = vunpack.c.l.b16 %v1151
        %v1942 = vpack.c.b16 %v1911, %v1910
        %v1943 = vpack.c.b16 %v1913, %v1912
        %v1944 = vpack.c.b16 %v1915, %v1914
        %v1945 = vpack.c.b16 %v1917, %v1916
        %v1946 = vpack.c.b16 %v1919, %v1918
        %v1947 = vpack.c.b16 %v1921, %v1920
        %v1948 = vpack.c.b16 %v1923, %v1922
        %v1949 = vpack.c.b16 %v1925, %v1924
        %v1950 = vpack.c.b16 %v1927, %v1926
        %v1951 = vpack.c.b16 %v1929, %v1928
        %v1952 = vpack.c.b16 %v1931, %v1930
        %v1953 = vpack.c.b16 %v1933, %v1932
        %v1954 = vpack.c.b16 %v1935, %v1934
        %v1955 = vpack.c.b16 %v1937, %v1936
        %v1956 = vpack.c.b16 %v1939, %v1938
        %v1957 = vpack.c.b16 %v1941, %v1940
        %1958 = vrot.lane.b32.xlu0 %v1942, 32
        %v1959 = vpop.permute.xlu0 %1958
        %1960 = vrot.lane.b32.xlu0 %v1943, 32
        %v1961 = vpop.permute.xlu0 %1960
        %1962 = vrot.lane.b32.xlu0 %v1944, 32
        %v1963 = vpop.permute.xlu0 %1962
        %1964 = vrot.lane.b32.xlu0 %v1945, 32
        %v1965 = vpop.permute.xlu0 %1964
        %1966 = vrot.lane.b32.xlu0 %v1946, 32
        %v1967 = vpop.permute.xlu0 %1966
        %1968 = vrot.lane.b32.xlu0 %v1947, 32
        %v1969 = vpop.permute.xlu0 %1968
        %1970 = vrot.lane.b32.xlu0 %v1948, 32
        %v1971 = vpop.permute.xlu0 %1970
        %1972 = vrot.lane.b32.xlu0 %v1949, 32
        %v1973 = vpop.permute.xlu0 %1972
        %1974 = vrot.lane.b32.xlu0 %v1950, 32
        %v1975 = vpop.permute.xlu0 %1974
        %1976 = vrot.lane.b32.xlu0 %v1951, 32
        %v1977 = vpop.permute.xlu0 %1976
        %1978 = vrot.lane.b32.xlu0 %v1952, 32
        %v1979 = vpop.permute.xlu0 %1978
        %1980 = vrot.lane.b32.xlu0 %v1953, 32
        %v1981 = vpop.permute.xlu0 %1980
        %1982 = vrot.lane.b32.xlu0 %v1954, 32
        %v1983 = vpop.permute.xlu0 %1982
        %1984 = vrot.lane.b32.xlu0 %v1955, 32
        %v1985 = vpop.permute.xlu0 %1984
        %1986 = vrot.lane.b32.xlu0 %v1956, 32
        %v1987 = vpop.permute.xlu0 %1986
        %1988 = vrot.lane.b32.xlu0 %v1957, 32
        %v1989 = vpop.permute.xlu0 %1988
        %v2022 = vunpack.c.l.b16 %v1152
        %v2023 = vunpack.c.l.b16 %v1153
        %v2024 = vunpack.c.l.b16 %v1154
        %v2025 = vunpack.c.l.b16 %v1155
        %v2026 = vunpack.c.l.b16 %v1156
        %v2027 = vunpack.c.l.b16 %v1157
        %v2028 = vunpack.c.l.b16 %v1158
        %v2029 = vunpack.c.l.b16 %v1159
        %v2030 = vunpack.c.l.b16 %v1160
        %v2031 = vunpack.c.l.b16 %v1161
        %v2032 = vunpack.c.l.b16 %v1162
        %v2033 = vunpack.c.l.b16 %v1163
        %v2034 = vunpack.c.l.b16 %v1164
        %v2035 = vunpack.c.l.b16 %v1165
        %v2036 = vunpack.c.l.b16 %v1166
        %v2037 = vunpack.c.l.b16 %v1167
        %v2038 = vunpack.c.l.b16 %v1168
        %v2039 = vunpack.c.l.b16 %v1169
        %v2040 = vunpack.c.l.b16 %v1170
        %v2041 = vunpack.c.l.b16 %v1171
        %v2042 = vunpack.c.l.b16 %v1172
        %v2043 = vunpack.c.l.b16 %v1173
        %v2044 = vunpack.c.l.b16 %v1174
        %v2045 = vunpack.c.l.b16 %v1175
        %v2046 = vunpack.c.l.b16 %v1176
        %v2047 = vunpack.c.l.b16 %v1177
        %v2048 = vunpack.c.l.b16 %v1178
        %v2049 = vunpack.c.l.b16 %v1179
        %v2050 = vunpack.c.l.b16 %v1180
        %v2051 = vunpack.c.l.b16 %v1181
        %v2052 = vunpack.c.l.b16 %v1182
        %v2053 = vunpack.c.l.b16 %v1183
        %v2054 = vpack.c.b16 %v2023, %v2022
        %v2055 = vpack.c.b16 %v2025, %v2024
        %v2056 = vpack.c.b16 %v2027, %v2026
        %v2057 = vpack.c.b16 %v2029, %v2028
        %v2058 = vpack.c.b16 %v2031, %v2030
        %v2059 = vpack.c.b16 %v2033, %v2032
        %v2060 = vpack.c.b16 %v2035, %v2034
        %v2061 = vpack.c.b16 %v2037, %v2036
        %v2062 = vpack.c.b16 %v2039, %v2038
        %v2063 = vpack.c.b16 %v2041, %v2040
        %v2064 = vpack.c.b16 %v2043, %v2042
        %v2065 = vpack.c.b16 %v2045, %v2044
        %v2066 = vpack.c.b16 %v2047, %v2046
        %v2067 = vpack.c.b16 %v2049, %v2048
        %v2068 = vpack.c.b16 %v2051, %v2050
        %v2069 = vpack.c.b16 %v2053, %v2052
        %2070 = vrot.lane.b32.xlu0 %v2054, 64
        %v2071 = vpop.permute.xlu0 %2070
        %2072 = vrot.lane.b32.xlu0 %v2055, 64
        %v2073 = vpop.permute.xlu0 %2072
        %2074 = vrot.lane.b32.xlu0 %v2056, 64
        %v2075 = vpop.permute.xlu0 %2074
        %2076 = vrot.lane.b32.xlu0 %v2057, 64
        %v2077 = vpop.permute.xlu0 %2076
        %2078 = vrot.lane.b32.xlu0 %v2058, 64
        %v2079 = vpop.permute.xlu0 %2078
        %2080 = vrot.lane.b32.xlu0 %v2059, 64
        %v2081 = vpop.permute.xlu0 %2080
        %2082 = vrot.lane.b32.xlu0 %v2060, 64
        %v2083 = vpop.permute.xlu0 %2082
        %2084 = vrot.lane.b32.xlu0 %v2061, 64
        %v2085 = vpop.permute.xlu0 %2084
        %2086 = vrot.lane.b32.xlu0 %v2062, 64
        %v2087 = vpop.permute.xlu0 %2086
        %2088 = vrot.lane.b32.xlu0 %v2063, 64
        %v2089 = vpop.permute.xlu0 %2088
        %2090 = vrot.lane.b32.xlu0 %v2064, 64
        %v2091 = vpop.permute.xlu0 %2090
        %2092 = vrot.lane.b32.xlu0 %v2065, 64
        %v2093 = vpop.permute.xlu0 %2092
        %2094 = vrot.lane.b32.xlu0 %v2066, 64
        %v2095 = vpop.permute.xlu0 %2094
        %2096 = vrot.lane.b32.xlu0 %v2067, 64
        %v2097 = vpop.permute.xlu0 %2096
        %2098 = vrot.lane.b32.xlu0 %v2068, 64
        %v2099 = vpop.permute.xlu0 %2098
        %2100 = vrot.lane.b32.xlu0 %v2069, 64
        %v2101 = vpop.permute.xlu0 %2100
        %v2134 = vunpack.c.l.b16 %v1185
        %v2135 = vunpack.c.l.b16 %v1186
        %v2136 = vunpack.c.l.b16 %v1187
        %v2137 = vunpack.c.l.b16 %v1188
        %v2138 = vunpack.c.l.b16 %v1189
        %v2139 = vunpack.c.l.b16 %v1190
        %v2140 = vunpack.c.l.b16 %v1191
        %v2141 = vunpack.c.l.b16 %v1192
        %v2142 = vunpack.c.l.b16 %v1193
        %v2143 = vunpack.c.l.b16 %v1194
        %v2144 = vunpack.c.l.b16 %v1195
        %v2145 = vunpack.c.l.b16 %v1196
        %v2146 = vunpack.c.l.b16 %v1197
        %v2147 = vunpack.c.l.b16 %v1198
        %v2148 = vunpack.c.l.b16 %v1199
        %v2149 = vunpack.c.l.b16 %v1200
        %v2150 = vunpack.c.l.b16 %v1201
        %v2151 = vunpack.c.l.b16 %v1202
        %v2152 = vunpack.c.l.b16 %v1203
        %v2153 = vunpack.c.l.b16 %v1204
        %v2154 = vunpack.c.l.b16 %v1205
        %v2155 = vunpack.c.l.b16 %v1206
        %v2156 = vunpack.c.l.b16 %v1207
        %v2157 = vunpack.c.l.b16 %v1208
        %v2158 = vunpack.c.l.b16 %v1209
        %v2159 = vunpack.c.l.b16 %v1210
        %v2160 = vunpack.c.l.b16 %v1211
        %v2161 = vunpack.c.l.b16 %v1212
        %v2162 = vunpack.c.l.b16 %v1213
        %v2163 = vunpack.c.l.b16 %v1214
        %v2164 = vunpack.c.l.b16 %v1215
        %v2165 = vunpack.c.l.b16 %v1216
        %v2166 = vpack.c.b16 %v2135, %v2134
        %v2167 = vpack.c.b16 %v2137, %v2136
        %v2168 = vpack.c.b16 %v2139, %v2138
        %v2169 = vpack.c.b16 %v2141, %v2140
        %v2170 = vpack.c.b16 %v2143, %v2142
        %v2171 = vpack.c.b16 %v2145, %v2144
        %v2172 = vpack.c.b16 %v2147, %v2146
        %v2173 = vpack.c.b16 %v2149, %v2148
        %v2174 = vpack.c.b16 %v2151, %v2150
        %v2175 = vpack.c.b16 %v2153, %v2152
        %v2176 = vpack.c.b16 %v2155, %v2154
        %v2177 = vpack.c.b16 %v2157, %v2156
        %v2178 = vpack.c.b16 %v2159, %v2158
        %v2179 = vpack.c.b16 %v2161, %v2160
        %v2180 = vpack.c.b16 %v2163, %v2162
        %v2181 = vpack.c.b16 %v2165, %v2164
        %2182 = vrot.lane.b32.xlu0 %v2166, 96
        %v2183 = vpop.permute.xlu0 %2182
        %2184 = vrot.lane.b32.xlu0 %v2167, 96
        %v2185 = vpop.permute.xlu0 %2184
        %2186 = vrot.lane.b32.xlu0 %v2168, 96
        %v2187 = vpop.permute.xlu0 %2186
        %2188 = vrot.lane.b32.xlu0 %v2169, 96
        %v2189 = vpop.permute.xlu0 %2188
        %2190 = vrot.lane.b32.xlu0 %v2170, 96
        %v2191 = vpop.permute.xlu0 %2190
        %2192 = vrot.lane.b32.xlu0 %v2171, 96
        %v2193 = vpop.permute.xlu0 %2192
        %2194 = vrot.lane.b32.xlu0 %v2172, 96
        %v2195 = vpop.permute.xlu0 %2194
        %2196 = vrot.lane.b32.xlu0 %v2173, 96
        %v2197 = vpop.permute.xlu0 %2196
        %2198 = vrot.lane.b32.xlu0 %v2174, 96
        %v2199 = vpop.permute.xlu0 %2198
        %2200 = vrot.lane.b32.xlu0 %v2175, 96
        %v2201 = vpop.permute.xlu0 %2200
        %2202 = vrot.lane.b32.xlu0 %v2176, 96
        %v2203 = vpop.permute.xlu0 %2202
        %2204 = vrot.lane.b32.xlu0 %v2177, 96
        %v2205 = vpop.permute.xlu0 %2204
        %2206 = vrot.lane.b32.xlu0 %v2178, 96
        %v2207 = vpop.permute.xlu0 %2206
        %2208 = vrot.lane.b32.xlu0 %v2179, 96
        %v2209 = vpop.permute.xlu0 %2208
        %2210 = vrot.lane.b32.xlu0 %v2180, 96
        %v2211 = vpop.permute.xlu0 %2210
        %2212 = vrot.lane.b32.xlu0 %v2181, 96
        %v2213 = vpop.permute.xlu0 %2212
        %v2246 = vunpack.c.l.b16 %v1218
        %v2247 = vunpack.c.l.b16 %v1219
        %v2248 = vunpack.c.l.b16 %v1220
        %v2249 = vunpack.c.l.b16 %v1221
        %v2250 = vunpack.c.l.b16 %v1222
        %v2251 = vunpack.c.l.b16 %v1223
        %v2252 = vunpack.c.l.b16 %v1224
        %v2253 = vunpack.c.l.b16 %v1225
        %v2254 = vunpack.c.l.b16 %v1226
        %v2255 = vunpack.c.l.b16 %v1227
        %v2256 = vunpack.c.l.b16 %v1228
        %v2257 = vunpack.c.l.b16 %v1229
        %v2258 = vunpack.c.l.b16 %v1230
        %v2259 = vunpack.c.l.b16 %v1231
        %v2260 = vunpack.c.l.b16 %v1232
        %v2261 = vunpack.c.l.b16 %v1233
        %v2262 = vunpack.c.l.b16 %v1234
        %v2263 = vunpack.c.l.b16 %v1235
        %v2264 = vunpack.c.l.b16 %v1236
        %v2265 = vunpack.c.l.b16 %v1237
        %v2266 = vunpack.c.l.b16 %v1238
        %v2267 = vunpack.c.l.b16 %v1239
        %v2268 = vunpack.c.l.b16 %v1240
        %v2269 = vunpack.c.l.b16 %v1241
        %v2270 = vunpack.c.l.b16 %v1242
        %v2271 = vunpack.c.l.b16 %v1243
        %v2272 = vunpack.c.l.b16 %v1244
        %v2273 = vunpack.c.l.b16 %v1245
        %v2274 = vunpack.c.l.b16 %v1246
        %v2275 = vunpack.c.l.b16 %v1247
        %v2276 = vunpack.c.l.b16 %v1248
        %v2277 = vunpack.c.l.b16 %v1249
        %v2278 = vpack.c.b16 %v2247, %v2246
        %v2279 = vpack.c.b16 %v2249, %v2248
        %v2280 = vpack.c.b16 %v2251, %v2250
        %v2281 = vpack.c.b16 %v2253, %v2252
        %v2282 = vpack.c.b16 %v2255, %v2254
        %v2283 = vpack.c.b16 %v2257, %v2256
        %v2284 = vpack.c.b16 %v2259, %v2258
        %v2285 = vpack.c.b16 %v2261, %v2260
        %v2286 = vpack.c.b16 %v2263, %v2262
        %v2287 = vpack.c.b16 %v2265, %v2264
        %v2288 = vpack.c.b16 %v2267, %v2266
        %v2289 = vpack.c.b16 %v2269, %v2268
        %v2290 = vpack.c.b16 %v2271, %v2270
        %v2291 = vpack.c.b16 %v2273, %v2272
        %v2292 = vpack.c.b16 %v2275, %v2274
        %v2293 = vpack.c.b16 %v2277, %v2276
        %v2326 = vunpack.c.l.b16 %v1251
        %v2327 = vunpack.c.l.b16 %v1252
        %v2328 = vunpack.c.l.b16 %v1253
        %v2329 = vunpack.c.l.b16 %v1254
        %v2330 = vunpack.c.l.b16 %v1255
        %v2331 = vunpack.c.l.b16 %v1256
        %v2332 = vunpack.c.l.b16 %v1257
        %v2333 = vunpack.c.l.b16 %v1258
        %v2334 = vunpack.c.l.b16 %v1259
        %v2335 = vunpack.c.l.b16 %v1260
        %v2336 = vunpack.c.l.b16 %v1261
        %v2337 = vunpack.c.l.b16 %v1262
        %v2338 = vunpack.c.l.b16 %v1263
        %v2339 = vunpack.c.l.b16 %v1264
        %v2340 = vunpack.c.l.b16 %v1265
        %v2341 = vunpack.c.l.b16 %v1266
        %v2342 = vunpack.c.l.b16 %v1267
        %v2343 = vunpack.c.l.b16 %v1268
        %v2344 = vunpack.c.l.b16 %v1269
        %v2345 = vunpack.c.l.b16 %v1270
        %v2346 = vunpack.c.l.b16 %v1271
        %v2347 = vunpack.c.l.b16 %v1272
        %v2348 = vunpack.c.l.b16 %v1273
        %v2349 = vunpack.c.l.b16 %v1274
        %v2350 = vunpack.c.l.b16 %v1275
        %v2351 = vunpack.c.l.b16 %v1276
        %v2352 = vunpack.c.l.b16 %v1277
        %v2353 = vunpack.c.l.b16 %v1278
        %v2354 = vunpack.c.l.b16 %v1279
        %v2355 = vunpack.c.l.b16 %v1280
        %v2356 = vunpack.c.l.b16 %v1281
        %v2357 = vunpack.c.l.b16 %v1282
        %v2358 = vpack.c.b16 %v2327, %v2326
        %v2359 = vpack.c.b16 %v2329, %v2328
        %v2360 = vpack.c.b16 %v2331, %v2330
        %v2361 = vpack.c.b16 %v2333, %v2332
        %v2362 = vpack.c.b16 %v2335, %v2334
        %v2363 = vpack.c.b16 %v2337, %v2336
        %v2364 = vpack.c.b16 %v2339, %v2338
        %v2365 = vpack.c.b16 %v2341, %v2340
        %v2366 = vpack.c.b16 %v2343, %v2342
        %v2367 = vpack.c.b16 %v2345, %v2344
        %v2368 = vpack.c.b16 %v2347, %v2346
        %v2369 = vpack.c.b16 %v2349, %v2348
        %v2370 = vpack.c.b16 %v2351, %v2350
        %v2371 = vpack.c.b16 %v2353, %v2352
        %v2372 = vpack.c.b16 %v2355, %v2354
        %v2373 = vpack.c.b16 %v2357, %v2356
        %2374 = vrot.lane.b32.xlu0 %v2358, 32
        %v2375 = vpop.permute.xlu0 %2374
        %2376 = vrot.lane.b32.xlu0 %v2359, 32
        %v2377 = vpop.permute.xlu0 %2376
        %2378 = vrot.lane.b32.xlu0 %v2360, 32
        %v2379 = vpop.permute.xlu0 %2378
        %2380 = vrot.lane.b32.xlu0 %v2361, 32
        %v2381 = vpop.permute.xlu0 %2380
        %2382 = vrot.lane.b32.xlu0 %v2362, 32
        %v2383 = vpop.permute.xlu0 %2382
        %2384 = vrot.lane.b32.xlu0 %v2363, 32
        %v2385 = vpop.permute.xlu0 %2384
        %2386 = vrot.lane.b32.xlu0 %v2364, 32
        %v2387 = vpop.permute.xlu0 %2386
        %2388 = vrot.lane.b32.xlu0 %v2365, 32
        %v2389 = vpop.permute.xlu0 %2388
        %2390 = vrot.lane.b32.xlu0 %v2366, 32
        %v2391 = vpop.permute.xlu0 %2390
        %2392 = vrot.lane.b32.xlu0 %v2367, 32
        %v2393 = vpop.permute.xlu0 %2392
        %2394 = vrot.lane.b32.xlu0 %v2368, 32
        %v2395 = vpop.permute.xlu0 %2394
        %2396 = vrot.lane.b32.xlu0 %v2369, 32
        %v2397 = vpop.permute.xlu0 %2396
        %2398 = vrot.lane.b32.xlu0 %v2370, 32
        %v2399 = vpop.permute.xlu0 %2398
        %2400 = vrot.lane.b32.xlu0 %v2371, 32
        %v2401 = vpop.permute.xlu0 %2400
        %2402 = vrot.lane.b32.xlu0 %v2372, 32
        %v2403 = vpop.permute.xlu0 %2402
        %2404 = vrot.lane.b32.xlu0 %v2373, 32
        %v2405 = vpop.permute.xlu0 %2404
        %v2438 = vunpack.c.l.b16 %v1284
        %v2439 = vunpack.c.l.b16 %v1285
        %v2440 = vunpack.c.l.b16 %v1286
        %v2441 = vunpack.c.l.b16 %v1287
        %v2442 = vunpack.c.l.b16 %v1288
        %v2443 = vunpack.c.l.b16 %v1289
        %v2444 = vunpack.c.l.b16 %v1290
        %v2445 = vunpack.c.l.b16 %v1291
        %v2446 = vunpack.c.l.b16 %v1292
        %v2447 = vunpack.c.l.b16 %v1293
        %v2448 = vunpack.c.l.b16 %v1294
        %v2449 = vunpack.c.l.b16 %v1295
        %v2450 = vunpack.c.l.b16 %v1296
        %v2451 = vunpack.c.l.b16 %v1297
        %v2452 = vunpack.c.l.b16 %v1298
        %v2453 = vunpack.c.l.b16 %v1299
        %v2454 = vunpack.c.l.b16 %v1300
        %v2455 = vunpack.c.l.b16 %v1301
        %v2456 = vunpack.c.l.b16 %v1302
        %v2457 = vunpack.c.l.b16 %v1303
        %v2458 = vunpack.c.l.b16 %v1304
        %v2459 = vunpack.c.l.b16 %v1305
        %v2460 = vunpack.c.l.b16 %v1306
        %v2461 = vunpack.c.l.b16 %v1307
        %v2462 = vunpack.c.l.b16 %v1308
        %v2463 = vunpack.c.l.b16 %v1309
        %v2464 = vunpack.c.l.b16 %v1310
        %v2465 = vunpack.c.l.b16 %v1311
        %v2466 = vunpack.c.l.b16 %v1312
        %v2467 = vunpack.c.l.b16 %v1313
        %v2468 = vunpack.c.l.b16 %v1314
        %v2469 = vunpack.c.l.b16 %v1315
        %v2470 = vpack.c.b16 %v2439, %v2438
        %v2471 = vpack.c.b16 %v2441, %v2440
        %v2472 = vpack.c.b16 %v2443, %v2442
        %v2473 = vpack.c.b16 %v2445, %v2444
        %v2474 = vpack.c.b16 %v2447, %v2446
        %v2475 = vpack.c.b16 %v2449, %v2448
        %v2476 = vpack.c.b16 %v2451, %v2450
        %v2477 = vpack.c.b16 %v2453, %v2452
        %v2478 = vpack.c.b16 %v2455, %v2454
        %v2479 = vpack.c.b16 %v2457, %v2456
        %v2480 = vpack.c.b16 %v2459, %v2458
        %v2481 = vpack.c.b16 %v2461, %v2460
        %v2482 = vpack.c.b16 %v2463, %v2462
        %v2483 = vpack.c.b16 %v2465, %v2464
        %v2484 = vpack.c.b16 %v2467, %v2466
        %v2485 = vpack.c.b16 %v2469, %v2468
        %2486 = vrot.lane.b32.xlu0 %v2470, 64
        %v2487 = vpop.permute.xlu0 %2486
        %2488 = vrot.lane.b32.xlu0 %v2471, 64
        %v2489 = vpop.permute.xlu0 %2488
        %2490 = vrot.lane.b32.xlu0 %v2472, 64
        %v2491 = vpop.permute.xlu0 %2490
        %2492 = vrot.lane.b32.xlu0 %v2473, 64
        %v2493 = vpop.permute.xlu0 %2492
        %2494 = vrot.lane.b32.xlu0 %v2474, 64
        %v2495 = vpop.permute.xlu0 %2494
        %2496 = vrot.lane.b32.xlu0 %v2475, 64
        %v2497 = vpop.permute.xlu0 %2496
        %2498 = vrot.lane.b32.xlu0 %v2476, 64
        %v2499 = vpop.permute.xlu0 %2498
        %2500 = vrot.lane.b32.xlu0 %v2477, 64
        %v2501 = vpop.permute.xlu0 %2500
        %2502 = vrot.lane.b32.xlu0 %v2478, 64
        %v2503 = vpop.permute.xlu0 %2502
        %2504 = vrot.lane.b32.xlu0 %v2479, 64
        %v2505 = vpop.permute.xlu0 %2504
        %2506 = vrot.lane.b32.xlu0 %v2480, 64
        %v2507 = vpop.permute.xlu0 %2506
        %2508 = vrot.lane.b32.xlu0 %v2481, 64
        %v2509 = vpop.permute.xlu0 %2508
        %2510 = vrot.lane.b32.xlu0 %v2482, 64
        %v2511 = vpop.permute.xlu0 %2510
        %2512 = vrot.lane.b32.xlu0 %v2483, 64
        %v2513 = vpop.permute.xlu0 %2512
        %2514 = vrot.lane.b32.xlu0 %v2484, 64
        %v2515 = vpop.permute.xlu0 %2514
        %2516 = vrot.lane.b32.xlu0 %v2485, 64
        %v2517 = vpop.permute.xlu0 %2516
        %v2550 = vunpack.c.l.b16 %v1317
        %v2551 = vunpack.c.l.b16 %v1318
        %v2552 = vunpack.c.l.b16 %v1319
        %v2553 = vunpack.c.l.b16 %v1320
        %v2554 = vunpack.c.l.b16 %v1321
        %v2555 = vunpack.c.l.b16 %v1322
        %v2556 = vunpack.c.l.b16 %v1323
        %v2557 = vunpack.c.l.b16 %v1324
        %v2558 = vunpack.c.l.b16 %v1325
        %v2559 = vunpack.c.l.b16 %v1326
        %v2560 = vunpack.c.l.b16 %v1327
        %v2561 = vunpack.c.l.b16 %v1328
        %v2562 = vunpack.c.l.b16 %v1329
        %v2563 = vunpack.c.l.b16 %v1330
        %v2564 = vunpack.c.l.b16 %v1331
        %v2565 = vunpack.c.l.b16 %v1332
        %v2566 = vunpack.c.l.b16 %v1333
        %v2567 = vunpack.c.l.b16 %v1334
        %v2568 = vunpack.c.l.b16 %v1335
        %v2569 = vunpack.c.l.b16 %v1336
        %v2570 = vunpack.c.l.b16 %v1337
        %v2571 = vunpack.c.l.b16 %v1338
        %v2572 = vunpack.c.l.b16 %v1339
        %v2573 = vunpack.c.l.b16 %v1340
        %v2574 = vunpack.c.l.b16 %v1341
        %v2575 = vunpack.c.l.b16 %v1342
        %v2576 = vunpack.c.l.b16 %v1343
        %v2577 = vunpack.c.l.b16 %v1344
        %v2578 = vunpack.c.l.b16 %v1345
        %v2579 = vunpack.c.l.b16 %v1346
        %v2580 = vunpack.c.l.b16 %v1347
        %v2581 = vunpack.c.l.b16 %v1348
        %v2582 = vpack.c.b16 %v2551, %v2550
        %v2583 = vpack.c.b16 %v2553, %v2552
        %v2584 = vpack.c.b16 %v2555, %v2554
        %v2585 = vpack.c.b16 %v2557, %v2556
        %v2586 = vpack.c.b16 %v2559, %v2558
        %v2587 = vpack.c.b16 %v2561, %v2560
        %v2588 = vpack.c.b16 %v2563, %v2562
        %v2589 = vpack.c.b16 %v2565, %v2564
        %v2590 = vpack.c.b16 %v2567, %v2566
        %v2591 = vpack.c.b16 %v2569, %v2568
        %v2592 = vpack.c.b16 %v2571, %v2570
        %v2593 = vpack.c.b16 %v2573, %v2572
        %v2594 = vpack.c.b16 %v2575, %v2574
        %v2595 = vpack.c.b16 %v2577, %v2576
        %v2596 = vpack.c.b16 %v2579, %v2578
        %v2597 = vpack.c.b16 %v2581, %v2580
        %2598 = vrot.lane.b32.xlu0 %v2582, 96
        %v2599 = vpop.permute.xlu0 %2598
        %2600 = vrot.lane.b32.xlu0 %v2583, 96
        %v2601 = vpop.permute.xlu0 %2600
        %2602 = vrot.lane.b32.xlu0 %v2584, 96
        %v2603 = vpop.permute.xlu0 %2602
        %2604 = vrot.lane.b32.xlu0 %v2585, 96
        %v2605 = vpop.permute.xlu0 %2604
        %2606 = vrot.lane.b32.xlu0 %v2586, 96
        %v2607 = vpop.permute.xlu0 %2606
        %2608 = vrot.lane.b32.xlu0 %v2587, 96
        %v2609 = vpop.permute.xlu0 %2608
        %2610 = vrot.lane.b32.xlu0 %v2588, 96
        %v2611 = vpop.permute.xlu0 %2610
        %2612 = vrot.lane.b32.xlu0 %v2589, 96
        %v2613 = vpop.permute.xlu0 %2612
        %2614 = vrot.lane.b32.xlu0 %v2590, 96
        %v2615 = vpop.permute.xlu0 %2614
        %2616 = vrot.lane.b32.xlu0 %v2591, 96
        %v2617 = vpop.permute.xlu0 %2616
        %2618 = vrot.lane.b32.xlu0 %v2592, 96
        %v2619 = vpop.permute.xlu0 %2618
        %2620 = vrot.lane.b32.xlu0 %v2593, 96
        %v2621 = vpop.permute.xlu0 %2620
        %2622 = vrot.lane.b32.xlu0 %v2594, 96
        %v2623 = vpop.permute.xlu0 %2622
        %2624 = vrot.lane.b32.xlu0 %v2595, 96
        %v2625 = vpop.permute.xlu0 %2624
        %2626 = vrot.lane.b32.xlu0 %v2596, 96
        %v2627 = vpop.permute.xlu0 %2626
        %2628 = vrot.lane.b32.xlu0 %v2597, 96
        %v2629 = vpop.permute.xlu0 %2628
        %v2662 = vunpack.c.l.b16 %v1350
        %v2663 = vunpack.c.l.b16 %v1351
        %v2664 = vunpack.c.l.b16 %v1352
        %v2665 = vunpack.c.l.b16 %v1353
        %v2666 = vunpack.c.l.b16 %v1354
        %v2667 = vunpack.c.l.b16 %v1355
        %v2668 = vunpack.c.l.b16 %v1356
        %v2669 = vunpack.c.l.b16 %v1357
        %v2670 = vunpack.c.l.b16 %v1358
        %v2671 = vunpack.c.l.b16 %v1359
        %v2672 = vunpack.c.l.b16 %v1360
        %v2673 = vunpack.c.l.b16 %v1361
        %v2674 = vunpack.c.l.b16 %v1362
        %v2675 = vunpack.c.l.b16 %v1363
        %v2676 = vunpack.c.l.b16 %v1364
        %v2677 = vunpack.c.l.b16 %v1365
        %v2678 = vunpack.c.l.b16 %v1366
        %v2679 = vunpack.c.l.b16 %v1367
        %v2680 = vunpack.c.l.b16 %v1368
        %v2681 = vunpack.c.l.b16 %v1369
        %v2682 = vunpack.c.l.b16 %v1370
        %v2683 = vunpack.c.l.b16 %v1371
        %v2684 = vunpack.c.l.b16 %v1372
        %v2685 = vunpack.c.l.b16 %v1373
        %v2686 = vunpack.c.l.b16 %v1374
        %v2687 = vunpack.c.l.b16 %v1375
        %v2688 = vunpack.c.l.b16 %v1376
        %v2689 = vunpack.c.l.b16 %v1377
        %v2690 = vunpack.c.l.b16 %v1378
        %v2691 = vunpack.c.l.b16 %v1379
        %v2692 = vunpack.c.l.b16 %v1380
        %v2693 = vunpack.c.l.b16 %v1381
        %v2694 = vpack.c.b16 %v2663, %v2662
        %v2695 = vpack.c.b16 %v2665, %v2664
        %v2696 = vpack.c.b16 %v2667, %v2666
        %v2697 = vpack.c.b16 %v2669, %v2668
        %v2698 = vpack.c.b16 %v2671, %v2670
        %v2699 = vpack.c.b16 %v2673, %v2672
        %v2700 = vpack.c.b16 %v2675, %v2674
        %v2701 = vpack.c.b16 %v2677, %v2676
        %v2702 = vpack.c.b16 %v2679, %v2678
        %v2703 = vpack.c.b16 %v2681, %v2680
        %v2704 = vpack.c.b16 %v2683, %v2682
        %v2705 = vpack.c.b16 %v2685, %v2684
        %v2706 = vpack.c.b16 %v2687, %v2686
        %v2707 = vpack.c.b16 %v2689, %v2688
        %v2708 = vpack.c.b16 %v2691, %v2690
        %v2709 = vpack.c.b16 %v2693, %v2692
        %vm2726 = vcmask 261120
        %v2729 = vsel %vm2726, %v1446, %v1543
        %v2732 = vsel %vm2726, %v1447, %v1545
        %v2735 = vsel %vm2726, %v1448, %v1547
        %v2738 = vsel %vm2726, %v1449, %v1549
        %v2741 = vsel %vm2726, %v1450, %v1551
        %v2744 = vsel %vm2726, %v1451, %v1553
        %v2747 = vsel %vm2726, %v1452, %v1555
        %v2750 = vsel %vm2726, %v1453, %v1557
        %v2753 = vsel %vm2726, %v1454, %v1559
        %v2756 = vsel %vm2726, %v1455, %v1561
        %v2759 = vsel %vm2726, %v1456, %v1563
        %v2762 = vsel %vm2726, %v1457, %v1565
        %v2765 = vsel %vm2726, %v1458, %v1567
        %v2768 = vsel %vm2726, %v1459, %v1569
        %v2771 = vsel %vm2726, %v1460, %v1571
        %v2774 = vsel %vm2726, %v1461, %v1573
        %vm2775 = vcmask 523264
        %v2777 = vsel %vm2775, %v2729, %v1655
        %v2779 = vsel %vm2775, %v2732, %v1657
        %v2781 = vsel %vm2775, %v2735, %v1659
        %v2783 = vsel %vm2775, %v2738, %v1661
        %v2785 = vsel %vm2775, %v2741, %v1663
        %v2787 = vsel %vm2775, %v2744, %v1665
        %v2789 = vsel %vm2775, %v2747, %v1667
        %v2791 = vsel %vm2775, %v2750, %v1669
        %v2793 = vsel %vm2775, %v2753, %v1671
        %v2795 = vsel %vm2775, %v2756, %v1673
        %v2797 = vsel %vm2775, %v2759, %v1675
        %v2799 = vsel %vm2775, %v2762, %v1677
        %v2801 = vsel %vm2775, %v2765, %v1679
        %v2803 = vsel %vm2775, %v2768, %v1681
        %v2805 = vsel %vm2775, %v2771, %v1683
        %v2807 = vsel %vm2775, %v2774, %v1685
        %vm2808 = vcmask 785408
        %v2810 = vsel %vm2808, %v2777, %v1767
        %v2813 = vsel %vm2808, %v2779, %v1769
        %v2816 = vsel %vm2808, %v2781, %v1771
        %v2819 = vsel %vm2808, %v2783, %v1773
        %v2822 = vsel %vm2808, %v2785, %v1775
        %v2825 = vsel %vm2808, %v2787, %v1777
        %v2828 = vsel %vm2808, %v2789, %v1779
        %v2831 = vsel %vm2808, %v2791, %v1781
        %v2834 = vsel %vm2808, %v2793, %v1783
        %v2837 = vsel %vm2808, %v2795, %v1785
        %v2840 = vsel %vm2808, %v2797, %v1787
        %v2843 = vsel %vm2808, %v2799, %v1789
        %v2846 = vsel %vm2808, %v2801, %v1791
        %v2849 = vsel %vm2808, %v2803, %v1793
        %v2852 = vsel %vm2808, %v2805, %v1795
        %v2855 = vsel %vm2808, %v2807, %v1797
        %v2859 = vsel %vm2726, %v1862, %v1959
        %v2862 = vsel %vm2726, %v1863, %v1961
        %v2865 = vsel %vm2726, %v1864, %v1963
        %v2868 = vsel %vm2726, %v1865, %v1965
        %v2871 = vsel %vm2726, %v1866, %v1967
        %v2874 = vsel %vm2726, %v1867, %v1969
        %v2877 = vsel %vm2726, %v1868, %v1971
        %v2880 = vsel %vm2726, %v1869, %v1973
        %v2883 = vsel %vm2726, %v1870, %v1975
        %v2886 = vsel %vm2726, %v1871, %v1977
        %v2889 = vsel %vm2726, %v1872, %v1979
        %v2892 = vsel %vm2726, %v1873, %v1981
        %v2895 = vsel %vm2726, %v1874, %v1983
        %v2898 = vsel %vm2726, %v1875, %v1985
        %v2901 = vsel %vm2726, %v1876, %v1987
        %v2904 = vsel %vm2726, %v1877, %v1989
        %v2906 = vsel %vm2775, %v2859, %v2071
        %v2908 = vsel %vm2775, %v2862, %v2073
        %v2910 = vsel %vm2775, %v2865, %v2075
        %v2912 = vsel %vm2775, %v2868, %v2077
        %v2914 = vsel %vm2775, %v2871, %v2079
        %v2916 = vsel %vm2775, %v2874, %v2081
        %v2918 = vsel %vm2775, %v2877, %v2083
        %v2920 = vsel %vm2775, %v2880, %v2085
        %v2922 = vsel %vm2775, %v2883, %v2087
        %v2924 = vsel %vm2775, %v2886, %v2089
        %v2926 = vsel %vm2775, %v2889, %v2091
        %v2928 = vsel %vm2775, %v2892, %v2093
        %v2930 = vsel %vm2775, %v2895, %v2095
        %v2932 = vsel %vm2775, %v2898, %v2097
        %v2934 = vsel %vm2775, %v2901, %v2099
        %v2936 = vsel %vm2775, %v2904, %v2101
        %v2938 = vsel %vm2808, %v2906, %v2183
        %v2941 = vsel %vm2808, %v2908, %v2185
        %v2944 = vsel %vm2808, %v2910, %v2187
        %v2947 = vsel %vm2808, %v2912, %v2189
        %v2950 = vsel %vm2808, %v2914, %v2191
        %v2953 = vsel %vm2808, %v2916, %v2193
        %v2956 = vsel %vm2808, %v2918, %v2195
        %v2959 = vsel %vm2808, %v2920, %v2197
        %v2962 = vsel %vm2808, %v2922, %v2199
        %v2965 = vsel %vm2808, %v2924, %v2201
        %v2968 = vsel %vm2808, %v2926, %v2203
        %v2971 = vsel %vm2808, %v2928, %v2205
        %v2974 = vsel %vm2808, %v2930, %v2207
        %v2977 = vsel %vm2808, %v2932, %v2209
        %v2980 = vsel %vm2808, %v2934, %v2211
        %v2983 = vsel %vm2808, %v2936, %v2213
        %v2987 = vsel %vm2726, %v2278, %v2375
        %v2990 = vsel %vm2726, %v2279, %v2377
        %v2993 = vsel %vm2726, %v2280, %v2379
        %v2996 = vsel %vm2726, %v2281, %v2381
        %v2999 = vsel %vm2726, %v2282, %v2383
        %v3002 = vsel %vm2726, %v2283, %v2385
        %v3005 = vsel %vm2726, %v2284, %v2387
        %v3008 = vsel %vm2726, %v2285, %v2389
        %v3011 = vsel %vm2726, %v2286, %v2391
        %v3014 = vsel %vm2726, %v2287, %v2393
        %v3017 = vsel %vm2726, %v2288, %v2395
        %v3020 = vsel %vm2726, %v2289, %v2397
        %v3023 = vsel %vm2726, %v2290, %v2399
        %v3026 = vsel %vm2726, %v2291, %v2401
        %v3029 = vsel %vm2726, %v2292, %v2403
        %v3032 = vsel %vm2726, %v2293, %v2405
        %v3034 = vsel %vm2775, %v2987, %v2487
        %v3036 = vsel %vm2775, %v2990, %v2489
        %v3038 = vsel %vm2775, %v2993, %v2491
        %v3040 = vsel %vm2775, %v2996, %v2493
        %v3042 = vsel %vm2775, %v2999, %v2495
        %v3044 = vsel %vm2775, %v3002, %v2497
        %v3046 = vsel %vm2775, %v3005, %v2499
        %v3048 = vsel %vm2775, %v3008, %v2501
        %v3050 = vsel %vm2775, %v3011, %v2503
        %v3052 = vsel %vm2775, %v3014, %v2505
        %v3054 = vsel %vm2775, %v3017, %v2507
        %v3056 = vsel %vm2775, %v3020, %v2509
        %v3058 = vsel %vm2775, %v3023, %v2511
        %v3060 = vsel %vm2775, %v3026, %v2513
        %v3062 = vsel %vm2775, %v3029, %v2515
        %v3064 = vsel %vm2775, %v3032, %v2517
        %v3066 = vsel %vm2808, %v3034, %v2599
        %v3069 = vsel %vm2808, %v3036, %v2601
        %v3072 = vsel %vm2808, %v3038, %v2603
        %v3075 = vsel %vm2808, %v3040, %v2605
        %v3078 = vsel %vm2808, %v3042, %v2607
        %v3081 = vsel %vm2808, %v3044, %v2609
        %v3084 = vsel %vm2808, %v3046, %v2611
        %v3087 = vsel %vm2808, %v3048, %v2613
        %v3090 = vsel %vm2808, %v3050, %v2615
        %v3093 = vsel %vm2808, %v3052, %v2617
        %v3096 = vsel %vm2808, %v3054, %v2619
        %v3099 = vsel %vm2808, %v3056, %v2621
        %v3102 = vsel %vm2808, %v3058, %v2623
        %v3105 = vsel %vm2808, %v3060, %v2625
        %v3108 = vsel %vm2808, %v3062, %v2627
        %v3111 = vsel %vm2808, %v3064, %v2629
        %v3113 = vld [vmem:[#allocation3] sm:$0xf]
        %v3114 = vld [vmem:[#allocation3 + $0x4] sm:$0xf]
        %v3115 = vld [vmem:[#allocation3 + $0x8] sm:$0xf]
        %v3116 = vld [vmem:[#allocation3 + $0xc] sm:$0xf]
        %v3117 = vld [vmem:[#allocation3 + $0x10] sm:$0xf]
        %v3118 = vld [vmem:[#allocation3 + $0x14] sm:$0xf]
        %v3119 = vld [vmem:[#allocation3 + $0x18] sm:$0xf]
        %v3120 = vld [vmem:[#allocation3 + $0x1c] sm:$0xf]
        %v3121 = vld [vmem:[#allocation3 + $0x20] sm:$0xf]
        %v3122 = vld [vmem:[#allocation3 + $0x24] sm:$0xf]
        %v3123 = vld [vmem:[#allocation3 + $0x28] sm:$0xf]
        %v3124 = vld [vmem:[#allocation3 + $0x2c] sm:$0xf]
        %v3125 = vld [vmem:[#allocation3 + $0x30] sm:$0xf]
        %v3126 = vld [vmem:[#allocation3 + $0x34] sm:$0xf]
        %v3127 = vld [vmem:[#allocation3 + $0x38] sm:$0xf]
        %v3128 = vld [vmem:[#allocation3 + $0x3c] sm:$0xf]
        %v3129 = vld [vmem:[#allocation3 + $0x40] sm:$0xf]
        %v3130 = vld [vmem:[#allocation3 + $0x44] sm:$0xf]
        %v3131 = vld [vmem:[#allocation3 + $0x48] sm:$0xf]
        %v3132 = vld [vmem:[#allocation3 + $0x4c] sm:$0xf]
        %v3133 = vld [vmem:[#allocation3 + $0x50] sm:$0xf]
        %v3134 = vld [vmem:[#allocation3 + $0x54] sm:$0xf]
        %v3135 = vld [vmem:[#allocation3 + $0x58] sm:$0xf]
        %v3136 = vld [vmem:[#allocation3 + $0x5c] sm:$0xf]
        %v3137 = vld [vmem:[#allocation3 + $0x60] sm:$0xf]
        %v3138 = vld [vmem:[#allocation3 + $0x64] sm:$0xf]
        %v3139 = vld [vmem:[#allocation3 + $0x68] sm:$0xf]
        %v3140 = vld [vmem:[#allocation3 + $0x6c] sm:$0xf]
        %v3141 = vld [vmem:[#allocation3 + $0x70] sm:$0xf]
        %v3142 = vld [vmem:[#allocation3 + $0x74] sm:$0xf]
        %v3143 = vld [vmem:[#allocation3 + $0x78] sm:$0xf]
        %v3144 = vld [vmem:[#allocation3 + $0x7c] sm:$0xf]
        %s3145 = scalar_lea.vmem [#allocation3], 24
        %v3146 = vld [vmem:[%s3145] sm:$0xf]
        %v3147 = vld [vmem:[%s3145 + $0x4] sm:$0xf]
        %v3148 = vld [vmem:[%s3145 + $0x8] sm:$0xf]
        %v3149 = vld [vmem:[%s3145 + $0xc] sm:$0xf]
        %v3150 = vld [vmem:[%s3145 + $0x10] sm:$0xf]
        %v3151 = vld [vmem:[%s3145 + $0x14] sm:$0xf]
        %v3152 = vld [vmem:[%s3145 + $0x18] sm:$0xf]
        %v3153 = vld [vmem:[%s3145 + $0x1c] sm:$0xf]
        %v3154 = vld [vmem:[%s3145 + $0x20] sm:$0xf]
        %v3155 = vld [vmem:[%s3145 + $0x24] sm:$0xf]
        %v3156 = vld [vmem:[%s3145 + $0x28] sm:$0xf]
        %v3157 = vld [vmem:[%s3145 + $0x2c] sm:$0xf]
        %v3158 = vld [vmem:[%s3145 + $0x30] sm:$0xf]
        %v3159 = vld [vmem:[%s3145 + $0x34] sm:$0xf]
        %v3160 = vld [vmem:[%s3145 + $0x38] sm:$0xf]
        %v3161 = vld [vmem:[%s3145 + $0x3c] sm:$0xf]
        %v3162 = vld [vmem:[%s3145 + $0x40] sm:$0xf]
        %v3163 = vld [vmem:[%s3145 + $0x44] sm:$0xf]
        %v3164 = vld [vmem:[%s3145 + $0x48] sm:$0xf]
        %v3165 = vld [vmem:[%s3145 + $0x4c] sm:$0xf]
        %v3166 = vld [vmem:[%s3145 + $0x50] sm:$0xf]
        %v3167 = vld [vmem:[%s3145 + $0x54] sm:$0xf]
        %v3168 = vld [vmem:[%s3145 + $0x58] sm:$0xf]
        %v3169 = vld [vmem:[%s3145 + $0x5c] sm:$0xf]
        %v3170 = vld [vmem:[%s3145 + $0x60] sm:$0xf]
        %v3171 = vld [vmem:[%s3145 + $0x64] sm:$0xf]
        %v3172 = vld [vmem:[%s3145 + $0x68] sm:$0xf]
        %v3173 = vld [vmem:[%s3145 + $0x6c] sm:$0xf]
        %v3174 = vld [vmem:[%s3145 + $0x70] sm:$0xf]
        %v3175 = vld [vmem:[%s3145 + $0x74] sm:$0xf]
        %v3176 = vld [vmem:[%s3145 + $0x78] sm:$0xf]
        %v3177 = vld [vmem:[%s3145 + $0x7c] sm:$0xf]
        %s3178 = scalar_lea.vmem [#allocation3], 40
        %v3179 = vld [vmem:[%s3178] sm:$0xf]
        %v3180 = vld [vmem:[%s3178 + $0x4] sm:$0xf]
        %v3181 = vld [vmem:[%s3178 + $0x8] sm:$0xf]
        %v3182 = vld [vmem:[%s3178 + $0xc] sm:$0xf]
        %v3183 = vld [vmem:[%s3178 + $0x10] sm:$0xf]
        %v3184 = vld [vmem:[%s3178 + $0x14] sm:$0xf]
        %v3185 = vld [vmem:[%s3178 + $0x18] sm:$0xf]
        %v3186 = vld [vmem:[%s3178 + $0x1c] sm:$0xf]
        %v3187 = vld [vmem:[%s3178 + $0x20] sm:$0xf]
        %v3188 = vld [vmem:[%s3178 + $0x24] sm:$0xf]
        %v3189 = vld [vmem:[%s3178 + $0x28] sm:$0xf]
        %v3190 = vld [vmem:[%s3178 + $0x2c] sm:$0xf]
        %v3191 = vld [vmem:[%s3178 + $0x30] sm:$0xf]
        %v3192 = vld [vmem:[%s3178 + $0x34] sm:$0xf]
        %v3193 = vld [vmem:[%s3178 + $0x38] sm:$0xf]
        %v3194 = vld [vmem:[%s3178 + $0x3c] sm:$0xf]
        %v3195 = vld [vmem:[%s3178 + $0x40] sm:$0xf]
        %v3196 = vld [vmem:[%s3178 + $0x44] sm:$0xf]
        %v3197 = vld [vmem:[%s3178 + $0x48] sm:$0xf]
        %v3198 = vld [vmem:[%s3178 + $0x4c] sm:$0xf]
        %v3199 = vld [vmem:[%s3178 + $0x50] sm:$0xf]
        %v3200 = vld [vmem:[%s3178 + $0x54] sm:$0xf]
        %v3201 = vld [vmem:[%s3178 + $0x58] sm:$0xf]
        %v3202 = vld [vmem:[%s3178 + $0x5c] sm:$0xf]
        %v3203 = vld [vmem:[%s3178 + $0x60] sm:$0xf]
        %v3204 = vld [vmem:[%s3178 + $0x64] sm:$0xf]
        %v3205 = vld [vmem:[%s3178 + $0x68] sm:$0xf]
        %v3206 = vld [vmem:[%s3178 + $0x6c] sm:$0xf]
        %v3207 = vld [vmem:[%s3178 + $0x70] sm:$0xf]
        %v3208 = vld [vmem:[%s3178 + $0x74] sm:$0xf]
        %v3209 = vld [vmem:[%s3178 + $0x78] sm:$0xf]
        %v3210 = vld [vmem:[%s3178 + $0x7c] sm:$0xf]
        %s3211 = scalar_lea.vmem [#allocation3], 48
        %v3212 = vld [vmem:[%s3211] sm:$0xf]
        %v3213 = vld [vmem:[%s3211 + $0x4] sm:$0xf]
        %v3214 = vld [vmem:[%s3211 + $0x8] sm:$0xf]
        %v3215 = vld [vmem:[%s3211 + $0xc] sm:$0xf]
        %v3216 = vld [vmem:[%s3211 + $0x10] sm:$0xf]
        %v3217 = vld [vmem:[%s3211 + $0x14] sm:$0xf]
        %v3218 = vld [vmem:[%s3211 + $0x18] sm:$0xf]
        %v3219 = vld [vmem:[%s3211 + $0x1c] sm:$0xf]
        %v3220 = vld [vmem:[%s3211 + $0x20] sm:$0xf]
        %v3221 = vld [vmem:[%s3211 + $0x24] sm:$0xf]
        %v3222 = vld [vmem:[%s3211 + $0x28] sm:$0xf]
        %v3223 = vld [vmem:[%s3211 + $0x2c] sm:$0xf]
        %v3224 = vld [vmem:[%s3211 + $0x30] sm:$0xf]
        %v3225 = vld [vmem:[%s3211 + $0x34] sm:$0xf]
        %v3226 = vld [vmem:[%s3211 + $0x38] sm:$0xf]
        %v3227 = vld [vmem:[%s3211 + $0x3c] sm:$0xf]
        %v3228 = vld [vmem:[%s3211 + $0x40] sm:$0xf]
        %v3229 = vld [vmem:[%s3211 + $0x44] sm:$0xf]
        %v3230 = vld [vmem:[%s3211 + $0x48] sm:$0xf]
        %v3231 = vld [vmem:[%s3211 + $0x4c] sm:$0xf]
        %v3232 = vld [vmem:[%s3211 + $0x50] sm:$0xf]
        %v3233 = vld [vmem:[%s3211 + $0x54] sm:$0xf]
        %v3234 = vld [vmem:[%s3211 + $0x58] sm:$0xf]
        %v3235 = vld [vmem:[%s3211 + $0x5c] sm:$0xf]
        %v3236 = vld [vmem:[%s3211 + $0x60] sm:$0xf]
        %v3237 = vld [vmem:[%s3211 + $0x64] sm:$0xf]
        %v3238 = vld [vmem:[%s3211 + $0x68] sm:$0xf]
        %v3239 = vld [vmem:[%s3211 + $0x6c] sm:$0xf]
        %v3240 = vld [vmem:[%s3211 + $0x70] sm:$0xf]
        %v3241 = vld [vmem:[%s3211 + $0x74] sm:$0xf]
        %v3242 = vld [vmem:[%s3211 + $0x78] sm:$0xf]
        %v3243 = vld [vmem:[%s3211 + $0x7c] sm:$0xf]
        %s3244 = scalar_lea.vmem [#allocation3], 56
        %v3245 = vld [vmem:[%s3244] sm:$0xf]
        %v3246 = vld [vmem:[%s3244 + $0x4] sm:$0xf]
        %v3247 = vld [vmem:[%s3244 + $0x8] sm:$0xf]
        %v3248 = vld [vmem:[%s3244 + $0xc] sm:$0xf]
        %v3249 = vld [vmem:[%s3244 + $0x10] sm:$0xf]
        %v3250 = vld [vmem:[%s3244 + $0x14] sm:$0xf]
        %v3251 = vld [vmem:[%s3244 + $0x18] sm:$0xf]
        %v3252 = vld [vmem:[%s3244 + $0x1c] sm:$0xf]
        %v3253 = vld [vmem:[%s3244 + $0x20] sm:$0xf]
        %v3254 = vld [vmem:[%s3244 + $0x24] sm:$0xf]
        %v3255 = vld [vmem:[%s3244 + $0x28] sm:$0xf]
        %v3256 = vld [vmem:[%s3244 + $0x2c] sm:$0xf]
        %v3257 = vld [vmem:[%s3244 + $0x30] sm:$0xf]
        %v3258 = vld [vmem:[%s3244 + $0x34] sm:$0xf]
        %v3259 = vld [vmem:[%s3244 + $0x38] sm:$0xf]
        %v3260 = vld [vmem:[%s3244 + $0x3c] sm:$0xf]
        %v3261 = vld [vmem:[%s3244 + $0x40] sm:$0xf]
        %v3262 = vld [vmem:[%s3244 + $0x44] sm:$0xf]
        %v3263 = vld [vmem:[%s3244 + $0x48] sm:$0xf]
        %v3264 = vld [vmem:[%s3244 + $0x4c] sm:$0xf]
        %v3265 = vld [vmem:[%s3244 + $0x50] sm:$0xf]
        %v3266 = vld [vmem:[%s3244 + $0x54] sm:$0xf]
        %v3267 = vld [vmem:[%s3244 + $0x58] sm:$0xf]
        %v3268 = vld [vmem:[%s3244 + $0x5c] sm:$0xf]
        %v3269 = vld [vmem:[%s3244 + $0x60] sm:$0xf]
        %v3270 = vld [vmem:[%s3244 + $0x64] sm:$0xf]
        %v3271 = vld [vmem:[%s3244 + $0x68] sm:$0xf]
        %v3272 = vld [vmem:[%s3244 + $0x6c] sm:$0xf]
        %v3273 = vld [vmem:[%s3244 + $0x70] sm:$0xf]
        %v3274 = vld [vmem:[%s3244 + $0x74] sm:$0xf]
        %v3275 = vld [vmem:[%s3244 + $0x78] sm:$0xf]
        %v3276 = vld [vmem:[%s3244 + $0x7c] sm:$0xf]
        %s3277 = scalar_lea.vmem [#allocation3], 64
        %v3278 = vld [vmem:[%s3277] sm:$0xf]
        %v3279 = vld [vmem:[%s3277 + $0x4] sm:$0xf]
        %v3280 = vld [vmem:[%s3277 + $0x8] sm:$0xf]
        %v3281 = vld [vmem:[%s3277 + $0xc] sm:$0xf]
        %v3282 = vld [vmem:[%s3277 + $0x10] sm:$0xf]
        %v3283 = vld [vmem:[%s3277 + $0x14] sm:$0xf]
        %v3284 = vld [vmem:[%s3277 + $0x18] sm:$0xf]
        %v3285 = vld [vmem:[%s3277 + $0x1c] sm:$0xf]
        %v3286 = vld [vmem:[%s3277 + $0x20] sm:$0xf]
        %v3287 = vld [vmem:[%s3277 + $0x24] sm:$0xf]
        %v3288 = vld [vmem:[%s3277 + $0x28] sm:$0xf]
        %v3289 = vld [vmem:[%s3277 + $0x2c] sm:$0xf]
        %v3290 = vld [vmem:[%s3277 + $0x30] sm:$0xf]
        %v3291 = vld [vmem:[%s3277 + $0x34] sm:$0xf]
        %v3292 = vld [vmem:[%s3277 + $0x38] sm:$0xf]
        %v3293 = vld [vmem:[%s3277 + $0x3c] sm:$0xf]
        %v3294 = vld [vmem:[%s3277 + $0x40] sm:$0xf]
        %v3295 = vld [vmem:[%s3277 + $0x44] sm:$0xf]
        %v3296 = vld [vmem:[%s3277 + $0x48] sm:$0xf]
        %v3297 = vld [vmem:[%s3277 + $0x4c] sm:$0xf]
        %v3298 = vld [vmem:[%s3277 + $0x50] sm:$0xf]
        %v3299 = vld [vmem:[%s3277 + $0x54] sm:$0xf]
        %v3300 = vld [vmem:[%s3277 + $0x58] sm:$0xf]
        %v3301 = vld [vmem:[%s3277 + $0x5c] sm:$0xf]
        %v3302 = vld [vmem:[%s3277 + $0x60] sm:$0xf]
        %v3303 = vld [vmem:[%s3277 + $0x64] sm:$0xf]
        %v3304 = vld [vmem:[%s3277 + $0x68] sm:$0xf]
        %v3305 = vld [vmem:[%s3277 + $0x6c] sm:$0xf]
        %v3306 = vld [vmem:[%s3277 + $0x70] sm:$0xf]
        %v3307 = vld [vmem:[%s3277 + $0x74] sm:$0xf]
        %v3308 = vld [vmem:[%s3277 + $0x78] sm:$0xf]
        %v3309 = vld [vmem:[%s3277 + $0x7c] sm:$0xf]
        %v3310 = vld [vmem:[%s885] sm:$0xf]
        %v3311 = vld [vmem:[%s885 + $0x4] sm:$0xf]
        %v3312 = vld [vmem:[%s885 + $0x8] sm:$0xf]
        %v3313 = vld [vmem:[%s885 + $0xc] sm:$0xf]
        %v3314 = vld [vmem:[%s885 + $0x10] sm:$0xf]
        %v3315 = vld [vmem:[%s885 + $0x14] sm:$0xf]
        %v3316 = vld [vmem:[%s885 + $0x18] sm:$0xf]
        %v3317 = vld [vmem:[%s885 + $0x1c] sm:$0xf]
        %v3318 = vld [vmem:[%s885 + $0x20] sm:$0xf]
        %v3319 = vld [vmem:[%s885 + $0x24] sm:$0xf]
        %v3320 = vld [vmem:[%s885 + $0x28] sm:$0xf]
        %v3321 = vld [vmem:[%s885 + $0x2c] sm:$0xf]
        %v3322 = vld [vmem:[%s885 + $0x30] sm:$0xf]
        %v3323 = vld [vmem:[%s885 + $0x34] sm:$0xf]
        %v3324 = vld [vmem:[%s885 + $0x38] sm:$0xf]
        %v3325 = vld [vmem:[%s885 + $0x3c] sm:$0xf]
        %v3326 = vld [vmem:[%s885 + $0x40] sm:$0xf]
        %v3327 = vld [vmem:[%s885 + $0x44] sm:$0xf]
        %v3328 = vld [vmem:[%s885 + $0x48] sm:$0xf]
        %v3329 = vld [vmem:[%s885 + $0x4c] sm:$0xf]
        %v3330 = vld [vmem:[%s885 + $0x50] sm:$0xf]
        %v3331 = vld [vmem:[%s885 + $0x54] sm:$0xf]
        %v3332 = vld [vmem:[%s885 + $0x58] sm:$0xf]
        %v3333 = vld [vmem:[%s885 + $0x5c] sm:$0xf]
        %v3334 = vld [vmem:[%s885 + $0x60] sm:$0xf]
        %v3335 = vld [vmem:[%s885 + $0x64] sm:$0xf]
        %v3336 = vld [vmem:[%s885 + $0x68] sm:$0xf]
        %v3337 = vld [vmem:[%s885 + $0x6c] sm:$0xf]
        %v3338 = vld [vmem:[%s885 + $0x70] sm:$0xf]
        %v3339 = vld [vmem:[%s885 + $0x74] sm:$0xf]
        %v3340 = vld [vmem:[%s885 + $0x78] sm:$0xf]
        %v3341 = vld [vmem:[%s885 + $0x7c] sm:$0xf]
        %s3342 = scalar_lea.vmem [#allocation3], 80
        %v3343 = vld [vmem:[%s3342] sm:$0xf]
        %v3344 = vld [vmem:[%s3342 + $0x4] sm:$0xf]
        %v3345 = vld [vmem:[%s3342 + $0x8] sm:$0xf]
        %v3346 = vld [vmem:[%s3342 + $0xc] sm:$0xf]
        %v3347 = vld [vmem:[%s3342 + $0x10] sm:$0xf]
        %v3348 = vld [vmem:[%s3342 + $0x14] sm:$0xf]
        %v3349 = vld [vmem:[%s3342 + $0x18] sm:$0xf]
        %v3350 = vld [vmem:[%s3342 + $0x1c] sm:$0xf]
        %v3351 = vld [vmem:[%s3342 + $0x20] sm:$0xf]
        %v3352 = vld [vmem:[%s3342 + $0x24] sm:$0xf]
        %v3353 = vld [vmem:[%s3342 + $0x28] sm:$0xf]
        %v3354 = vld [vmem:[%s3342 + $0x2c] sm:$0xf]
        %v3355 = vld [vmem:[%s3342 + $0x30] sm:$0xf]
        %v3356 = vld [vmem:[%s3342 + $0x34] sm:$0xf]
        %v3357 = vld [vmem:[%s3342 + $0x38] sm:$0xf]
        %v3358 = vld [vmem:[%s3342 + $0x3c] sm:$0xf]
        %v3359 = vld [vmem:[%s3342 + $0x40] sm:$0xf]
        %v3360 = vld [vmem:[%s3342 + $0x44] sm:$0xf]
        %v3361 = vld [vmem:[%s3342 + $0x48] sm:$0xf]
        %v3362 = vld [vmem:[%s3342 + $0x4c] sm:$0xf]
        %v3363 = vld [vmem:[%s3342 + $0x50] sm:$0xf]
        %v3364 = vld [vmem:[%s3342 + $0x54] sm:$0xf]
        %v3365 = vld [vmem:[%s3342 + $0x58] sm:$0xf]
        %v3366 = vld [vmem:[%s3342 + $0x5c] sm:$0xf]
        %v3367 = vld [vmem:[%s3342 + $0x60] sm:$0xf]
        %v3368 = vld [vmem:[%s3342 + $0x64] sm:$0xf]
        %v3369 = vld [vmem:[%s3342 + $0x68] sm:$0xf]
        %v3370 = vld [vmem:[%s3342 + $0x6c] sm:$0xf]
        %v3371 = vld [vmem:[%s3342 + $0x70] sm:$0xf]
        %v3372 = vld [vmem:[%s3342 + $0x74] sm:$0xf]
        %v3373 = vld [vmem:[%s3342 + $0x78] sm:$0xf]
        %v3374 = vld [vmem:[%s3342 + $0x7c] sm:$0xf]
        %s3375 = scalar_lea.vmem [#allocation3], 88
        %v3376 = vld [vmem:[%s3375] sm:$0xf]
        %v3377 = vld [vmem:[%s3375 + $0x4] sm:$0xf]
        %v3378 = vld [vmem:[%s3375 + $0x8] sm:$0xf]
        %v3379 = vld [vmem:[%s3375 + $0xc] sm:$0xf]
        %v3380 = vld [vmem:[%s3375 + $0x10] sm:$0xf]
        %v3381 = vld [vmem:[%s3375 + $0x14] sm:$0xf]
        %v3382 = vld [vmem:[%s3375 + $0x18] sm:$0xf]
        %v3383 = vld [vmem:[%s3375 + $0x1c] sm:$0xf]
        %v3384 = vld [vmem:[%s3375 + $0x20] sm:$0xf]
        %v3385 = vld [vmem:[%s3375 + $0x24] sm:$0xf]
        %v3386 = vld [vmem:[%s3375 + $0x28] sm:$0xf]
        %v3387 = vld [vmem:[%s3375 + $0x2c] sm:$0xf]
        %v3388 = vld [vmem:[%s3375 + $0x30] sm:$0xf]
        %v3389 = vld [vmem:[%s3375 + $0x34] sm:$0xf]
        %v3390 = vld [vmem:[%s3375 + $0x38] sm:$0xf]
        %v3391 = vld [vmem:[%s3375 + $0x3c] sm:$0xf]
        %v3392 = vld [vmem:[%s3375 + $0x40] sm:$0xf]
        %v3393 = vld [vmem:[%s3375 + $0x44] sm:$0xf]
        %v3394 = vld [vmem:[%s3375 + $0x48] sm:$0xf]
        %v3395 = vld [vmem:[%s3375 + $0x4c] sm:$0xf]
        %v3396 = vld [vmem:[%s3375 + $0x50] sm:$0xf]
        %v3397 = vld [vmem:[%s3375 + $0x54] sm:$0xf]
        %v3398 = vld [vmem:[%s3375 + $0x58] sm:$0xf]
        %v3399 = vld [vmem:[%s3375 + $0x5c] sm:$0xf]
        %v3400 = vld [vmem:[%s3375 + $0x60] sm:$0xf]
        %v3401 = vld [vmem:[%s3375 + $0x64] sm:$0xf]
        %v3402 = vld [vmem:[%s3375 + $0x68] sm:$0xf]
        %v3403 = vld [vmem:[%s3375 + $0x6c] sm:$0xf]
        %v3404 = vld [vmem:[%s3375 + $0x70] sm:$0xf]
        %v3405 = vld [vmem:[%s3375 + $0x74] sm:$0xf]
        %v3406 = vld [vmem:[%s3375 + $0x78] sm:$0xf]
        %v3407 = vld [vmem:[%s3375 + $0x7c] sm:$0xf]
        %s3408 = scalar_lea.vmem [#allocation3], 96
        %v3409 = vld [vmem:[%s3408] sm:$0xf]
        %v3410 = vld [vmem:[%s3408 + $0x4] sm:$0xf]
        %v3411 = vld [vmem:[%s3408 + $0x8] sm:$0xf]
        %v3412 = vld [vmem:[%s3408 + $0xc] sm:$0xf]
        %v3413 = vld [vmem:[%s3408 + $0x10] sm:$0xf]
        %v3414 = vld [vmem:[%s3408 + $0x14] sm:$0xf]
        %v3415 = vld [vmem:[%s3408 + $0x18] sm:$0xf]
        %v3416 = vld [vmem:[%s3408 + $0x1c] sm:$0xf]
        %v3417 = vld [vmem:[%s3408 + $0x20] sm:$0xf]
        %v3418 = vld [vmem:[%s3408 + $0x24] sm:$0xf]
        %v3419 = vld [vmem:[%s3408 + $0x28] sm:$0xf]
        %v3420 = vld [vmem:[%s3408 + $0x2c] sm:$0xf]
        %v3421 = vld [vmem:[%s3408 + $0x30] sm:$0xf]
        %v3422 = vld [vmem:[%s3408 + $0x34] sm:$0xf]
        %v3423 = vld [vmem:[%s3408 + $0x38] sm:$0xf]
        %v3424 = vld [vmem:[%s3408 + $0x3c] sm:$0xf]
        %v3425 = vld [vmem:[%s3408 + $0x40] sm:$0xf]
        %v3426 = vld [vmem:[%s3408 + $0x44] sm:$0xf]
        %v3427 = vld [vmem:[%s3408 + $0x48] sm:$0xf]
        %v3428 = vld [vmem:[%s3408 + $0x4c] sm:$0xf]
        %v3429 = vld [vmem:[%s3408 + $0x50] sm:$0xf]
        %v3430 = vld [vmem:[%s3408 + $0x54] sm:$0xf]
        %v3431 = vld [vmem:[%s3408 + $0x58] sm:$0xf]
        %v3432 = vld [vmem:[%s3408 + $0x5c] sm:$0xf]
        %v3433 = vld [vmem:[%s3408 + $0x60] sm:$0xf]
        %v3434 = vld [vmem:[%s3408 + $0x64] sm:$0xf]
        %v3435 = vld [vmem:[%s3408 + $0x68] sm:$0xf]
        %v3436 = vld [vmem:[%s3408 + $0x6c] sm:$0xf]
        %v3437 = vld [vmem:[%s3408 + $0x70] sm:$0xf]
        %v3438 = vld [vmem:[%s3408 + $0x74] sm:$0xf]
        %v3439 = vld [vmem:[%s3408 + $0x78] sm:$0xf]
        %v3440 = vld [vmem:[%s3408 + $0x7c] sm:$0xf]
        %s3441 = scalar_lea.vmem [#allocation3], 104
        %v3442 = vld [vmem:[%s3441] sm:$0xf]
        %v3443 = vld [vmem:[%s3441 + $0x4] sm:$0xf]
        %v3444 = vld [vmem:[%s3441 + $0x8] sm:$0xf]
        %v3445 = vld [vmem:[%s3441 + $0xc] sm:$0xf]
        %v3446 = vld [vmem:[%s3441 + $0x10] sm:$0xf]
        %v3447 = vld [vmem:[%s3441 + $0x14] sm:$0xf]
        %v3448 = vld [vmem:[%s3441 + $0x18] sm:$0xf]
        %v3449 = vld [vmem:[%s3441 + $0x1c] sm:$0xf]
        %v3450 = vld [vmem:[%s3441 + $0x20] sm:$0xf]
        %v3451 = vld [vmem:[%s3441 + $0x24] sm:$0xf]
        %v3452 = vld [vmem:[%s3441 + $0x28] sm:$0xf]
        %v3453 = vld [vmem:[%s3441 + $0x2c] sm:$0xf]
        %v3454 = vld [vmem:[%s3441 + $0x30] sm:$0xf]
        %v3455 = vld [vmem:[%s3441 + $0x34] sm:$0xf]
        %v3456 = vld [vmem:[%s3441 + $0x38] sm:$0xf]
        %v3457 = vld [vmem:[%s3441 + $0x3c] sm:$0xf]
        %v3458 = vld [vmem:[%s3441 + $0x40] sm:$0xf]
        %v3459 = vld [vmem:[%s3441 + $0x44] sm:$0xf]
        %v3460 = vld [vmem:[%s3441 + $0x48] sm:$0xf]
        %v3461 = vld [vmem:[%s3441 + $0x4c] sm:$0xf]
        %v3462 = vld [vmem:[%s3441 + $0x50] sm:$0xf]
        %v3463 = vld [vmem:[%s3441 + $0x54] sm:$0xf]
        %v3464 = vld [vmem:[%s3441 + $0x58] sm:$0xf]
        %v3465 = vld [vmem:[%s3441 + $0x5c] sm:$0xf]
        %v3466 = vld [vmem:[%s3441 + $0x60] sm:$0xf]
        %v3467 = vld [vmem:[%s3441 + $0x64] sm:$0xf]
        %v3468 = vld [vmem:[%s3441 + $0x68] sm:$0xf]
        %v3469 = vld [vmem:[%s3441 + $0x6c] sm:$0xf]
        %v3470 = vld [vmem:[%s3441 + $0x70] sm:$0xf]
        %v3471 = vld [vmem:[%s3441 + $0x74] sm:$0xf]
        %v3472 = vld [vmem:[%s3441 + $0x78] sm:$0xf]
        %v3473 = vld [vmem:[%s3441 + $0x7c] sm:$0xf]
        %s3474 = scalar_lea.vmem [#allocation3], 120
        %v3475 = vld [vmem:[%s3474] sm:$0xf]
        %v3476 = vld [vmem:[%s3474 + $0x4] sm:$0xf]
        %v3477 = vld [vmem:[%s3474 + $0x8] sm:$0xf]
        %v3478 = vld [vmem:[%s3474 + $0xc] sm:$0xf]
        %v3479 = vld [vmem:[%s3474 + $0x10] sm:$0xf]
        %v3480 = vld [vmem:[%s3474 + $0x14] sm:$0xf]
        %v3481 = vld [vmem:[%s3474 + $0x18] sm:$0xf]
        %v3482 = vld [vmem:[%s3474 + $0x1c] sm:$0xf]
        %v3483 = vld [vmem:[%s3474 + $0x20] sm:$0xf]
        %v3484 = vld [vmem:[%s3474 + $0x24] sm:$0xf]
        %v3485 = vld [vmem:[%s3474 + $0x28] sm:$0xf]
        %v3486 = vld [vmem:[%s3474 + $0x2c] sm:$0xf]
        %v3487 = vld [vmem:[%s3474 + $0x30] sm:$0xf]
        %v3488 = vld [vmem:[%s3474 + $0x34] sm:$0xf]
        %v3489 = vld [vmem:[%s3474 + $0x38] sm:$0xf]
        %v3490 = vld [vmem:[%s3474 + $0x3c] sm:$0xf]
        %v3491 = vld [vmem:[%s3474 + $0x40] sm:$0xf]
        %v3492 = vld [vmem:[%s3474 + $0x44] sm:$0xf]
        %v3493 = vld [vmem:[%s3474 + $0x48] sm:$0xf]
        %v3494 = vld [vmem:[%s3474 + $0x4c] sm:$0xf]
        %v3495 = vld [vmem:[%s3474 + $0x50] sm:$0xf]
        %v3496 = vld [vmem:[%s3474 + $0x54] sm:$0xf]
        %v3497 = vld [vmem:[%s3474 + $0x58] sm:$0xf]
        %v3498 = vld [vmem:[%s3474 + $0x5c] sm:$0xf]
        %v3499 = vld [vmem:[%s3474 + $0x60] sm:$0xf]
        %v3500 = vld [vmem:[%s3474 + $0x64] sm:$0xf]
        %v3501 = vld [vmem:[%s3474 + $0x68] sm:$0xf]
        %v3502 = vld [vmem:[%s3474 + $0x6c] sm:$0xf]
        %v3503 = vld [vmem:[%s3474 + $0x70] sm:$0xf]
        %v3504 = vld [vmem:[%s3474 + $0x74] sm:$0xf]
        %v3505 = vld [vmem:[%s3474 + $0x78] sm:$0xf]
        %v3506 = vld [vmem:[%s3474 + $0x7c] sm:$0xf]
        %s3507 = scalar_lea.vmem [#allocation3], 144
        %v3508 = vld [vmem:[%s3507] sm:$0xf]
        %v3509 = vld [vmem:[%s3507 + $0x4] sm:$0xf]
        %v3510 = vld [vmem:[%s3507 + $0x8] sm:$0xf]
        %v3511 = vld [vmem:[%s3507 + $0xc] sm:$0xf]
        %v3512 = vld [vmem:[%s3507 + $0x10] sm:$0xf]
        %v3513 = vld [vmem:[%s3507 + $0x14] sm:$0xf]
        %v3514 = vld [vmem:[%s3507 + $0x18] sm:$0xf]
        %v3515 = vld [vmem:[%s3507 + $0x1c] sm:$0xf]
        %v3516 = vld [vmem:[%s3507 + $0x20] sm:$0xf]
        %v3517 = vld [vmem:[%s3507 + $0x24] sm:$0xf]
        %v3518 = vld [vmem:[%s3507 + $0x28] sm:$0xf]
        %v3519 = vld [vmem:[%s3507 + $0x2c] sm:$0xf]
        %v3520 = vld [vmem:[%s3507 + $0x30] sm:$0xf]
        %v3521 = vld [vmem:[%s3507 + $0x34] sm:$0xf]
        %v3522 = vld [vmem:[%s3507 + $0x38] sm:$0xf]
        %v3523 = vld [vmem:[%s3507 + $0x3c] sm:$0xf]
        %v3524 = vld [vmem:[%s3507 + $0x40] sm:$0xf]
        %v3525 = vld [vmem:[%s3507 + $0x44] sm:$0xf]
        %v3526 = vld [vmem:[%s3507 + $0x48] sm:$0xf]
        %v3527 = vld [vmem:[%s3507 + $0x4c] sm:$0xf]
        %v3528 = vld [vmem:[%s3507 + $0x50] sm:$0xf]
        %v3529 = vld [vmem:[%s3507 + $0x54] sm:$0xf]
        %v3530 = vld [vmem:[%s3507 + $0x58] sm:$0xf]
        %v3531 = vld [vmem:[%s3507 + $0x5c] sm:$0xf]
        %v3532 = vld [vmem:[%s3507 + $0x60] sm:$0xf]
        %v3533 = vld [vmem:[%s3507 + $0x64] sm:$0xf]
        %v3534 = vld [vmem:[%s3507 + $0x68] sm:$0xf]
        %v3535 = vld [vmem:[%s3507 + $0x6c] sm:$0xf]
        %v3536 = vld [vmem:[%s3507 + $0x70] sm:$0xf]
        %v3537 = vld [vmem:[%s3507 + $0x74] sm:$0xf]
        %v3538 = vld [vmem:[%s3507 + $0x78] sm:$0xf]
        %v3539 = vld [vmem:[%s3507 + $0x7c] sm:$0xf]
        %v3572 = vunpack.c.l.b16 %v3113
        %v3573 = vunpack.c.l.b16 %v3114
        %v3574 = vunpack.c.l.b16 %v3115
        %v3575 = vunpack.c.l.b16 %v3116
        %v3576 = vunpack.c.l.b16 %v3117
        %v3577 = vunpack.c.l.b16 %v3118
        %v3578 = vunpack.c.l.b16 %v3119
        %v3579 = vunpack.c.l.b16 %v3120
        %v3580 = vunpack.c.l.b16 %v3121
        %v3581 = vunpack.c.l.b16 %v3122
        %v3582 = vunpack.c.l.b16 %v3123
        %v3583 = vunpack.c.l.b16 %v3124
        %v3584 = vunpack.c.l.b16 %v3125
        %v3585 = vunpack.c.l.b16 %v3126
        %v3586 = vunpack.c.l.b16 %v3127
        %v3587 = vunpack.c.l.b16 %v3128
        %v3588 = vunpack.c.l.b16 %v3129
        %v3589 = vunpack.c.l.b16 %v3130
        %v3590 = vunpack.c.l.b16 %v3131
        %v3591 = vunpack.c.l.b16 %v3132
        %v3592 = vunpack.c.l.b16 %v3133
        %v3593 = vunpack.c.l.b16 %v3134
        %v3594 = vunpack.c.l.b16 %v3135
        %v3595 = vunpack.c.l.b16 %v3136
        %v3596 = vunpack.c.l.b16 %v3137
        %v3597 = vunpack.c.l.b16 %v3138
        %v3598 = vunpack.c.l.b16 %v3139
        %v3599 = vunpack.c.l.b16 %v3140
        %v3600 = vunpack.c.l.b16 %v3141
        %v3601 = vunpack.c.l.b16 %v3142
        %v3602 = vunpack.c.l.b16 %v3143
        %v3603 = vunpack.c.l.b16 %v3144
        %v3604 = vpack.c.b16 %v3573, %v3572
        %v3605 = vpack.c.b16 %v3575, %v3574
        %v3606 = vpack.c.b16 %v3577, %v3576
        %v3607 = vpack.c.b16 %v3579, %v3578
        %v3608 = vpack.c.b16 %v3581, %v3580
        %v3609 = vpack.c.b16 %v3583, %v3582
        %v3610 = vpack.c.b16 %v3585, %v3584
        %v3611 = vpack.c.b16 %v3587, %v3586
        %v3612 = vpack.c.b16 %v3589, %v3588
        %v3613 = vpack.c.b16 %v3591, %v3590
        %v3614 = vpack.c.b16 %v3593, %v3592
        %v3615 = vpack.c.b16 %v3595, %v3594
        %v3616 = vpack.c.b16 %v3597, %v3596
        %v3617 = vpack.c.b16 %v3599, %v3598
        %v3618 = vpack.c.b16 %v3601, %v3600
        %v3619 = vpack.c.b16 %v3603, %v3602
        %v3652 = vunpack.c.l.b16 %v3146
        %v3653 = vunpack.c.l.b16 %v3147
        %v3654 = vunpack.c.l.b16 %v3148
        %v3655 = vunpack.c.l.b16 %v3149
        %v3656 = vunpack.c.l.b16 %v3150
        %v3657 = vunpack.c.l.b16 %v3151
        %v3658 = vunpack.c.l.b16 %v3152
        %v3659 = vunpack.c.l.b16 %v3153
        %v3660 = vunpack.c.l.b16 %v3154
        %v3661 = vunpack.c.l.b16 %v3155
        %v3662 = vunpack.c.l.b16 %v3156
        %v3663 = vunpack.c.l.b16 %v3157
        %v3664 = vunpack.c.l.b16 %v3158
        %v3665 = vunpack.c.l.b16 %v3159
        %v3666 = vunpack.c.l.b16 %v3160
        %v3667 = vunpack.c.l.b16 %v3161
        %v3668 = vunpack.c.l.b16 %v3162
        %v3669 = vunpack.c.l.b16 %v3163
        %v3670 = vunpack.c.l.b16 %v3164
        %v3671 = vunpack.c.l.b16 %v3165
        %v3672 = vunpack.c.l.b16 %v3166
        %v3673 = vunpack.c.l.b16 %v3167
        %v3674 = vunpack.c.l.b16 %v3168
        %v3675 = vunpack.c.l.b16 %v3169
        %v3676 = vunpack.c.l.b16 %v3170
        %v3677 = vunpack.c.l.b16 %v3171
        %v3678 = vunpack.c.l.b16 %v3172
        %v3679 = vunpack.c.l.b16 %v3173
        %v3680 = vunpack.c.l.b16 %v3174
        %v3681 = vunpack.c.l.b16 %v3175
        %v3682 = vunpack.c.l.b16 %v3176
        %v3683 = vunpack.c.l.b16 %v3177
        %v3684 = vpack.c.b16 %v3653, %v3652
        %v3685 = vpack.c.b16 %v3655, %v3654
        %v3686 = vpack.c.b16 %v3657, %v3656
        %v3687 = vpack.c.b16 %v3659, %v3658
        %v3688 = vpack.c.b16 %v3661, %v3660
        %v3689 = vpack.c.b16 %v3663, %v3662
        %v3690 = vpack.c.b16 %v3665, %v3664
        %v3691 = vpack.c.b16 %v3667, %v3666
        %v3692 = vpack.c.b16 %v3669, %v3668
        %v3693 = vpack.c.b16 %v3671, %v3670
        %v3694 = vpack.c.b16 %v3673, %v3672
        %v3695 = vpack.c.b16 %v3675, %v3674
        %v3696 = vpack.c.b16 %v3677, %v3676
        %v3697 = vpack.c.b16 %v3679, %v3678
        %v3698 = vpack.c.b16 %v3681, %v3680
        %v3699 = vpack.c.b16 %v3683, %v3682
        %3700 = vrot.lane.b32.xlu0 %v3684, 32
        %v3701 = vpop.permute.xlu0 %3700
        %3702 = vrot.lane.b32.xlu0 %v3685, 32
        %v3703 = vpop.permute.xlu0 %3702
        %3704 = vrot.lane.b32.xlu0 %v3686, 32
        %v3705 = vpop.permute.xlu0 %3704
        %3706 = vrot.lane.b32.xlu0 %v3687, 32
        %v3707 = vpop.permute.xlu0 %3706
        %3708 = vrot.lane.b32.xlu0 %v3688, 32
        %v3709 = vpop.permute.xlu0 %3708
        %3710 = vrot.lane.b32.xlu0 %v3689, 32
        %v3711 = vpop.permute.xlu0 %3710
        %3712 = vrot.lane.b32.xlu0 %v3690, 32
        %v3713 = vpop.permute.xlu0 %3712
        %3714 = vrot.lane.b32.xlu0 %v3691, 32
        %v3715 = vpop.permute.xlu0 %3714
        %3716 = vrot.lane.b32.xlu0 %v3692, 32
        %v3717 = vpop.permute.xlu0 %3716
        %3718 = vrot.lane.b32.xlu0 %v3693, 32
        %v3719 = vpop.permute.xlu0 %3718
        %3720 = vrot.lane.b32.xlu0 %v3694, 32
        %v3721 = vpop.permute.xlu0 %3720
        %3722 = vrot.lane.b32.xlu0 %v3695, 32
        %v3723 = vpop.permute.xlu0 %3722
        %3724 = vrot.lane.b32.xlu0 %v3696, 32
        %v3725 = vpop.permute.xlu0 %3724
        %3726 = vrot.lane.b32.xlu0 %v3697, 32
        %v3727 = vpop.permute.xlu0 %3726
        %3728 = vrot.lane.b32.xlu0 %v3698, 32
        %v3729 = vpop.permute.xlu0 %3728
        %3730 = vrot.lane.b32.xlu0 %v3699, 32
        %v3731 = vpop.permute.xlu0 %3730
        %v3764 = vunpack.c.l.b16 %v3179
        %v3765 = vunpack.c.l.b16 %v3180
        %v3766 = vunpack.c.l.b16 %v3181
        %v3767 = vunpack.c.l.b16 %v3182
        %v3768 = vunpack.c.l.b16 %v3183
        %v3769 = vunpack.c.l.b16 %v3184
        %v3770 = vunpack.c.l.b16 %v3185
        %v3771 = vunpack.c.l.b16 %v3186
        %v3772 = vunpack.c.l.b16 %v3187
        %v3773 = vunpack.c.l.b16 %v3188
        %v3774 = vunpack.c.l.b16 %v3189
        %v3775 = vunpack.c.l.b16 %v3190
        %v3776 = vunpack.c.l.b16 %v3191
        %v3777 = vunpack.c.l.b16 %v3192
        %v3778 = vunpack.c.l.b16 %v3193
        %v3779 = vunpack.c.l.b16 %v3194
        %v3780 = vunpack.c.l.b16 %v3195
        %v3781 = vunpack.c.l.b16 %v3196
        %v3782 = vunpack.c.l.b16 %v3197
        %v3783 = vunpack.c.l.b16 %v3198
        %v3784 = vunpack.c.l.b16 %v3199
        %v3785 = vunpack.c.l.b16 %v3200
        %v3786 = vunpack.c.l.b16 %v3201
        %v3787 = vunpack.c.l.b16 %v3202
        %v3788 = vunpack.c.l.b16 %v3203
        %v3789 = vunpack.c.l.b16 %v3204
        %v3790 = vunpack.c.l.b16 %v3205
        %v3791 = vunpack.c.l.b16 %v3206
        %v3792 = vunpack.c.l.b16 %v3207
        %v3793 = vunpack.c.l.b16 %v3208
        %v3794 = vunpack.c.l.b16 %v3209
        %v3795 = vunpack.c.l.b16 %v3210
        %v3796 = vpack.c.b16 %v3765, %v3764
        %v3797 = vpack.c.b16 %v3767, %v3766
        %v3798 = vpack.c.b16 %v3769, %v3768
        %v3799 = vpack.c.b16 %v3771, %v3770
        %v3800 = vpack.c.b16 %v3773, %v3772
        %v3801 = vpack.c.b16 %v3775, %v3774
        %v3802 = vpack.c.b16 %v3777, %v3776
        %v3803 = vpack.c.b16 %v3779, %v3778
        %v3804 = vpack.c.b16 %v3781, %v3780
        %v3805 = vpack.c.b16 %v3783, %v3782
        %v3806 = vpack.c.b16 %v3785, %v3784
        %v3807 = vpack.c.b16 %v3787, %v3786
        %v3808 = vpack.c.b16 %v3789, %v3788
        %v3809 = vpack.c.b16 %v3791, %v3790
        %v3810 = vpack.c.b16 %v3793, %v3792
        %v3811 = vpack.c.b16 %v3795, %v3794
        %3812 = vrot.lane.b32.xlu0 %v3796, 64
        %v3813 = vpop.permute.xlu0 %3812
        %3814 = vrot.lane.b32.xlu0 %v3797, 64
        %v3815 = vpop.permute.xlu0 %3814
        %3816 = vrot.lane.b32.xlu0 %v3798, 64
        %v3817 = vpop.permute.xlu0 %3816
        %3818 = vrot.lane.b32.xlu0 %v3799, 64
        %v3819 = vpop.permute.xlu0 %3818
        %3820 = vrot.lane.b32.xlu0 %v3800, 64
        %v3821 = vpop.permute.xlu0 %3820
        %3822 = vrot.lane.b32.xlu0 %v3801, 64
        %v3823 = vpop.permute.xlu0 %3822
        %3824 = vrot.lane.b32.xlu0 %v3802, 64
        %v3825 = vpop.permute.xlu0 %3824
        %3826 = vrot.lane.b32.xlu0 %v3803, 64
        %v3827 = vpop.permute.xlu0 %3826
        %3828 = vrot.lane.b32.xlu0 %v3804, 64
        %v3829 = vpop.permute.xlu0 %3828
        %3830 = vrot.lane.b32.xlu0 %v3805, 64
        %v3831 = vpop.permute.xlu0 %3830
        %3832 = vrot.lane.b32.xlu0 %v3806, 64
        %v3833 = vpop.permute.xlu0 %3832
        %3834 = vrot.lane.b32.xlu0 %v3807, 64
        %v3835 = vpop.permute.xlu0 %3834
        %3836 = vrot.lane.b32.xlu0 %v3808, 64
        %v3837 = vpop.permute.xlu0 %3836
        %3838 = vrot.lane.b32.xlu0 %v3809, 64
        %v3839 = vpop.permute.xlu0 %3838
        %3840 = vrot.lane.b32.xlu0 %v3810, 64
        %v3841 = vpop.permute.xlu0 %3840
        %3842 = vrot.lane.b32.xlu0 %v3811, 64
        %v3843 = vpop.permute.xlu0 %3842
        %v3876 = vunpack.c.l.b16 %v3212
        %v3877 = vunpack.c.l.b16 %v3213
        %v3878 = vunpack.c.l.b16 %v3214
        %v3879 = vunpack.c.l.b16 %v3215
        %v3880 = vunpack.c.l.b16 %v3216
        %v3881 = vunpack.c.l.b16 %v3217
        %v3882 = vunpack.c.l.b16 %v3218
        %v3883 = vunpack.c.l.b16 %v3219
        %v3884 = vunpack.c.l.b16 %v3220
        %v3885 = vunpack.c.l.b16 %v3221
        %v3886 = vunpack.c.l.b16 %v3222
        %v3887 = vunpack.c.l.b16 %v3223
        %v3888 = vunpack.c.l.b16 %v3224
        %v3889 = vunpack.c.l.b16 %v3225
        %v3890 = vunpack.c.l.b16 %v3226
        %v3891 = vunpack.c.l.b16 %v3227
        %v3892 = vunpack.c.l.b16 %v3228
        %v3893 = vunpack.c.l.b16 %v3229
        %v3894 = vunpack.c.l.b16 %v3230
        %v3895 = vunpack.c.l.b16 %v3231
        %v3896 = vunpack.c.l.b16 %v3232
        %v3897 = vunpack.c.l.b16 %v3233
        %v3898 = vunpack.c.l.b16 %v3234
        %v3899 = vunpack.c.l.b16 %v3235
        %v3900 = vunpack.c.l.b16 %v3236
        %v3901 = vunpack.c.l.b16 %v3237
        %v3902 = vunpack.c.l.b16 %v3238
        %v3903 = vunpack.c.l.b16 %v3239
        %v3904 = vunpack.c.l.b16 %v3240
        %v3905 = vunpack.c.l.b16 %v3241
        %v3906 = vunpack.c.l.b16 %v3242
        %v3907 = vunpack.c.l.b16 %v3243
        %v3908 = vpack.c.b16 %v3877, %v3876
        %v3909 = vpack.c.b16 %v3879, %v3878
        %v3910 = vpack.c.b16 %v3881, %v3880
        %v3911 = vpack.c.b16 %v3883, %v3882
        %v3912 = vpack.c.b16 %v3885, %v3884
        %v3913 = vpack.c.b16 %v3887, %v3886
        %v3914 = vpack.c.b16 %v3889, %v3888
        %v3915 = vpack.c.b16 %v3891, %v3890
        %v3916 = vpack.c.b16 %v3893, %v3892
        %v3917 = vpack.c.b16 %v3895, %v3894
        %v3918 = vpack.c.b16 %v3897, %v3896
        %v3919 = vpack.c.b16 %v3899, %v3898
        %v3920 = vpack.c.b16 %v3901, %v3900
        %v3921 = vpack.c.b16 %v3903, %v3902
        %v3922 = vpack.c.b16 %v3905, %v3904
        %v3923 = vpack.c.b16 %v3907, %v3906
        %3924 = vrot.lane.b32.xlu0 %v3908, 96
        %v3925 = vpop.permute.xlu0 %3924
        %3926 = vrot.lane.b32.xlu0 %v3909, 96
        %v3927 = vpop.permute.xlu0 %3926
        %3928 = vrot.lane.b32.xlu0 %v3910, 96
        %v3929 = vpop.permute.xlu0 %3928
        %3930 = vrot.lane.b32.xlu0 %v3911, 96
        %v3931 = vpop.permute.xlu0 %3930
        %3932 = vrot.lane.b32.xlu0 %v3912, 96
        %v3933 = vpop.permute.xlu0 %3932
        %3934 = vrot.lane.b32.xlu0 %v3913, 96
        %v3935 = vpop.permute.xlu0 %3934
        %3936 = vrot.lane.b32.xlu0 %v3914, 96
        %v3937 = vpop.permute.xlu0 %3936
        %3938 = vrot.lane.b32.xlu0 %v3915, 96
        %v3939 = vpop.permute.xlu0 %3938
        %3940 = vrot.lane.b32.xlu0 %v3916, 96
        %v3941 = vpop.permute.xlu0 %3940
        %3942 = vrot.lane.b32.xlu0 %v3917, 96
        %v3943 = vpop.permute.xlu0 %3942
        %3944 = vrot.lane.b32.xlu0 %v3918, 96
        %v3945 = vpop.permute.xlu0 %3944
        %3946 = vrot.lane.b32.xlu0 %v3919, 96
        %v3947 = vpop.permute.xlu0 %3946
        %3948 = vrot.lane.b32.xlu0 %v3920, 96
        %v3949 = vpop.permute.xlu0 %3948
        %3950 = vrot.lane.b32.xlu0 %v3921, 96
        %v3951 = vpop.permute.xlu0 %3950
        %3952 = vrot.lane.b32.xlu0 %v3922, 96
        %v3953 = vpop.permute.xlu0 %3952
        %3954 = vrot.lane.b32.xlu0 %v3923, 96
        %v3955 = vpop.permute.xlu0 %3954
        %v3988 = vunpack.c.l.b16 %v3245
        %v3989 = vunpack.c.l.b16 %v3246
        %v3990 = vunpack.c.l.b16 %v3247
        %v3991 = vunpack.c.l.b16 %v3248
        %v3992 = vunpack.c.l.b16 %v3249
        %v3993 = vunpack.c.l.b16 %v3250
        %v3994 = vunpack.c.l.b16 %v3251
        %v3995 = vunpack.c.l.b16 %v3252
        %v3996 = vunpack.c.l.b16 %v3253
        %v3997 = vunpack.c.l.b16 %v3254
        %v3998 = vunpack.c.l.b16 %v3255
        %v3999 = vunpack.c.l.b16 %v3256
        %v4000 = vunpack.c.l.b16 %v3257
        %v4001 = vunpack.c.l.b16 %v3258
        %v4002 = vunpack.c.l.b16 %v3259
        %v4003 = vunpack.c.l.b16 %v3260
        %v4004 = vunpack.c.l.b16 %v3261
        %v4005 = vunpack.c.l.b16 %v3262
        %v4006 = vunpack.c.l.b16 %v3263
        %v4007 = vunpack.c.l.b16 %v3264
        %v4008 = vunpack.c.l.b16 %v3265
        %v4009 = vunpack.c.l.b16 %v3266
        %v4010 = vunpack.c.l.b16 %v3267
        %v4011 = vunpack.c.l.b16 %v3268
        %v4012 = vunpack.c.l.b16 %v3269
        %v4013 = vunpack.c.l.b16 %v3270
        %v4014 = vunpack.c.l.b16 %v3271
        %v4015 = vunpack.c.l.b16 %v3272
        %v4016 = vunpack.c.l.b16 %v3273
        %v4017 = vunpack.c.l.b16 %v3274
        %v4018 = vunpack.c.l.b16 %v3275
        %v4019 = vunpack.c.l.b16 %v3276
        %v4020 = vpack.c.b16 %v3989, %v3988
        %v4021 = vpack.c.b16 %v3991, %v3990
        %v4022 = vpack.c.b16 %v3993, %v3992
        %v4023 = vpack.c.b16 %v3995, %v3994
        %v4024 = vpack.c.b16 %v3997, %v3996
        %v4025 = vpack.c.b16 %v3999, %v3998
        %v4026 = vpack.c.b16 %v4001, %v4000
        %v4027 = vpack.c.b16 %v4003, %v4002
        %v4028 = vpack.c.b16 %v4005, %v4004
        %v4029 = vpack.c.b16 %v4007, %v4006
        %v4030 = vpack.c.b16 %v4009, %v4008
        %v4031 = vpack.c.b16 %v4011, %v4010
        %v4032 = vpack.c.b16 %v4013, %v4012
        %v4033 = vpack.c.b16 %v4015, %v4014
        %v4034 = vpack.c.b16 %v4017, %v4016
        %v4035 = vpack.c.b16 %v4019, %v4018
        %v4068 = vunpack.c.l.b16 %v3278
        %v4069 = vunpack.c.l.b16 %v3279
        %v4070 = vunpack.c.l.b16 %v3280
        %v4071 = vunpack.c.l.b16 %v3281
        %v4072 = vunpack.c.l.b16 %v3282
        %v4073 = vunpack.c.l.b16 %v3283
        %v4074 = vunpack.c.l.b16 %v3284
        %v4075 = vunpack.c.l.b16 %v3285
        %v4076 = vunpack.c.l.b16 %v3286
        %v4077 = vunpack.c.l.b16 %v3287
        %v4078 = vunpack.c.l.b16 %v3288
        %v4079 = vunpack.c.l.b16 %v3289
        %v4080 = vunpack.c.l.b16 %v3290
        %v4081 = vunpack.c.l.b16 %v3291
        %v4082 = vunpack.c.l.b16 %v3292
        %v4083 = vunpack.c.l.b16 %v3293
        %v4084 = vunpack.c.l.b16 %v3294
        %v4085 = vunpack.c.l.b16 %v3295
        %v4086 = vunpack.c.l.b16 %v3296
        %v4087 = vunpack.c.l.b16 %v3297
        %v4088 = vunpack.c.l.b16 %v3298
        %v4089 = vunpack.c.l.b16 %v3299
        %v4090 = vunpack.c.l.b16 %v3300
        %v4091 = vunpack.c.l.b16 %v3301
        %v4092 = vunpack.c.l.b16 %v3302
        %v4093 = vunpack.c.l.b16 %v3303
        %v4094 = vunpack.c.l.b16 %v3304
        %v4095 = vunpack.c.l.b16 %v3305
        %v4096 = vunpack.c.l.b16 %v3306
        %v4097 = vunpack.c.l.b16 %v3307
        %v4098 = vunpack.c.l.b16 %v3308
        %v4099 = vunpack.c.l.b16 %v3309
        %v4100 = vpack.c.b16 %v4069, %v4068
        %v4101 = vpack.c.b16 %v4071, %v4070
        %v4102 = vpack.c.b16 %v4073, %v4072
        %v4103 = vpack.c.b16 %v4075, %v4074
        %v4104 = vpack.c.b16 %v4077, %v4076
        %v4105 = vpack.c.b16 %v4079, %v4078
        %v4106 = vpack.c.b16 %v4081, %v4080
        %v4107 = vpack.c.b16 %v4083, %v4082
        %v4108 = vpack.c.b16 %v4085, %v4084
        %v4109 = vpack.c.b16 %v4087, %v4086
        %v4110 = vpack.c.b16 %v4089, %v4088
        %v4111 = vpack.c.b16 %v4091, %v4090
        %v4112 = vpack.c.b16 %v4093, %v4092
        %v4113 = vpack.c.b16 %v4095, %v4094
        %v4114 = vpack.c.b16 %v4097, %v4096
        %v4115 = vpack.c.b16 %v4099, %v4098
        %4116 = vrot.lane.b32.xlu0 %v4100, 32
        %v4117 = vpop.permute.xlu0 %4116
        %4118 = vrot.lane.b32.xlu0 %v4101, 32
        %v4119 = vpop.permute.xlu0 %4118
        %4120 = vrot.lane.b32.xlu0 %v4102, 32
        %v4121 = vpop.permute.xlu0 %4120
        %4122 = vrot.lane.b32.xlu0 %v4103, 32
        %v4123 = vpop.permute.xlu0 %4122
        %4124 = vrot.lane.b32.xlu0 %v4104, 32
        %v4125 = vpop.permute.xlu0 %4124
        %4126 = vrot.lane.b32.xlu0 %v4105, 32
        %v4127 = vpop.permute.xlu0 %4126
        %4128 = vrot.lane.b32.xlu0 %v4106, 32
        %v4129 = vpop.permute.xlu0 %4128
        %4130 = vrot.lane.b32.xlu0 %v4107, 32
        %v4131 = vpop.permute.xlu0 %4130
        %4132 = vrot.lane.b32.xlu0 %v4108, 32
        %v4133 = vpop.permute.xlu0 %4132
        %4134 = vrot.lane.b32.xlu0 %v4109, 32
        %v4135 = vpop.permute.xlu0 %4134
        %4136 = vrot.lane.b32.xlu0 %v4110, 32
        %v4137 = vpop.permute.xlu0 %4136
        %4138 = vrot.lane.b32.xlu0 %v4111, 32
        %v4139 = vpop.permute.xlu0 %4138
        %4140 = vrot.lane.b32.xlu0 %v4112, 32
        %v4141 = vpop.permute.xlu0 %4140
        %4142 = vrot.lane.b32.xlu0 %v4113, 32
        %v4143 = vpop.permute.xlu0 %4142
        %4144 = vrot.lane.b32.xlu0 %v4114, 32
        %v4145 = vpop.permute.xlu0 %4144
        %4146 = vrot.lane.b32.xlu0 %v4115, 32
        %v4147 = vpop.permute.xlu0 %4146
        %v4180 = vunpack.c.l.b16 %v3310
        %v4181 = vunpack.c.l.b16 %v3311
        %v4182 = vunpack.c.l.b16 %v3312
        %v4183 = vunpack.c.l.b16 %v3313
        %v4184 = vunpack.c.l.b16 %v3314
        %v4185 = vunpack.c.l.b16 %v3315
        %v4186 = vunpack.c.l.b16 %v3316
        %v4187 = vunpack.c.l.b16 %v3317
        %v4188 = vunpack.c.l.b16 %v3318
        %v4189 = vunpack.c.l.b16 %v3319
        %v4190 = vunpack.c.l.b16 %v3320
        %v4191 = vunpack.c.l.b16 %v3321
        %v4192 = vunpack.c.l.b16 %v3322
        %v4193 = vunpack.c.l.b16 %v3323
        %v4194 = vunpack.c.l.b16 %v3324
        %v4195 = vunpack.c.l.b16 %v3325
        %v4196 = vunpack.c.l.b16 %v3326
        %v4197 = vunpack.c.l.b16 %v3327
        %v4198 = vunpack.c.l.b16 %v3328
        %v4199 = vunpack.c.l.b16 %v3329
        %v4200 = vunpack.c.l.b16 %v3330
        %v4201 = vunpack.c.l.b16 %v3331
        %v4202 = vunpack.c.l.b16 %v3332
        %v4203 = vunpack.c.l.b16 %v3333
        %v4204 = vunpack.c.l.b16 %v3334
        %v4205 = vunpack.c.l.b16 %v3335
        %v4206 = vunpack.c.l.b16 %v3336
        %v4207 = vunpack.c.l.b16 %v3337
        %v4208 = vunpack.c.l.b16 %v3338
        %v4209 = vunpack.c.l.b16 %v3339
        %v4210 = vunpack.c.l.b16 %v3340
        %v4211 = vunpack.c.l.b16 %v3341
        %v4212 = vpack.c.b16 %v4181, %v4180
        %v4213 = vpack.c.b16 %v4183, %v4182
        %v4214 = vpack.c.b16 %v4185, %v4184
        %v4215 = vpack.c.b16 %v4187, %v4186
        %v4216 = vpack.c.b16 %v4189, %v4188
        %v4217 = vpack.c.b16 %v4191, %v4190
        %v4218 = vpack.c.b16 %v4193, %v4192
        %v4219 = vpack.c.b16 %v4195, %v4194
        %v4220 = vpack.c.b16 %v4197, %v4196
        %v4221 = vpack.c.b16 %v4199, %v4198
        %v4222 = vpack.c.b16 %v4201, %v4200
        %v4223 = vpack.c.b16 %v4203, %v4202
        %v4224 = vpack.c.b16 %v4205, %v4204
        %v4225 = vpack.c.b16 %v4207, %v4206
        %v4226 = vpack.c.b16 %v4209, %v4208
        %v4227 = vpack.c.b16 %v4211, %v4210
        %4228 = vrot.lane.b32.xlu0 %v4212, 64
        %v4229 = vpop.permute.xlu0 %4228
        %4230 = vrot.lane.b32.xlu0 %v4213, 64
        %v4231 = vpop.permute.xlu0 %4230
        %4232 = vrot.lane.b32.xlu0 %v4214, 64
        %v4233 = vpop.permute.xlu0 %4232
        %4234 = vrot.lane.b32.xlu0 %v4215, 64
        %v4235 = vpop.permute.xlu0 %4234
        %4236 = vrot.lane.b32.xlu0 %v4216, 64
        %v4237 = vpop.permute.xlu0 %4236
        %4238 = vrot.lane.b32.xlu0 %v4217, 64
        %v4239 = vpop.permute.xlu0 %4238
        %4240 = vrot.lane.b32.xlu0 %v4218, 64
        %v4241 = vpop.permute.xlu0 %4240
        %4242 = vrot.lane.b32.xlu0 %v4219, 64
        %v4243 = vpop.permute.xlu0 %4242
        %4244 = vrot.lane.b32.xlu0 %v4220, 64
        %v4245 = vpop.permute.xlu0 %4244
        %4246 = vrot.lane.b32.xlu0 %v4221, 64
        %v4247 = vpop.permute.xlu0 %4246
        %4248 = vrot.lane.b32.xlu0 %v4222, 64
        %v4249 = vpop.permute.xlu0 %4248
        %4250 = vrot.lane.b32.xlu0 %v4223, 64
        %v4251 = vpop.permute.xlu0 %4250
        %4252 = vrot.lane.b32.xlu0 %v4224, 64
        %v4253 = vpop.permute.xlu0 %4252
        %4254 = vrot.lane.b32.xlu0 %v4225, 64
        %v4255 = vpop.permute.xlu0 %4254
        %4256 = vrot.lane.b32.xlu0 %v4226, 64
        %v4257 = vpop.permute.xlu0 %4256
        %4258 = vrot.lane.b32.xlu0 %v4227, 64
        %v4259 = vpop.permute.xlu0 %4258
        %v4292 = vunpack.c.l.b16 %v3343
        %v4293 = vunpack.c.l.b16 %v3344
        %v4294 = vunpack.c.l.b16 %v3345
        %v4295 = vunpack.c.l.b16 %v3346
        %v4296 = vunpack.c.l.b16 %v3347
        %v4297 = vunpack.c.l.b16 %v3348
        %v4298 = vunpack.c.l.b16 %v3349
        %v4299 = vunpack.c.l.b16 %v3350
        %v4300 = vunpack.c.l.b16 %v3351
        %v4301 = vunpack.c.l.b16 %v3352
        %v4302 = vunpack.c.l.b16 %v3353
        %v4303 = vunpack.c.l.b16 %v3354
        %v4304 = vunpack.c.l.b16 %v3355
        %v4305 = vunpack.c.l.b16 %v3356
        %v4306 = vunpack.c.l.b16 %v3357
        %v4307 = vunpack.c.l.b16 %v3358
        %v4308 = vunpack.c.l.b16 %v3359
        %v4309 = vunpack.c.l.b16 %v3360
        %v4310 = vunpack.c.l.b16 %v3361
        %v4311 = vunpack.c.l.b16 %v3362
        %v4312 = vunpack.c.l.b16 %v3363
        %v4313 = vunpack.c.l.b16 %v3364
        %v4314 = vunpack.c.l.b16 %v3365
        %v4315 = vunpack.c.l.b16 %v3366
        %v4316 = vunpack.c.l.b16 %v3367
        %v4317 = vunpack.c.l.b16 %v3368
        %v4318 = vunpack.c.l.b16 %v3369
        %v4319 = vunpack.c.l.b16 %v3370
        %v4320 = vunpack.c.l.b16 %v3371
        %v4321 = vunpack.c.l.b16 %v3372
        %v4322 = vunpack.c.l.b16 %v3373
        %v4323 = vunpack.c.l.b16 %v3374
        %v4324 = vpack.c.b16 %v4293, %v4292
        %v4325 = vpack.c.b16 %v4295, %v4294
        %v4326 = vpack.c.b16 %v4297, %v4296
        %v4327 = vpack.c.b16 %v4299, %v4298
        %v4328 = vpack.c.b16 %v4301, %v4300
        %v4329 = vpack.c.b16 %v4303, %v4302
        %v4330 = vpack.c.b16 %v4305, %v4304
        %v4331 = vpack.c.b16 %v4307, %v4306
        %v4332 = vpack.c.b16 %v4309, %v4308
        %v4333 = vpack.c.b16 %v4311, %v4310
        %v4334 = vpack.c.b16 %v4313, %v4312
        %v4335 = vpack.c.b16 %v4315, %v4314
        %v4336 = vpack.c.b16 %v4317, %v4316
        %v4337 = vpack.c.b16 %v4319, %v4318
        %v4338 = vpack.c.b16 %v4321, %v4320
        %v4339 = vpack.c.b16 %v4323, %v4322
        %4340 = vrot.lane.b32.xlu0 %v4324, 96
        %v4341 = vpop.permute.xlu0 %4340
        %4342 = vrot.lane.b32.xlu0 %v4325, 96
        %v4343 = vpop.permute.xlu0 %4342
        %4344 = vrot.lane.b32.xlu0 %v4326, 96
        %v4345 = vpop.permute.xlu0 %4344
        %4346 = vrot.lane.b32.xlu0 %v4327, 96
        %v4347 = vpop.permute.xlu0 %4346
        %4348 = vrot.lane.b32.xlu0 %v4328, 96
        %v4349 = vpop.permute.xlu0 %4348
        %4350 = vrot.lane.b32.xlu0 %v4329, 96
        %v4351 = vpop.permute.xlu0 %4350
        %4352 = vrot.lane.b32.xlu0 %v4330, 96
        %v4353 = vpop.permute.xlu0 %4352
        %4354 = vrot.lane.b32.xlu0 %v4331, 96
        %v4355 = vpop.permute.xlu0 %4354
        %4356 = vrot.lane.b32.xlu0 %v4332, 96
        %v4357 = vpop.permute.xlu0 %4356
        %4358 = vrot.lane.b32.xlu0 %v4333, 96
        %v4359 = vpop.permute.xlu0 %4358
        %4360 = vrot.lane.b32.xlu0 %v4334, 96
        %v4361 = vpop.permute.xlu0 %4360
        %4362 = vrot.lane.b32.xlu0 %v4335, 96
        %v4363 = vpop.permute.xlu0 %4362
        %4364 = vrot.lane.b32.xlu0 %v4336, 96
        %v4365 = vpop.permute.xlu0 %4364
        %4366 = vrot.lane.b32.xlu0 %v4337, 96
        %v4367 = vpop.permute.xlu0 %4366
        %4368 = vrot.lane.b32.xlu0 %v4338, 96
        %v4369 = vpop.permute.xlu0 %4368
        %4370 = vrot.lane.b32.xlu0 %v4339, 96
        %v4371 = vpop.permute.xlu0 %4370
        %v4404 = vunpack.c.l.b16 %v3376
        %v4405 = vunpack.c.l.b16 %v3377
        %v4406 = vunpack.c.l.b16 %v3378
        %v4407 = vunpack.c.l.b16 %v3379
        %v4408 = vunpack.c.l.b16 %v3380
        %v4409 = vunpack.c.l.b16 %v3381
        %v4410 = vunpack.c.l.b16 %v3382
        %v4411 = vunpack.c.l.b16 %v3383
        %v4412 = vunpack.c.l.b16 %v3384
        %v4413 = vunpack.c.l.b16 %v3385
        %v4414 = vunpack.c.l.b16 %v3386
        %v4415 = vunpack.c.l.b16 %v3387
        %v4416 = vunpack.c.l.b16 %v3388
        %v4417 = vunpack.c.l.b16 %v3389
        %v4418 = vunpack.c.l.b16 %v3390
        %v4419 = vunpack.c.l.b16 %v3391
        %v4420 = vunpack.c.l.b16 %v3392
        %v4421 = vunpack.c.l.b16 %v3393
        %v4422 = vunpack.c.l.b16 %v3394
        %v4423 = vunpack.c.l.b16 %v3395
        %v4424 = vunpack.c.l.b16 %v3396
        %v4425 = vunpack.c.l.b16 %v3397
        %v4426 = vunpack.c.l.b16 %v3398
        %v4427 = vunpack.c.l.b16 %v3399
        %v4428 = vunpack.c.l.b16 %v3400
        %v4429 = vunpack.c.l.b16 %v3401
        %v4430 = vunpack.c.l.b16 %v3402
        %v4431 = vunpack.c.l.b16 %v3403
        %v4432 = vunpack.c.l.b16 %v3404
        %v4433 = vunpack.c.l.b16 %v3405
        %v4434 = vunpack.c.l.b16 %v3406
        %v4435 = vunpack.c.l.b16 %v3407
        %v4436 = vpack.c.b16 %v4405, %v4404
        %v4437 = vpack.c.b16 %v4407, %v4406
        %v4438 = vpack.c.b16 %v4409, %v4408
        %v4439 = vpack.c.b16 %v4411, %v4410
        %v4440 = vpack.c.b16 %v4413, %v4412
        %v4441 = vpack.c.b16 %v4415, %v4414
        %v4442 = vpack.c.b16 %v4417, %v4416
        %v4443 = vpack.c.b16 %v4419, %v4418
        %v4444 = vpack.c.b16 %v4421, %v4420
        %v4445 = vpack.c.b16 %v4423, %v4422
        %v4446 = vpack.c.b16 %v4425, %v4424
        %v4447 = vpack.c.b16 %v4427, %v4426
        %v4448 = vpack.c.b16 %v4429, %v4428
        %v4449 = vpack.c.b16 %v4431, %v4430
        %v4450 = vpack.c.b16 %v4433, %v4432
        %v4451 = vpack.c.b16 %v4435, %v4434
        %v4484 = vunpack.c.l.b16 %v3409
        %v4485 = vunpack.c.l.b16 %v3410
        %v4486 = vunpack.c.l.b16 %v3411
        %v4487 = vunpack.c.l.b16 %v3412
        %v4488 = vunpack.c.l.b16 %v3413
        %v4489 = vunpack.c.l.b16 %v3414
        %v4490 = vunpack.c.l.b16 %v3415
        %v4491 = vunpack.c.l.b16 %v3416
        %v4492 = vunpack.c.l.b16 %v3417
        %v4493 = vunpack.c.l.b16 %v3418
        %v4494 = vunpack.c.l.b16 %v3419
        %v4495 = vunpack.c.l.b16 %v3420
        %v4496 = vunpack.c.l.b16 %v3421
        %v4497 = vunpack.c.l.b16 %v3422
        %v4498 = vunpack.c.l.b16 %v3423
        %v4499 = vunpack.c.l.b16 %v3424
        %v4500 = vunpack.c.l.b16 %v3425
        %v4501 = vunpack.c.l.b16 %v3426
        %v4502 = vunpack.c.l.b16 %v3427
        %v4503 = vunpack.c.l.b16 %v3428
        %v4504 = vunpack.c.l.b16 %v3429
        %v4505 = vunpack.c.l.b16 %v3430
        %v4506 = vunpack.c.l.b16 %v3431
        %v4507 = vunpack.c.l.b16 %v3432
        %v4508 = vunpack.c.l.b16 %v3433
        %v4509 = vunpack.c.l.b16 %v3434
        %v4510 = vunpack.c.l.b16 %v3435
        %v4511 = vunpack.c.l.b16 %v3436
        %v4512 = vunpack.c.l.b16 %v3437
        %v4513 = vunpack.c.l.b16 %v3438
        %v4514 = vunpack.c.l.b16 %v3439
        %v4515 = vunpack.c.l.b16 %v3440
        %v4516 = vpack.c.b16 %v4485, %v4484
        %v4517 = vpack.c.b16 %v4487, %v4486
        %v4518 = vpack.c.b16 %v4489, %v4488
        %v4519 = vpack.c.b16 %v4491, %v4490
        %v4520 = vpack.c.b16 %v4493, %v4492
        %v4521 = vpack.c.b16 %v4495, %v4494
        %v4522 = vpack.c.b16 %v4497, %v4496
        %v4523 = vpack.c.b16 %v4499, %v4498
        %v4524 = vpack.c.b16 %v4501, %v4500
        %v4525 = vpack.c.b16 %v4503, %v4502
        %v4526 = vpack.c.b16 %v4505, %v4504
        %v4527 = vpack.c.b16 %v4507, %v4506
        %v4528 = vpack.c.b16 %v4509, %v4508
        %v4529 = vpack.c.b16 %v4511, %v4510
        %v4530 = vpack.c.b16 %v4513, %v4512
        %v4531 = vpack.c.b16 %v4515, %v4514
        %4532 = vrot.lane.b32.xlu0 %v4516, 32
        %v4533 = vpop.permute.xlu0 %4532
        %4534 = vrot.lane.b32.xlu0 %v4517, 32
        %v4535 = vpop.permute.xlu0 %4534
        %4536 = vrot.lane.b32.xlu0 %v4518, 32
        %v4537 = vpop.permute.xlu0 %4536
        %4538 = vrot.lane.b32.xlu0 %v4519, 32
        %v4539 = vpop.permute.xlu0 %4538
        %4540 = vrot.lane.b32.xlu0 %v4520, 32
        %v4541 = vpop.permute.xlu0 %4540
        %4542 = vrot.lane.b32.xlu0 %v4521, 32
        %v4543 = vpop.permute.xlu0 %4542
        %4544 = vrot.lane.b32.xlu0 %v4522, 32
        %v4545 = vpop.permute.xlu0 %4544
        %4546 = vrot.lane.b32.xlu0 %v4523, 32
        %v4547 = vpop.permute.xlu0 %4546
        %4548 = vrot.lane.b32.xlu0 %v4524, 32
        %v4549 = vpop.permute.xlu0 %4548
        %4550 = vrot.lane.b32.xlu0 %v4525, 32
        %v4551 = vpop.permute.xlu0 %4550
        %4552 = vrot.lane.b32.xlu0 %v4526, 32
        %v4553 = vpop.permute.xlu0 %4552
        %4554 = vrot.lane.b32.xlu0 %v4527, 32
        %v4555 = vpop.permute.xlu0 %4554
        %4556 = vrot.lane.b32.xlu0 %v4528, 32
        %v4557 = vpop.permute.xlu0 %4556
        %4558 = vrot.lane.b32.xlu0 %v4529, 32
        %v4559 = vpop.permute.xlu0 %4558
        %4560 = vrot.lane.b32.xlu0 %v4530, 32
        %v4561 = vpop.permute.xlu0 %4560
        %4562 = vrot.lane.b32.xlu0 %v4531, 32
        %v4563 = vpop.permute.xlu0 %4562
        %v4596 = vunpack.c.l.b16 %v3442
        %v4597 = vunpack.c.l.b16 %v3443
        %v4598 = vunpack.c.l.b16 %v3444
        %v4599 = vunpack.c.l.b16 %v3445
        %v4600 = vunpack.c.l.b16 %v3446
        %v4601 = vunpack.c.l.b16 %v3447
        %v4602 = vunpack.c.l.b16 %v3448
        %v4603 = vunpack.c.l.b16 %v3449
        %v4604 = vunpack.c.l.b16 %v3450
        %v4605 = vunpack.c.l.b16 %v3451
        %v4606 = vunpack.c.l.b16 %v3452
        %v4607 = vunpack.c.l.b16 %v3453
        %v4608 = vunpack.c.l.b16 %v3454
        %v4609 = vunpack.c.l.b16 %v3455
        %v4610 = vunpack.c.l.b16 %v3456
        %v4611 = vunpack.c.l.b16 %v3457
        %v4612 = vunpack.c.l.b16 %v3458
        %v4613 = vunpack.c.l.b16 %v3459
        %v4614 = vunpack.c.l.b16 %v3460
        %v4615 = vunpack.c.l.b16 %v3461
        %v4616 = vunpack.c.l.b16 %v3462
        %v4617 = vunpack.c.l.b16 %v3463
        %v4618 = vunpack.c.l.b16 %v3464
        %v4619 = vunpack.c.l.b16 %v3465
        %v4620 = vunpack.c.l.b16 %v3466
        %v4621 = vunpack.c.l.b16 %v3467
        %v4622 = vunpack.c.l.b16 %v3468
        %v4623 = vunpack.c.l.b16 %v3469
        %v4624 = vunpack.c.l.b16 %v3470
        %v4625 = vunpack.c.l.b16 %v3471
        %v4626 = vunpack.c.l.b16 %v3472
        %v4627 = vunpack.c.l.b16 %v3473
        %v4628 = vpack.c.b16 %v4597, %v4596
        %v4629 = vpack.c.b16 %v4599, %v4598
        %v4630 = vpack.c.b16 %v4601, %v4600
        %v4631 = vpack.c.b16 %v4603, %v4602
        %v4632 = vpack.c.b16 %v4605, %v4604
        %v4633 = vpack.c.b16 %v4607, %v4606
        %v4634 = vpack.c.b16 %v4609, %v4608
        %v4635 = vpack.c.b16 %v4611, %v4610
        %v4636 = vpack.c.b16 %v4613, %v4612
        %v4637 = vpack.c.b16 %v4615, %v4614
        %v4638 = vpack.c.b16 %v4617, %v4616
        %v4639 = vpack.c.b16 %v4619, %v4618
        %v4640 = vpack.c.b16 %v4621, %v4620
        %v4641 = vpack.c.b16 %v4623, %v4622
        %v4642 = vpack.c.b16 %v4625, %v4624
        %v4643 = vpack.c.b16 %v4627, %v4626
        %4644 = vrot.lane.b32.xlu0 %v4628, 64
        %v4645 = vpop.permute.xlu0 %4644
        %4646 = vrot.lane.b32.xlu0 %v4629, 64
        %v4647 = vpop.permute.xlu0 %4646
        %4648 = vrot.lane.b32.xlu0 %v4630, 64
        %v4649 = vpop.permute.xlu0 %4648
        %4650 = vrot.lane.b32.xlu0 %v4631, 64
        %v4651 = vpop.permute.xlu0 %4650
        %4652 = vrot.lane.b32.xlu0 %v4632, 64
        %v4653 = vpop.permute.xlu0 %4652
        %4654 = vrot.lane.b32.xlu0 %v4633, 64
        %v4655 = vpop.permute.xlu0 %4654
        %4656 = vrot.lane.b32.xlu0 %v4634, 64
        %v4657 = vpop.permute.xlu0 %4656
        %4658 = vrot.lane.b32.xlu0 %v4635, 64
        %v4659 = vpop.permute.xlu0 %4658
        %4660 = vrot.lane.b32.xlu0 %v4636, 64
        %v4661 = vpop.permute.xlu0 %4660
        %4662 = vrot.lane.b32.xlu0 %v4637, 64
        %v4663 = vpop.permute.xlu0 %4662
        %4664 = vrot.lane.b32.xlu0 %v4638, 64
        %v4665 = vpop.permute.xlu0 %4664
        %4666 = vrot.lane.b32.xlu0 %v4639, 64
        %v4667 = vpop.permute.xlu0 %4666
        %4668 = vrot.lane.b32.xlu0 %v4640, 64
        %v4669 = vpop.permute.xlu0 %4668
        %4670 = vrot.lane.b32.xlu0 %v4641, 64
        %v4671 = vpop.permute.xlu0 %4670
        %4672 = vrot.lane.b32.xlu0 %v4642, 64
        %v4673 = vpop.permute.xlu0 %4672
        %4674 = vrot.lane.b32.xlu0 %v4643, 64
        %v4675 = vpop.permute.xlu0 %4674
        %v4708 = vunpack.c.l.b16 %v3475
        %v4709 = vunpack.c.l.b16 %v3476
        %v4710 = vunpack.c.l.b16 %v3477
        %v4711 = vunpack.c.l.b16 %v3478
        %v4712 = vunpack.c.l.b16 %v3479
        %v4713 = vunpack.c.l.b16 %v3480
        %v4714 = vunpack.c.l.b16 %v3481
        %v4715 = vunpack.c.l.b16 %v3482
        %v4716 = vunpack.c.l.b16 %v3483
        %v4717 = vunpack.c.l.b16 %v3484
        %v4718 = vunpack.c.l.b16 %v3485
        %v4719 = vunpack.c.l.b16 %v3486
        %v4720 = vunpack.c.l.b16 %v3487
        %v4721 = vunpack.c.l.b16 %v3488
        %v4722 = vunpack.c.l.b16 %v3489
        %v4723 = vunpack.c.l.b16 %v3490
        %v4724 = vunpack.c.l.b16 %v3491
        %v4725 = vunpack.c.l.b16 %v3492
        %v4726 = vunpack.c.l.b16 %v3493
        %v4727 = vunpack.c.l.b16 %v3494
        %v4728 = vunpack.c.l.b16 %v3495
        %v4729 = vunpack.c.l.b16 %v3496
        %v4730 = vunpack.c.l.b16 %v3497
        %v4731 = vunpack.c.l.b16 %v3498
        %v4732 = vunpack.c.l.b16 %v3499
        %v4733 = vunpack.c.l.b16 %v3500
        %v4734 = vunpack.c.l.b16 %v3501
        %v4735 = vunpack.c.l.b16 %v3502
        %v4736 = vunpack.c.l.b16 %v3503
        %v4737 = vunpack.c.l.b16 %v3504
        %v4738 = vunpack.c.l.b16 %v3505
        %v4739 = vunpack.c.l.b16 %v3506
        %v4740 = vpack.c.b16 %v4709, %v4708
        %v4741 = vpack.c.b16 %v4711, %v4710
        %v4742 = vpack.c.b16 %v4713, %v4712
        %v4743 = vpack.c.b16 %v4715, %v4714
        %v4744 = vpack.c.b16 %v4717, %v4716
        %v4745 = vpack.c.b16 %v4719, %v4718
        %v4746 = vpack.c.b16 %v4721, %v4720
        %v4747 = vpack.c.b16 %v4723, %v4722
        %v4748 = vpack.c.b16 %v4725, %v4724
        %v4749 = vpack.c.b16 %v4727, %v4726
        %v4750 = vpack.c.b16 %v4729, %v4728
        %v4751 = vpack.c.b16 %v4731, %v4730
        %v4752 = vpack.c.b16 %v4733, %v4732
        %v4753 = vpack.c.b16 %v4735, %v4734
        %v4754 = vpack.c.b16 %v4737, %v4736
        %v4755 = vpack.c.b16 %v4739, %v4738
        %4756 = vrot.lane.b32.xlu0 %v4740, 96
        %v4757 = vpop.permute.xlu0 %4756
        %4758 = vrot.lane.b32.xlu0 %v4741, 96
        %v4759 = vpop.permute.xlu0 %4758
        %4760 = vrot.lane.b32.xlu0 %v4742, 96
        %v4761 = vpop.permute.xlu0 %4760
        %4762 = vrot.lane.b32.xlu0 %v4743, 96
        %v4763 = vpop.permute.xlu0 %4762
        %4764 = vrot.lane.b32.xlu0 %v4744, 96
        %v4765 = vpop.permute.xlu0 %4764
        %4766 = vrot.lane.b32.xlu0 %v4745, 96
        %v4767 = vpop.permute.xlu0 %4766
        %4768 = vrot.lane.b32.xlu0 %v4746, 96
        %v4769 = vpop.permute.xlu0 %4768
        %4770 = vrot.lane.b32.xlu0 %v4747, 96
        %v4771 = vpop.permute.xlu0 %4770
        %4772 = vrot.lane.b32.xlu0 %v4748, 96
        %v4773 = vpop.permute.xlu0 %4772
        %4774 = vrot.lane.b32.xlu0 %v4749, 96
        %v4775 = vpop.permute.xlu0 %4774
        %4776 = vrot.lane.b32.xlu0 %v4750, 96
        %v4777 = vpop.permute.xlu0 %4776
        %4778 = vrot.lane.b32.xlu0 %v4751, 96
        %v4779 = vpop.permute.xlu0 %4778
        %4780 = vrot.lane.b32.xlu0 %v4752, 96
        %v4781 = vpop.permute.xlu0 %4780
        %4782 = vrot.lane.b32.xlu0 %v4753, 96
        %v4783 = vpop.permute.xlu0 %4782
        %4784 = vrot.lane.b32.xlu0 %v4754, 96
        %v4785 = vpop.permute.xlu0 %4784
        %4786 = vrot.lane.b32.xlu0 %v4755, 96
        %v4787 = vpop.permute.xlu0 %4786
        %v4820 = vunpack.c.l.b16 %v3508
        %v4821 = vunpack.c.l.b16 %v3509
        %v4822 = vunpack.c.l.b16 %v3510
        %v4823 = vunpack.c.l.b16 %v3511
        %v4824 = vunpack.c.l.b16 %v3512
        %v4825 = vunpack.c.l.b16 %v3513
        %v4826 = vunpack.c.l.b16 %v3514
        %v4827 = vunpack.c.l.b16 %v3515
        %v4828 = vunpack.c.l.b16 %v3516
        %v4829 = vunpack.c.l.b16 %v3517
        %v4830 = vunpack.c.l.b16 %v3518
        %v4831 = vunpack.c.l.b16 %v3519
        %v4832 = vunpack.c.l.b16 %v3520
        %v4833 = vunpack.c.l.b16 %v3521
        %v4834 = vunpack.c.l.b16 %v3522
        %v4835 = vunpack.c.l.b16 %v3523
        %v4836 = vunpack.c.l.b16 %v3524
        %v4837 = vunpack.c.l.b16 %v3525
        %v4838 = vunpack.c.l.b16 %v3526
        %v4839 = vunpack.c.l.b16 %v3527
        %v4840 = vunpack.c.l.b16 %v3528
        %v4841 = vunpack.c.l.b16 %v3529
        %v4842 = vunpack.c.l.b16 %v3530
        %v4843 = vunpack.c.l.b16 %v3531
        %v4844 = vunpack.c.l.b16 %v3532
        %v4845 = vunpack.c.l.b16 %v3533
        %v4846 = vunpack.c.l.b16 %v3534
        %v4847 = vunpack.c.l.b16 %v3535
        %v4848 = vunpack.c.l.b16 %v3536
        %v4849 = vunpack.c.l.b16 %v3537
        %v4850 = vunpack.c.l.b16 %v3538
        %v4851 = vunpack.c.l.b16 %v3539
        %v4852 = vpack.c.b16 %v4821, %v4820
        %v4853 = vpack.c.b16 %v4823, %v4822
        %v4854 = vpack.c.b16 %v4825, %v4824
        %v4855 = vpack.c.b16 %v4827, %v4826
        %v4856 = vpack.c.b16 %v4829, %v4828
        %v4857 = vpack.c.b16 %v4831, %v4830
        %v4858 = vpack.c.b16 %v4833, %v4832
        %v4859 = vpack.c.b16 %v4835, %v4834
        %v4860 = vpack.c.b16 %v4837, %v4836
        %v4861 = vpack.c.b16 %v4839, %v4838
        %v4862 = vpack.c.b16 %v4841, %v4840
        %v4863 = vpack.c.b16 %v4843, %v4842
        %v4864 = vpack.c.b16 %v4845, %v4844
        %v4865 = vpack.c.b16 %v4847, %v4846
        %v4866 = vpack.c.b16 %v4849, %v4848
        %v4867 = vpack.c.b16 %v4851, %v4850
        %v4886 = vsel %vm2726, %v3604, %v3701
        %v4889 = vsel %vm2726, %v3605, %v3703
        %v4892 = vsel %vm2726, %v3606, %v3705
        %v4895 = vsel %vm2726, %v3607, %v3707
        %v4898 = vsel %vm2726, %v3608, %v3709
        %v4901 = vsel %vm2726, %v3609, %v3711
        %v4904 = vsel %vm2726, %v3610, %v3713
        %v4907 = vsel %vm2726, %v3611, %v3715
        %v4910 = vsel %vm2726, %v3612, %v3717
        %v4913 = vsel %vm2726, %v3613, %v3719
        %v4916 = vsel %vm2726, %v3614, %v3721
        %v4919 = vsel %vm2726, %v3615, %v3723
        %v4922 = vsel %vm2726, %v3616, %v3725
        %v4925 = vsel %vm2726, %v3617, %v3727
        %v4928 = vsel %vm2726, %v3618, %v3729
        %v4931 = vsel %vm2726, %v3619, %v3731
        %v4933 = vsel %vm2775, %v4886, %v3813
        %v4935 = vsel %vm2775, %v4889, %v3815
        %v4937 = vsel %vm2775, %v4892, %v3817
        %v4939 = vsel %vm2775, %v4895, %v3819
        %v4941 = vsel %vm2775, %v4898, %v3821
        %v4943 = vsel %vm2775, %v4901, %v3823
        %v4945 = vsel %vm2775, %v4904, %v3825
        %v4947 = vsel %vm2775, %v4907, %v3827
        %v4949 = vsel %vm2775, %v4910, %v3829
        %v4951 = vsel %vm2775, %v4913, %v3831
        %v4953 = vsel %vm2775, %v4916, %v3833
        %v4955 = vsel %vm2775, %v4919, %v3835
        %v4957 = vsel %vm2775, %v4922, %v3837
        %v4959 = vsel %vm2775, %v4925, %v3839
        %v4961 = vsel %vm2775, %v4928, %v3841
        %v4963 = vsel %vm2775, %v4931, %v3843
        %v4965 = vsel %vm2808, %v4933, %v3925
        %v4968 = vsel %vm2808, %v4935, %v3927
        %v4971 = vsel %vm2808, %v4937, %v3929
        %v4974 = vsel %vm2808, %v4939, %v3931
        %v4977 = vsel %vm2808, %v4941, %v3933
        %v4980 = vsel %vm2808, %v4943, %v3935
        %v4983 = vsel %vm2808, %v4945, %v3937
        %v4986 = vsel %vm2808, %v4947, %v3939
        %v4989 = vsel %vm2808, %v4949, %v3941
        %v4992 = vsel %vm2808, %v4951, %v3943
        %v4995 = vsel %vm2808, %v4953, %v3945
        %v4998 = vsel %vm2808, %v4955, %v3947
        %v5001 = vsel %vm2808, %v4957, %v3949
        %v5004 = vsel %vm2808, %v4959, %v3951
        %v5007 = vsel %vm2808, %v4961, %v3953
        %v5010 = vsel %vm2808, %v4963, %v3955
        %v5014 = vsel %vm2726, %v4020, %v4117
        %v5017 = vsel %vm2726, %v4021, %v4119
        %v5020 = vsel %vm2726, %v4022, %v4121
        %v5023 = vsel %vm2726, %v4023, %v4123
        %v5026 = vsel %vm2726, %v4024, %v4125
        %v5029 = vsel %vm2726, %v4025, %v4127
        %v5032 = vsel %vm2726, %v4026, %v4129
        %v5035 = vsel %vm2726, %v4027, %v4131
        %v5038 = vsel %vm2726, %v4028, %v4133
        %v5041 = vsel %vm2726, %v4029, %v4135
        %v5044 = vsel %vm2726, %v4030, %v4137
        %v5047 = vsel %vm2726, %v4031, %v4139
        %v5050 = vsel %vm2726, %v4032, %v4141
        %v5053 = vsel %vm2726, %v4033, %v4143
        %v5056 = vsel %vm2726, %v4034, %v4145
        %v5059 = vsel %vm2726, %v4035, %v4147
        %v5061 = vsel %vm2775, %v5014, %v4229
        %v5063 = vsel %vm2775, %v5017, %v4231
        %v5065 = vsel %vm2775, %v5020, %v4233
        %v5067 = vsel %vm2775, %v5023, %v4235
        %v5069 = vsel %vm2775, %v5026, %v4237
        %v5071 = vsel %vm2775, %v5029, %v4239
        %v5073 = vsel %vm2775, %v5032, %v4241
        %v5075 = vsel %vm2775, %v5035, %v4243
        %v5077 = vsel %vm2775, %v5038, %v4245
        %v5079 = vsel %vm2775, %v5041, %v4247
        %v5081 = vsel %vm2775, %v5044, %v4249
        %v5083 = vsel %vm2775, %v5047, %v4251
        %v5085 = vsel %vm2775, %v5050, %v4253
        %v5087 = vsel %vm2775, %v5053, %v4255
        %v5089 = vsel %vm2775, %v5056, %v4257
        %v5091 = vsel %vm2775, %v5059, %v4259
        %v5093 = vsel %vm2808, %v5061, %v4341
        %v5096 = vsel %vm2808, %v5063, %v4343
        %v5099 = vsel %vm2808, %v5065, %v4345
        %v5102 = vsel %vm2808, %v5067, %v4347
        %v5105 = vsel %vm2808, %v5069, %v4349
        %v5108 = vsel %vm2808, %v5071, %v4351
        %v5111 = vsel %vm2808, %v5073, %v4353
        %v5114 = vsel %vm2808, %v5075, %v4355
        %v5117 = vsel %vm2808, %v5077, %v4357
        %v5120 = vsel %vm2808, %v5079, %v4359
        %v5123 = vsel %vm2808, %v5081, %v4361
        %v5126 = vsel %vm2808, %v5083, %v4363
        %v5129 = vsel %vm2808, %v5085, %v4365
        %v5132 = vsel %vm2808, %v5087, %v4367
        %v5135 = vsel %vm2808, %v5089, %v4369
        %v5138 = vsel %vm2808, %v5091, %v4371
        %v5142 = vsel %vm2726, %v4436, %v4533
        %v5145 = vsel %vm2726, %v4437, %v4535
        %v5148 = vsel %vm2726, %v4438, %v4537
        %v5151 = vsel %vm2726, %v4439, %v4539
        %v5154 = vsel %vm2726, %v4440, %v4541
        %v5157 = vsel %vm2726, %v4441, %v4543
        %v5160 = vsel %vm2726, %v4442, %v4545
        %v5163 = vsel %vm2726, %v4443, %v4547
        %v5166 = vsel %vm2726, %v4444, %v4549
        %v5169 = vsel %vm2726, %v4445, %v4551
        %v5172 = vsel %vm2726, %v4446, %v4553
        %v5175 = vsel %vm2726, %v4447, %v4555
        %v5178 = vsel %vm2726, %v4448, %v4557
        %v5181 = vsel %vm2726, %v4449, %v4559
        %v5184 = vsel %vm2726, %v4450, %v4561
        %v5187 = vsel %vm2726, %v4451, %v4563
        %v5189 = vsel %vm2775, %v5142, %v4645
        %v5191 = vsel %vm2775, %v5145, %v4647
        %v5193 = vsel %vm2775, %v5148, %v4649
        %v5195 = vsel %vm2775, %v5151, %v4651
        %v5197 = vsel %vm2775, %v5154, %v4653
        %v5199 = vsel %vm2775, %v5157, %v4655
        %v5201 = vsel %vm2775, %v5160, %v4657
        %v5203 = vsel %vm2775, %v5163, %v4659
        %v5205 = vsel %vm2775, %v5166, %v4661
        %v5207 = vsel %vm2775, %v5169, %v4663
        %v5209 = vsel %vm2775, %v5172, %v4665
        %v5211 = vsel %vm2775, %v5175, %v4667
        %v5213 = vsel %vm2775, %v5178, %v4669
        %v5215 = vsel %vm2775, %v5181, %v4671
        %v5217 = vsel %vm2775, %v5184, %v4673
        %v5219 = vsel %vm2775, %v5187, %v4675
        %v5221 = vsel %vm2808, %v5189, %v4757
        %v5224 = vsel %vm2808, %v5191, %v4759
        %v5227 = vsel %vm2808, %v5193, %v4761
        %v5230 = vsel %vm2808, %v5195, %v4763
        %v5233 = vsel %vm2808, %v5197, %v4765
        %v5236 = vsel %vm2808, %v5199, %v4767
        %v5239 = vsel %vm2808, %v5201, %v4769
        %v5242 = vsel %vm2808, %v5203, %v4771
        %v5245 = vsel %vm2808, %v5205, %v4773
        %v5248 = vsel %vm2808, %v5207, %v4775
        %v5251 = vsel %vm2808, %v5209, %v4777
        %v5254 = vsel %vm2808, %v5211, %v4779
        %v5257 = vsel %vm2808, %v5213, %v4781
        %v5260 = vsel %vm2808, %v5215, %v4783
        %v5263 = vsel %vm2808, %v5217, %v4785
        %v5266 = vsel %vm2808, %v5219, %v4787
        %v5268 = vld [vmem:[#allocation4] sm:$0xf]
        %v5269 = vld [vmem:[#allocation4 + $0x4] sm:$0xf]
        %v5270 = vld [vmem:[#allocation4 + $0x8] sm:$0xf]
        %v5271 = vld [vmem:[#allocation4 + $0xc] sm:$0xf]
        %v5272 = vld [vmem:[#allocation4 + $0x10] sm:$0xf]
        %v5273 = vld [vmem:[#allocation4 + $0x14] sm:$0xf]
        %v5274 = vld [vmem:[#allocation4 + $0x18] sm:$0xf]
        %v5275 = vld [vmem:[#allocation4 + $0x1c] sm:$0xf]
        %v5276 = vld [vmem:[#allocation4 + $0x20] sm:$0xf]
        %v5277 = vld [vmem:[#allocation4 + $0x24] sm:$0xf]
        %v5278 = vld [vmem:[#allocation4 + $0x28] sm:$0xf]
        %v5279 = vld [vmem:[#allocation4 + $0x2c] sm:$0xf]
        %v5280 = vld [vmem:[#allocation4 + $0x30] sm:$0xf]
        %v5281 = vld [vmem:[#allocation4 + $0x34] sm:$0xf]
        %v5282 = vld [vmem:[#allocation4 + $0x38] sm:$0xf]
        %v5283 = vld [vmem:[#allocation4 + $0x3c] sm:$0xf]
        %v5284 = vld [vmem:[#allocation4 + $0x40] sm:$0xf]
        %v5285 = vld [vmem:[#allocation4 + $0x44] sm:$0xf]
        %v5286 = vld [vmem:[#allocation4 + $0x48] sm:$0xf]
        %v5287 = vld [vmem:[#allocation4 + $0x4c] sm:$0xf]
        %v5288 = vld [vmem:[#allocation4 + $0x50] sm:$0xf]
        %v5289 = vld [vmem:[#allocation4 + $0x54] sm:$0xf]
        %v5290 = vld [vmem:[#allocation4 + $0x58] sm:$0xf]
        %v5291 = vld [vmem:[#allocation4 + $0x5c] sm:$0xf]
        %v5292 = vld [vmem:[#allocation4 + $0x60] sm:$0xf]
        %v5293 = vld [vmem:[#allocation4 + $0x64] sm:$0xf]
        %v5294 = vld [vmem:[#allocation4 + $0x68] sm:$0xf]
        %v5295 = vld [vmem:[#allocation4 + $0x6c] sm:$0xf]
        %v5296 = vld [vmem:[#allocation4 + $0x70] sm:$0xf]
        %v5297 = vld [vmem:[#allocation4 + $0x74] sm:$0xf]
        %v5298 = vld [vmem:[#allocation4 + $0x78] sm:$0xf]
        %v5299 = vld [vmem:[#allocation4 + $0x7c] sm:$0xf]
        %v5300 = vld [vmem:[#allocation4 + $0x80] sm:$0xf]
        %v5301 = vld [vmem:[#allocation4 + $0x84] sm:$0xf]
        %v5302 = vld [vmem:[#allocation4 + $0x88] sm:$0xf]
        %v5303 = vld [vmem:[#allocation4 + $0x8c] sm:$0xf]
        %v5304 = vld [vmem:[#allocation4 + $0x90] sm:$0xf]
        %v5305 = vld [vmem:[#allocation4 + $0x94] sm:$0xf]
        %v5306 = vld [vmem:[#allocation4 + $0x98] sm:$0xf]
        %v5307 = vld [vmem:[#allocation4 + $0x9c] sm:$0xf]
        %v5308 = vld [vmem:[#allocation4 + $0xa0] sm:$0xf]
        %v5309 = vld [vmem:[#allocation4 + $0xa4] sm:$0xf]
        %v5310 = vld [vmem:[#allocation4 + $0xa8] sm:$0xf]
        %v5311 = vld [vmem:[#allocation4 + $0xac] sm:$0xf]
        %v5312 = vld [vmem:[#allocation4 + $0xb0] sm:$0xf]
        %v5313 = vld [vmem:[#allocation4 + $0xb4] sm:$0xf]
        %v5314 = vld [vmem:[#allocation4 + $0xb8] sm:$0xf]
        %v5315 = vld [vmem:[#allocation4 + $0xbc] sm:$0xf]
        %v5316 = vld [vmem:[#allocation4 + $0xc0] sm:$0xf]
        %v5317 = vld [vmem:[#allocation4 + $0xc4] sm:$0xf]
        %v5318 = vld [vmem:[#allocation4 + $0xc8] sm:$0xf]
        %v5319 = vld [vmem:[#allocation4 + $0xcc] sm:$0xf]
        %v5372 = vunpack.c.l.b16 %v5268
        %v5373 = vunpack.c.l.b16 %v5269
        %v5374 = vunpack.c.l.b16 %v5270
        %v5375 = vunpack.c.l.b16 %v5271
        %v5376 = vunpack.c.l.b16 %v5272
        %v5377 = vunpack.c.l.b16 %v5273
        %v5378 = vunpack.c.l.b16 %v5274
        %v5379 = vunpack.c.l.b16 %v5275
        %v5380 = vunpack.c.l.b16 %v5276
        %v5381 = vunpack.c.l.b16 %v5277
        %v5382 = vunpack.c.l.b16 %v5278
        %v5383 = vunpack.c.l.b16 %v5279
        %v5384 = vunpack.c.l.b16 %v5280
        %v5385 = vunpack.c.l.b16 %v5281
        %v5386 = vunpack.c.l.b16 %v5282
        %v5387 = vunpack.c.l.b16 %v5283
        %v5388 = vunpack.c.l.b16 %v5284
        %v5389 = vunpack.c.l.b16 %v5285
        %v5390 = vunpack.c.l.b16 %v5286
        %v5391 = vunpack.c.l.b16 %v5287
        %v5392 = vunpack.c.l.b16 %v5288
        %v5393 = vunpack.c.l.b16 %v5289
        %v5394 = vunpack.c.l.b16 %v5290
        %v5395 = vunpack.c.l.b16 %v5291
        %v5396 = vunpack.c.l.b16 %v5292
        %v5397 = vunpack.c.l.b16 %v5293
        %v5398 = vunpack.c.l.b16 %v5294
        %v5399 = vunpack.c.l.b16 %v5295
        %v5400 = vunpack.c.l.b16 %v5296
        %v5401 = vunpack.c.l.b16 %v5297
        %v5402 = vunpack.c.l.b16 %v5298
        %v5403 = vunpack.c.l.b16 %v5299
        %v5404 = vunpack.c.l.b16 %v5300
        %v5405 = vunpack.c.l.b16 %v5301
        %v5406 = vunpack.c.l.b16 %v5302
        %v5407 = vunpack.c.l.b16 %v5303
        %v5408 = vunpack.c.l.b16 %v5304
        %v5409 = vunpack.c.l.b16 %v5305
        %v5410 = vunpack.c.l.b16 %v5306
        %v5411 = vunpack.c.l.b16 %v5307
        %v5412 = vunpack.c.l.b16 %v5308
        %v5413 = vunpack.c.l.b16 %v5309
        %v5414 = vunpack.c.l.b16 %v5310
        %v5415 = vunpack.c.l.b16 %v5311
        %v5416 = vunpack.c.l.b16 %v5312
        %v5417 = vunpack.c.l.b16 %v5313
        %v5418 = vunpack.c.l.b16 %v5314
        %v5419 = vunpack.c.l.b16 %v5315
        %v5420 = vunpack.c.l.b16 %v5316
        %v5421 = vunpack.c.l.b16 %v5317
        %v5422 = vunpack.c.l.b16 %v5318
        %v5423 = vunpack.c.l.b16 %v5319
        %v5424 = vpack.c.b16 %v5373, %v5372
        %v5425 = vpack.c.b16 %v5375, %v5374
        %v5426 = vpack.c.b16 %v5377, %v5376
        %v5427 = vpack.c.b16 %v5379, %v5378
        %v5428 = vpack.c.b16 %v5381, %v5380
        %v5429 = vpack.c.b16 %v5383, %v5382
        %v5430 = vpack.c.b16 %v5385, %v5384
        %v5431 = vpack.c.b16 %v5387, %v5386
        %v5432 = vpack.c.b16 %v5389, %v5388
        %v5433 = vpack.c.b16 %v5391, %v5390
        %v5434 = vpack.c.b16 %v5393, %v5392
        %v5435 = vpack.c.b16 %v5395, %v5394
        %v5436 = vpack.c.b16 %v5397, %v5396
        %v5437 = vpack.c.b16 %v5399, %v5398
        %v5438 = vpack.c.b16 %v5401, %v5400
        %v5439 = vpack.c.b16 %v5403, %v5402
        %v5440 = vpack.c.b16 %v5405, %v5404
        %v5441 = vpack.c.b16 %v5407, %v5406
        %v5442 = vpack.c.b16 %v5409, %v5408
        %v5443 = vpack.c.b16 %v5411, %v5410
        %v5444 = vpack.c.b16 %v5413, %v5412
        %v5445 = vpack.c.b16 %v5415, %v5414
        %v5446 = vpack.c.b16 %v5417, %v5416
        %v5447 = vpack.c.b16 %v5419, %v5418
        %v5448 = vpack.c.b16 %v5421, %v5420
        %v5449 = vpack.c.b16 %v5423, %v5422
        %v5477 = vsel %vm2726, %v4852, 0
        %v5480 = vsel %vm2726, %v4853, 0
        %v5483 = vsel %vm2726, %v4854, 0
        %v5486 = vsel %vm2726, %v4855, 0
        %v5489 = vsel %vm2726, %v4856, 0
        %v5492 = vsel %vm2726, %v4857, 0
        %v5495 = vsel %vm2726, %v4858, 0
        %v5498 = vsel %vm2726, %v4859, 0
        %v5501 = vsel %vm2726, %v4860, 0
        %v5504 = vsel %vm2726, %v4861, 0
        %v5507 = vsel %vm2726, %v4862, 0
        %v5510 = vsel %vm2726, %v4863, 0
        %v5513 = vsel %vm2726, %v4864, 0
        %v5516 = vsel %vm2726, %v4865, 0
        %v5519 = vsel %vm2726, %v4866, 0
        %v5522 = vsel %vm2726, %v4867, 0
        %5524 = vmatpush.bf16.msra.mxu0 %v5431
        %5525 = vmatpush.bf16.msra.mxu0 %v5430
        %5526 = vmatpush.bf16.msra.mxu0 %v5429
        %5527 = vmatpush.bf16.msra.mxu0 %v5428
        %5528 = vmatpush.bf16.msra.mxu0 %v5427
        %5529 = vmatpush.bf16.msra.mxu0 %v5426
        %5530 = vmatpush.bf16.msra.mxu0 %v5425
        %5531 = vmatpush.bf16.msra.mxu0 %v5424
        %5532 = vmatmul.bf16.gmra.mxu0 %v4965
        %v5533 = vpop.f32.mrf.mxu0
        %v5534 = vadd.f32 0.0, %v5533
        %v5535 = vpop.f32.mrf.mxu0
        %v5536 = vadd.f32 0.0, %v5535
        %5537 = vmatmul.bf16.gmra.mxu0 %v4968
        %v5538 = vpop.f32.mrf.mxu0
        %v5539 = vadd.f32 0.0, %v5538
        %v5540 = vpop.f32.mrf.mxu0
        %v5541 = vadd.f32 0.0, %v5540
        %5542 = vmatmul.bf16.gmra.mxu0 %v4971
        %v5543 = vpop.f32.mrf.mxu0
        %v5544 = vadd.f32 0.0, %v5543
        %v5545 = vpop.f32.mrf.mxu0
        %v5546 = vadd.f32 0.0, %v5545
        %5547 = vmatmul.bf16.gmra.mxu0 %v4974
        %v5548 = vpop.f32.mrf.mxu0
        %v5549 = vadd.f32 0.0, %v5548
        %v5550 = vpop.f32.mrf.mxu0
        %v5551 = vadd.f32 0.0, %v5550
        %5552 = vmatmul.bf16.gmra.mxu0 %v4977
        %v5553 = vpop.f32.mrf.mxu0
        %v5554 = vadd.f32 0.0, %v5553
        %v5555 = vpop.f32.mrf.mxu0
        %v5556 = vadd.f32 0.0, %v5555
        %5557 = vmatmul.bf16.gmra.mxu0 %v4980
        %v5558 = vpop.f32.mrf.mxu0
        %v5559 = vadd.f32 0.0, %v5558
        %v5560 = vpop.f32.mrf.mxu0
        %v5561 = vadd.f32 0.0, %v5560
        %5562 = vmatmul.bf16.gmra.mxu0 %v4983
        %v5563 = vpop.f32.mrf.mxu0
        %v5564 = vadd.f32 0.0, %v5563
        %v5565 = vpop.f32.mrf.mxu0
        %v5566 = vadd.f32 0.0, %v5565
        %5567 = vmatmul.bf16.gmra.mxu0 %v4986
        %v5568 = vpop.f32.mrf.mxu0
        %v5569 = vadd.f32 0.0, %v5568
        %v5570 = vpop.f32.mrf.mxu0
        %v5571 = vadd.f32 0.0, %v5570
        %5572 = vmatmul.bf16.gmra.mxu0 %v4989
        %v5573 = vpop.f32.mrf.mxu0
        %v5574 = vadd.f32 0.0, %v5573
        %v5575 = vpop.f32.mrf.mxu0
        %v5576 = vadd.f32 0.0, %v5575
        %5577 = vmatmul.bf16.gmra.mxu0 %v4992
        %v5578 = vpop.f32.mrf.mxu0
        %v5579 = vadd.f32 0.0, %v5578
        %v5580 = vpop.f32.mrf.mxu0
        %v5581 = vadd.f32 0.0, %v5580
        %5582 = vmatmul.bf16.gmra.mxu0 %v4995
        %v5583 = vpop.f32.mrf.mxu0
        %v5584 = vadd.f32 0.0, %v5583
        %v5585 = vpop.f32.mrf.mxu0
        %v5586 = vadd.f32 0.0, %v5585
        %5587 = vmatmul.bf16.gmra.mxu0 %v4998
        %v5588 = vpop.f32.mrf.mxu0
        %v5589 = vadd.f32 0.0, %v5588
        %v5590 = vpop.f32.mrf.mxu0
        %v5591 = vadd.f32 0.0, %v5590
        %5592 = vmatmul.bf16.gmra.mxu0 %v5001
        %v5593 = vpop.f32.mrf.mxu0
        %v5594 = vadd.f32 0.0, %v5593
        %v5595 = vpop.f32.mrf.mxu0
        %v5596 = vadd.f32 0.0, %v5595
        %5597 = vmatmul.bf16.gmra.mxu0 %v5004
        %v5598 = vpop.f32.mrf.mxu0
        %v5599 = vadd.f32 0.0, %v5598
        %v5600 = vpop.f32.mrf.mxu0
        %v5601 = vadd.f32 0.0, %v5600
        %5602 = vmatmul.bf16.gmra.mxu0 %v5007
        %v5603 = vpop.f32.mrf.mxu0
        %v5604 = vadd.f32 0.0, %v5603
        %v5605 = vpop.f32.mrf.mxu0
        %v5606 = vadd.f32 0.0, %v5605
        %5607 = vmatmul.bf16.gmra.mxu0 %v5010
        %v5608 = vpop.f32.mrf.mxu0
        %v5609 = vadd.f32 0.0, %v5608
        %v5610 = vpop.f32.mrf.mxu0
        %v5611 = vadd.f32 0.0, %v5610
        %5612 = vdwg.mxu0
        %5613 = vmatpush.bf16.msra.mxu0 %v5439
        %5614 = vmatpush.bf16.msra.mxu0 %v5438
        %5615 = vmatpush.bf16.msra.mxu0 %v5437
        %5616 = vmatpush.bf16.msra.mxu0 %v5436
        %5617 = vmatpush.bf16.msra.mxu0 %v5435
        %5618 = vmatpush.bf16.msra.mxu0 %v5434
        %5619 = vmatpush.bf16.msra.mxu0 %v5433
        %5620 = vmatpush.bf16.msra.mxu0 %v5432
        %5621 = vmatmul.bf16.gmra.mxu0 %v5093
        %v5622 = vpop.f32.mrf.mxu0
        %v5623 = vadd.f32 %v5534, %v5622
        %v5624 = vpop.f32.mrf.mxu0
        %v5625 = vadd.f32 %v5536, %v5624
        %5626 = vmatmul.bf16.gmra.mxu0 %v5096
        %v5627 = vpop.f32.mrf.mxu0
        %v5628 = vadd.f32 %v5539, %v5627
        %v5629 = vpop.f32.mrf.mxu0
        %v5630 = vadd.f32 %v5541, %v5629
        %5631 = vmatmul.bf16.gmra.mxu0 %v5099
        %v5632 = vpop.f32.mrf.mxu0
        %v5633 = vadd.f32 %v5544, %v5632
        %v5634 = vpop.f32.mrf.mxu0
        %v5635 = vadd.f32 %v5546, %v5634
        %5636 = vmatmul.bf16.gmra.mxu0 %v5102
        %v5637 = vpop.f32.mrf.mxu0
        %v5638 = vadd.f32 %v5549, %v5637
        %v5639 = vpop.f32.mrf.mxu0
        %v5640 = vadd.f32 %v5551, %v5639
        %5641 = vmatmul.bf16.gmra.mxu0 %v5105
        %v5642 = vpop.f32.mrf.mxu0
        %v5643 = vadd.f32 %v5554, %v5642
        %v5644 = vpop.f32.mrf.mxu0
        %v5645 = vadd.f32 %v5556, %v5644
        %5646 = vmatmul.bf16.gmra.mxu0 %v5108
        %v5647 = vpop.f32.mrf.mxu0
        %v5648 = vadd.f32 %v5559, %v5647
        %v5649 = vpop.f32.mrf.mxu0
        %v5650 = vadd.f32 %v5561, %v5649
        %5651 = vmatmul.bf16.gmra.mxu0 %v5111
        %v5652 = vpop.f32.mrf.mxu0
        %v5653 = vadd.f32 %v5564, %v5652
        %v5654 = vpop.f32.mrf.mxu0
        %v5655 = vadd.f32 %v5566, %v5654
        %5656 = vmatmul.bf16.gmra.mxu0 %v5114
        %v5657 = vpop.f32.mrf.mxu0
        %v5658 = vadd.f32 %v5569, %v5657
        %v5659 = vpop.f32.mrf.mxu0
        %v5660 = vadd.f32 %v5571, %v5659
        %5661 = vmatmul.bf16.gmra.mxu0 %v5117
        %v5662 = vpop.f32.mrf.mxu0
        %v5663 = vadd.f32 %v5574, %v5662
        %v5664 = vpop.f32.mrf.mxu0
        %v5665 = vadd.f32 %v5576, %v5664
        %5666 = vmatmul.bf16.gmra.mxu0 %v5120
        %v5667 = vpop.f32.mrf.mxu0
        %v5668 = vadd.f32 %v5579, %v5667
        %v5669 = vpop.f32.mrf.mxu0
        %v5670 = vadd.f32 %v5581, %v5669
        %5671 = vmatmul.bf16.gmra.mxu0 %v5123
        %v5672 = vpop.f32.mrf.mxu0
        %v5673 = vadd.f32 %v5584, %v5672
        %v5674 = vpop.f32.mrf.mxu0
        %v5675 = vadd.f32 %v5586, %v5674
        %5676 = vmatmul.bf16.gmra.mxu0 %v5126
        %v5677 = vpop.f32.mrf.mxu0
        %v5678 = vadd.f32 %v5589, %v5677
        %v5679 = vpop.f32.mrf.mxu0
        %v5680 = vadd.f32 %v5591, %v5679
        %5681 = vmatmul.bf16.gmra.mxu0 %v5129
        %v5682 = vpop.f32.mrf.mxu0
        %v5683 = vadd.f32 %v5594, %v5682
        %v5684 = vpop.f32.mrf.mxu0
        %v5685 = vadd.f32 %v5596, %v5684
        %5686 = vmatmul.bf16.gmra.mxu0 %v5132
        %v5687 = vpop.f32.mrf.mxu0
        %v5688 = vadd.f32 %v5599, %v5687
        %v5689 = vpop.f32.mrf.mxu0
        %v5690 = vadd.f32 %v5601, %v5689
        %5691 = vmatmul.bf16.gmra.mxu0 %v5135
        %v5692 = vpop.f32.mrf.mxu0
        %v5693 = vadd.f32 %v5604, %v5692
        %v5694 = vpop.f32.mrf.mxu0
        %v5695 = vadd.f32 %v5606, %v5694
        %5696 = vmatmul.bf16.gmra.mxu0 %v5138
        %v5697 = vpop.f32.mrf.mxu0
        %v5698 = vadd.f32 %v5609, %v5697
        %v5699 = vpop.f32.mrf.mxu0
        %v5700 = vadd.f32 %v5611, %v5699
        %5701 = vdwg.mxu0
        %5702 = vmatpush.bf16.msra.mxu0 %v5447
        %5703 = vmatpush.bf16.msra.mxu0 %v5446
        %5704 = vmatpush.bf16.msra.mxu0 %v5445
        %5705 = vmatpush.bf16.msra.mxu0 %v5444
        %5706 = vmatpush.bf16.msra.mxu0 %v5443
        %5707 = vmatpush.bf16.msra.mxu0 %v5442
        %5708 = vmatpush.bf16.msra.mxu0 %v5441
        %5709 = vmatpush.bf16.msra.mxu0 %v5440
        %5710 = vmatmul.bf16.gmra.mxu0 %v5221
        %v5711 = vpop.f32.mrf.mxu0
        %v5712 = vadd.f32 %v5623, %v5711
        %v5713 = vpop.f32.mrf.mxu0
        %v5714 = vadd.f32 %v5625, %v5713
        %5715 = vmatmul.bf16.gmra.mxu0 %v5224
        %v5716 = vpop.f32.mrf.mxu0
        %v5717 = vadd.f32 %v5628, %v5716
        %v5718 = vpop.f32.mrf.mxu0
        %v5719 = vadd.f32 %v5630, %v5718
        %5720 = vmatmul.bf16.gmra.mxu0 %v5227
        %v5721 = vpop.f32.mrf.mxu0
        %v5722 = vadd.f32 %v5633, %v5721
        %v5723 = vpop.f32.mrf.mxu0
        %v5724 = vadd.f32 %v5635, %v5723
        %5725 = vmatmul.bf16.gmra.mxu0 %v5230
        %v5726 = vpop.f32.mrf.mxu0
        %v5727 = vadd.f32 %v5638, %v5726
        %v5728 = vpop.f32.mrf.mxu0
        %v5729 = vadd.f32 %v5640, %v5728
        %5730 = vmatmul.bf16.gmra.mxu0 %v5233
        %v5731 = vpop.f32.mrf.mxu0
        %v5732 = vadd.f32 %v5643, %v5731
        %v5733 = vpop.f32.mrf.mxu0
        %v5734 = vadd.f32 %v5645, %v5733
        %5735 = vmatmul.bf16.gmra.mxu0 %v5236
        %v5736 = vpop.f32.mrf.mxu0
        %v5737 = vadd.f32 %v5648, %v5736
        %v5738 = vpop.f32.mrf.mxu0
        %v5739 = vadd.f32 %v5650, %v5738
        %5740 = vmatmul.bf16.gmra.mxu0 %v5239
        %v5741 = vpop.f32.mrf.mxu0
        %v5742 = vadd.f32 %v5653, %v5741
        %v5743 = vpop.f32.mrf.mxu0
        %v5744 = vadd.f32 %v5655, %v5743
        %5745 = vmatmul.bf16.gmra.mxu0 %v5242
        %v5746 = vpop.f32.mrf.mxu0
        %v5747 = vadd.f32 %v5658, %v5746
        %v5748 = vpop.f32.mrf.mxu0
        %v5749 = vadd.f32 %v5660, %v5748
        %5750 = vmatmul.bf16.gmra.mxu0 %v5245
        %v5751 = vpop.f32.mrf.mxu0
        %v5752 = vadd.f32 %v5663, %v5751
        %v5753 = vpop.f32.mrf.mxu0
        %v5754 = vadd.f32 %v5665, %v5753
        %5755 = vmatmul.bf16.gmra.mxu0 %v5248
        %v5756 = vpop.f32.mrf.mxu0
        %v5757 = vadd.f32 %v5668, %v5756
        %v5758 = vpop.f32.mrf.mxu0
        %v5759 = vadd.f32 %v5670, %v5758
        %5760 = vmatmul.bf16.gmra.mxu0 %v5251
        %v5761 = vpop.f32.mrf.mxu0
        %v5762 = vadd.f32 %v5673, %v5761
        %v5763 = vpop.f32.mrf.mxu0
        %v5764 = vadd.f32 %v5675, %v5763
        %5765 = vmatmul.bf16.gmra.mxu0 %v5254
        %v5766 = vpop.f32.mrf.mxu0
        %v5767 = vadd.f32 %v5678, %v5766
        %v5768 = vpop.f32.mrf.mxu0
        %v5769 = vadd.f32 %v5680, %v5768
        %5770 = vmatmul.bf16.gmra.mxu0 %v5257
        %v5771 = vpop.f32.mrf.mxu0
        %v5772 = vadd.f32 %v5683, %v5771
        %v5773 = vpop.f32.mrf.mxu0
        %v5774 = vadd.f32 %v5685, %v5773
        %5775 = vmatmul.bf16.gmra.mxu0 %v5260
        %v5776 = vpop.f32.mrf.mxu0
        %v5777 = vadd.f32 %v5688, %v5776
        %v5778 = vpop.f32.mrf.mxu0
        %v5779 = vadd.f32 %v5690, %v5778
        %5780 = vmatmul.bf16.gmra.mxu0 %v5263
        %v5781 = vpop.f32.mrf.mxu0
        %v5782 = vadd.f32 %v5693, %v5781
        %v5783 = vpop.f32.mrf.mxu0
        %v5784 = vadd.f32 %v5695, %v5783
        %5785 = vmatmul.bf16.gmra.mxu0 %v5266
        %v5786 = vpop.f32.mrf.mxu0
        %v5787 = vadd.f32 %v5698, %v5786
        %v5788 = vpop.f32.mrf.mxu0
        %v5789 = vadd.f32 %v5700, %v5788
        %5790 = vdwg.mxu0
        %5791 = vmatpush.bf16.msra.mxu0 0
        %5792 = vmatpush.bf16.msra.mxu0 0
        %5793 = vmatpush.bf16.msra.mxu0 0
        %5794 = vmatpush.bf16.msra.mxu0 0
        %5795 = vmatpush.bf16.msra.mxu0 0
        %5796 = vmatpush.bf16.msra.mxu0 0
        %5797 = vmatpush.bf16.msra.mxu0 %v5449
        %5798 = vmatpush.bf16.msra.mxu0 %v5448
        %5799 = vmatmul.bf16.gmra.mxu0 %v5477
        %v5800 = vpop.f32.mrf.mxu0
        %v5801 = vadd.f32 %v5712, %v5800
        %v5802 = vpop.f32.mrf.mxu0
        %v5803 = vadd.f32 %v5714, %v5802
        %5804 = vmatmul.bf16.gmra.mxu0 %v5480
        %v5805 = vpop.f32.mrf.mxu0
        %v5806 = vadd.f32 %v5717, %v5805
        %v5807 = vpop.f32.mrf.mxu0
        %v5808 = vadd.f32 %v5719, %v5807
        %5809 = vmatmul.bf16.gmra.mxu0 %v5483
        %v5810 = vpop.f32.mrf.mxu0
        %v5811 = vadd.f32 %v5722, %v5810
        %v5812 = vpop.f32.mrf.mxu0
        %v5813 = vadd.f32 %v5724, %v5812
        %5814 = vmatmul.bf16.gmra.mxu0 %v5486
        %v5815 = vpop.f32.mrf.mxu0
        %v5816 = vadd.f32 %v5727, %v5815
        %v5817 = vpop.f32.mrf.mxu0
        %v5818 = vadd.f32 %v5729, %v5817
        %5819 = vmatmul.bf16.gmra.mxu0 %v5489
        %v5820 = vpop.f32.mrf.mxu0
        %v5821 = vadd.f32 %v5732, %v5820
        %v5822 = vpop.f32.mrf.mxu0
        %v5823 = vadd.f32 %v5734, %v5822
        %5824 = vmatmul.bf16.gmra.mxu0 %v5492
        %v5825 = vpop.f32.mrf.mxu0
        %v5826 = vadd.f32 %v5737, %v5825
        %v5827 = vpop.f32.mrf.mxu0
        %v5828 = vadd.f32 %v5739, %v5827
        %5829 = vmatmul.bf16.gmra.mxu0 %v5495
        %v5830 = vpop.f32.mrf.mxu0
        %v5831 = vadd.f32 %v5742, %v5830
        %v5832 = vpop.f32.mrf.mxu0
        %v5833 = vadd.f32 %v5744, %v5832
        %5834 = vmatmul.bf16.gmra.mxu0 %v5498
        %v5835 = vpop.f32.mrf.mxu0
        %v5836 = vadd.f32 %v5747, %v5835
        %v5837 = vpop.f32.mrf.mxu0
        %v5838 = vadd.f32 %v5749, %v5837
        %5839 = vmatmul.bf16.gmra.mxu0 %v5501
        %v5840 = vpop.f32.mrf.mxu0
        %v5841 = vadd.f32 %v5752, %v5840
        %v5842 = vpop.f32.mrf.mxu0
        %v5843 = vadd.f32 %v5754, %v5842
        %5844 = vmatmul.bf16.gmra.mxu0 %v5504
        %v5845 = vpop.f32.mrf.mxu0
        %v5846 = vadd.f32 %v5757, %v5845
        %v5847 = vpop.f32.mrf.mxu0
        %v5848 = vadd.f32 %v5759, %v5847
        %5849 = vmatmul.bf16.gmra.mxu0 %v5507
        %v5850 = vpop.f32.mrf.mxu0
        %v5851 = vadd.f32 %v5762, %v5850
        %v5852 = vpop.f32.mrf.mxu0
        %v5853 = vadd.f32 %v5764, %v5852
        %5854 = vmatmul.bf16.gmra.mxu0 %v5510
        %v5855 = vpop.f32.mrf.mxu0
        %v5856 = vadd.f32 %v5767, %v5855
        %v5857 = vpop.f32.mrf.mxu0
        %v5858 = vadd.f32 %v5769, %v5857
        %5859 = vmatmul.bf16.gmra.mxu0 %v5513
        %v5860 = vpop.f32.mrf.mxu0
        %v5861 = vadd.f32 %v5772, %v5860
        %v5862 = vpop.f32.mrf.mxu0
        %v5863 = vadd.f32 %v5774, %v5862
        %5864 = vmatmul.bf16.gmra.mxu0 %v5516
        %v5865 = vpop.f32.mrf.mxu0
        %v5866 = vadd.f32 %v5777, %v5865
        %v5867 = vpop.f32.mrf.mxu0
        %v5868 = vadd.f32 %v5779, %v5867
        %5869 = vmatmul.bf16.gmra.mxu0 %v5519
        %v5870 = vpop.f32.mrf.mxu0
        %v5871 = vadd.f32 %v5782, %v5870
        %v5872 = vpop.f32.mrf.mxu0
        %v5873 = vadd.f32 %v5784, %v5872
        %5874 = vmatmul.bf16.gmra.mxu0 %v5522
        %v5875 = vpop.f32.mrf.mxu0
        %v5876 = vadd.f32 %v5787, %v5875
        %v5877 = vpop.f32.mrf.mxu0
        %v5878 = vadd.f32 %v5789, %v5877
        %5879 = vdwg.mxu0
        %s5880 = scalar_lea.vmem [#allocation4], 208
        %v5881 = vld [vmem:[%s5880] sm:$0xf]
        %v5882 = vld [vmem:[%s5880 + $0x4] sm:$0xf]
        %v5883 = vld [vmem:[%s5880 + $0x8] sm:$0xf]
        %v5884 = vld [vmem:[%s5880 + $0xc] sm:$0xf]
        %v5885 = vld [vmem:[%s5880 + $0x10] sm:$0xf]
        %v5886 = vld [vmem:[%s5880 + $0x14] sm:$0xf]
        %v5887 = vld [vmem:[%s5880 + $0x18] sm:$0xf]
        %v5888 = vld [vmem:[%s5880 + $0x1c] sm:$0xf]
        %v5889 = vld [vmem:[%s5880 + $0x20] sm:$0xf]
        %v5890 = vld [vmem:[%s5880 + $0x24] sm:$0xf]
        %v5891 = vld [vmem:[%s5880 + $0x28] sm:$0xf]
        %v5892 = vld [vmem:[%s5880 + $0x2c] sm:$0xf]
        %v5893 = vld [vmem:[%s5880 + $0x30] sm:$0xf]
        %v5894 = vld [vmem:[%s5880 + $0x34] sm:$0xf]
        %v5895 = vld [vmem:[%s5880 + $0x38] sm:$0xf]
        %v5896 = vld [vmem:[%s5880 + $0x3c] sm:$0xf]
        %v5897 = vld [vmem:[%s5880 + $0x40] sm:$0xf]
        %v5898 = vld [vmem:[%s5880 + $0x44] sm:$0xf]
        %v5899 = vld [vmem:[%s5880 + $0x48] sm:$0xf]
        %v5900 = vld [vmem:[%s5880 + $0x4c] sm:$0xf]
        %v5901 = vld [vmem:[%s5880 + $0x50] sm:$0xf]
        %v5902 = vld [vmem:[%s5880 + $0x54] sm:$0xf]
        %v5903 = vld [vmem:[%s5880 + $0x58] sm:$0xf]
        %v5904 = vld [vmem:[%s5880 + $0x5c] sm:$0xf]
        %v5905 = vld [vmem:[%s5880 + $0x60] sm:$0xf]
        %v5906 = vld [vmem:[%s5880 + $0x64] sm:$0xf]
        %v5907 = vld [vmem:[%s5880 + $0x68] sm:$0xf]
        %v5908 = vld [vmem:[%s5880 + $0x6c] sm:$0xf]
        %v5909 = vld [vmem:[%s5880 + $0x70] sm:$0xf]
        %v5910 = vld [vmem:[%s5880 + $0x74] sm:$0xf]
        %v5911 = vld [vmem:[%s5880 + $0x78] sm:$0xf]
        %v5912 = vld [vmem:[%s5880 + $0x7c] sm:$0xf]
        %v5913 = vld [vmem:[%s5880 + $0x80] sm:$0xf]
        %v5914 = vld [vmem:[%s5880 + $0x84] sm:$0xf]
        %v5915 = vld [vmem:[%s5880 + $0x88] sm:$0xf]
        %v5916 = vld [vmem:[%s5880 + $0x8c] sm:$0xf]
        %v5917 = vld [vmem:[%s5880 + $0x90] sm:$0xf]
        %v5918 = vld [vmem:[%s5880 + $0x94] sm:$0xf]
        %v5919 = vld [vmem:[%s5880 + $0x98] sm:$0xf]
        %v5920 = vld [vmem:[%s5880 + $0x9c] sm:$0xf]
        %v5921 = vld [vmem:[%s5880 + $0xa0] sm:$0xf]
        %v5922 = vld [vmem:[%s5880 + $0xa4] sm:$0xf]
        %v5923 = vld [vmem:[%s5880 + $0xa8] sm:$0xf]
        %v5924 = vld [vmem:[%s5880 + $0xac] sm:$0xf]
        %v5925 = vld [vmem:[%s5880 + $0xb0] sm:$0xf]
        %v5926 = vld [vmem:[%s5880 + $0xb4] sm:$0xf]
        %v5927 = vld [vmem:[%s5880 + $0xb8] sm:$0xf]
        %v5928 = vld [vmem:[%s5880 + $0xbc] sm:$0xf]
        %v5929 = vld [vmem:[%s5880 + $0xc0] sm:$0xf]
        %v5930 = vld [vmem:[%s5880 + $0xc4] sm:$0xf]
        %v5931 = vld [vmem:[%s5880 + $0xc8] sm:$0xf]
        %v5932 = vld [vmem:[%s5880 + $0xcc] sm:$0xf]
        %v5985 = vunpack.c.l.b16 %v5881
        %v5986 = vunpack.c.l.b16 %v5882
        %v5987 = vunpack.c.l.b16 %v5883
        %v5988 = vunpack.c.l.b16 %v5884
        %v5989 = vunpack.c.l.b16 %v5885
        %v5990 = vunpack.c.l.b16 %v5886
        %v5991 = vunpack.c.l.b16 %v5887
        %v5992 = vunpack.c.l.b16 %v5888
        %v5993 = vunpack.c.l.b16 %v5889
        %v5994 = vunpack.c.l.b16 %v5890
        %v5995 = vunpack.c.l.b16 %v5891
        %v5996 = vunpack.c.l.b16 %v5892
        %v5997 = vunpack.c.l.b16 %v5893
        %v5998 = vunpack.c.l.b16 %v5894
        %v5999 = vunpack.c.l.b16 %v5895
        %v6000 = vunpack.c.l.b16 %v5896
        %v6001 = vunpack.c.l.b16 %v5897
        %v6002 = vunpack.c.l.b16 %v5898
        %v6003 = vunpack.c.l.b16 %v5899
        %v6004 = vunpack.c.l.b16 %v5900
        %v6005 = vunpack.c.l.b16 %v5901
        %v6006 = vunpack.c.l.b16 %v5902
        %v6007 = vunpack.c.l.b16 %v5903
        %v6008 = vunpack.c.l.b16 %v5904
        %v6009 = vunpack.c.l.b16 %v5905
        %v6010 = vunpack.c.l.b16 %v5906
        %v6011 = vunpack.c.l.b16 %v5907
        %v6012 = vunpack.c.l.b16 %v5908
        %v6013 = vunpack.c.l.b16 %v5909
        %v6014 = vunpack.c.l.b16 %v5910
        %v6015 = vunpack.c.l.b16 %v5911
        %v6016 = vunpack.c.l.b16 %v5912
        %v6017 = vunpack.c.l.b16 %v5913
        %v6018 = vunpack.c.l.b16 %v5914
        %v6019 = vunpack.c.l.b16 %v5915
        %v6020 = vunpack.c.l.b16 %v5916
        %v6021 = vunpack.c.l.b16 %v5917
        %v6022 = vunpack.c.l.b16 %v5918
        %v6023 = vunpack.c.l.b16 %v5919
        %v6024 = vunpack.c.l.b16 %v5920
        %v6025 = vunpack.c.l.b16 %v5921
        %v6026 = vunpack.c.l.b16 %v5922
        %v6027 = vunpack.c.l.b16 %v5923
        %v6028 = vunpack.c.l.b16 %v5924
        %v6029 = vunpack.c.l.b16 %v5925
        %v6030 = vunpack.c.l.b16 %v5926
        %v6031 = vunpack.c.l.b16 %v5927
        %v6032 = vunpack.c.l.b16 %v5928
        %v6033 = vunpack.c.l.b16 %v5929
        %v6034 = vunpack.c.l.b16 %v5930
        %v6035 = vunpack.c.l.b16 %v5931
        %v6036 = vunpack.c.l.b16 %v5932
        %v6037 = vpack.c.b16 %v5986, %v5985
        %v6038 = vpack.c.b16 %v5988, %v5987
        %v6039 = vpack.c.b16 %v5990, %v5989
        %v6040 = vpack.c.b16 %v5992, %v5991
        %v6041 = vpack.c.b16 %v5994, %v5993
        %v6042 = vpack.c.b16 %v5996, %v5995
        %v6043 = vpack.c.b16 %v5998, %v5997
        %v6044 = vpack.c.b16 %v6000, %v5999
        %v6045 = vpack.c.b16 %v6002, %v6001
        %v6046 = vpack.c.b16 %v6004, %v6003
        %v6047 = vpack.c.b16 %v6006, %v6005
        %v6048 = vpack.c.b16 %v6008, %v6007
        %v6049 = vpack.c.b16 %v6010, %v6009
        %v6050 = vpack.c.b16 %v6012, %v6011
        %v6051 = vpack.c.b16 %v6014, %v6013
        %v6052 = vpack.c.b16 %v6016, %v6015
        %v6053 = vpack.c.b16 %v6018, %v6017
        %v6054 = vpack.c.b16 %v6020, %v6019
        %v6055 = vpack.c.b16 %v6022, %v6021
        %v6056 = vpack.c.b16 %v6024, %v6023
        %v6057 = vpack.c.b16 %v6026, %v6025
        %v6058 = vpack.c.b16 %v6028, %v6027
        %v6059 = vpack.c.b16 %v6030, %v6029
        %v6060 = vpack.c.b16 %v6032, %v6031
        %v6061 = vpack.c.b16 %v6034, %v6033
        %v6062 = vpack.c.b16 %v6036, %v6035
        %v6090 = vsel %vm2726, %v2694, 0
        %v6093 = vsel %vm2726, %v2695, 0
        %v6096 = vsel %vm2726, %v2696, 0
        %v6099 = vsel %vm2726, %v2697, 0
        %v6102 = vsel %vm2726, %v2698, 0
        %v6105 = vsel %vm2726, %v2699, 0
        %v6108 = vsel %vm2726, %v2700, 0
        %v6111 = vsel %vm2726, %v2701, 0
        %v6114 = vsel %vm2726, %v2702, 0
        %v6117 = vsel %vm2726, %v2703, 0
        %v6120 = vsel %vm2726, %v2704, 0
        %v6123 = vsel %vm2726, %v2705, 0
        %v6126 = vsel %vm2726, %v2706, 0
        %v6129 = vsel %vm2726, %v2707, 0
        %v6132 = vsel %vm2726, %v2708, 0
        %v6135 = vsel %vm2726, %v2709, 0
        %6137 = vmatpush.bf16.msra.mxu0 %v6044
        %6138 = vmatpush.bf16.msra.mxu0 %v6043
        %6139 = vmatpush.bf16.msra.mxu0 %v6042
        %6140 = vmatpush.bf16.msra.mxu0 %v6041
        %6141 = vmatpush.bf16.msra.mxu0 %v6040
        %6142 = vmatpush.bf16.msra.mxu0 %v6039
        %6143 = vmatpush.bf16.msra.mxu0 %v6038
        %6144 = vmatpush.bf16.msra.mxu0 %v6037
        %6145 = vmatmul.bf16.gmra.mxu0 %v2810
        %v6146 = vpop.f32.mrf.mxu0
        %v6147 = vadd.f32 0.0, %v6146
        %v6148 = vpop.f32.mrf.mxu0
        %v6149 = vadd.f32 0.0, %v6148
        %6150 = vmatmul.bf16.gmra.mxu0 %v2813
        %v6151 = vpop.f32.mrf.mxu0
        %v6152 = vadd.f32 0.0, %v6151
        %v6153 = vpop.f32.mrf.mxu0
        %v6154 = vadd.f32 0.0, %v6153
        %6155 = vmatmul.bf16.gmra.mxu0 %v2816
        %v6156 = vpop.f32.mrf.mxu0
        %v6157 = vadd.f32 0.0, %v6156
        %v6158 = vpop.f32.mrf.mxu0
        %v6159 = vadd.f32 0.0, %v6158
        %6160 = vmatmul.bf16.gmra.mxu0 %v2819
        %v6161 = vpop.f32.mrf.mxu0
        %v6162 = vadd.f32 0.0, %v6161
        %v6163 = vpop.f32.mrf.mxu0
        %v6164 = vadd.f32 0.0, %v6163
        %6165 = vmatmul.bf16.gmra.mxu0 %v2822
        %v6166 = vpop.f32.mrf.mxu0
        %v6167 = vadd.f32 0.0, %v6166
        %v6168 = vpop.f32.mrf.mxu0
        %v6169 = vadd.f32 0.0, %v6168
        %6170 = vmatmul.bf16.gmra.mxu0 %v2825
        %v6171 = vpop.f32.mrf.mxu0
        %v6172 = vadd.f32 0.0, %v6171
        %v6173 = vpop.f32.mrf.mxu0
        %v6174 = vadd.f32 0.0, %v6173
        %6175 = vmatmul.bf16.gmra.mxu0 %v2828
        %v6176 = vpop.f32.mrf.mxu0
        %v6177 = vadd.f32 0.0, %v6176
        %v6178 = vpop.f32.mrf.mxu0
        %v6179 = vadd.f32 0.0, %v6178
        %6180 = vmatmul.bf16.gmra.mxu0 %v2831
        %v6181 = vpop.f32.mrf.mxu0
        %v6182 = vadd.f32 0.0, %v6181
        %v6183 = vpop.f32.mrf.mxu0
        %v6184 = vadd.f32 0.0, %v6183
        %6185 = vmatmul.bf16.gmra.mxu0 %v2834
        %v6186 = vpop.f32.mrf.mxu0
        %v6187 = vadd.f32 0.0, %v6186
        %v6188 = vpop.f32.mrf.mxu0
        %v6189 = vadd.f32 0.0, %v6188
        %6190 = vmatmul.bf16.gmra.mxu0 %v2837
        %v6191 = vpop.f32.mrf.mxu0
        %v6192 = vadd.f32 0.0, %v6191
        %v6193 = vpop.f32.mrf.mxu0
        %v6194 = vadd.f32 0.0, %v6193
        %6195 = vmatmul.bf16.gmra.mxu0 %v2840
        %v6196 = vpop.f32.mrf.mxu0
        %v6197 = vadd.f32 0.0, %v6196
        %v6198 = vpop.f32.mrf.mxu0
        %v6199 = vadd.f32 0.0, %v6198
        %6200 = vmatmul.bf16.gmra.mxu0 %v2843
        %v6201 = vpop.f32.mrf.mxu0
        %v6202 = vadd.f32 0.0, %v6201
        %v6203 = vpop.f32.mrf.mxu0
        %v6204 = vadd.f32 0.0, %v6203
        %6205 = vmatmul.bf16.gmra.mxu0 %v2846
        %v6206 = vpop.f32.mrf.mxu0
        %v6207 = vadd.f32 0.0, %v6206
        %v6208 = vpop.f32.mrf.mxu0
        %v6209 = vadd.f32 0.0, %v6208
        %6210 = vmatmul.bf16.gmra.mxu0 %v2849
        %v6211 = vpop.f32.mrf.mxu0
        %v6212 = vadd.f32 0.0, %v6211
        %v6213 = vpop.f32.mrf.mxu0
        %v6214 = vadd.f32 0.0, %v6213
        %6215 = vmatmul.bf16.gmra.mxu0 %v2852
        %v6216 = vpop.f32.mrf.mxu0
        %v6217 = vadd.f32 0.0, %v6216
        %v6218 = vpop.f32.mrf.mxu0
        %v6219 = vadd.f32 0.0, %v6218
        %6220 = vmatmul.bf16.gmra.mxu0 %v2855
        %v6221 = vpop.f32.mrf.mxu0
        %v6222 = vadd.f32 0.0, %v6221
        %v6223 = vpop.f32.mrf.mxu0
        %v6224 = vadd.f32 0.0, %v6223
        %6225 = vdwg.mxu0
        %6226 = vmatpush.bf16.msra.mxu0 %v6052
        %6227 = vmatpush.bf16.msra.mxu0 %v6051
        %6228 = vmatpush.bf16.msra.mxu0 %v6050
        %6229 = vmatpush.bf16.msra.mxu0 %v6049
        %6230 = vmatpush.bf16.msra.mxu0 %v6048
        %6231 = vmatpush.bf16.msra.mxu0 %v6047
        %6232 = vmatpush.bf16.msra.mxu0 %v6046
        %6233 = vmatpush.bf16.msra.mxu0 %v6045
        %6234 = vmatmul.bf16.gmra.mxu0 %v2938
        %v6235 = vpop.f32.mrf.mxu0
        %v6236 = vadd.f32 %v6147, %v6235
        %v6237 = vpop.f32.mrf.mxu0
        %v6238 = vadd.f32 %v6149, %v6237
        %6239 = vmatmul.bf16.gmra.mxu0 %v2941
        %v6240 = vpop.f32.mrf.mxu0
        %v6241 = vadd.f32 %v6152, %v6240
        %v6242 = vpop.f32.mrf.mxu0
        %v6243 = vadd.f32 %v6154, %v6242
        %6244 = vmatmul.bf16.gmra.mxu0 %v2944
        %v6245 = vpop.f32.mrf.mxu0
        %v6246 = vadd.f32 %v6157, %v6245
        %v6247 = vpop.f32.mrf.mxu0
        %v6248 = vadd.f32 %v6159, %v6247
        %6249 = vmatmul.bf16.gmra.mxu0 %v2947
        %v6250 = vpop.f32.mrf.mxu0
        %v6251 = vadd.f32 %v6162, %v6250
        %v6252 = vpop.f32.mrf.mxu0
        %v6253 = vadd.f32 %v6164, %v6252
        %6254 = vmatmul.bf16.gmra.mxu0 %v2950
        %v6255 = vpop.f32.mrf.mxu0
        %v6256 = vadd.f32 %v6167, %v6255
        %v6257 = vpop.f32.mrf.mxu0
        %v6258 = vadd.f32 %v6169, %v6257
        %6259 = vmatmul.bf16.gmra.mxu0 %v2953
        %v6260 = vpop.f32.mrf.mxu0
        %v6261 = vadd.f32 %v6172, %v6260
        %v6262 = vpop.f32.mrf.mxu0
        %v6263 = vadd.f32 %v6174, %v6262
        %6264 = vmatmul.bf16.gmra.mxu0 %v2956
        %v6265 = vpop.f32.mrf.mxu0
        %v6266 = vadd.f32 %v6177, %v6265
        %v6267 = vpop.f32.mrf.mxu0
        %v6268 = vadd.f32 %v6179, %v6267
        %6269 = vmatmul.bf16.gmra.mxu0 %v2959
        %v6270 = vpop.f32.mrf.mxu0
        %v6271 = vadd.f32 %v6182, %v6270
        %v6272 = vpop.f32.mrf.mxu0
        %v6273 = vadd.f32 %v6184, %v6272
        %6274 = vmatmul.bf16.gmra.mxu0 %v2962
        %v6275 = vpop.f32.mrf.mxu0
        %v6276 = vadd.f32 %v6187, %v6275
        %v6277 = vpop.f32.mrf.mxu0
        %v6278 = vadd.f32 %v6189, %v6277
        %6279 = vmatmul.bf16.gmra.mxu0 %v2965
        %v6280 = vpop.f32.mrf.mxu0
        %v6281 = vadd.f32 %v6192, %v6280
        %v6282 = vpop.f32.mrf.mxu0
        %v6283 = vadd.f32 %v6194, %v6282
        %6284 = vmatmul.bf16.gmra.mxu0 %v2968
        %v6285 = vpop.f32.mrf.mxu0
        %v6286 = vadd.f32 %v6197, %v6285
        %v6287 = vpop.f32.mrf.mxu0
        %v6288 = vadd.f32 %v6199, %v6287
        %6289 = vmatmul.bf16.gmra.mxu0 %v2971
        %v6290 = vpop.f32.mrf.mxu0
        %v6291 = vadd.f32 %v6202, %v6290
        %v6292 = vpop.f32.mrf.mxu0
        %v6293 = vadd.f32 %v6204, %v6292
        %6294 = vmatmul.bf16.gmra.mxu0 %v2974
        %v6295 = vpop.f32.mrf.mxu0
        %v6296 = vadd.f32 %v6207, %v6295
        %v6297 = vpop.f32.mrf.mxu0
        %v6298 = vadd.f32 %v6209, %v6297
        %6299 = vmatmul.bf16.gmra.mxu0 %v2977
        %v6300 = vpop.f32.mrf.mxu0
        %v6301 = vadd.f32 %v6212, %v6300
        %v6302 = vpop.f32.mrf.mxu0
        %v6303 = vadd.f32 %v6214, %v6302
        %6304 = vmatmul.bf16.gmra.mxu0 %v2980
        %v6305 = vpop.f32.mrf.mxu0
        %v6306 = vadd.f32 %v6217, %v6305
        %v6307 = vpop.f32.mrf.mxu0
        %v6308 = vadd.f32 %v6219, %v6307
        %6309 = vmatmul.bf16.gmra.mxu0 %v2983
        %v6310 = vpop.f32.mrf.mxu0
        %v6311 = vadd.f32 %v6222, %v6310
        %v6312 = vpop.f32.mrf.mxu0
        %v6313 = vadd.f32 %v6224, %v6312
        %6314 = vdwg.mxu0
        %6315 = vmatpush.bf16.msra.mxu0 %v6060
        %6316 = vmatpush.bf16.msra.mxu0 %v6059
        %6317 = vmatpush.bf16.msra.mxu0 %v6058
        %6318 = vmatpush.bf16.msra.mxu0 %v6057
        %6319 = vmatpush.bf16.msra.mxu0 %v6056
        %6320 = vmatpush.bf16.msra.mxu0 %v6055
        %6321 = vmatpush.bf16.msra.mxu0 %v6054
        %6322 = vmatpush.bf16.msra.mxu0 %v6053
        %6323 = vmatmul.bf16.gmra.mxu0 %v3066
        %v6324 = vpop.f32.mrf.mxu0
        %v6325 = vadd.f32 %v6236, %v6324
        %v6326 = vpop.f32.mrf.mxu0
        %v6327 = vadd.f32 %v6238, %v6326
        %6328 = vmatmul.bf16.gmra.mxu0 %v3069
        %v6329 = vpop.f32.mrf.mxu0
        %v6330 = vadd.f32 %v6241, %v6329
        %v6331 = vpop.f32.mrf.mxu0
        %v6332 = vadd.f32 %v6243, %v6331
        %6333 = vmatmul.bf16.gmra.mxu0 %v3072
        %v6334 = vpop.f32.mrf.mxu0
        %v6335 = vadd.f32 %v6246, %v6334
        %v6336 = vpop.f32.mrf.mxu0
        %v6337 = vadd.f32 %v6248, %v6336
        %6338 = vmatmul.bf16.gmra.mxu0 %v3075
        %v6339 = vpop.f32.mrf.mxu0
        %v6340 = vadd.f32 %v6251, %v6339
        %v6341 = vpop.f32.mrf.mxu0
        %v6342 = vadd.f32 %v6253, %v6341
        %6343 = vmatmul.bf16.gmra.mxu0 %v3078
        %v6344 = vpop.f32.mrf.mxu0
        %v6345 = vadd.f32 %v6256, %v6344
        %v6346 = vpop.f32.mrf.mxu0
        %v6347 = vadd.f32 %v6258, %v6346
        %6348 = vmatmul.bf16.gmra.mxu0 %v3081
        %v6349 = vpop.f32.mrf.mxu0
        %v6350 = vadd.f32 %v6261, %v6349
        %v6351 = vpop.f32.mrf.mxu0
        %v6352 = vadd.f32 %v6263, %v6351
        %6353 = vmatmul.bf16.gmra.mxu0 %v3084
        %v6354 = vpop.f32.mrf.mxu0
        %v6355 = vadd.f32 %v6266, %v6354
        %v6356 = vpop.f32.mrf.mxu0
        %v6357 = vadd.f32 %v6268, %v6356
        %6358 = vmatmul.bf16.gmra.mxu0 %v3087
        %v6359 = vpop.f32.mrf.mxu0
        %v6360 = vadd.f32 %v6271, %v6359
        %v6361 = vpop.f32.mrf.mxu0
        %v6362 = vadd.f32 %v6273, %v6361
        %6363 = vmatmul.bf16.gmra.mxu0 %v3090
        %v6364 = vpop.f32.mrf.mxu0
        %v6365 = vadd.f32 %v6276, %v6364
        %v6366 = vpop.f32.mrf.mxu0
        %v6367 = vadd.f32 %v6278, %v6366
        %6368 = vmatmul.bf16.gmra.mxu0 %v3093
        %v6369 = vpop.f32.mrf.mxu0
        %v6370 = vadd.f32 %v6281, %v6369
        %v6371 = vpop.f32.mrf.mxu0
        %v6372 = vadd.f32 %v6283, %v6371
        %6373 = vmatmul.bf16.gmra.mxu0 %v3096
        %v6374 = vpop.f32.mrf.mxu0
        %v6375 = vadd.f32 %v6286, %v6374
        %v6376 = vpop.f32.mrf.mxu0
        %v6377 = vadd.f32 %v6288, %v6376
        %6378 = vmatmul.bf16.gmra.mxu0 %v3099
        %v6379 = vpop.f32.mrf.mxu0
        %v6380 = vadd.f32 %v6291, %v6379
        %v6381 = vpop.f32.mrf.mxu0
        %v6382 = vadd.f32 %v6293, %v6381
        %6383 = vmatmul.bf16.gmra.mxu0 %v3102
        %v6384 = vpop.f32.mrf.mxu0
        %v6385 = vadd.f32 %v6296, %v6384
        %v6386 = vpop.f32.mrf.mxu0
        %v6387 = vadd.f32 %v6298, %v6386
        %6388 = vmatmul.bf16.gmra.mxu0 %v3105
        %v6389 = vpop.f32.mrf.mxu0
        %v6390 = vadd.f32 %v6301, %v6389
        %v6391 = vpop.f32.mrf.mxu0
        %v6392 = vadd.f32 %v6303, %v6391
        %6393 = vmatmul.bf16.gmra.mxu0 %v3108
        %v6394 = vpop.f32.mrf.mxu0
        %v6395 = vadd.f32 %v6306, %v6394
        %v6396 = vpop.f32.mrf.mxu0
        %v6397 = vadd.f32 %v6308, %v6396
        %6398 = vmatmul.bf16.gmra.mxu0 %v3111
        %v6399 = vpop.f32.mrf.mxu0
        %v6400 = vadd.f32 %v6311, %v6399
        %v6401 = vpop.f32.mrf.mxu0
        %v6402 = vadd.f32 %v6313, %v6401
        %6403 = vdwg.mxu0
        %6404 = vmatpush.bf16.msra.mxu0 0
        %6405 = vmatpush.bf16.msra.mxu0 0
        %6406 = vmatpush.bf16.msra.mxu0 0
        %6407 = vmatpush.bf16.msra.mxu0 0
        %6408 = vmatpush.bf16.msra.mxu0 0
        %6409 = vmatpush.bf16.msra.mxu0 0
        %6410 = vmatpush.bf16.msra.mxu0 %v6062
        %6411 = vmatpush.bf16.msra.mxu0 %v6061
        %6412 = vmatmul.bf16.gmra.mxu0 %v6090
        %v6413 = vpop.f32.mrf.mxu0
        %v6414 = vadd.f32 %v6325, %v6413
        %v6415 = vpop.f32.mrf.mxu0
        %v6416 = vadd.f32 %v6327, %v6415
        %6417 = vmatmul.bf16.gmra.mxu0 %v6093
        %v6418 = vpop.f32.mrf.mxu0
        %v6419 = vadd.f32 %v6330, %v6418
        %v6420 = vpop.f32.mrf.mxu0
        %v6421 = vadd.f32 %v6332, %v6420
        %6422 = vmatmul.bf16.gmra.mxu0 %v6096
        %v6423 = vpop.f32.mrf.mxu0
        %v6424 = vadd.f32 %v6335, %v6423
        %v6425 = vpop.f32.mrf.mxu0
        %v6426 = vadd.f32 %v6337, %v6425
        %6427 = vmatmul.bf16.gmra.mxu0 %v6099
        %v6428 = vpop.f32.mrf.mxu0
        %v6429 = vadd.f32 %v6340, %v6428
        %v6430 = vpop.f32.mrf.mxu0
        %v6431 = vadd.f32 %v6342, %v6430
        %6432 = vmatmul.bf16.gmra.mxu0 %v6102
        %v6433 = vpop.f32.mrf.mxu0
        %v6434 = vadd.f32 %v6345, %v6433
        %v6435 = vpop.f32.mrf.mxu0
        %v6436 = vadd.f32 %v6347, %v6435
        %6437 = vmatmul.bf16.gmra.mxu0 %v6105
        %v6438 = vpop.f32.mrf.mxu0
        %v6439 = vadd.f32 %v6350, %v6438
        %v6440 = vpop.f32.mrf.mxu0
        %v6441 = vadd.f32 %v6352, %v6440
        %6442 = vmatmul.bf16.gmra.mxu0 %v6108
        %v6443 = vpop.f32.mrf.mxu0
        %v6444 = vadd.f32 %v6355, %v6443
        %v6445 = vpop.f32.mrf.mxu0
        %v6446 = vadd.f32 %v6357, %v6445
        %6447 = vmatmul.bf16.gmra.mxu0 %v6111
        %v6448 = vpop.f32.mrf.mxu0
        %v6449 = vadd.f32 %v6360, %v6448
        %v6450 = vpop.f32.mrf.mxu0
        %v6451 = vadd.f32 %v6362, %v6450
        %6452 = vmatmul.bf16.gmra.mxu0 %v6114
        %v6453 = vpop.f32.mrf.mxu0
        %v6454 = vadd.f32 %v6365, %v6453
        %v6455 = vpop.f32.mrf.mxu0
        %v6456 = vadd.f32 %v6367, %v6455
        %6457 = vmatmul.bf16.gmra.mxu0 %v6117
        %v6458 = vpop.f32.mrf.mxu0
        %v6459 = vadd.f32 %v6370, %v6458
        %v6460 = vpop.f32.mrf.mxu0
        %v6461 = vadd.f32 %v6372, %v6460
        %6462 = vmatmul.bf16.gmra.mxu0 %v6120
        %v6463 = vpop.f32.mrf.mxu0
        %v6464 = vadd.f32 %v6375, %v6463
        %v6465 = vpop.f32.mrf.mxu0
        %v6466 = vadd.f32 %v6377, %v6465
        %6467 = vmatmul.bf16.gmra.mxu0 %v6123
        %v6468 = vpop.f32.mrf.mxu0
        %v6469 = vadd.f32 %v6380, %v6468
        %v6470 = vpop.f32.mrf.mxu0
        %v6471 = vadd.f32 %v6382, %v6470
        %6472 = vmatmul.bf16.gmra.mxu0 %v6126
        %v6473 = vpop.f32.mrf.mxu0
        %v6474 = vadd.f32 %v6385, %v6473
        %v6475 = vpop.f32.mrf.mxu0
        %v6476 = vadd.f32 %v6387, %v6475
        %6477 = vmatmul.bf16.gmra.mxu0 %v6129
        %v6478 = vpop.f32.mrf.mxu0
        %v6479 = vadd.f32 %v6390, %v6478
        %v6480 = vpop.f32.mrf.mxu0
        %v6481 = vadd.f32 %v6392, %v6480
        %6482 = vmatmul.bf16.gmra.mxu0 %v6132
        %v6483 = vpop.f32.mrf.mxu0
        %v6484 = vadd.f32 %v6395, %v6483
        %v6485 = vpop.f32.mrf.mxu0
        %v6486 = vadd.f32 %v6397, %v6485
        %6487 = vmatmul.bf16.gmra.mxu0 %v6135
        %v6488 = vpop.f32.mrf.mxu0
        %v6489 = vadd.f32 %v6400, %v6488
        %v6490 = vpop.f32.mrf.mxu0
        %v6491 = vadd.f32 %v6402, %v6490
        %6492 = vdwg.mxu0
        %6493 = vmatpush.bf16.msra.mxu0 %v4986
        %6494 = vmatpush.bf16.msra.mxu0 %v4983
        %6495 = vmatpush.bf16.msra.mxu0 %v4980
        %6496 = vmatpush.bf16.msra.mxu0 %v4977
        %6497 = vmatpush.bf16.msra.mxu0 %v4974
        %6498 = vmatpush.bf16.msra.mxu0 %v4971
        %6499 = vmatpush.bf16.msra.mxu0 %v4968
        %6500 = vmatpush.bf16.msra.mxu0 %v4965
        %6501 = vmatmul.bf16.gmra.mxu0 1065369472
        %v6502 = vpop.f32.mrf.mxu0
        %v6503 = vadd.f32 0.0, %v6502
        %v6504 = vpop.f32.mrf.mxu0
        %6505 = vdwg.mxu0
        %6506 = vmatpush.bf16.msra.mxu0 %v5010
        %6507 = vmatpush.bf16.msra.mxu0 %v5007
        %6508 = vmatpush.bf16.msra.mxu0 %v5004
        %6509 = vmatpush.bf16.msra.mxu0 %v5001
        %6510 = vmatpush.bf16.msra.mxu0 %v4998
        %6511 = vmatpush.bf16.msra.mxu0 %v4995
        %6512 = vmatpush.bf16.msra.mxu0 %v4992
        %6513 = vmatpush.bf16.msra.mxu0 %v4989
        %6514 = vmatmul.bf16.gmra.mxu0 1065369472
        %v6515 = vpop.f32.mrf.mxu0
        %v6516 = vadd.f32 %v6503, %v6515
        %v6517 = vpop.f32.mrf.mxu0
        %6518 = vdwg.mxu0
        %6519 = vmatpush.bf16.msra.mxu0 %v5114
        %6520 = vmatpush.bf16.msra.mxu0 %v5111
        %6521 = vmatpush.bf16.msra.mxu0 %v5108
        %6522 = vmatpush.bf16.msra.mxu0 %v5105
        %6523 = vmatpush.bf16.msra.mxu0 %v5102
        %6524 = vmatpush.bf16.msra.mxu0 %v5099
        %6525 = vmatpush.bf16.msra.mxu0 %v5096
        %6526 = vmatpush.bf16.msra.mxu0 %v5093
        %6527 = vmatmul.bf16.gmra.mxu0 1065369472
        %v6528 = vpop.f32.mrf.mxu0
        %v6529 = vadd.f32 0.0, %v6528
        %v6530 = vpop.f32.mrf.mxu0
        %6531 = vdwg.mxu0
        %6532 = vmatpush.bf16.msra.mxu0 %v5138
        %6533 = vmatpush.bf16.msra.mxu0 %v5135
        %6534 = vmatpush.bf16.msra.mxu0 %v5132
        %6535 = vmatpush.bf16.msra.mxu0 %v5129
        %6536 = vmatpush.bf16.msra.mxu0 %v5126
        %6537 = vmatpush.bf16.msra.mxu0 %v5123
        %6538 = vmatpush.bf16.msra.mxu0 %v5120
        %6539 = vmatpush.bf16.msra.mxu0 %v5117
        %6540 = vmatmul.bf16.gmra.mxu0 1065369472
        %v6541 = vpop.f32.mrf.mxu0
        %v6542 = vadd.f32 %v6529, %v6541
        %v6543 = vpop.f32.mrf.mxu0
        %6544 = vdwg.mxu0
        %6545 = vmatpush.bf16.msra.mxu0 %v5242
        %6546 = vmatpush.bf16.msra.mxu0 %v5239
        %6547 = vmatpush.bf16.msra.mxu0 %v5236
        %6548 = vmatpush.bf16.msra.mxu0 %v5233
        %6549 = vmatpush.bf16.msra.mxu0 %v5230
        %6550 = vmatpush.bf16.msra.mxu0 %v5227
        %6551 = vmatpush.bf16.msra.mxu0 %v5224
        %6552 = vmatpush.bf16.msra.mxu0 %v5221
        %6553 = vmatmul.bf16.gmra.mxu0 1065369472
        %v6554 = vpop.f32.mrf.mxu0
        %v6555 = vadd.f32 0.0, %v6554
        %v6556 = vpop.f32.mrf.mxu0
        %6557 = vdwg.mxu0
        %6558 = vmatpush.bf16.msra.mxu0 %v5266
        %6559 = vmatpush.bf16.msra.mxu0 %v5263
        %6560 = vmatpush.bf16.msra.mxu0 %v5260
        %6561 = vmatpush.bf16.msra.mxu0 %v5257
        %6562 = vmatpush.bf16.msra.mxu0 %v5254
        %6563 = vmatpush.bf16.msra.mxu0 %v5251
        %6564 = vmatpush.bf16.msra.mxu0 %v5248
        %6565 = vmatpush.bf16.msra.mxu0 %v5245
        %6566 = vmatmul.bf16.gmra.mxu0 1065369472
        %v6567 = vpop.f32.mrf.mxu0
        %v6568 = vadd.f32 %v6555, %v6567
        %v6569 = vpop.f32.mrf.mxu0
        %6570 = vdwg.mxu0
        %6571 = vmatpush.bf16.msra.mxu0 %v4859
        %6572 = vmatpush.bf16.msra.mxu0 %v4858
        %6573 = vmatpush.bf16.msra.mxu0 %v4857
        %6574 = vmatpush.bf16.msra.mxu0 %v4856
        %6575 = vmatpush.bf16.msra.mxu0 %v4855
        %6576 = vmatpush.bf16.msra.mxu0 %v4854
        %6577 = vmatpush.bf16.msra.mxu0 %v4853
        %6578 = vmatpush.bf16.msra.mxu0 %v4852
        %6579 = vmatmul.bf16.gmra.mxu0 1065369472
        %v6580 = vpop.f32.mrf.mxu0
        %v6581 = vadd.f32 0.0, %v6580
        %v6582 = vpop.f32.mrf.mxu0
        %6583 = vdwg.mxu0
        %6584 = vmatpush.bf16.msra.mxu0 %v4867
        %6585 = vmatpush.bf16.msra.mxu0 %v4866
        %6586 = vmatpush.bf16.msra.mxu0 %v4865
        %6587 = vmatpush.bf16.msra.mxu0 %v4864
        %6588 = vmatpush.bf16.msra.mxu0 %v4863
        %6589 = vmatpush.bf16.msra.mxu0 %v4862
        %6590 = vmatpush.bf16.msra.mxu0 %v4861
        %6591 = vmatpush.bf16.msra.mxu0 %v4860
        %6592 = vmatmul.bf16.gmra.mxu0 1065369472
        %v6593 = vpop.f32.mrf.mxu0
        %v6594 = vadd.f32 %v6581, %v6593
        %v6595 = vpop.f32.mrf.mxu0
        %6596 = vdwg.mxu0
        %6597 = vmatpush.bf16.msra.mxu0 %v2831
        %6598 = vmatpush.bf16.msra.mxu0 %v2828
        %6599 = vmatpush.bf16.msra.mxu0 %v2825
        %6600 = vmatpush.bf16.msra.mxu0 %v2822
        %6601 = vmatpush.bf16.msra.mxu0 %v2819
        %6602 = vmatpush.bf16.msra.mxu0 %v2816
        %6603 = vmatpush.bf16.msra.mxu0 %v2813
        %6604 = vmatpush.bf16.msra.mxu0 %v2810
        %6605 = vmatmul.bf16.gmra.mxu0 1065369472
        %v6606 = vpop.f32.mrf.mxu0
        %v6607 = vadd.f32 0.0, %v6606
        %v6608 = vpop.f32.mrf.mxu0
        %6609 = vdwg.mxu0
        %6610 = vmatpush.bf16.msra.mxu0 %v2855
        %6611 = vmatpush.bf16.msra.mxu0 %v2852
        %6612 = vmatpush.bf16.msra.mxu0 %v2849
        %6613 = vmatpush.bf16.msra.mxu0 %v2846
        %6614 = vmatpush.bf16.msra.mxu0 %v2843
        %6615 = vmatpush.bf16.msra.mxu0 %v2840
        %6616 = vmatpush.bf16.msra.mxu0 %v2837
        %6617 = vmatpush.bf16.msra.mxu0 %v2834
        %6618 = vmatmul.bf16.gmra.mxu0 1065369472
        %v6619 = vpop.f32.mrf.mxu0
        %v6620 = vadd.f32 %v6607, %v6619
        %v6621 = vpop.f32.mrf.mxu0
        %6622 = vdwg.mxu0
        %6623 = vmatpush.bf16.msra.mxu0 %v2959
        %6624 = vmatpush.bf16.msra.mxu0 %v2956
        %6625 = vmatpush.bf16.msra.mxu0 %v2953
        %6626 = vmatpush.bf16.msra.mxu0 %v2950
        %6627 = vmatpush.bf16.msra.mxu0 %v2947
        %6628 = vmatpush.bf16.msra.mxu0 %v2944
        %6629 = vmatpush.bf16.msra.mxu0 %v2941
        %6630 = vmatpush.bf16.msra.mxu0 %v2938
        %6631 = vmatmul.bf16.gmra.mxu0 1065369472
        %v6632 = vpop.f32.mrf.mxu0
        %v6633 = vadd.f32 0.0, %v6632
        %v6634 = vpop.f32.mrf.mxu0
        %6635 = vdwg.mxu0
        %6636 = vmatpush.bf16.msra.mxu0 %v2983
        %6637 = vmatpush.bf16.msra.mxu0 %v2980
        %6638 = vmatpush.bf16.msra.mxu0 %v2977
        %6639 = vmatpush.bf16.msra.mxu0 %v2974
        %6640 = vmatpush.bf16.msra.mxu0 %v2971
        %6641 = vmatpush.bf16.msra.mxu0 %v2968
        %6642 = vmatpush.bf16.msra.mxu0 %v2965
        %6643 = vmatpush.bf16.msra.mxu0 %v2962
        %6644 = vmatmul.bf16.gmra.mxu0 1065369472
        %v6645 = vpop.f32.mrf.mxu0
        %v6646 = vadd.f32 %v6633, %v6645
        %v6647 = vpop.f32.mrf.mxu0
        %6648 = vdwg.mxu0
        %6649 = vmatpush.bf16.msra.mxu0 %v3087
        %6650 = vmatpush.bf16.msra.mxu0 %v3084
        %6651 = vmatpush.bf16.msra.mxu0 %v3081
        %6652 = vmatpush.bf16.msra.mxu0 %v3078
        %6653 = vmatpush.bf16.msra.mxu0 %v3075
        %6654 = vmatpush.bf16.msra.mxu0 %v3072
        %6655 = vmatpush.bf16.msra.mxu0 %v3069
        %6656 = vmatpush.bf16.msra.mxu0 %v3066
        %6657 = vmatmul.bf16.gmra.mxu0 1065369472
        %v6658 = vpop.f32.mrf.mxu0
        %v6659 = vadd.f32 0.0, %v6658
        %v6660 = vpop.f32.mrf.mxu0
        %6661 = vdwg.mxu0
        %6662 = vmatpush.bf16.msra.mxu0 %v3111
        %6663 = vmatpush.bf16.msra.mxu0 %v3108
        %6664 = vmatpush.bf16.msra.mxu0 %v3105
        %6665 = vmatpush.bf16.msra.mxu0 %v3102
        %6666 = vmatpush.bf16.msra.mxu0 %v3099
        %6667 = vmatpush.bf16.msra.mxu0 %v3096
        %6668 = vmatpush.bf16.msra.mxu0 %v3093
        %6669 = vmatpush.bf16.msra.mxu0 %v3090
        %6670 = vmatmul.bf16.gmra.mxu0 1065369472
        %v6671 = vpop.f32.mrf.mxu0
        %v6672 = vadd.f32 %v6659, %v6671
        %v6673 = vpop.f32.mrf.mxu0
        %6674 = vdwg.mxu0
        %6675 = vmatpush.bf16.msra.mxu0 %v2701
        %6676 = vmatpush.bf16.msra.mxu0 %v2700
        %6677 = vmatpush.bf16.msra.mxu0 %v2699
        %6678 = vmatpush.bf16.msra.mxu0 %v2698
        %6679 = vmatpush.bf16.msra.mxu0 %v2697
        %6680 = vmatpush.bf16.msra.mxu0 %v2696
        %6681 = vmatpush.bf16.msra.mxu0 %v2695
        %6682 = vmatpush.bf16.msra.mxu0 %v2694
        %6683 = vmatmul.bf16.gmra.mxu0 1065369472
        %v6684 = vpop.f32.mrf.mxu0
        %v6685 = vadd.f32 0.0, %v6684
        %v6686 = vpop.f32.mrf.mxu0
        %6687 = vdwg.mxu0
        %6688 = vmatpush.bf16.msra.mxu0 %v2709
        %6689 = vmatpush.bf16.msra.mxu0 %v2708
        %6690 = vmatpush.bf16.msra.mxu0 %v2707
        %6691 = vmatpush.bf16.msra.mxu0 %v2706
        %6692 = vmatpush.bf16.msra.mxu0 %v2705
        %6693 = vmatpush.bf16.msra.mxu0 %v2704
        %6694 = vmatpush.bf16.msra.mxu0 %v2703
        %6695 = vmatpush.bf16.msra.mxu0 %v2702
        %6696 = vmatmul.bf16.gmra.mxu0 1065369472
        %v6697 = vpop.f32.mrf.mxu0
        %v6698 = vadd.f32 %v6685, %v6697
        %v6699 = vpop.f32.mrf.mxu0
        %6700 = vdwg.mxu0
        %v6701 = vpack.c.bf16 %v6516, %v6516
        %v6702 = vpack.c.bf16 %v6542, %v6542
        %v6703 = vpack.c.bf16 %v6568, %v6568
        %v6704 = vpack.c.bf16 %v6594, %v6594
        %v6706 = vsel %vm2726, %v6704, 0
        %6708 = vmatpush.bf16.msra.mxu0 %v5431
        %6709 = vmatpush.bf16.msra.mxu0 %v5430
        %6710 = vmatpush.bf16.msra.mxu0 %v5429
        %6711 = vmatpush.bf16.msra.mxu0 %v5428
        %6712 = vmatpush.bf16.msra.mxu0 %v5427
        %6713 = vmatpush.bf16.msra.mxu0 %v5426
        %6714 = vmatpush.bf16.msra.mxu0 %v5425
        %6715 = vmatpush.bf16.msra.mxu0 %v5424
        %6716 = vmatmul.bf16.gmra.mxu0 %v6701
        %v6717 = vpop.f32.mrf.mxu0
        %v6718 = vadd.f32 0.0, %v6717
        %v6719 = vpop.f32.mrf.mxu0
        %6720 = vdwg.mxu0
        %6721 = vmatpush.bf16.msra.mxu0 %v5439
        %6722 = vmatpush.bf16.msra.mxu0 %v5438
        %6723 = vmatpush.bf16.msra.mxu0 %v5437
        %6724 = vmatpush.bf16.msra.mxu0 %v5436
        %6725 = vmatpush.bf16.msra.mxu0 %v5435
        %6726 = vmatpush.bf16.msra.mxu0 %v5434
        %6727 = vmatpush.bf16.msra.mxu0 %v5433
        %6728 = vmatpush.bf16.msra.mxu0 %v5432
        %6729 = vmatmul.bf16.gmra.mxu0 %v6702
        %v6730 = vpop.f32.mrf.mxu0
        %v6731 = vadd.f32 %v6718, %v6730
        %v6732 = vpop.f32.mrf.mxu0
        %6733 = vdwg.mxu0
        %6734 = vmatpush.bf16.msra.mxu0 %v5447
        %6735 = vmatpush.bf16.msra.mxu0 %v5446
        %6736 = vmatpush.bf16.msra.mxu0 %v5445
        %6737 = vmatpush.bf16.msra.mxu0 %v5444
        %6738 = vmatpush.bf16.msra.mxu0 %v5443
        %6739 = vmatpush.bf16.msra.mxu0 %v5442
        %6740 = vmatpush.bf16.msra.mxu0 %v5441
        %6741 = vmatpush.bf16.msra.mxu0 %v5440
        %6742 = vmatmul.bf16.gmra.mxu0 %v6703
        %v6743 = vpop.f32.mrf.mxu0
        %v6744 = vadd.f32 %v6731, %v6743
        %v6745 = vpop.f32.mrf.mxu0
        %6746 = vdwg.mxu0
        %6747 = vmatpush.bf16.msra.mxu0 0
        %6748 = vmatpush.bf16.msra.mxu0 0
        %6749 = vmatpush.bf16.msra.mxu0 0
        %6750 = vmatpush.bf16.msra.mxu0 0
        %6751 = vmatpush.bf16.msra.mxu0 0
        %6752 = vmatpush.bf16.msra.mxu0 0
        %6753 = vmatpush.bf16.msra.mxu0 %v5449
        %6754 = vmatpush.bf16.msra.mxu0 %v5448
        %6755 = vmatmul.bf16.gmra.mxu0 %v6706
        %v6756 = vpop.f32.mrf.mxu0
        %v6757 = vadd.f32 %v6744, %v6756
        %v6758 = vpop.f32.mrf.mxu0
        %6759 = vdwg.mxu0
        %v6760 = vpack.c.bf16 %v6620, %v6620
        %v6761 = vpack.c.bf16 %v6646, %v6646
        %v6762 = vpack.c.bf16 %v6672, %v6672
        %v6763 = vpack.c.bf16 %v6698, %v6698
        %v6765 = vsel %vm2726, %v6763, 0
        %6767 = vmatpush.bf16.msra.mxu0 %v6044
        %6768 = vmatpush.bf16.msra.mxu0 %v6043
        %6769 = vmatpush.bf16.msra.mxu0 %v6042
        %6770 = vmatpush.bf16.msra.mxu0 %v6041
        %6771 = vmatpush.bf16.msra.mxu0 %v6040
        %6772 = vmatpush.bf16.msra.mxu0 %v6039
        %6773 = vmatpush.bf16.msra.mxu0 %v6038
        %6774 = vmatpush.bf16.msra.mxu0 %v6037
        %6775 = vmatmul.bf16.gmra.mxu0 %v6760
        %v6776 = vpop.f32.mrf.mxu0
        %v6777 = vadd.f32 0.0, %v6776
        %v6778 = vpop.f32.mrf.mxu0
        %6779 = vdwg.mxu0
        %6780 = vmatpush.bf16.msra.mxu0 %v6052
        %6781 = vmatpush.bf16.msra.mxu0 %v6051
        %6782 = vmatpush.bf16.msra.mxu0 %v6050
        %6783 = vmatpush.bf16.msra.mxu0 %v6049
        %6784 = vmatpush.bf16.msra.mxu0 %v6048
        %6785 = vmatpush.bf16.msra.mxu0 %v6047
        %6786 = vmatpush.bf16.msra.mxu0 %v6046
        %6787 = vmatpush.bf16.msra.mxu0 %v6045
        %6788 = vmatmul.bf16.gmra.mxu0 %v6761
        %v6789 = vpop.f32.mrf.mxu0
        %v6790 = vadd.f32 %v6777, %v6789
        %v6791 = vpop.f32.mrf.mxu0
        %6792 = vdwg.mxu0
        %6793 = vmatpush.bf16.msra.mxu0 %v6060
        %6794 = vmatpush.bf16.msra.mxu0 %v6059
        %6795 = vmatpush.bf16.msra.mxu0 %v6058
        %6796 = vmatpush.bf16.msra.mxu0 %v6057
        %6797 = vmatpush.bf16.msra.mxu0 %v6056
        %6798 = vmatpush.bf16.msra.mxu0 %v6055
        %6799 = vmatpush.bf16.msra.mxu0 %v6054
        %6800 = vmatpush.bf16.msra.mxu0 %v6053
        %6801 = vmatmul.bf16.gmra.mxu0 %v6762
        %v6802 = vpop.f32.mrf.mxu0
        %v6803 = vadd.f32 %v6790, %v6802
        %v6804 = vpop.f32.mrf.mxu0
        %6805 = vdwg.mxu0
        %6806 = vmatpush.bf16.msra.mxu0 0
        %6807 = vmatpush.bf16.msra.mxu0 0
        %6808 = vmatpush.bf16.msra.mxu0 0
        %6809 = vmatpush.bf16.msra.mxu0 0
        %6810 = vmatpush.bf16.msra.mxu0 0
        %6811 = vmatpush.bf16.msra.mxu0 0
        %6812 = vmatpush.bf16.msra.mxu0 %v6062
        %6813 = vmatpush.bf16.msra.mxu0 %v6061
        %6814 = vmatmul.bf16.gmra.mxu0 %v6765
        %v6815 = vpop.f32.mrf.mxu0
        %v6816 = vadd.f32 %v6803, %v6815
        %v6817 = vpop.f32.mrf.mxu0
        %6818 = vdwg.mxu0
        %v6819 = vld [vmem:[%s2] sm:$0xff]
        %v6820 = vld [vmem:[%s2 + $0x8] sm:$0xff]
        %v6821 = vld [vmem:[%s2 + $0x10] sm:$0xff]
        %v6822 = vld [vmem:[%s2 + $0x18] sm:$0xff]
        %v6823 = vld [vmem:[%s2 + $0x20] sm:$0xff]
        %v6824 = vld [vmem:[%s2 + $0x28] sm:$0xff]
        %v6825 = vld [vmem:[%s2 + $0x30] sm:$0xff]
        %v6826 = vld [vmem:[%s2 + $0x38] sm:$0xff]
        %v6827 = vld [vmem:[%s2 + $0x40] sm:$0xff]
        %v6828 = vld [vmem:[%s2 + $0x48] sm:$0xff]
        %v6829 = vld [vmem:[%s2 + $0x50] sm:$0xff]
        %v6830 = vld [vmem:[%s2 + $0x58] sm:$0xff]
        %v6831 = vld [vmem:[%s2 + $0x60] sm:$0xff]
        %v6832 = vld [vmem:[%s2 + $0x68] sm:$0xff]
        %v6833 = vld [vmem:[%s2 + $0x70] sm:$0xff]
        %v6834 = vld [vmem:[%s2 + $0x78] sm:$0xff]
        %v6835 = vld [vmem:[%s2 + $0x80] sm:$0xff]
        %v6836 = vld [vmem:[%s2 + $0x88] sm:$0xff]
        %v6837 = vld [vmem:[%s2 + $0x90] sm:$0xff]
        %v6838 = vld [vmem:[%s2 + $0x98] sm:$0xff]
        %v6839 = vld [vmem:[%s2 + $0xa0] sm:$0xff]
        %v6840 = vld [vmem:[%s2 + $0xa8] sm:$0xff]
        %v6841 = vld [vmem:[%s2 + $0xb0] sm:$0xff]
        %v6842 = vld [vmem:[%s2 + $0xb8] sm:$0xff]
        %v6843 = vld [vmem:[%s2 + $0xc0] sm:$0xff]
        %v6844 = vld [vmem:[%s2 + $0xc8] sm:$0xff]
        %v6845 = vld [vmem:[%s2 + $0xd0] sm:$0xff]
        %v6846 = vld [vmem:[%s2 + $0xd8] sm:$0xff]
        %v6847 = vld [vmem:[%s2 + $0xe0] sm:$0xff]
        %v6848 = vld [vmem:[%s2 + $0xe8] sm:$0xff]
        %v6849 = vld [vmem:[%s2 + $0xf0] sm:$0xff]
        %v6850 = vld [vmem:[%s2 + $0xf8] sm:$0xff]
        %6851 = vmatpush.msra.mxu0 %v6834
        %6852 = vmatpush.msra.mxu0 %v6833
        %6853 = vmatpush.msra.mxu0 %v6832
        %6854 = vmatpush.msra.mxu0 %v6831
        %6855 = vmatpush.msra.mxu0 %v6830
        %6856 = vmatpush.msra.mxu0 %v6829
        %6857 = vmatpush.msra.mxu0 %v6828
        %6858 = vmatpush.msra.mxu0 %v6827
        %6859 = vmatpush.msra.mxu0 %v6826
        %6860 = vmatpush.msra.mxu0 %v6825
        %6861 = vmatpush.msra.mxu0 %v6824
        %6862 = vmatpush.msra.mxu0 %v6823
        %6863 = vmatpush.msra.mxu0 %v6822
        %6864 = vmatpush.msra.mxu0 %v6821
        %6865 = vmatpush.msra.mxu0 %v6820
        %6866 = vmatpush.msra.mxu0 %v6819
        %6867 = vmatmul.f32.gmra.mxu0 %v6757
        %v6868 = vpop.f32.mrf.mxu0
        %v6869 = vadd.f32 0.0, %v6868
        %6870 = vdwg.mxu0
        %6871 = vmatpush.msra.mxu0 %v6850
        %6872 = vmatpush.msra.mxu0 %v6849
        %6873 = vmatpush.msra.mxu0 %v6848
        %6874 = vmatpush.msra.mxu0 %v6847
        %6875 = vmatpush.msra.mxu0 %v6846
        %6876 = vmatpush.msra.mxu0 %v6845
        %6877 = vmatpush.msra.mxu0 %v6844
        %6878 = vmatpush.msra.mxu0 %v6843
        %6879 = vmatpush.msra.mxu0 %v6842
        %6880 = vmatpush.msra.mxu0 %v6841
        %6881 = vmatpush.msra.mxu0 %v6840
        %6882 = vmatpush.msra.mxu0 %v6839
        %6883 = vmatpush.msra.mxu0 %v6838
        %6884 = vmatpush.msra.mxu0 %v6837
        %6885 = vmatpush.msra.mxu0 %v6836
        %6886 = vmatpush.msra.mxu0 %v6835
        %6887 = vmatmul.f32.gmra.mxu0 %v6816
        %v6888 = vpop.f32.mrf.mxu0
        %v6889 = vadd.f32 %v6869, %v6888
        %6890 = vdwg.mxu0
        %v6891 = vmax.f32 %v6889, 0.0
        %v6892 = vld [vmem:[%s3] sm:$0xff]
        %v6893 = vld [vmem:[%s3 + $0x8] sm:$0xff]
        %v6894 = vld [vmem:[%s3 + $0x10] sm:$0xf]
        %v6895 = vld [vmem:[%s3 + $0x18] sm:$0xf]
        %vm6896 = vcmask 97280
        %v6898 = vsel %vm6896, %v6891, 0
        %vm6900 = vcmask 1043456
        %v6902 = vsel %vm6900, %v6894, 0
        %v6905 = vsel %vm6900, %v6895, 0
        %6907 = vmatpush.msra.mxu0 0.0
        %6908 = vmatpush.msra.mxu0 0.0
        %6909 = vmatpush.msra.mxu0 0.0
        %6910 = vmatpush.msra.mxu0 0.0
        %6911 = vmatpush.msra.mxu0 0.0
        %6912 = vmatpush.msra.mxu0 0.0
        %6913 = vmatpush.msra.mxu0 0.0
        %6914 = vmatpush.msra.mxu0 0.0
        %6915 = vmatpush.msra.mxu0 0.0
        %6916 = vmatpush.msra.mxu0 0.0
        %6917 = vmatpush.msra.mxu0 0.0
        %6918 = vmatpush.msra.mxu0 0.0
        %6919 = vmatpush.msra.mxu0 0.0
        %6920 = vmatpush.msra.mxu0 0.0
        %6921 = vmatpush.msra.mxu0 %v6902
        %6922 = vmatpush.msra.mxu0 %v6892
        %6923 = vmatmul.f32.gmra.mxu0 %v6898
        %v6924 = vpop.f32.mrf.mxu0
        %v6925 = vadd.f32 0.0, %v6924
        %6926 = vdwg.mxu0
        %6927 = vmatpush.msra.mxu0 0.0
        %6928 = vmatpush.msra.mxu0 0.0
        %6929 = vmatpush.msra.mxu0 0.0
        %6930 = vmatpush.msra.mxu0 0.0
        %6931 = vmatpush.msra.mxu0 0.0
        %6932 = vmatpush.msra.mxu0 0.0
        %6933 = vmatpush.msra.mxu0 0.0
        %6934 = vmatpush.msra.mxu0 0.0
        %6935 = vmatpush.msra.mxu0 0.0
        %6936 = vmatpush.msra.mxu0 0.0
        %6937 = vmatpush.msra.mxu0 0.0
        %6938 = vmatpush.msra.mxu0 0.0
        %6939 = vmatpush.msra.mxu0 0.0
        %6940 = vmatpush.msra.mxu0 0.0
        %6941 = vmatpush.msra.mxu0 %v6905
        %6942 = vmatpush.msra.mxu0 %v6893
        %6943 = vmatmul.f32.gmra.mxu0 %v6898
        %v6944 = vpop.f32.mrf.mxu0
        %v6945 = vadd.f32 0.0, %v6944
        %6946 = vdwg.mxu0
        %v6947 = vsub.f32 0.0, %v6925
        %v6948 = vsub.f32 0.0, %v6945
        %v6949 = vmul.f32 %v6947, 1.442695
        %v6950 = vpow.pop %v6949
        %v6951 = vmul.f32 %v6948, 1.442695
        %v6952 = vpow.pop %v6951
        %v6953 = vadd.f32 %v6950, 1.0
        %v6954 = vadd.f32 %v6952, 1.0
        %v6955 = vrcp.pop %v6953
        %v6956 = vmul.f32 %v6953, %v6955
        %v6957 = vsub.f32 1.0, %v6956
        %v6958 = vmul.f32 %v6955, %v6957
        %v6959 = vadd.f32 %v6955, %v6958
        %vm6960 = vweird.f32 %v6953
        %vm6961 = vweird.f32 %v6955
        %vm6962 = vmor %vm6960, %vm6961
        %v6963 = vsel %vm6962, %v6955, %v6959
        %v6964 = vand.u32 2147483647, %v6953
        %vm6965 = vcmp.eq.f32.partialorder %v6964, 8.507059e+37
        %v6966 = vand.u32 %v6953, 2147483648
        %v6967 = vor.u32 1.1754944e-38, %v6966
        %v6968 = vsel %vm6965, %v6967, %v6963
        %v6969 = vmul.f32 1.0, %v6968
        %v6970 = vrcp.pop %v6954
        %v6971 = vmul.f32 %v6954, %v6970
        %v6972 = vsub.f32 1.0, %v6971
        %v6973 = vmul.f32 %v6970, %v6972
        %v6974 = vadd.f32 %v6970, %v6973
        %vm6975 = vweird.f32 %v6954
        %vm6976 = vweird.f32 %v6970
        %vm6977 = vmor %vm6975, %vm6976
        %v6978 = vsel %vm6977, %v6970, %v6974
        %v6979 = vand.u32 2147483647, %v6954
        %vm6980 = vcmp.eq.f32.partialorder %v6979, 8.507059e+37
        %v6981 = vand.u32 %v6954, 2147483648
        %v6982 = vor.u32 1.1754944e-38, %v6981
        %v6983 = vsel %vm6980, %v6982, %v6978
        %v6984 = vmul.f32 1.0, %v6983
        %v6985 = vsel %vm2808, %v6969, 1.0
        %6988 = vrot.lane.b32.xlu0 %v6969, 32
        %v6989 = vpop.permute.xlu0 %6988
        %6990 = vrot.lane.b32.xlu0 %v6984, 32
        %v6991 = vpop.permute.xlu0 %6990
        %v6992 = vsel %vm2726, %v6989, %v6991
        %v6994 = vsel %vm2808, %v6992, 1.0
        %v6995 = vperm.slane %v6985, 0
        %v6996 = vmul.f32 %v5801, %v6995
        %v6997 = vmul.f32 %v5803, %v6995
        %v6998 = vmul.f32 %v5806, %v6995
        %v6999 = vmul.f32 %v5808, %v6995
        %v7000 = vmul.f32 %v5811, %v6995
        %v7001 = vmul.f32 %v5813, %v6995
        %v7002 = vmul.f32 %v5816, %v6995
        %v7003 = vmul.f32 %v5818, %v6995
        %v7004 = vmul.f32 %v5821, %v6995
        %v7005 = vmul.f32 %v5823, %v6995
        %v7006 = vmul.f32 %v5826, %v6995
        %v7007 = vmul.f32 %v5828, %v6995
        %v7008 = vmul.f32 %v5831, %v6995
        %v7009 = vmul.f32 %v5833, %v6995
        %v7010 = vmul.f32 %v5836, %v6995
        %v7011 = vmul.f32 %v5838, %v6995
        %v7012 = vmul.f32 %v5841, %v6995
        %v7013 = vmul.f32 %v5843, %v6995
        %v7014 = vmul.f32 %v5846, %v6995
        %v7015 = vmul.f32 %v5848, %v6995
        %v7016 = vmul.f32 %v5851, %v6995
        %v7017 = vmul.f32 %v5853, %v6995
        %v7018 = vmul.f32 %v5856, %v6995
        %v7019 = vmul.f32 %v5858, %v6995
        %v7020 = vmul.f32 %v5861, %v6995
        %v7021 = vmul.f32 %v5863, %v6995
        %v7022 = vmul.f32 %v5866, %v6995
        %v7023 = vmul.f32 %v5868, %v6995
        %v7024 = vmul.f32 %v5871, %v6995
        %v7025 = vmul.f32 %v5873, %v6995
        %v7026 = vmul.f32 %v5876, %v6995
        %v7027 = vmul.f32 %v5878, %v6995
        %v7028 = vpack.c.bf16 %v6997, %v6996
        %v7029 = vpack.c.bf16 %v6999, %v6998
        %v7030 = vpack.c.bf16 %v7001, %v7000
        %v7031 = vpack.c.bf16 %v7003, %v7002
        %v7032 = vpack.c.bf16 %v7005, %v7004
        %v7033 = vpack.c.bf16 %v7007, %v7006
        %v7034 = vpack.c.bf16 %v7009, %v7008
        %v7035 = vpack.c.bf16 %v7011, %v7010
        %v7036 = vpack.c.bf16 %v7013, %v7012
        %v7037 = vpack.c.bf16 %v7015, %v7014
        %v7038 = vpack.c.bf16 %v7017, %v7016
        %v7039 = vpack.c.bf16 %v7019, %v7018
        %v7040 = vpack.c.bf16 %v7021, %v7020
        %v7041 = vpack.c.bf16 %v7023, %v7022
        %v7042 = vpack.c.bf16 %v7025, %v7024
        %v7043 = vpack.c.bf16 %v7027, %v7026
        %v7044 = vperm.slane %v6994, 0
        %v7045 = vmul.f32 %v6414, %v7044
        %v7046 = vmul.f32 %v6416, %v7044
        %v7047 = vmul.f32 %v6419, %v7044
        %v7048 = vmul.f32 %v6421, %v7044
        %v7049 = vmul.f32 %v6424, %v7044
        %v7050 = vmul.f32 %v6426, %v7044
        %v7051 = vmul.f32 %v6429, %v7044
        %v7052 = vmul.f32 %v6431, %v7044
        %v7053 = vmul.f32 %v6434, %v7044
        %v7054 = vmul.f32 %v6436, %v7044
        %v7055 = vmul.f32 %v6439, %v7044
        %v7056 = vmul.f32 %v6441, %v7044
        %v7057 = vmul.f32 %v6444, %v7044
        %v7058 = vmul.f32 %v6446, %v7044
        %v7059 = vmul.f32 %v6449, %v7044
        %v7060 = vmul.f32 %v6451, %v7044
        %v7061 = vmul.f32 %v6454, %v7044
        %v7062 = vmul.f32 %v6456, %v7044
        %v7063 = vmul.f32 %v6459, %v7044
        %v7064 = vmul.f32 %v6461, %v7044
        %v7065 = vmul.f32 %v6464, %v7044
        %v7066 = vmul.f32 %v6466, %v7044
        %v7067 = vmul.f32 %v6469, %v7044
        %v7068 = vmul.f32 %v6471, %v7044
        %v7069 = vmul.f32 %v6474, %v7044
        %v7070 = vmul.f32 %v6476, %v7044
        %v7071 = vmul.f32 %v6479, %v7044
        %v7072 = vmul.f32 %v6481, %v7044
        %v7073 = vmul.f32 %v6484, %v7044
        %v7074 = vmul.f32 %v6486, %v7044
        %v7075 = vmul.f32 %v6489, %v7044
        %v7076 = vmul.f32 %v6491, %v7044
        %v7077 = vpack.c.bf16 %v7046, %v7045
        %v7078 = vpack.c.bf16 %v7048, %v7047
        %v7079 = vpack.c.bf16 %v7050, %v7049
        %v7080 = vpack.c.bf16 %v7052, %v7051
        %v7081 = vpack.c.bf16 %v7054, %v7053
        %v7082 = vpack.c.bf16 %v7056, %v7055
        %v7083 = vpack.c.bf16 %v7058, %v7057
        %v7084 = vpack.c.bf16 %v7060, %v7059
        %v7085 = vpack.c.bf16 %v7062, %v7061
        %v7086 = vpack.c.bf16 %v7064, %v7063
        %v7087 = vpack.c.bf16 %v7066, %v7065
        %v7088 = vpack.c.bf16 %v7068, %v7067
        %v7089 = vpack.c.bf16 %v7070, %v7069
        %v7090 = vpack.c.bf16 %v7072, %v7071
        %v7091 = vpack.c.bf16 %v7074, %v7073
        %v7092 = vpack.c.bf16 %v7076, %v7075
        %v7093 = vld [vmem:[%s4] sm:$0xf]
        %v7094 = vld [vmem:[%s4 + $0x4] sm:$0xf]
        %v7095 = vld [vmem:[%s4 + $0x8] sm:$0xf]
        %v7096 = vld [vmem:[%s4 + $0xc] sm:$0xf]
        %v7097 = vld [vmem:[%s4 + $0x10] sm:$0xf]
        %v7098 = vld [vmem:[%s4 + $0x14] sm:$0xf]
        %v7099 = vld [vmem:[%s4 + $0x18] sm:$0xf]
        %v7100 = vld [vmem:[%s4 + $0x1c] sm:$0xf]
        %v7101 = vld [vmem:[%s4 + $0x20] sm:$0xf]
        %v7102 = vld [vmem:[%s4 + $0x24] sm:$0xf]
        %v7103 = vld [vmem:[%s4 + $0x28] sm:$0xf]
        %v7104 = vld [vmem:[%s4 + $0x2c] sm:$0xf]
        %v7105 = vld [vmem:[%s4 + $0x30] sm:$0xf]
        %v7106 = vld [vmem:[%s4 + $0x34] sm:$0xf]
        %v7107 = vld [vmem:[%s4 + $0x38] sm:$0xf]
        %v7108 = vld [vmem:[%s4 + $0x3c] sm:$0xf]
        %v7125 = vunpack.c.l.b16 %v7093
        %v7126 = vunpack.c.l.b16 %v7094
        %v7127 = vunpack.c.l.b16 %v7095
        %v7128 = vunpack.c.l.b16 %v7096
        %v7129 = vunpack.c.l.b16 %v7097
        %v7130 = vunpack.c.l.b16 %v7098
        %v7131 = vunpack.c.l.b16 %v7099
        %v7132 = vunpack.c.l.b16 %v7100
        %v7133 = vunpack.c.l.b16 %v7101
        %v7134 = vunpack.c.l.b16 %v7102
        %v7135 = vunpack.c.l.b16 %v7103
        %v7136 = vunpack.c.l.b16 %v7104
        %v7137 = vunpack.c.l.b16 %v7105
        %v7138 = vunpack.c.l.b16 %v7106
        %v7139 = vunpack.c.l.b16 %v7107
        %v7140 = vunpack.c.l.b16 %v7108
        %v7141 = vpack.c.b16 %v7126, %v7125
        %v7142 = vpack.c.b16 %v7128, %v7127
        %v7143 = vpack.c.b16 %v7130, %v7129
        %v7144 = vpack.c.b16 %v7132, %v7131
        %v7145 = vpack.c.b16 %v7134, %v7133
        %v7146 = vpack.c.b16 %v7136, %v7135
        %v7147 = vpack.c.b16 %v7138, %v7137
        %v7148 = vpack.c.b16 %v7140, %v7139
        %7157 = vmatpush.bf16.msra.mxu0 %v7148
        %7158 = vmatpush.bf16.msra.mxu0 %v7147
        %7159 = vmatpush.bf16.msra.mxu0 %v7146
        %7160 = vmatpush.bf16.msra.mxu0 %v7145
        %7161 = vmatpush.bf16.msra.mxu0 %v7144
        %7162 = vmatpush.bf16.msra.mxu0 %v7143
        %7163 = vmatpush.bf16.msra.mxu0 %v7142
        %7164 = vmatpush.bf16.msra.mxu0 %v7141
        %7165 = vmatmul.bf16.gmra.mxu0 %v7028
        %v7166 = vpop.f32.mrf.mxu0
        %v7167 = vadd.f32 0.0, %v7166
        %v7168 = vpop.f32.mrf.mxu0
        %v7169 = vadd.f32 0.0, %v7168
        %7170 = vmatmul.bf16.gmra.mxu0 %v7029
        %v7171 = vpop.f32.mrf.mxu0
        %v7172 = vadd.f32 0.0, %v7171
        %v7173 = vpop.f32.mrf.mxu0
        %v7174 = vadd.f32 0.0, %v7173
        %7175 = vmatmul.bf16.gmra.mxu0 %v7030
        %v7176 = vpop.f32.mrf.mxu0
        %v7177 = vadd.f32 0.0, %v7176
        %v7178 = vpop.f32.mrf.mxu0
        %v7179 = vadd.f32 0.0, %v7178
        %7180 = vmatmul.bf16.gmra.mxu0 %v7031
        %v7181 = vpop.f32.mrf.mxu0
        %v7182 = vadd.f32 0.0, %v7181
        %v7183 = vpop.f32.mrf.mxu0
        %v7184 = vadd.f32 0.0, %v7183
        %7185 = vmatmul.bf16.gmra.mxu0 %v7032
        %v7186 = vpop.f32.mrf.mxu0
        %v7187 = vadd.f32 0.0, %v7186
        %v7188 = vpop.f32.mrf.mxu0
        %v7189 = vadd.f32 0.0, %v7188
        %7190 = vmatmul.bf16.gmra.mxu0 %v7033
        %v7191 = vpop.f32.mrf.mxu0
        %v7192 = vadd.f32 0.0, %v7191
        %v7193 = vpop.f32.mrf.mxu0
        %v7194 = vadd.f32 0.0, %v7193
        %7195 = vmatmul.bf16.gmra.mxu0 %v7034
        %v7196 = vpop.f32.mrf.mxu0
        %v7197 = vadd.f32 0.0, %v7196
        %v7198 = vpop.f32.mrf.mxu0
        %v7199 = vadd.f32 0.0, %v7198
        %7200 = vmatmul.bf16.gmra.mxu0 %v7035
        %v7201 = vpop.f32.mrf.mxu0
        %v7202 = vadd.f32 0.0, %v7201
        %v7203 = vpop.f32.mrf.mxu0
        %v7204 = vadd.f32 0.0, %v7203
        %7205 = vmatmul.bf16.gmra.mxu0 %v7036
        %v7206 = vpop.f32.mrf.mxu0
        %v7207 = vadd.f32 0.0, %v7206
        %v7208 = vpop.f32.mrf.mxu0
        %v7209 = vadd.f32 0.0, %v7208
        %7210 = vmatmul.bf16.gmra.mxu0 %v7037
        %v7211 = vpop.f32.mrf.mxu0
        %v7212 = vadd.f32 0.0, %v7211
        %v7213 = vpop.f32.mrf.mxu0
        %v7214 = vadd.f32 0.0, %v7213
        %7215 = vmatmul.bf16.gmra.mxu0 %v7038
        %v7216 = vpop.f32.mrf.mxu0
        %v7217 = vadd.f32 0.0, %v7216
        %v7218 = vpop.f32.mrf.mxu0
        %v7219 = vadd.f32 0.0, %v7218
        %7220 = vmatmul.bf16.gmra.mxu0 %v7039
        %v7221 = vpop.f32.mrf.mxu0
        %v7222 = vadd.f32 0.0, %v7221
        %v7223 = vpop.f32.mrf.mxu0
        %v7224 = vadd.f32 0.0, %v7223
        %7225 = vmatmul.bf16.gmra.mxu0 %v7040
        %v7226 = vpop.f32.mrf.mxu0
        %v7227 = vadd.f32 0.0, %v7226
        %v7228 = vpop.f32.mrf.mxu0
        %v7229 = vadd.f32 0.0, %v7228
        %7230 = vmatmul.bf16.gmra.mxu0 %v7041
        %v7231 = vpop.f32.mrf.mxu0
        %v7232 = vadd.f32 0.0, %v7231
        %v7233 = vpop.f32.mrf.mxu0
        %v7234 = vadd.f32 0.0, %v7233
        %7235 = vmatmul.bf16.gmra.mxu0 %v7042
        %v7236 = vpop.f32.mrf.mxu0
        %v7237 = vadd.f32 0.0, %v7236
        %v7238 = vpop.f32.mrf.mxu0
        %v7239 = vadd.f32 0.0, %v7238
        %7240 = vmatmul.bf16.gmra.mxu0 %v7043
        %v7241 = vpop.f32.mrf.mxu0
        %v7242 = vadd.f32 0.0, %v7241
        %v7243 = vpop.f32.mrf.mxu0
        %v7244 = vadd.f32 0.0, %v7243
        %7245 = vdwg.mxu0
        %s7246 = scalar_lea.vmem %s4, 64
        %v7247 = vld [vmem:[%s7246] sm:$0xf]
        %v7248 = vld [vmem:[%s7246 + $0x4] sm:$0xf]
        %v7249 = vld [vmem:[%s7246 + $0x8] sm:$0xf]
        %v7250 = vld [vmem:[%s7246 + $0xc] sm:$0xf]
        %v7251 = vld [vmem:[%s7246 + $0x10] sm:$0xf]
        %v7252 = vld [vmem:[%s7246 + $0x14] sm:$0xf]
        %v7253 = vld [vmem:[%s7246 + $0x18] sm:$0xf]
        %v7254 = vld [vmem:[%s7246 + $0x1c] sm:$0xf]
        %v7255 = vld [vmem:[%s7246 + $0x20] sm:$0xf]
        %v7256 = vld [vmem:[%s7246 + $0x24] sm:$0xf]
        %v7257 = vld [vmem:[%s7246 + $0x28] sm:$0xf]
        %v7258 = vld [vmem:[%s7246 + $0x2c] sm:$0xf]
        %v7259 = vld [vmem:[%s7246 + $0x30] sm:$0xf]
        %v7260 = vld [vmem:[%s7246 + $0x34] sm:$0xf]
        %v7261 = vld [vmem:[%s7246 + $0x38] sm:$0xf]
        %v7262 = vld [vmem:[%s7246 + $0x3c] sm:$0xf]
        %v7279 = vunpack.c.l.b16 %v7247
        %v7280 = vunpack.c.l.b16 %v7248
        %v7281 = vunpack.c.l.b16 %v7249
        %v7282 = vunpack.c.l.b16 %v7250
        %v7283 = vunpack.c.l.b16 %v7251
        %v7284 = vunpack.c.l.b16 %v7252
        %v7285 = vunpack.c.l.b16 %v7253
        %v7286 = vunpack.c.l.b16 %v7254
        %v7287 = vunpack.c.l.b16 %v7255
        %v7288 = vunpack.c.l.b16 %v7256
        %v7289 = vunpack.c.l.b16 %v7257
        %v7290 = vunpack.c.l.b16 %v7258
        %v7291 = vunpack.c.l.b16 %v7259
        %v7292 = vunpack.c.l.b16 %v7260
        %v7293 = vunpack.c.l.b16 %v7261
        %v7294 = vunpack.c.l.b16 %v7262
        %v7295 = vpack.c.b16 %v7280, %v7279
        %v7296 = vpack.c.b16 %v7282, %v7281
        %v7297 = vpack.c.b16 %v7284, %v7283
        %v7298 = vpack.c.b16 %v7286, %v7285
        %v7299 = vpack.c.b16 %v7288, %v7287
        %v7300 = vpack.c.b16 %v7290, %v7289
        %v7301 = vpack.c.b16 %v7292, %v7291
        %v7302 = vpack.c.b16 %v7294, %v7293
        %7311 = vmatpush.bf16.msra.mxu0 %v7302
        %7312 = vmatpush.bf16.msra.mxu0 %v7301
        %7313 = vmatpush.bf16.msra.mxu0 %v7300
        %7314 = vmatpush.bf16.msra.mxu0 %v7299
        %7315 = vmatpush.bf16.msra.mxu0 %v7298
        %7316 = vmatpush.bf16.msra.mxu0 %v7297
        %7317 = vmatpush.bf16.msra.mxu0 %v7296
        %7318 = vmatpush.bf16.msra.mxu0 %v7295
        %7319 = vmatmul.bf16.gmra.mxu0 %v7077
        %v7320 = vpop.f32.mrf.mxu0
        %v7321 = vadd.f32 0.0, %v7320
        %v7322 = vpop.f32.mrf.mxu0
        %v7323 = vadd.f32 0.0, %v7322
        %7324 = vmatmul.bf16.gmra.mxu0 %v7078
        %v7325 = vpop.f32.mrf.mxu0
        %v7326 = vadd.f32 0.0, %v7325
        %v7327 = vpop.f32.mrf.mxu0
        %v7328 = vadd.f32 0.0, %v7327
        %7329 = vmatmul.bf16.gmra.mxu0 %v7079
        %v7330 = vpop.f32.mrf.mxu0
        %v7331 = vadd.f32 0.0, %v7330
        %v7332 = vpop.f32.mrf.mxu0
        %v7333 = vadd.f32 0.0, %v7332
        %7334 = vmatmul.bf16.gmra.mxu0 %v7080
        %v7335 = vpop.f32.mrf.mxu0
        %v7336 = vadd.f32 0.0, %v7335
        %v7337 = vpop.f32.mrf.mxu0
        %v7338 = vadd.f32 0.0, %v7337
        %7339 = vmatmul.bf16.gmra.mxu0 %v7081
        %v7340 = vpop.f32.mrf.mxu0
        %v7341 = vadd.f32 0.0, %v7340
        %v7342 = vpop.f32.mrf.mxu0
        %v7343 = vadd.f32 0.0, %v7342
        %7344 = vmatmul.bf16.gmra.mxu0 %v7082
        %v7345 = vpop.f32.mrf.mxu0
        %v7346 = vadd.f32 0.0, %v7345
        %v7347 = vpop.f32.mrf.mxu0
        %v7348 = vadd.f32 0.0, %v7347
        %7349 = vmatmul.bf16.gmra.mxu0 %v7083
        %v7350 = vpop.f32.mrf.mxu0
        %v7351 = vadd.f32 0.0, %v7350
        %v7352 = vpop.f32.mrf.mxu0
        %v7353 = vadd.f32 0.0, %v7352
        %7354 = vmatmul.bf16.gmra.mxu0 %v7084
        %v7355 = vpop.f32.mrf.mxu0
        %v7356 = vadd.f32 0.0, %v7355
        %v7357 = vpop.f32.mrf.mxu0
        %v7358 = vadd.f32 0.0, %v7357
        %7359 = vmatmul.bf16.gmra.mxu0 %v7085
        %v7360 = vpop.f32.mrf.mxu0
        %v7361 = vadd.f32 0.0, %v7360
        %v7362 = vpop.f32.mrf.mxu0
        %v7363 = vadd.f32 0.0, %v7362
        %7364 = vmatmul.bf16.gmra.mxu0 %v7086
        %v7365 = vpop.f32.mrf.mxu0
        %v7366 = vadd.f32 0.0, %v7365
        %v7367 = vpop.f32.mrf.mxu0
        %v7368 = vadd.f32 0.0, %v7367
        %7369 = vmatmul.bf16.gmra.mxu0 %v7087
        %v7370 = vpop.f32.mrf.mxu0
        %v7371 = vadd.f32 0.0, %v7370
        %v7372 = vpop.f32.mrf.mxu0
        %v7373 = vadd.f32 0.0, %v7372
        %7374 = vmatmul.bf16.gmra.mxu0 %v7088
        %v7375 = vpop.f32.mrf.mxu0
        %v7376 = vadd.f32 0.0, %v7375
        %v7377 = vpop.f32.mrf.mxu0
        %v7378 = vadd.f32 0.0, %v7377
        %7379 = vmatmul.bf16.gmra.mxu0 %v7089
        %v7380 = vpop.f32.mrf.mxu0
        %v7381 = vadd.f32 0.0, %v7380
        %v7382 = vpop.f32.mrf.mxu0
        %v7383 = vadd.f32 0.0, %v7382
        %7384 = vmatmul.bf16.gmra.mxu0 %v7090
        %v7385 = vpop.f32.mrf.mxu0
        %v7386 = vadd.f32 0.0, %v7385
        %v7387 = vpop.f32.mrf.mxu0
        %v7388 = vadd.f32 0.0, %v7387
        %7389 = vmatmul.bf16.gmra.mxu0 %v7091
        %v7390 = vpop.f32.mrf.mxu0
        %v7391 = vadd.f32 0.0, %v7390
        %v7392 = vpop.f32.mrf.mxu0
        %v7393 = vadd.f32 0.0, %v7392
        %7394 = vmatmul.bf16.gmra.mxu0 %v7092
        %v7395 = vpop.f32.mrf.mxu0
        %v7396 = vadd.f32 0.0, %v7395
        %v7397 = vpop.f32.mrf.mxu0
        %v7398 = vadd.f32 0.0, %v7397
        %7399 = vdwg.mxu0
        %v7400 = vrot.slane %v7331, 4
        %v7401 = vsel %vm405, %v7400, %v7321
        %v7402 = vrot.slane %v7321, 4
        %v7403 = vsel %vm405, %v7331, %v7402
        %v7405 = vunpack.c.l.s4 1983009808
        %v7406 = vunpack.c.0.s8 %v7405
        %v7407 = vperm.slane %v7401, %v7406
        %v7409 = vunpack.c.l.s4 1983009808
        %v7410 = vunpack.c.0.s8 %v7409
        %v7411 = vperm.slane %v7403, %v7410
        %v7412 = vrot.slane %v7336, 4
        %v7413 = vsel %vm405, %v7412, %v7326
        %v7414 = vrot.slane %v7326, 4
        %v7415 = vsel %vm405, %v7336, %v7414
        %v7417 = vunpack.c.l.s4 1983009808
        %v7418 = vunpack.c.0.s8 %v7417
        %v7419 = vperm.slane %v7413, %v7418
        %v7421 = vunpack.c.l.s4 1983009808
        %v7422 = vunpack.c.0.s8 %v7421
        %v7423 = vperm.slane %v7415, %v7422
        %v7424 = vrot.slane %v7351, 4
        %v7425 = vsel %vm405, %v7424, %v7341
        %v7426 = vrot.slane %v7341, 4
        %v7427 = vsel %vm405, %v7351, %v7426
        %v7429 = vunpack.c.l.s4 1983009808
        %v7430 = vunpack.c.0.s8 %v7429
        %v7431 = vperm.slane %v7425, %v7430
        %v7433 = vunpack.c.l.s4 1983009808
        %v7434 = vunpack.c.0.s8 %v7433
        %v7435 = vperm.slane %v7427, %v7434
        %v7436 = vrot.slane %v7356, 4
        %v7437 = vsel %vm405, %v7436, %v7346
        %v7438 = vrot.slane %v7346, 4
        %v7439 = vsel %vm405, %v7356, %v7438
        %v7441 = vunpack.c.l.s4 1983009808
        %v7442 = vunpack.c.0.s8 %v7441
        %v7443 = vperm.slane %v7437, %v7442
        %v7445 = vunpack.c.l.s4 1983009808
        %v7446 = vunpack.c.0.s8 %v7445
        %v7447 = vperm.slane %v7439, %v7446
        %v7448 = vrot.slane %v7419, 4
        %v7449 = vsel %vm405, %v7448, %v7407
        %v7450 = vrot.slane %v7407, 4
        %v7451 = vsel %vm405, %v7419, %v7450
        %v7453 = vunpack.c.l.s4 1934713408
        %v7454 = vunpack.c.0.s8 %v7453
        %v7455 = vperm.slane %v7449, %v7454
        %v7457 = vunpack.c.l.s4 1934713408
        %v7458 = vunpack.c.0.s8 %v7457
        %v7459 = vperm.slane %v7451, %v7458
        %v7460 = vrot.slane %v7423, 4
        %v7461 = vsel %vm405, %v7460, %v7411
        %v7462 = vrot.slane %v7411, 4
        %v7463 = vsel %vm405, %v7423, %v7462
        %v7465 = vunpack.c.l.s4 1934713408
        %v7466 = vunpack.c.0.s8 %v7465
        %v7467 = vperm.slane %v7461, %v7466
        %v7469 = vunpack.c.l.s4 1934713408
        %v7470 = vunpack.c.0.s8 %v7469
        %v7471 = vperm.slane %v7463, %v7470
        %v7472 = vrot.slane %v7443, 4
        %v7473 = vsel %vm405, %v7472, %v7431
        %v7474 = vrot.slane %v7431, 4
        %v7475 = vsel %vm405, %v7443, %v7474
        %v7477 = vunpack.c.l.s4 1934713408
        %v7478 = vunpack.c.0.s8 %v7477
        %v7479 = vperm.slane %v7473, %v7478
        %v7481 = vunpack.c.l.s4 1934713408
        %v7482 = vunpack.c.0.s8 %v7481
        %v7483 = vperm.slane %v7475, %v7482
        %v7484 = vrot.slane %v7447, 4
        %v7485 = vsel %vm405, %v7484, %v7435
        %v7486 = vrot.slane %v7435, 4
        %v7487 = vsel %vm405, %v7447, %v7486
        %v7489 = vunpack.c.l.s4 1934713408
        %v7490 = vunpack.c.0.s8 %v7489
        %v7491 = vperm.slane %v7485, %v7490
        %v7493 = vunpack.c.l.s4 1934713408
        %v7494 = vunpack.c.0.s8 %v7493
        %v7495 = vperm.slane %v7487, %v7494
        %v7496 = vrot.slane %v7479, 4
        %v7497 = vsel %vm405, %v7496, %v7455
        %v7498 = vrot.slane %v7455, 4
        %v7499 = vsel %vm405, %v7479, %v7498
        %v7500 = vrot.slane %v7483, 4
        %v7501 = vsel %vm405, %v7500, %v7459
        %v7502 = vrot.slane %v7459, 4
        %v7503 = vsel %vm405, %v7483, %v7502
        %v7504 = vrot.slane %v7491, 4
        %v7505 = vsel %vm405, %v7504, %v7467
        %v7506 = vrot.slane %v7467, 4
        %v7507 = vsel %vm405, %v7491, %v7506
        %v7508 = vrot.slane %v7495, 4
        %v7509 = vsel %vm405, %v7508, %v7471
        %v7510 = vrot.slane %v7471, 4
        %v7511 = vsel %vm405, %v7495, %v7510
        %v7512 = vrot.slane %v7371, 4
        %v7513 = vsel %vm405, %v7512, %v7361
        %v7514 = vrot.slane %v7361, 4
        %v7515 = vsel %vm405, %v7371, %v7514
        %v7517 = vunpack.c.l.s4 1983009808
        %v7518 = vunpack.c.0.s8 %v7517
        %v7519 = vperm.slane %v7513, %v7518
        %v7521 = vunpack.c.l.s4 1983009808
        %v7522 = vunpack.c.0.s8 %v7521
        %v7523 = vperm.slane %v7515, %v7522
        %v7524 = vrot.slane %v7376, 4
        %v7525 = vsel %vm405, %v7524, %v7366
        %v7526 = vrot.slane %v7366, 4
        %v7527 = vsel %vm405, %v7376, %v7526
        %v7529 = vunpack.c.l.s4 1983009808
        %v7530 = vunpack.c.0.s8 %v7529
        %v7531 = vperm.slane %v7525, %v7530
        %v7533 = vunpack.c.l.s4 1983009808
        %v7534 = vunpack.c.0.s8 %v7533
        %v7535 = vperm.slane %v7527, %v7534
        %v7536 = vrot.slane %v7391, 4
        %v7537 = vsel %vm405, %v7536, %v7381
        %v7538 = vrot.slane %v7381, 4
        %v7539 = vsel %vm405, %v7391, %v7538
        %v7541 = vunpack.c.l.s4 1983009808
        %v7542 = vunpack.c.0.s8 %v7541
        %v7543 = vperm.slane %v7537, %v7542
        %v7545 = vunpack.c.l.s4 1983009808
        %v7546 = vunpack.c.0.s8 %v7545
        %v7547 = vperm.slane %v7539, %v7546
        %v7548 = vrot.slane %v7396, 4
        %v7549 = vsel %vm405, %v7548, %v7386
        %v7550 = vrot.slane %v7386, 4
        %v7551 = vsel %vm405, %v7396, %v7550
        %v7553 = vunpack.c.l.s4 1983009808
        %v7554 = vunpack.c.0.s8 %v7553
        %v7555 = vperm.slane %v7549, %v7554
        %v7557 = vunpack.c.l.s4 1983009808
        %v7558 = vunpack.c.0.s8 %v7557
        %v7559 = vperm.slane %v7551, %v7558
        %v7560 = vrot.slane %v7531, 4
        %v7561 = vsel %vm405, %v7560, %v7519
        %v7562 = vrot.slane %v7519, 4
        %v7563 = vsel %vm405, %v7531, %v7562
        %v7565 = vunpack.c.l.s4 1934713408
        %v7566 = vunpack.c.0.s8 %v7565
        %v7567 = vperm.slane %v7561, %v7566
        %v7569 = vunpack.c.l.s4 1934713408
        %v7570 = vunpack.c.0.s8 %v7569
        %v7571 = vperm.slane %v7563, %v7570
        %v7572 = vrot.slane %v7535, 4
        %v7573 = vsel %vm405, %v7572, %v7523
        %v7574 = vrot.slane %v7523, 4
        %v7575 = vsel %vm405, %v7535, %v7574
        %v7577 = vunpack.c.l.s4 1934713408
        %v7578 = vunpack.c.0.s8 %v7577
        %v7579 = vperm.slane %v7573, %v7578
        %v7581 = vunpack.c.l.s4 1934713408
        %v7582 = vunpack.c.0.s8 %v7581
        %v7583 = vperm.slane %v7575, %v7582
        %v7584 = vrot.slane %v7555, 4
        %v7585 = vsel %vm405, %v7584, %v7543
        %v7586 = vrot.slane %v7543, 4
        %v7587 = vsel %vm405, %v7555, %v7586
        %v7589 = vunpack.c.l.s4 1934713408
        %v7590 = vunpack.c.0.s8 %v7589
        %v7591 = vperm.slane %v7585, %v7590
        %v7593 = vunpack.c.l.s4 1934713408
        %v7594 = vunpack.c.0.s8 %v7593
        %v7595 = vperm.slane %v7587, %v7594
        %v7596 = vrot.slane %v7559, 4
        %v7597 = vsel %vm405, %v7596, %v7547
        %v7598 = vrot.slane %v7547, 4
        %v7599 = vsel %vm405, %v7559, %v7598
        %v7601 = vunpack.c.l.s4 1934713408
        %v7602 = vunpack.c.0.s8 %v7601
        %v7603 = vperm.slane %v7597, %v7602
        %v7605 = vunpack.c.l.s4 1934713408
        %v7606 = vunpack.c.0.s8 %v7605
        %v7607 = vperm.slane %v7599, %v7606
        %v7608 = vrot.slane %v7591, 4
        %v7609 = vsel %vm405, %v7608, %v7567
        %v7610 = vrot.slane %v7567, 4
        %v7611 = vsel %vm405, %v7591, %v7610
        %v7612 = vrot.slane %v7595, 4
        %v7613 = vsel %vm405, %v7612, %v7571
        %v7614 = vrot.slane %v7571, 4
        %v7615 = vsel %vm405, %v7595, %v7614
        %v7616 = vrot.slane %v7603, 4
        %v7617 = vsel %vm405, %v7616, %v7579
        %v7618 = vrot.slane %v7579, 4
        %v7619 = vsel %vm405, %v7603, %v7618
        %v7620 = vrot.slane %v7607, 4
        %v7621 = vsel %vm405, %v7620, %v7583
        %v7622 = vrot.slane %v7583, 4
        %v7623 = vsel %vm405, %v7607, %v7622
        %v7624 = vrot.slane %v7333, 4
        %v7625 = vsel %vm405, %v7624, %v7323
        %v7626 = vrot.slane %v7323, 4
        %v7627 = vsel %vm405, %v7333, %v7626
        %v7629 = vunpack.c.l.s4 1983009808
        %v7630 = vunpack.c.0.s8 %v7629
        %v7631 = vperm.slane %v7625, %v7630
        %v7633 = vunpack.c.l.s4 1983009808
        %v7634 = vunpack.c.0.s8 %v7633
        %v7635 = vperm.slane %v7627, %v7634
        %v7636 = vrot.slane %v7338, 4
        %v7637 = vsel %vm405, %v7636, %v7328
        %v7638 = vrot.slane %v7328, 4
        %v7639 = vsel %vm405, %v7338, %v7638
        %v7641 = vunpack.c.l.s4 1983009808
        %v7642 = vunpack.c.0.s8 %v7641
        %v7643 = vperm.slane %v7637, %v7642
        %v7645 = vunpack.c.l.s4 1983009808
        %v7646 = vunpack.c.0.s8 %v7645
        %v7647 = vperm.slane %v7639, %v7646
        %v7648 = vrot.slane %v7353, 4
        %v7649 = vsel %vm405, %v7648, %v7343
        %v7650 = vrot.slane %v7343, 4
        %v7651 = vsel %vm405, %v7353, %v7650
        %v7653 = vunpack.c.l.s4 1983009808
        %v7654 = vunpack.c.0.s8 %v7653
        %v7655 = vperm.slane %v7649, %v7654
        %v7657 = vunpack.c.l.s4 1983009808
        %v7658 = vunpack.c.0.s8 %v7657
        %v7659 = vperm.slane %v7651, %v7658
        %v7660 = vrot.slane %v7358, 4
        %v7661 = vsel %vm405, %v7660, %v7348
        %v7662 = vrot.slane %v7348, 4
        %v7663 = vsel %vm405, %v7358, %v7662
        %v7665 = vunpack.c.l.s4 1983009808
        %v7666 = vunpack.c.0.s8 %v7665
        %v7667 = vperm.slane %v7661, %v7666
        %v7669 = vunpack.c.l.s4 1983009808
        %v7670 = vunpack.c.0.s8 %v7669
        %v7671 = vperm.slane %v7663, %v7670
        %v7672 = vrot.slane %v7643, 4
        %v7673 = vsel %vm405, %v7672, %v7631
        %v7674 = vrot.slane %v7631, 4
        %v7675 = vsel %vm405, %v7643, %v7674
        %v7677 = vunpack.c.l.s4 1934713408
        %v7678 = vunpack.c.0.s8 %v7677
        %v7679 = vperm.slane %v7673, %v7678
        %v7681 = vunpack.c.l.s4 1934713408
        %v7682 = vunpack.c.0.s8 %v7681
        %v7683 = vperm.slane %v7675, %v7682
        %v7684 = vrot.slane %v7647, 4
        %v7685 = vsel %vm405, %v7684, %v7635
        %v7686 = vrot.slane %v7635, 4
        %v7687 = vsel %vm405, %v7647, %v7686
        %v7689 = vunpack.c.l.s4 1934713408
        %v7690 = vunpack.c.0.s8 %v7689
        %v7691 = vperm.slane %v7685, %v7690
        %v7693 = vunpack.c.l.s4 1934713408
        %v7694 = vunpack.c.0.s8 %v7693
        %v7695 = vperm.slane %v7687, %v7694
        %v7696 = vrot.slane %v7667, 4
        %v7697 = vsel %vm405, %v7696, %v7655
        %v7698 = vrot.slane %v7655, 4
        %v7699 = vsel %vm405, %v7667, %v7698
        %v7701 = vunpack.c.l.s4 1934713408
        %v7702 = vunpack.c.0.s8 %v7701
        %v7703 = vperm.slane %v7697, %v7702
        %v7705 = vunpack.c.l.s4 1934713408
        %v7706 = vunpack.c.0.s8 %v7705
        %v7707 = vperm.slane %v7699, %v7706
        %v7708 = vrot.slane %v7671, 4
        %v7709 = vsel %vm405, %v7708, %v7659
        %v7710 = vrot.slane %v7659, 4
        %v7711 = vsel %vm405, %v7671, %v7710
        %v7713 = vunpack.c.l.s4 1934713408
        %v7714 = vunpack.c.0.s8 %v7713
        %v7715 = vperm.slane %v7709, %v7714
        %v7717 = vunpack.c.l.s4 1934713408
        %v7718 = vunpack.c.0.s8 %v7717
        %v7719 = vperm.slane %v7711, %v7718
        %v7720 = vrot.slane %v7703, 4
        %v7721 = vsel %vm405, %v7720, %v7679
        %v7722 = vrot.slane %v7679, 4
        %v7723 = vsel %vm405, %v7703, %v7722
        %v7724 = vrot.slane %v7707, 4
        %v7725 = vsel %vm405, %v7724, %v7683
        %v7726 = vrot.slane %v7683, 4
        %v7727 = vsel %vm405, %v7707, %v7726
        %v7728 = vrot.slane %v7715, 4
        %v7729 = vsel %vm405, %v7728, %v7691
        %v7730 = vrot.slane %v7691, 4
        %v7731 = vsel %vm405, %v7715, %v7730
        %v7732 = vrot.slane %v7719, 4
        %v7733 = vsel %vm405, %v7732, %v7695
        %v7734 = vrot.slane %v7695, 4
        %v7735 = vsel %vm405, %v7719, %v7734
        %v7736 = vrot.slane %v7373, 4
        %v7737 = vsel %vm405, %v7736, %v7363
        %v7738 = vrot.slane %v7363, 4
        %v7739 = vsel %vm405, %v7373, %v7738
        %v7741 = vunpack.c.l.s4 1983009808
        %v7742 = vunpack.c.0.s8 %v7741
        %v7743 = vperm.slane %v7737, %v7742
        %v7745 = vunpack.c.l.s4 1983009808
        %v7746 = vunpack.c.0.s8 %v7745
        %v7747 = vperm.slane %v7739, %v7746
        %v7748 = vrot.slane %v7378, 4
        %v7749 = vsel %vm405, %v7748, %v7368
        %v7750 = vrot.slane %v7368, 4
        %v7751 = vsel %vm405, %v7378, %v7750
        %v7753 = vunpack.c.l.s4 1983009808
        %v7754 = vunpack.c.0.s8 %v7753
        %v7755 = vperm.slane %v7749, %v7754
        %v7757 = vunpack.c.l.s4 1983009808
        %v7758 = vunpack.c.0.s8 %v7757
        %v7759 = vperm.slane %v7751, %v7758
        %v7760 = vrot.slane %v7393, 4
        %v7761 = vsel %vm405, %v7760, %v7383
        %v7762 = vrot.slane %v7383, 4
        %v7763 = vsel %vm405, %v7393, %v7762
        %v7765 = vunpack.c.l.s4 1983009808
        %v7766 = vunpack.c.0.s8 %v7765
        %v7767 = vperm.slane %v7761, %v7766
        %v7769 = vunpack.c.l.s4 1983009808
        %v7770 = vunpack.c.0.s8 %v7769
        %v7771 = vperm.slane %v7763, %v7770
        %v7772 = vrot.slane %v7398, 4
        %v7773 = vsel %vm405, %v7772, %v7388
        %v7774 = vrot.slane %v7388, 4
        %v7775 = vsel %vm405, %v7398, %v7774
        %v7777 = vunpack.c.l.s4 1983009808
        %v7778 = vunpack.c.0.s8 %v7777
        %v7779 = vperm.slane %v7773, %v7778
        %v7781 = vunpack.c.l.s4 1983009808
        %v7782 = vunpack.c.0.s8 %v7781
        %v7783 = vperm.slane %v7775, %v7782
        %v7784 = vrot.slane %v7755, 4
        %v7785 = vsel %vm405, %v7784, %v7743
        %v7786 = vrot.slane %v7743, 4
        %v7787 = vsel %vm405, %v7755, %v7786
        %v7789 = vunpack.c.l.s4 1934713408
        %v7790 = vunpack.c.0.s8 %v7789
        %v7791 = vperm.slane %v7785, %v7790
        %v7793 = vunpack.c.l.s4 1934713408
        %v7794 = vunpack.c.0.s8 %v7793
        %v7795 = vperm.slane %v7787, %v7794
        %v7796 = vrot.slane %v7759, 4
        %v7797 = vsel %vm405, %v7796, %v7747
        %v7798 = vrot.slane %v7747, 4
        %v7799 = vsel %vm405, %v7759, %v7798
        %v7801 = vunpack.c.l.s4 1934713408
        %v7802 = vunpack.c.0.s8 %v7801
        %v7803 = vperm.slane %v7797, %v7802
        %v7805 = vunpack.c.l.s4 1934713408
        %v7806 = vunpack.c.0.s8 %v7805
        %v7807 = vperm.slane %v7799, %v7806
        %v7808 = vrot.slane %v7779, 4
        %v7809 = vsel %vm405, %v7808, %v7767
        %v7810 = vrot.slane %v7767, 4
        %v7811 = vsel %vm405, %v7779, %v7810
        %v7813 = vunpack.c.l.s4 1934713408
        %v7814 = vunpack.c.0.s8 %v7813
        %v7815 = vperm.slane %v7809, %v7814
        %v7817 = vunpack.c.l.s4 1934713408
        %v7818 = vunpack.c.0.s8 %v7817
        %v7819 = vperm.slane %v7811, %v7818
        %v7820 = vrot.slane %v7783, 4
        %v7821 = vsel %vm405, %v7820, %v7771
        %v7822 = vrot.slane %v7771, 4
        %v7823 = vsel %vm405, %v7783, %v7822
        %v7825 = vunpack.c.l.s4 1934713408
        %v7826 = vunpack.c.0.s8 %v7825
        %v7827 = vperm.slane %v7821, %v7826
        %v7829 = vunpack.c.l.s4 1934713408
        %v7830 = vunpack.c.0.s8 %v7829
        %v7831 = vperm.slane %v7823, %v7830
        %v7832 = vrot.slane %v7815, 4
        %v7833 = vsel %vm405, %v7832, %v7791
        %v7834 = vrot.slane %v7791, 4
        %v7835 = vsel %vm405, %v7815, %v7834
        %v7836 = vrot.slane %v7819, 4
        %v7837 = vsel %vm405, %v7836, %v7795
        %v7838 = vrot.slane %v7795, 4
        %v7839 = vsel %vm405, %v7819, %v7838
        %v7840 = vrot.slane %v7827, 4
        %v7841 = vsel %vm405, %v7840, %v7803
        %v7842 = vrot.slane %v7803, 4
        %v7843 = vsel %vm405, %v7827, %v7842
        %v7844 = vrot.slane %v7831, 4
        %v7845 = vsel %vm405, %v7844, %v7807
        %v7846 = vrot.slane %v7807, 4
        %v7847 = vsel %vm405, %v7831, %v7846
        %v7848 = vadd.f32 %v7167, %v7497
        %v7849 = vadd.f32 %v7169, %v7609
        %v7850 = vadd.f32 %v7172, %v7499
        %v7851 = vadd.f32 %v7174, %v7611
        %v7852 = vadd.f32 %v7177, %v7501
        %v7853 = vadd.f32 %v7179, %v7613
        %v7854 = vadd.f32 %v7182, %v7503
        %v7855 = vadd.f32 %v7184, %v7615
        %v7856 = vadd.f32 %v7187, %v7505
        %v7857 = vadd.f32 %v7189, %v7617
        %v7858 = vadd.f32 %v7192, %v7507
        %v7859 = vadd.f32 %v7194, %v7619
        %v7860 = vadd.f32 %v7197, %v7509
        %v7861 = vadd.f32 %v7199, %v7621
        %v7862 = vadd.f32 %v7202, %v7511
        %v7863 = vadd.f32 %v7204, %v7623
        %v7864 = vadd.f32 %v7207, %v7721
        %v7865 = vadd.f32 %v7209, %v7833
        %v7866 = vadd.f32 %v7212, %v7723
        %v7867 = vadd.f32 %v7214, %v7835
        %v7868 = vadd.f32 %v7217, %v7725
        %v7869 = vadd.f32 %v7219, %v7837
        %v7870 = vadd.f32 %v7222, %v7727
        %v7871 = vadd.f32 %v7224, %v7839
        %v7872 = vadd.f32 %v7227, %v7729
        %v7873 = vadd.f32 %v7229, %v7841
        %v7874 = vadd.f32 %v7232, %v7731
        %v7875 = vadd.f32 %v7234, %v7843
        %v7876 = vadd.f32 %v7237, %v7733
        %v7877 = vadd.f32 %v7239, %v7845
        %v7878 = vadd.f32 %v7242, %v7735
        %v7879 = vadd.f32 %v7244, %v7847
        %v7880 = vld [vmem:[%s5] sm:$0x1]
        %v7882 = vperm.slane %v7880, 0
        %v7884 = vadd.f32 %v7848, %v7882
        %v7885 = vadd.f32 %v7849, %v7882
        %v7886 = vadd.f32 %v7850, %v7882
        %v7887 = vadd.f32 %v7851, %v7882
        %v7888 = vadd.f32 %v7852, %v7882
        %v7889 = vadd.f32 %v7853, %v7882
        %v7890 = vadd.f32 %v7854, %v7882
        %v7891 = vadd.f32 %v7855, %v7882
        %v7892 = vadd.f32 %v7856, %v7882
        %v7893 = vadd.f32 %v7857, %v7882
        %v7894 = vadd.f32 %v7858, %v7882
        %v7895 = vadd.f32 %v7859, %v7882
        %v7896 = vadd.f32 %v7860, %v7882
        %v7897 = vadd.f32 %v7861, %v7882
        %v7898 = vadd.f32 %v7862, %v7882
        %v7899 = vadd.f32 %v7863, %v7882
        %v7900 = vadd.f32 %v7864, %v7882
        %v7901 = vadd.f32 %v7865, %v7882
        %v7902 = vadd.f32 %v7866, %v7882
        %v7903 = vadd.f32 %v7867, %v7882
        %v7904 = vadd.f32 %v7868, %v7882
        %v7905 = vadd.f32 %v7869, %v7882
        %v7906 = vadd.f32 %v7870, %v7882
        %v7907 = vadd.f32 %v7871, %v7882
        %v7908 = vadd.f32 %v7872, %v7882
        %v7909 = vadd.f32 %v7873, %v7882
        %v7910 = vadd.f32 %v7874, %v7882
        %v7911 = vadd.f32 %v7875, %v7882
        %v7912 = vadd.f32 %v7876, %v7882
        %v7913 = vadd.f32 %v7877, %v7882
        %v7914 = vadd.f32 %v7878, %v7882
        %v7915 = vadd.f32 %v7879, %v7882
        %v7916 = vmax.f32 %v7884, 0.0
        %v7917 = vmax.f32 %v7885, 0.0
        %v7918 = vmax.f32 %v7886, 0.0
        %v7919 = vmax.f32 %v7887, 0.0
        %v7920 = vmax.f32 %v7888, 0.0
        %v7921 = vmax.f32 %v7889, 0.0
        %v7922 = vmax.f32 %v7890, 0.0
        %v7923 = vmax.f32 %v7891, 0.0
        %v7924 = vmax.f32 %v7892, 0.0
        %v7925 = vmax.f32 %v7893, 0.0
        %v7926 = vmax.f32 %v7894, 0.0
        %v7927 = vmax.f32 %v7895, 0.0
        %v7928 = vmax.f32 %v7896, 0.0
        %v7929 = vmax.f32 %v7897, 0.0
        %v7930 = vmax.f32 %v7898, 0.0
        %v7931 = vmax.f32 %v7899, 0.0
        %v7932 = vmax.f32 %v7900, 0.0
        %v7933 = vmax.f32 %v7901, 0.0
        %v7934 = vmax.f32 %v7902, 0.0
        %v7935 = vmax.f32 %v7903, 0.0
        %v7936 = vmax.f32 %v7904, 0.0
        %v7937 = vmax.f32 %v7905, 0.0
        %v7938 = vmax.f32 %v7906, 0.0
        %v7939 = vmax.f32 %v7907, 0.0
        %v7940 = vmax.f32 %v7908, 0.0
        %v7941 = vmax.f32 %v7909, 0.0
        %v7942 = vmax.f32 %v7910, 0.0
        %v7943 = vmax.f32 %v7911, 0.0
        %v7944 = vmax.f32 %v7912, 0.0
        %v7945 = vmax.f32 %v7913, 0.0
        %v7946 = vmax.f32 %v7914, 0.0
        %v7947 = vmax.f32 %v7915, 0.0
        %vm7948 = vcmask 130048
        %7949 = vst.msk [vmem:[%s261] sm:$0xff] %vm7948, %v7916
        %7950 = vst.msk [vmem:[%s261 + $0x10] sm:$0xff] %vm7948, %v7917
        %7953 = vrot.lane.b32.xlu0 %v7918, 16
        %v7954 = vpop.permute.xlu0 %7953
        %7955 = vrot.lane.b32.xlu0 %v7919, 16
        %v7956 = vpop.permute.xlu0 %7955
        %vm7959 = vcmask 261248
        %7960 = vst.msk [vmem:[%s261] sm:$0xff] %vm7959, %v7954
        %7961 = vst.msk [vmem:[%s261 + $0x10] sm:$0xff] %vm7959, %v7956
        %7964 = vrot.lane.b32.xlu0 %v7920, 32
        %v7965 = vpop.permute.xlu0 %7964
        %7966 = vrot.lane.b32.xlu0 %v7921, 32
        %v7967 = vpop.permute.xlu0 %7966
        %vm7970 = vcmask 392448
        %7971 = vst.msk [vmem:[%s261] sm:$0xff] %vm7970, %v7965
        %7972 = vst.msk [vmem:[%s261 + $0x10] sm:$0xff] %vm7970, %v7967
        %7975 = vrot.lane.b32.xlu0 %v7922, 48
        %v7976 = vpop.permute.xlu0 %7975
        %7977 = vrot.lane.b32.xlu0 %v7923, 48
        %v7978 = vpop.permute.xlu0 %7977
        %vm7981 = vcmask 523648
        %7982 = vst.msk [vmem:[%s261] sm:$0xff] %vm7981, %v7976
        %7983 = vst.msk [vmem:[%s261 + $0x10] sm:$0xff] %vm7981, %v7978
        %7986 = vrot.lane.b32.xlu0 %v7924, 64
        %v7987 = vpop.permute.xlu0 %7986
        %7988 = vrot.lane.b32.xlu0 %v7925, 64
        %v7989 = vpop.permute.xlu0 %7988
        %vm7992 = vcmask 654848
        %7993 = vst.msk [vmem:[%s261] sm:$0xff] %vm7992, %v7987
        %7994 = vst.msk [vmem:[%s261 + $0x10] sm:$0xff] %vm7992, %v7989
        %7997 = vrot.lane.b32.xlu0 %v7926, 80
        %v7998 = vpop.permute.xlu0 %7997
        %7999 = vrot.lane.b32.xlu0 %v7927, 80
        %v8000 = vpop.permute.xlu0 %7999
        %vm8003 = vcmask 786048
        %8004 = vst.msk [vmem:[%s261] sm:$0xff] %vm8003, %v7998
        %8005 = vst.msk [vmem:[%s261 + $0x10] sm:$0xff] %vm8003, %v8000
        %8008 = vrot.lane.b32.xlu0 %v7928, 96
        %v8009 = vpop.permute.xlu0 %8008
        %8010 = vrot.lane.b32.xlu0 %v7929, 96
        %v8011 = vpop.permute.xlu0 %8010
        %vm8014 = vcmask 917248
        %8015 = vst.msk [vmem:[%s261] sm:$0xff] %vm8014, %v8009
        %8016 = vst.msk [vmem:[%s261 + $0x10] sm:$0xff] %vm8014, %v8011
        %8019 = vrot.lane.b32.xlu0 %v7930, 112
        %v8020 = vpop.permute.xlu0 %8019
        %8021 = vrot.lane.b32.xlu0 %v7931, 112
        %v8022 = vpop.permute.xlu0 %8021
        %vm8025 = vcmask 1048448
        %8026 = vst.msk [vmem:[%s261] sm:$0xff] %vm8025, %v8020
        %8027 = vst.msk [vmem:[%s261 + $0x10] sm:$0xff] %vm8025, %v8022
        %8028 = vst.msk [vmem:[%s261 + $0x8] sm:$0xff] %vm7948, %v7932
        %8029 = vst.msk [vmem:[%s261 + $0x18] sm:$0xff] %vm7948, %v7933
        %8032 = vrot.lane.b32.xlu0 %v7934, 16
        %v8033 = vpop.permute.xlu0 %8032
        %8034 = vrot.lane.b32.xlu0 %v7935, 16
        %v8035 = vpop.permute.xlu0 %8034
        %8038 = vst.msk [vmem:[%s261 + $0x8] sm:$0xff] %vm7959, %v8033
        %8039 = vst.msk [vmem:[%s261 + $0x18] sm:$0xff] %vm7959, %v8035
        %8042 = vrot.lane.b32.xlu0 %v7936, 32
        %v8043 = vpop.permute.xlu0 %8042
        %8044 = vrot.lane.b32.xlu0 %v7937, 32
        %v8045 = vpop.permute.xlu0 %8044
        %8048 = vst.msk [vmem:[%s261 + $0x8] sm:$0xff] %vm7970, %v8043
        %8049 = vst.msk [vmem:[%s261 + $0x18] sm:$0xff] %vm7970, %v8045
        %8052 = vrot.lane.b32.xlu0 %v7938, 48
        %v8053 = vpop.permute.xlu0 %8052
        %8054 = vrot.lane.b32.xlu0 %v7939, 48
        %v8055 = vpop.permute.xlu0 %8054
        %8058 = vst.msk [vmem:[%s261 + $0x8] sm:$0xff] %vm7981, %v8053
        %8059 = vst.msk [vmem:[%s261 + $0x18] sm:$0xff] %vm7981, %v8055
        %8062 = vrot.lane.b32.xlu0 %v7940, 64
        %v8063 = vpop.permute.xlu0 %8062
        %8064 = vrot.lane.b32.xlu0 %v7941, 64
        %v8065 = vpop.permute.xlu0 %8064
        %8068 = vst.msk [vmem:[%s261 + $0x8] sm:$0xff] %vm7992, %v8063
        %8069 = vst.msk [vmem:[%s261 + $0x18] sm:$0xff] %vm7992, %v8065
        %8072 = vrot.lane.b32.xlu0 %v7942, 80
        %v8073 = vpop.permute.xlu0 %8072
        %8074 = vrot.lane.b32.xlu0 %v7943, 80
        %v8075 = vpop.permute.xlu0 %8074
        %8078 = vst.msk [vmem:[%s261 + $0x8] sm:$0xff] %vm8003, %v8073
        %8079 = vst.msk [vmem:[%s261 + $0x18] sm:$0xff] %vm8003, %v8075
        %8082 = vrot.lane.b32.xlu0 %v7944, 96
        %v8083 = vpop.permute.xlu0 %8082
        %8084 = vrot.lane.b32.xlu0 %v7945, 96
        %v8085 = vpop.permute.xlu0 %8084
        %8088 = vst.msk [vmem:[%s261 + $0x8] sm:$0xff] %vm8014, %v8083
        %8089 = vst.msk [vmem:[%s261 + $0x18] sm:$0xff] %vm8014, %v8085
        %8092 = vrot.lane.b32.xlu0 %v7946, 112
        %v8093 = vpop.permute.xlu0 %8092
        %8094 = vrot.lane.b32.xlu0 %v7947, 112
        %v8095 = vpop.permute.xlu0 %8094
        %8098 = vst.msk [vmem:[%s261 + $0x8] sm:$0xff] %vm8025, %v8093
        %8099 = vst.msk [vmem:[%s261 + $0x18] sm:$0xff] %vm8025, %v8095
        %s8100 = sand.u32 %s160, 1
        %s8101 = scalar_lea.sflag [#allocation6], %s8100
        %s8102 = sand.u32 %s160, 1
        %s8103 = smul.addr %s8102, 32
        %s8104 = scalar_lea.vmem [#allocation7], %s8103
        // Predicated region
        $region49: #{tpu_custom_call.1} parent=43 // pred_check
          %p8105 = pneg %p170
        $region50: #{tpu_custom_call.1} parent=43 // pred_check_branch
          %8107 = sbr.rel (%p8105) target = $region52
        $region51: #{tpu_custom_call.1} parent=43 // pred_region
          %8109 = vsyncadd %s8101, 0
          %s8110 = smul.addr %s21, 4
          %s8111 = smul.addr %s8110, 8
          %s8112 = scalar_lea.hbm %s6, %s8111
          %s8113 = sshll.u32 %s8104, 4
          %s8114 = int_to_ptr.vmem [resolvable:$true] %s8113
          %s8115 = sshll.u32 %s8112, 4
          %s8116 = int_to_ptr.hbm [resolvable:$true] %s8115
          %8121 = dma.vmem_to_hbm [thread:$0]  %s8114, 512, %s8116, %s8101, 256, 256, 16
        $region52: #{tpu_custom_call.1} parent=43 // pred_fallthru
          _
      $region44: #{tpu_custom_call.1} parent=5 // pred_fallthru
        _
      %p8122 = scmp.le.s32.totalorder 2, %s16
      // Predicated region
      $region53: #{tpu_custom_call.1} parent=5 // pred_check
        %p8123 = pneg %p8122
      $region54: #{tpu_custom_call.1} parent=5 // pred_check_branch
        %8125 = sbr.rel (%p8123) target = $region56
      $region55: #{tpu_custom_call.1} parent=5 // pred_region
        %s8126 = ssub.s32 %s16, 2
        // Predicated region
        $region57: #{tpu_custom_call.1} parent=55 // pred_check
          %p8127 = pneg %p176
        $region58: #{tpu_custom_call.1} parent=55 // pred_check_branch
          %8129 = sbr.rel (%p8127) target = $region60
        $region59: #{tpu_custom_call.1} parent=55 // pred_region
          %s8130 = sand.u32 %s161, 1
          %s8131 = scalar_lea.sflag [#allocation6], %s8130
          %s8132 = sand.u32 %s161, 1
          %s8133 = smul.addr %s8132, 32
          %s8134 = scalar_lea.vmem [#allocation7], %s8133
          %8136 = dma.done %s8131, 512
        $region60: #{tpu_custom_call.1} parent=55 // pred_fallthru
          _
      $region56: #{tpu_custom_call.1} parent=5 // pred_fallthru
        _
    $region6: #{tpu_custom_call.1} parent=1 // loop_footer
      %s20 = sadd.s32 1, %s16
    $region7: #{tpu_custom_call.1} parent=1 // loop_footer_branch
      %15 = sbr.rel target = $region3
    $region8: #{tpu_custom_call.1} parent=1 // loop_exit
      _
    %8137 = vsyncpa [#allocation5], 1
    %s8138 = scalar_lea.sflag [#allocation5], 1
    %8139 = vsyncpa %s8138, 1
    %8140 = vsyncpa [#allocation6], 1
    %s8141 = scalar_lea.sflag [#allocation6], 1
    %8142 = vsyncpa %s8141, 1

</llo_original>
